<compile_context>
chip_gen: v7x
topology: tpu7x:2x2x1
jax: 0.10.0
libtpu: 0.0.40
codegen_flags: <defaults>
</compile_context>

<pallas_src>
import functools

import jax
import jax.numpy as jnp
from jax.experimental import pallas as pl
from jax.experimental.pallas import tpu as pltpu

BN_EPS = 1e-3


# ---------------------------------------------------------------------------
# Fused Block8 Pallas kernel (one grid step == one image of the batch)
# ---------------------------------------------------------------------------
def _block8_kernel(x_ref,                       # (HW, 2080) f32
                   wb0_ref, sb0_ref, bb0_ref,   # branch0   1x1: (2080,192) bf16, (1,192) f32 x2
                   wb1_ref, sb1_ref, bb1_ref,   # branch1.0 1x1: (2080,192) bf16, (1,192) f32 x2
                   sh_ref,                      # (4, HW, HW) bf16 shift matrices
                   w13_ref, s13_ref, b13_ref,   # branch1.1 1x3: (3,192,224) bf16, (1,224) f32 x2
                   w31_ref, s31_ref, b31_ref,   # branch1.2 3x1: (3,224,256) bf16, (1,256) f32 x2
                   wf0_ref, wf1_ref, bfin_ref,  # final conv: (192,2080),(256,2080) bf16, (1,2080) f32
                   o_ref,                       # (HW, 2080) f32
                   *, scale, apply_relu):
    f32 = jnp.float32
    bf16 = jnp.bfloat16

    x = x_ref[...]                 # f32 residual (exact)
    xb = x.astype(bf16)            # bf16 matmul operand

    # --- branch0 and branch1.0 : 1x1 convs sharing the VMEM-resident input ---
    x0 = jnp.maximum(
        jnp.dot(xb, wb0_ref[...], preferred_element_type=f32) * sb0_ref[...] + bb0_ref[...],
        0.0)                                                         # (HW, 192)
    y1 = jnp.maximum(
        jnp.dot(xb, wb1_ref[...], preferred_element_type=f32) * sb1_ref[...] + bb1_ref[...],
        0.0)                                                         # (HW, 192)
    x0b = x0.astype(bf16)
    y1b = y1.astype(bf16)

    # --- branch1.1 : (1,3) conv, padding (0,1) -> 3 shifted accumulating matmuls ---
    zl = jnp.dot(sh_ref[0], y1b, preferred_element_type=f32).astype(bf16)   # value at (h, w-1)
    zr = jnp.dot(sh_ref[1], y1b, preferred_element_type=f32).astype(bf16)   # value at (h, w+1)
    acc = jnp.dot(zl, w13_ref[0], preferred_element_type=f32)
    acc = acc + jnp.dot(y1b, w13_ref[1], preferred_element_type=f32)
    acc = acc + jnp.dot(zr, w13_ref[2], preferred_element_type=f32)
    y2 = jnp.maximum(acc * s13_ref[...] + b13_ref[...], 0.0)                # (HW, 224)
    y2b = y2.astype(bf16)

    # --- branch1.2 : (3,1) conv, padding (1,0) ---
    zu = jnp.dot(sh_ref[2], y2b, preferred_element_type=f32).astype(bf16)   # value at (h-1, w)
    zd = jnp.dot(sh_ref[3], y2b, preferred_element_type=f32).astype(bf16)   # value at (h+1, w)
    acc = jnp.dot(zu, w31_ref[0], preferred_element_type=f32)
    acc = acc + jnp.dot(y2b, w31_ref[1], preferred_element_type=f32)
    acc = acc + jnp.dot(zd, w31_ref[2], preferred_element_type=f32)
    x1 = jnp.maximum(acc * s31_ref[...] + b31_ref[...], 0.0)                # (HW, 256)
    x1b = x1.astype(bf16)

    # --- final 1x1 conv on the (virtual) concat [x0 | x1], bias, *scale, +residual ---
    out = jnp.dot(x0b, wf0_ref[...], preferred_element_type=f32)
    out = out + jnp.dot(x1b, wf1_ref[...], preferred_element_type=f32)
    out = (out + bfin_ref[...]) * scale + x
    if apply_relu:
        out = jnp.maximum(out, 0.0)
    o_ref[...] = out.astype(o_ref.dtype)


# ---------------------------------------------------------------------------
# Small plain-JAX helpers (run once per call in the wrapper)
# ---------------------------------------------------------------------------
def _make_shift_mats(H, W):
    """(4, HW, HW) one-hot shift matrices: (h,w-1), (h,w+1), (h-1,w), (h+1,w),
    with zero rows where the neighbour falls outside the (zero-padded) image."""
    HW = H * W
    idx = jnp.arange(HW)
    h = idx // W
    w = idx % W

    def one(dh, dw):
        th = h + dh
        tw = w + dw
        valid = (th >= 0) & (th < H) & (tw >= 0) & (tw < W)
        src = th * W + tw
        m = (idx[None, :] == src[:, None]) & valid[:, None]
        return m.astype(jnp.bfloat16)

    return jnp.stack([one(0, -1), one(0, 1), one(-1, 0), one(1, 0)])


def conv_w_to_mat(w_oihw):
    """PyTorch OIHW conv weight -> (kh*kw*Cin, Cout) matmul weight."""
    O, C, kh, kw = w_oihw.shape
    return jnp.transpose(w_oihw, (2, 3, 1, 0)).reshape(kh * kw * C, O)


def _fold_bn(gamma, beta, mean, var, eps=BN_EPS):
    s = gamma / jnp.sqrt(var + eps)
    return s, beta - mean * s


# ---------------------------------------------------------------------------
# Parameter construction (deterministic, synthetic)
# ---------------------------------------------------------------------------
def init_basic_conv2d(key, cin, cout, kh, kw):
    k1, k2, k3, k4, k5 = jax.random.split(key, 5)
    fan_in = cin * kh * kw
    w = jax.random.normal(k1, (cout, cin, kh, kw), jnp.float32) / jnp.sqrt(float(fan_in))
    gamma = 1.0 + 0.1 * jax.random.normal(k2, (cout,), jnp.float32)
    beta = 0.1 * jax.random.normal(k3, (cout,), jnp.float32)
    mean = 0.1 * jax.random.normal(k4, (cout,), jnp.float32)
    var = jnp.abs(jax.random.normal(k5, (cout,), jnp.float32)) + 0.5
    s, b = _fold_bn(gamma, beta, mean, var)
    return {"w": w, "s": s, "b": b, "w2": conv_w_to_mat(w)}


def init_block8_params(key):
    k0, k1, k2, k3, k4, k5 = jax.random.split(key, 6)
    w_final = jax.random.normal(k4, (2080, 448, 1, 1), jnp.float32) / jnp.sqrt(448.0)
    bias_final = 0.05 * jax.random.normal(k5, (2080,), jnp.float32)
    return {
        "branch0": init_basic_conv2d(k0, 2080, 192, 1, 1),
        "branch1_0": init_basic_conv2d(k1, 2080, 192, 1, 1),
        "branch1_1": init_basic_conv2d(k2, 192, 224, 1, 3),
        "branch1_2": init_basic_conv2d(k3, 224, 256, 3, 1),
        "conv2d": {"w": w_final, "bias": bias_final, "w2": conv_w_to_mat(w_final)},
    }


# ---------------------------------------------------------------------------
# Block8 forward: one fused pallas_call
# ---------------------------------------------------------------------------
def block8_forward(params, x_nchw, *, scale=1.0, noReLU=False):
    B, C, H, W = x_nchw.shape
    HW = H * W
    x = jnp.transpose(x_nchw, (0, 2, 3, 1)).reshape(B, HW, C)   # NHWC, flattened spatially

    b0, b1_0 = params["branch0"], params["branch1_0"]
    b1_1, b1_2 = params["branch1_1"], params["branch1_2"]
    fin = params["conv2d"]
    c0 = b0["w2"].shape[1]      # 192
    c1 = b1_0["w2"].shape[1]    # 192
    c2 = b1_1["w2"].shape[1]    # 224
    c3 = b1_2["w2"].shape[1]    # 256

    bf16 = jnp.bfloat16
    wb0 = b0["w2"].astype(bf16)
    sb0 = b0["s"].reshape(1, c0)
    bb0 = b0["b"].reshape(1, c0)
    wb1 = b1_0["w2"].astype(bf16)
    sb1 = b1_0["s"].reshape(1, c1)
    bb1 = b1_0["b"].reshape(1, c1)
    w13 = b1_1["w2"].reshape(3, c1, c2).astype(bf16)     # per-tap (kw) weights
    s13 = b1_1["s"].reshape(1, c2)
    b13 = b1_1["b"].reshape(1, c2)
    w31 = b1_2["w2"].reshape(3, c2, c3).astype(bf16)     # per-tap (kh) weights
    s31 = b1_2["s"].reshape(1, c3)
    b31 = b1_2["b"].reshape(1, c3)
    wf = fin["w2"]                                       # (448, 2080)
    wf0 = wf[:c0].astype(bf16)                           # rows for x0 (branch0)
    wf1 = wf[c0:].astype(bf16)                           # rows for x1 (branch1)
    bfin = fin["bias"].reshape(1, C)
    shifts = _make_shift_mats(H, W)                      # (4, HW, HW) bf16

    kernel = functools.partial(_block8_kernel, scale=scale, apply_relu=not noReLU)

    full2 = lambda b: (0, 0)
    full3 = lambda b: (0, 0, 0)

    out = pl.pallas_call(
        kernel,
        out_shape=jax.ShapeDtypeStruct((B, HW, C), x_nchw.dtype),
        grid=(B,),
        in_specs=[
            pl.BlockSpec((None, HW, C), lambda b: (b, 0, 0)),      # x (per-image block)
            pl.BlockSpec(wb0.shape, full2), pl.BlockSpec(sb0.shape, full2), pl.BlockSpec(bb0.shape, full2),
            pl.BlockSpec(wb1.shape, full2), pl.BlockSpec(sb1.shape, full2), pl.BlockSpec(bb1.shape, full2),
            pl.BlockSpec(shifts.shape, full3),
            pl.BlockSpec(w13.shape, full3), pl.BlockSpec(s13.shape, full2), pl.BlockSpec(b13.shape, full2),
            pl.BlockSpec(w31.shape, full3), pl.BlockSpec(s31.shape, full2), pl.BlockSpec(b31.shape, full2),
            pl.BlockSpec(wf0.shape, full2), pl.BlockSpec(wf1.shape, full2),
            pl.BlockSpec(bfin.shape, full2),
        ],
        out_specs=pl.BlockSpec((None, HW, C), lambda b: (b, 0, 0)),
        compiler_params=pltpu.CompilerParams(
            dimension_semantics=("parallel",),
            vmem_limit_bytes=48 * 1024 * 1024,
        ),
    )(x, wb0, sb0, bb0, wb1, sb1, bb1, shifts,
      w13, s13, b13, w31, s31, b31, wf0, wf1, bfin)

    return jnp.transpose(out.reshape(B, H, W, C), (0, 3, 1, 2))


# ---------------------------------------------------------------------------
# Pure-JAX reference (correctness check only)
# ---------------------------------------------------------------------------
def _conv_ref(x_nhwc, w_oihw, padding):
    k = jnp.transpose(w_oihw, (2, 3, 1, 0))  # OIHW -> HWIO
    return jax.lax.conv_general_dilated(
        x_nhwc, k, (1, 1), padding,
        dimension_numbers=("NHWC", "HWIO", "NHWC"),
        precision=jax.lax.Precision.HIGHEST,
    )


def _basic_ref(x, p, padding):
    y = _conv_ref(x, p["w"], padding)
    return jnp.maximum(y * p["s"] + p["b"], 0.0)


def block8_ref(params, x_nchw, *, scale=1.0, noReLU=False):
    x = jnp.transpose(x_nchw, (0, 2, 3, 1))
    x0 = _basic_ref(x, params["branch0"], [(0, 0), (0, 0)])
    y = _basic_ref(x, params["branch1_0"], [(0, 0), (0, 0)])
    y = _basic_ref(y, params["branch1_1"], [(0, 0), (1, 1)])
    x1 = _basic_ref(y, params["branch1_2"], [(1, 1), (0, 0)])
    cat = jnp.concatenate([x0, x1], axis=-1)
    out = _conv_ref(cat, params["conv2d"]["w"], [(0, 0), (0, 0)]) + params["conv2d"]["bias"]
    out = out * scale + x
    if not noReLU:
        out = jnp.maximum(out, 0.0)
    return jnp.transpose(out, (0, 3, 1, 2))


# ---------------------------------------------------------------------------
if __name__ == "__main__":
    key = jax.random.PRNGKey(0)
    k_x, k_p = jax.random.split(key)

    # Channel count is fixed by Block8 (2080); batch/spatial kept small
    # (8x8 is the native spatial size for Block8 in Inception-ResNet-v2).
    B, C, H, W = 2, 2080, 8, 8
    x = jax.random.normal(k_x, (B, C, H, W), jnp.float32)
    params = init_block8_params(k_p)

    fwd = jax.jit(functools.partial(block8_forward, scale=0.2, noReLU=False))
    out = jax.block_until_ready(fwd(params, x))

    ref = jax.block_until_ready(block8_ref(params, x, scale=0.2, noReLU=False))

    assert out.shape == x.shape and out.dtype == jnp.float32
    max_err = float(jnp.max(jnp.abs(out - ref)))
    denom = float(jnp.max(jnp.abs(ref))) + 1e-6
    # bf16 matmul operands with f32 accumulation / f32 epilogue: comfortably
    # inside a 2e-2 max-error-over-max-ref tolerance.
    if max_err / denom < 2e-2:
        print("KERNEL_OK")
    else:
        print(f"MISMATCH max_abs_err={max_err} max_ref={denom}")
</pallas_src>

<mosaic_0001>
module attributes {stable_mosaic.version = 11 : i64} {
  func.func @_block8_kernel(%arg0: i32, %arg1: memref<1x64x2080xf32, #tpu.memory_space<vmem>>, %arg2: memref<2080x192xbf16, #tpu.memory_space<vmem>>, %arg3: memref<1x192xf32, #tpu.memory_space<vmem>>, %arg4: memref<1x192xf32, #tpu.memory_space<vmem>>, %arg5: memref<2080x192xbf16, #tpu.memory_space<vmem>>, %arg6: memref<1x192xf32, #tpu.memory_space<vmem>>, %arg7: memref<1x192xf32, #tpu.memory_space<vmem>>, %arg8: memref<4x64x64xbf16, #tpu.memory_space<vmem>>, %arg9: memref<3x192x224xbf16, #tpu.memory_space<vmem>>, %arg10: memref<1x224xf32, #tpu.memory_space<vmem>>, %arg11: memref<1x224xf32, #tpu.memory_space<vmem>>, %arg12: memref<3x224x256xbf16, #tpu.memory_space<vmem>>, %arg13: memref<1x256xf32, #tpu.memory_space<vmem>>, %arg14: memref<1x256xf32, #tpu.memory_space<vmem>>, %arg15: memref<192x2080xbf16, #tpu.memory_space<vmem>>, %arg16: memref<256x2080xbf16, #tpu.memory_space<vmem>>, %arg17: memref<1x2080xf32, #tpu.memory_space<vmem>>, %arg18: memref<1x64x2080xf32, #tpu.memory_space<vmem>>) attributes {dimension_semantics = [#tpu.dimension_semantics<parallel>], iteration_bounds = array<i64: 2>, scalar_prefetch = 0 : i64, scratch_operands = 0 : i64, tpu.core_type = #tpu.core_type<tc>, window_params = [{transform_indices = @transform_0, window_bounds = array<i64: 1, 64, 2080>}, {pipeline_mode = #tpu.pipeline_mode<synchronous>, transform_indices = @transform_1, window_bounds = array<i64: 2080, 192>}, {pipeline_mode = #tpu.pipeline_mode<synchronous>, transform_indices = @transform_2, window_bounds = array<i64: 1, 192>}, {pipeline_mode = #tpu.pipeline_mode<synchronous>, transform_indices = @transform_3, window_bounds = array<i64: 1, 192>}, {pipeline_mode = #tpu.pipeline_mode<synchronous>, transform_indices = @transform_4, window_bounds = array<i64: 2080, 192>}, {pipeline_mode = #tpu.pipeline_mode<synchronous>, transform_indices = @transform_5, window_bounds = array<i64: 1, 192>}, {pipeline_mode = #tpu.pipeline_mode<synchronous>, transform_indices = @transform_6, window_bounds = array<i64: 1, 192>}, {pipeline_mode = #tpu.pipeline_mode<synchronous>, transform_indices = @transform_7, window_bounds = array<i64: 4, 64, 64>}, {pipeline_mode = #tpu.pipeline_mode<synchronous>, transform_indices = @transform_8, window_bounds = array<i64: 3, 192, 224>}, {pipeline_mode = #tpu.pipeline_mode<synchronous>, transform_indices = @transform_9, window_bounds = array<i64: 1, 224>}, {pipeline_mode = #tpu.pipeline_mode<synchronous>, transform_indices = @transform_10, window_bounds = array<i64: 1, 224>}, {pipeline_mode = #tpu.pipeline_mode<synchronous>, transform_indices = @transform_11, window_bounds = array<i64: 3, 224, 256>}, {pipeline_mode = #tpu.pipeline_mode<synchronous>, transform_indices = @transform_12, window_bounds = array<i64: 1, 256>}, {pipeline_mode = #tpu.pipeline_mode<synchronous>, transform_indices = @transform_13, window_bounds = array<i64: 1, 256>}, {pipeline_mode = #tpu.pipeline_mode<synchronous>, transform_indices = @transform_14, window_bounds = array<i64: 192, 2080>}, {pipeline_mode = #tpu.pipeline_mode<synchronous>, transform_indices = @transform_15, window_bounds = array<i64: 256, 2080>}, {pipeline_mode = #tpu.pipeline_mode<synchronous>, transform_indices = @transform_16, window_bounds = array<i64: 1, 2080>}, {transform_indices = @transform_17, window_bounds = array<i64: 1, 64, 2080>}]} {
    %c0 = arith.constant 0 : index
    %c0_0 = arith.constant 0 : index
    %c0_1 = arith.constant 0 : index
    %0 = vector.load %arg1[%c0, %c0_0, %c0_1] : memref<1x64x2080xf32, #tpu.memory_space<vmem>>, vector<1x64x2080xf32>
    %1 = vector.shape_cast %0 : vector<1x64x2080xf32> to vector<64x2080xf32>
    %2 = arith.truncf %1 : vector<64x2080xf32> to vector<64x2080xbf16>
    %c0_2 = arith.constant 0 : index
    %c0_3 = arith.constant 0 : index
    %3 = vector.load %arg2[%c0_2, %c0_3] : memref<2080x192xbf16, #tpu.memory_space<vmem>>, vector<2080x192xbf16>
    %cst = arith.constant dense<0.000000e+00> : vector<64x192xf32>
    %4 = tpu.matmul %2, %3, %cst {dimension_numbers = #tpu.dot_dimension_numbers<[1], [0], [0], [1], [0, 0, 1, 1], [], []>} : vector<64x2080xbf16>, vector<2080x192xbf16>, vector<64x192xf32> -> vector<64x192xf32>
    %c0_4 = arith.constant 0 : index
    %c0_5 = arith.constant 0 : index
    %5 = vector.load %arg3[%c0_4, %c0_5] : memref<1x192xf32, #tpu.memory_space<vmem>>, vector<1x192xf32>
    %6 = vector.broadcast %5 : vector<1x192xf32> to vector<64x192xf32>
    %7 = arith.mulf %4, %6 : vector<64x192xf32>
    %c0_6 = arith.constant 0 : index
    %c0_7 = arith.constant 0 : index
    %8 = vector.load %arg4[%c0_6, %c0_7] : memref<1x192xf32, #tpu.memory_space<vmem>>, vector<1x192xf32>
    %9 = vector.broadcast %8 : vector<1x192xf32> to vector<64x192xf32>
    %10 = arith.addf %7, %9 : vector<64x192xf32>
    %cst_8 = arith.constant 0.000000e+00 : f32
    %11 = vector.broadcast %cst_8 : f32 to vector<64x192xf32>
    %12 = arith.maximumf %10, %11 : vector<64x192xf32>
    %c0_9 = arith.constant 0 : index
    %c0_10 = arith.constant 0 : index
    %13 = vector.load %arg5[%c0_9, %c0_10] : memref<2080x192xbf16, #tpu.memory_space<vmem>>, vector<2080x192xbf16>
    %cst_11 = arith.constant dense<0.000000e+00> : vector<64x192xf32>
    %14 = tpu.matmul %2, %13, %cst_11 {dimension_numbers = #tpu.dot_dimension_numbers<[1], [0], [0], [1], [0, 0, 1, 1], [], []>} : vector<64x2080xbf16>, vector<2080x192xbf16>, vector<64x192xf32> -> vector<64x192xf32>
    %c0_12 = arith.constant 0 : index
    %c0_13 = arith.constant 0 : index
    %15 = vector.load %arg6[%c0_12, %c0_13] : memref<1x192xf32, #tpu.memory_space<vmem>>, vector<1x192xf32>
    %16 = vector.broadcast %15 : vector<1x192xf32> to vector<64x192xf32>
    %17 = arith.mulf %14, %16 : vector<64x192xf32>
    %c0_14 = arith.constant 0 : index
    %c0_15 = arith.constant 0 : index
    %18 = vector.load %arg7[%c0_14, %c0_15] : memref<1x192xf32, #tpu.memory_space<vmem>>, vector<1x192xf32>
    %19 = vector.broadcast %18 : vector<1x192xf32> to vector<64x192xf32>
    %20 = arith.addf %17, %19 : vector<64x192xf32>
    %cst_16 = arith.constant 0.000000e+00 : f32
    %21 = vector.broadcast %cst_16 : f32 to vector<64x192xf32>
    %22 = arith.maximumf %20, %21 : vector<64x192xf32>
    %23 = arith.truncf %12 : vector<64x192xf32> to vector<64x192xbf16>
    %24 = arith.truncf %22 : vector<64x192xf32> to vector<64x192xbf16>
    %c0_17 = arith.constant 0 : index
    %c0_18 = arith.constant 0 : index
    %c0_19 = arith.constant 0 : index
    %25 = vector.load %arg8[%c0_17, %c0_18, %c0_19] : memref<4x64x64xbf16, #tpu.memory_space<vmem>>, vector<1x64x64xbf16>
    %26 = vector.shape_cast %25 : vector<1x64x64xbf16> to vector<64x64xbf16>
    %cst_20 = arith.constant dense<0.000000e+00> : vector<64x192xf32>
    %27 = tpu.matmul %26, %24, %cst_20 {dimension_numbers = #tpu.dot_dimension_numbers<[1], [0], [0], [1], [0, 0, 1, 1], [], []>} : vector<64x64xbf16>, vector<64x192xbf16>, vector<64x192xf32> -> vector<64x192xf32>
    %28 = arith.truncf %27 : vector<64x192xf32> to vector<64x192xbf16>
    %c1 = arith.constant 1 : index
    %c0_21 = arith.constant 0 : index
    %c0_22 = arith.constant 0 : index
    %29 = vector.load %arg8[%c1, %c0_21, %c0_22] : memref<4x64x64xbf16, #tpu.memory_space<vmem>>, vector<1x64x64xbf16>
    %30 = vector.shape_cast %29 : vector<1x64x64xbf16> to vector<64x64xbf16>
    %cst_23 = arith.constant dense<0.000000e+00> : vector<64x192xf32>
    %31 = tpu.matmul %30, %24, %cst_23 {dimension_numbers = #tpu.dot_dimension_numbers<[1], [0], [0], [1], [0, 0, 1, 1], [], []>} : vector<64x64xbf16>, vector<64x192xbf16>, vector<64x192xf32> -> vector<64x192xf32>
    %32 = arith.truncf %31 : vector<64x192xf32> to vector<64x192xbf16>
    %c0_24 = arith.constant 0 : index
    %c0_25 = arith.constant 0 : index
    %c0_26 = arith.constant 0 : index
    %33 = vector.load %arg9[%c0_24, %c0_25, %c0_26] : memref<3x192x224xbf16, #tpu.memory_space<vmem>>, vector<1x192x224xbf16>
    %34 = vector.shape_cast %33 : vector<1x192x224xbf16> to vector<192x224xbf16>
    %cst_27 = arith.constant dense<0.000000e+00> : vector<64x224xf32>
    %35 = tpu.matmul %28, %34, %cst_27 {dimension_numbers = #tpu.dot_dimension_numbers<[1], [0], [0], [1], [0, 0, 1, 1], [], []>} : vector<64x192xbf16>, vector<192x224xbf16>, vector<64x224xf32> -> vector<64x224xf32>
    %c1_28 = arith.constant 1 : index
    %c0_29 = arith.constant 0 : index
    %c0_30 = arith.constant 0 : index
    %36 = vector.load %arg9[%c1_28, %c0_29, %c0_30] : memref<3x192x224xbf16, #tpu.memory_space<vmem>>, vector<1x192x224xbf16>
    %37 = vector.shape_cast %36 : vector<1x192x224xbf16> to vector<192x224xbf16>
    %cst_31 = arith.constant dense<0.000000e+00> : vector<64x224xf32>
    %38 = tpu.matmul %24, %37, %cst_31 {dimension_numbers = #tpu.dot_dimension_numbers<[1], [0], [0], [1], [0, 0, 1, 1], [], []>} : vector<64x192xbf16>, vector<192x224xbf16>, vector<64x224xf32> -> vector<64x224xf32>
    %39 = arith.addf %35, %38 : vector<64x224xf32>
    %c2 = arith.constant 2 : index
    %c0_32 = arith.constant 0 : index
    %c0_33 = arith.constant 0 : index
    %40 = vector.load %arg9[%c2, %c0_32, %c0_33] : memref<3x192x224xbf16, #tpu.memory_space<vmem>>, vector<1x192x224xbf16>
    %41 = vector.shape_cast %40 : vector<1x192x224xbf16> to vector<192x224xbf16>
    %cst_34 = arith.constant dense<0.000000e+00> : vector<64x224xf32>
    %42 = tpu.matmul %32, %41, %cst_34 {dimension_numbers = #tpu.dot_dimension_numbers<[1], [0], [0], [1], [0, 0, 1, 1], [], []>} : vector<64x192xbf16>, vector<192x224xbf16>, vector<64x224xf32> -> vector<64x224xf32>
    %43 = arith.addf %39, %42 : vector<64x224xf32>
    %c0_35 = arith.constant 0 : index
    %c0_36 = arith.constant 0 : index
    %44 = vector.load %arg10[%c0_35, %c0_36] : memref<1x224xf32, #tpu.memory_space<vmem>>, vector<1x224xf32>
    %45 = vector.broadcast %44 : vector<1x224xf32> to vector<64x224xf32>
    %46 = arith.mulf %43, %45 : vector<64x224xf32>
    %c0_37 = arith.constant 0 : index
    %c0_38 = arith.constant 0 : index
    %47 = vector.load %arg11[%c0_37, %c0_38] : memref<1x224xf32, #tpu.memory_space<vmem>>, vector<1x224xf32>
    %48 = vector.broadcast %47 : vector<1x224xf32> to vector<64x224xf32>
    %49 = arith.addf %46, %48 : vector<64x224xf32>
    %cst_39 = arith.constant 0.000000e+00 : f32
    %50 = vector.broadcast %cst_39 : f32 to vector<64x224xf32>
    %51 = arith.maximumf %49, %50 : vector<64x224xf32>
    %52 = arith.truncf %51 : vector<64x224xf32> to vector<64x224xbf16>
    %c2_40 = arith.constant 2 : index
    %c0_41 = arith.constant 0 : index
    %c0_42 = arith.constant 0 : index
    %53 = vector.load %arg8[%c2_40, %c0_41, %c0_42] : memref<4x64x64xbf16, #tpu.memory_space<vmem>>, vector<1x64x64xbf16>
    %54 = vector.shape_cast %53 : vector<1x64x64xbf16> to vector<64x64xbf16>
    %cst_43 = arith.constant dense<0.000000e+00> : vector<64x224xf32>
    %55 = tpu.matmul %54, %52, %cst_43 {dimension_numbers = #tpu.dot_dimension_numbers<[1], [0], [0], [1], [0, 0, 1, 1], [], []>} : vector<64x64xbf16>, vector<64x224xbf16>, vector<64x224xf32> -> vector<64x224xf32>
    %56 = arith.truncf %55 : vector<64x224xf32> to vector<64x224xbf16>
    %c3 = arith.constant 3 : index
    %c0_44 = arith.constant 0 : index
    %c0_45 = arith.constant 0 : index
    %57 = vector.load %arg8[%c3, %c0_44, %c0_45] : memref<4x64x64xbf16, #tpu.memory_space<vmem>>, vector<1x64x64xbf16>
    %58 = vector.shape_cast %57 : vector<1x64x64xbf16> to vector<64x64xbf16>
    %cst_46 = arith.constant dense<0.000000e+00> : vector<64x224xf32>
    %59 = tpu.matmul %58, %52, %cst_46 {dimension_numbers = #tpu.dot_dimension_numbers<[1], [0], [0], [1], [0, 0, 1, 1], [], []>} : vector<64x64xbf16>, vector<64x224xbf16>, vector<64x224xf32> -> vector<64x224xf32>
    %60 = arith.truncf %59 : vector<64x224xf32> to vector<64x224xbf16>
    %c0_47 = arith.constant 0 : index
    %c0_48 = arith.constant 0 : index
    %c0_49 = arith.constant 0 : index
    %61 = vector.load %arg12[%c0_47, %c0_48, %c0_49] : memref<3x224x256xbf16, #tpu.memory_space<vmem>>, vector<1x224x256xbf16>
    %62 = vector.shape_cast %61 : vector<1x224x256xbf16> to vector<224x256xbf16>
    %cst_50 = arith.constant dense<0.000000e+00> : vector<64x256xf32>
    %63 = tpu.matmul %56, %62, %cst_50 {dimension_numbers = #tpu.dot_dimension_numbers<[1], [0], [0], [1], [0, 0, 1, 1], [], []>} : vector<64x224xbf16>, vector<224x256xbf16>, vector<64x256xf32> -> vector<64x256xf32>
    %c1_51 = arith.constant 1 : index
    %c0_52 = arith.constant 0 : index
    %c0_53 = arith.constant 0 : index
    %64 = vector.load %arg12[%c1_51, %c0_52, %c0_53] : memref<3x224x256xbf16, #tpu.memory_space<vmem>>, vector<1x224x256xbf16>
    %65 = vector.shape_cast %64 : vector<1x224x256xbf16> to vector<224x256xbf16>
    %cst_54 = arith.constant dense<0.000000e+00> : vector<64x256xf32>
    %66 = tpu.matmul %52, %65, %cst_54 {dimension_numbers = #tpu.dot_dimension_numbers<[1], [0], [0], [1], [0, 0, 1, 1], [], []>} : vector<64x224xbf16>, vector<224x256xbf16>, vector<64x256xf32> -> vector<64x256xf32>
    %67 = arith.addf %63, %66 : vector<64x256xf32>
    %c2_55 = arith.constant 2 : index
    %c0_56 = arith.constant 0 : index
    %c0_57 = arith.constant 0 : index
    %68 = vector.load %arg12[%c2_55, %c0_56, %c0_57] : memref<3x224x256xbf16, #tpu.memory_space<vmem>>, vector<1x224x256xbf16>
    %69 = vector.shape_cast %68 : vector<1x224x256xbf16> to vector<224x256xbf16>
    %cst_58 = arith.constant dense<0.000000e+00> : vector<64x256xf32>
    %70 = tpu.matmul %60, %69, %cst_58 {dimension_numbers = #tpu.dot_dimension_numbers<[1], [0], [0], [1], [0, 0, 1, 1], [], []>} : vector<64x224xbf16>, vector<224x256xbf16>, vector<64x256xf32> -> vector<64x256xf32>
    %71 = arith.addf %67, %70 : vector<64x256xf32>
    %c0_59 = arith.constant 0 : index
    %c0_60 = arith.constant 0 : index
    %72 = vector.load %arg13[%c0_59, %c0_60] : memref<1x256xf32, #tpu.memory_space<vmem>>, vector<1x256xf32>
    %73 = vector.broadcast %72 : vector<1x256xf32> to vector<64x256xf32>
    %74 = arith.mulf %71, %73 : vector<64x256xf32>
    %c0_61 = arith.constant 0 : index
    %c0_62 = arith.constant 0 : index
    %75 = vector.load %arg14[%c0_61, %c0_62] : memref<1x256xf32, #tpu.memory_space<vmem>>, vector<1x256xf32>
    %76 = vector.broadcast %75 : vector<1x256xf32> to vector<64x256xf32>
    %77 = arith.addf %74, %76 : vector<64x256xf32>
    %cst_63 = arith.constant 0.000000e+00 : f32
    %78 = vector.broadcast %cst_63 : f32 to vector<64x256xf32>
    %79 = arith.maximumf %77, %78 : vector<64x256xf32>
    %80 = arith.truncf %79 : vector<64x256xf32> to vector<64x256xbf16>
    %c0_64 = arith.constant 0 : index
    %c0_65 = arith.constant 0 : index
    %81 = vector.load %arg15[%c0_64, %c0_65] : memref<192x2080xbf16, #tpu.memory_space<vmem>>, vector<192x2080xbf16>
    %cst_66 = arith.constant dense<0.000000e+00> : vector<64x2080xf32>
    %82 = tpu.matmul %23, %81, %cst_66 {dimension_numbers = #tpu.dot_dimension_numbers<[1], [0], [0], [1], [0, 0, 1, 1], [], []>} : vector<64x192xbf16>, vector<192x2080xbf16>, vector<64x2080xf32> -> vector<64x2080xf32>
    %c0_67 = arith.constant 0 : index
    %c0_68 = arith.constant 0 : index
    %83 = vector.load %arg16[%c0_67, %c0_68] : memref<256x2080xbf16, #tpu.memory_space<vmem>>, vector<256x2080xbf16>
    %cst_69 = arith.constant dense<0.000000e+00> : vector<64x2080xf32>
    %84 = tpu.matmul %80, %83, %cst_69 {dimension_numbers = #tpu.dot_dimension_numbers<[1], [0], [0], [1], [0, 0, 1, 1], [], []>} : vector<64x256xbf16>, vector<256x2080xbf16>, vector<64x2080xf32> -> vector<64x2080xf32>
    %85 = arith.addf %82, %84 : vector<64x2080xf32>
    %c0_70 = arith.constant 0 : index
    %c0_71 = arith.constant 0 : index
    %86 = vector.load %arg17[%c0_70, %c0_71] : memref<1x2080xf32, #tpu.memory_space<vmem>>, vector<1x2080xf32>
    %87 = vector.broadcast %86 : vector<1x2080xf32> to vector<64x2080xf32>
    %88 = arith.addf %85, %87 : vector<64x2080xf32>
    %cst_72 = arith.constant 2.000000e-01 : f32
    %89 = vector.broadcast %cst_72 : f32 to vector<64x2080xf32>
    %90 = arith.mulf %88, %89 : vector<64x2080xf32>
    %91 = arith.addf %90, %1 : vector<64x2080xf32>
    %cst_73 = arith.constant 0.000000e+00 : f32
    %92 = vector.broadcast %cst_73 : f32 to vector<64x2080xf32>
    %93 = arith.maximumf %91, %92 : vector<64x2080xf32>
    %c0_74 = arith.constant 0 : index
    %c0_75 = arith.constant 0 : index
    %c0_76 = arith.constant 0 : index
    %94 = vector.load %arg18[%c0_74, %c0_75, %c0_76] : memref<1x64x2080xf32, #tpu.memory_space<vmem>>, vector<1x64x2080xf32>
    %95 = vector.shape_cast %94 : vector<1x64x2080xf32> to vector<64x2080xf32>
    %96 = vector.shape_cast %93 : vector<64x2080xf32> to vector<1x64x2080xf32>
    tpu.vector_store %arg18[%c0_74, %c0_75, %c0_76], %96 {strides = array<i32>} : memref<1x64x2080xf32, #tpu.memory_space<vmem>>, vector<1x64x2080xf32>,
    return
  }
  func.func @transform_0(%arg0: i32) -> (i32, i32, i32) {
    %c0_i32 = arith.constant 0 : i32
    %c0_i32_0 = arith.constant 0 : i32
    %c0_i32_1 = arith.constant 0 : i32
    return %arg0, %c0_i32, %c0_i32_0 : i32, i32, i32
  }
  func.func @transform_1(%arg0: i32) -> (i32, i32) {
    %c0_i32 = arith.constant 0 : i32
    %c0_i32_0 = arith.constant 0 : i32
    %c0_i32_1 = arith.constant 0 : i32
    return %c0_i32, %c0_i32_0 : i32, i32
  }
  func.func @transform_2(%arg0: i32) -> (i32, i32) {
    %c0_i32 = arith.constant 0 : i32
    %c0_i32_0 = arith.constant 0 : i32
    %c0_i32_1 = arith.constant 0 : i32
    return %c0_i32, %c0_i32_0 : i32, i32
  }
  func.func @transform_3(%arg0: i32) -> (i32, i32) {
    %c0_i32 = arith.constant 0 : i32
    %c0_i32_0 = arith.constant 0 : i32
    %c0_i32_1 = arith.constant 0 : i32
    return %c0_i32, %c0_i32_0 : i32, i32
  }
  func.func @transform_4(%arg0: i32) -> (i32, i32) {
    %c0_i32 = arith.constant 0 : i32
    %c0_i32_0 = arith.constant 0 : i32
    %c0_i32_1 = arith.constant 0 : i32
    return %c0_i32, %c0_i32_0 : i32, i32
  }
  func.func @transform_5(%arg0: i32) -> (i32, i32) {
    %c0_i32 = arith.constant 0 : i32
    %c0_i32_0 = arith.constant 0 : i32
    %c0_i32_1 = arith.constant 0 : i32
    return %c0_i32, %c0_i32_0 : i32, i32
  }
  func.func @transform_6(%arg0: i32) -> (i32, i32) {
    %c0_i32 = arith.constant 0 : i32
    %c0_i32_0 = arith.constant 0 : i32
    %c0_i32_1 = arith.constant 0 : i32
    return %c0_i32, %c0_i32_0 : i32, i32
  }
  func.func @transform_7(%arg0: i32) -> (i32, i32, i32) {
    %c0_i32 = arith.constant 0 : i32
    %c0_i32_0 = arith.constant 0 : i32
    %c0_i32_1 = arith.constant 0 : i32
    %c0_i32_2 = arith.constant 0 : i32
    return %c0_i32, %c0_i32_0, %c0_i32_1 : i32, i32, i32
  }
  func.func @transform_8(%arg0: i32) -> (i32, i32, i32) {
    %c0_i32 = arith.constant 0 : i32
    %c0_i32_0 = arith.constant 0 : i32
    %c0_i32_1 = arith.constant 0 : i32
    %c0_i32_2 = arith.constant 0 : i32
    return %c0_i32, %c0_i32_0, %c0_i32_1 : i32, i32, i32
  }
  func.func @transform_9(%arg0: i32) -> (i32, i32) {
    %c0_i32 = arith.constant 0 : i32
    %c0_i32_0 = arith.constant 0 : i32
    %c0_i32_1 = arith.constant 0 : i32
    return %c0_i32, %c0_i32_0 : i32, i32
  }
  func.func @transform_10(%arg0: i32) -> (i32, i32) {
    %c0_i32 = arith.constant 0 : i32
    %c0_i32_0 = arith.constant 0 : i32
    %c0_i32_1 = arith.constant 0 : i32
    return %c0_i32, %c0_i32_0 : i32, i32
  }
  func.func @transform_11(%arg0: i32) -> (i32, i32, i32) {
    %c0_i32 = arith.constant 0 : i32
    %c0_i32_0 = arith.constant 0 : i32
    %c0_i32_1 = arith.constant 0 : i32
    %c0_i32_2 = arith.constant 0 : i32
    return %c0_i32, %c0_i32_0, %c0_i32_1 : i32, i32, i32
  }
  func.func @transform_12(%arg0: i32) -> (i32, i32) {
    %c0_i32 = arith.constant 0 : i32
    %c0_i32_0 = arith.constant 0 : i32
    %c0_i32_1 = arith.constant 0 : i32
    return %c0_i32, %c0_i32_0 : i32, i32
  }
  func.func @transform_13(%arg0: i32) -> (i32, i32) {
    %c0_i32 = arith.constant 0 : i32
    %c0_i32_0 = arith.constant 0 : i32
    %c0_i32_1 = arith.constant 0 : i32
    return %c0_i32, %c0_i32_0 : i32, i32
  }
  func.func @transform_14(%arg0: i32) -> (i32, i32) {
    %c0_i32 = arith.constant 0 : i32
    %c0_i32_0 = arith.constant 0 : i32
    %c0_i32_1 = arith.constant 0 : i32
    return %c0_i32, %c0_i32_0 : i32, i32
  }
  func.func @transform_15(%arg0: i32) -> (i32, i32) {
    %c0_i32 = arith.constant 0 : i32
    %c0_i32_0 = arith.constant 0 : i32
    %c0_i32_1 = arith.constant 0 : i32
    return %c0_i32, %c0_i32_0 : i32, i32
  }
  func.func @transform_16(%arg0: i32) -> (i32, i32) {
    %c0_i32 = arith.constant 0 : i32
    %c0_i32_0 = arith.constant 0 : i32
    %c0_i32_1 = arith.constant 0 : i32
    return %c0_i32, %c0_i32_0 : i32, i32
  }
  func.func @transform_17(%arg0: i32) -> (i32, i32, i32) {
    %c0_i32 = arith.constant 0 : i32
    %c0_i32_0 = arith.constant 0 : i32
    %c0_i32_1 = arith.constant 0 : i32
    return %arg0, %c0_i32, %c0_i32_0 : i32, i32, i32
  }
}

</mosaic_0001>

<llo_original>
// kernel: block8_forward.1
$region0: #{block8_forward.1}
  #allocation0 [shape = 'u32[]', space=smem, size = 0x4, offset = 0x4, fixed_abs, tag = 'smem constant byte address 0x4 - core index']
  #allocation1 [shape = 'u32[144,128]{1,0:T(1,128)}', space=vmem, size = 0x12000, scoped, tag = 'internal scratch']
  %s0 = inlined_call_operand.vmem [shape: f32[2,64,2080], index: 0, kind: input, shape index: {}]
  %s1 = inlined_call_operand.vmem [shape: bf16[2080,192], index: 1, kind: input, shape index: {}]
  %s2 = inlined_call_operand.vmem [shape: f32[1,192], index: 2, kind: input, shape index: {}]
  %s3 = inlined_call_operand.vmem [shape: f32[1,192], index: 3, kind: input, shape index: {}]
  %s4 = inlined_call_operand.vmem [shape: bf16[2080,192], index: 4, kind: input, shape index: {}]
  %s5 = inlined_call_operand.vmem [shape: f32[1,192], index: 5, kind: input, shape index: {}]
  %s6 = inlined_call_operand.vmem [shape: f32[1,192], index: 6, kind: input, shape index: {}]
  %s7 = inlined_call_operand.vmem [shape: bf16[4,64,64], index: 7, kind: input, shape index: {}]
  %s8 = inlined_call_operand.vmem [shape: bf16[3,192,224], index: 8, kind: input, shape index: {}]
  %s9 = inlined_call_operand.vmem [shape: f32[1,224], index: 9, kind: input, shape index: {}]
  %s10 = inlined_call_operand.vmem [shape: f32[1,224], index: 10, kind: input, shape index: {}]
  %s11 = inlined_call_operand.vmem [shape: bf16[3,224,256], index: 11, kind: input, shape index: {}]
  %s12 = inlined_call_operand.vmem [shape: f32[1,256], index: 12, kind: input, shape index: {}]
  %s13 = inlined_call_operand.vmem [shape: f32[1,256], index: 13, kind: input, shape index: {}]
  %s14 = inlined_call_operand.vmem [shape: bf16[192,2080], index: 14, kind: input, shape index: {}]
  %s15 = inlined_call_operand.vmem [shape: bf16[256,2080], index: 15, kind: input, shape index: {}]
  %s16 = inlined_call_operand.vmem [shape: f32[1,2080], index: 16, kind: input, shape index: {}]
  %s17 = inlined_call_operand.hbm [shape: f32[2,64,2080], index: 17, kind: output, shape index: {}]
  %s18 = sld [smem:[#allocation0]]
  $region101: #{block8_forward.1} parent=0
    _
  %s20 = ssub.s32 1, %s18
  %s21 = scalar_select 0, %s20, %s18
  $region1: #{block8_forward.1} parent=0
    #allocation2 [shape = 'u8[1114112]{0}', space=vmem, size = 0x110000, scoped, tag = 'output window, operand 0']
    #allocation3 [shape = 's32[2]{0}', space=sflag, size = 0x8, scoped, tag = 'scoped memory for block8_forward.1']
    %22 = vsyncpa [#allocation3], 0
    %s23 = scalar_lea.sflag [#allocation3], 1
    %24 = vsyncpa %s23, 0
    loop: start=0, step=1, limit=4
    $region2: #{block8_forward.1} parent=1 // loop_pre_header
      _
    $region3: #{block8_forward.1} parent=1 // loop_header
      %s26 = sphi 0, %s30
      %p27 = scmp.ge.s32.totalorder %s26, 4
      %s36 = sphi 0, %s38
      %s39 = sphi 0, %s36
      %s40 = sphi 0, %s39
      %s56 = sphi 0, %s40
      %s60 = sphi 0, %s60
      %s62 = sphi 0, %s60
      %s63 = sphi 0, %s62
      %s77 = sphi 0, %s63
      %s81 = sphi 0, %s81
      %s83 = sphi 0, %s81
      %s84 = sphi 0, %s83
      %s98 = sphi 0, %s84
      %s102 = sphi 0, %s102
      %s104 = sphi 0, %s102
      %s105 = sphi 0, %s104
      %s119 = sphi 0, %s105
      %s123 = sphi 0, %s123
      %s125 = sphi 0, %s123
      %s126 = sphi 0, %s125
      %s140 = sphi 0, %s126
      %s144 = sphi 0, %s144
      %s146 = sphi 0, %s144
      %s147 = sphi 0, %s146
      %s161 = sphi 0, %s147
      %s165 = sphi 0, %s165
      %s167 = sphi 0, %s165
      %s168 = sphi 0, %s167
      %s182 = sphi 0, %s168
      %s186 = sphi 0, %s186
      %s188 = sphi 0, %s186
      %s189 = sphi 0, %s188
      %s203 = sphi 0, %s189
      %s207 = sphi 0, %s207
      %s209 = sphi 0, %s207
      %s210 = sphi 0, %s209
      %s224 = sphi 0, %s210
      %s228 = sphi 0, %s228
      %s230 = sphi 0, %s228
      %s231 = sphi 0, %s230
      %s245 = sphi 0, %s231
      %s249 = sphi 0, %s249
      %s251 = sphi 0, %s249
      %s252 = sphi 0, %s251
      %s266 = sphi 0, %s252
      %s270 = sphi 0, %s270
      %s272 = sphi 0, %s270
      %s273 = sphi 0, %s272
      %s287 = sphi 0, %s273
      %s291 = sphi 0, %s291
      %s293 = sphi 0, %s291
      %s294 = sphi 0, %s293
      %s308 = sphi 0, %s294
      %s312 = sphi 0, %s312
      %s314 = sphi 0, %s312
      %s315 = sphi 0, %s314
      %s329 = sphi 0, %s315
      %s333 = sphi 0, %s333
      %s335 = sphi 0, %s333
      %s336 = sphi 0, %s335
      %s350 = sphi 0, %s336
      %s354 = sphi 0, %s354
      %s356 = sphi 0, %s354
      %s357 = sphi 0, %s356
      %s371 = sphi 0, %s357
      %s375 = sphi 0, %s375
      %s377 = sphi 0, %s375
      %s378 = sphi 0, %s377
      %s392 = sphi 0, %s378
      %s398 = sphi 0, %s400
      %s401 = sphi 0, %s398
      %s402 = sphi 0, %s401
      %s418 = sphi 0, %s402
    $region4: #{block8_forward.1} parent=1 // loop_header_branch
      %29 = sbr.rel (%p27) target = $region8
    $region5: #{block8_forward.1} parent=1 // loop_body
      %s31 = ssub.s32 %s26, 1
      %s32 = ssub.s32 %s26, 2
      %s33 = sadd.s32 %s26, 1
      %s34 = ssub.s32 %s26, %s33
      %p35 = scmp.eq.s32.totalorder %s34, 0
      %s37 = sadd.s32 %s36, 1
      %s38 = scalar_select %p35, %s36, %s37
      %p41 = pneg %p35
      %p42 = scmp.eq.s32.totalorder %s26, 1
      %p43 = por %p41, %p42
      %p44 = scmp.ne.s32.totalorder %s36, %s39
      %p45 = scmp.eq.s32.totalorder %s26, 0
      %p46 = por %p44, %p45
      %p47 = scmp.ne.s32.totalorder %s36, %s39
      %p48 = scmp.eq.s32.totalorder %s31, 1
      %p49 = por %p47, %p48
      %p50 = scmp.ne.s32.totalorder %s39, %s40
      %p51 = scmp.eq.s32.totalorder %s31, 0
      %p52 = por %p50, %p51
      %p53 = scmp.ne.s32.totalorder %s39, %s40
      %p54 = scmp.eq.s32.totalorder %s32, 1
      %p55 = por %p53, %p54
      %p57 = scmp.ne.s32.totalorder %s40, %s56
      %p58 = scmp.eq.s32.totalorder %s32, 0
      %p59 = por %p57, %p58
      %s61 = sadd.s32 %s60, 1
      %p64 = scmp.eq.s32.totalorder %s26, 1
      %p65 = scmp.ne.s32.totalorder %s60, %s62
      %p66 = scmp.eq.s32.totalorder %s26, 0
      %p67 = por %p65, %p66
      %p68 = scmp.ne.s32.totalorder %s60, %s62
      %p69 = scmp.eq.s32.totalorder %s31, 1
      %p70 = por %p68, %p69
      %p71 = scmp.ne.s32.totalorder %s62, %s63
      %p72 = scmp.eq.s32.totalorder %s31, 0
      %p73 = por %p71, %p72
      %p74 = scmp.ne.s32.totalorder %s62, %s63
      %p75 = scmp.eq.s32.totalorder %s32, 1
      %p76 = por %p74, %p75
      %p78 = scmp.ne.s32.totalorder %s63, %s77
      %p79 = scmp.eq.s32.totalorder %s32, 0
      %p80 = por %p78, %p79
      %s82 = sadd.s32 %s81, 1
      %p85 = scmp.eq.s32.totalorder %s26, 1
      %p86 = scmp.ne.s32.totalorder %s81, %s83
      %p87 = scmp.eq.s32.totalorder %s26, 0
      %p88 = por %p86, %p87
      %p89 = scmp.ne.s32.totalorder %s81, %s83
      %p90 = scmp.eq.s32.totalorder %s31, 1
      %p91 = por %p89, %p90
      %p92 = scmp.ne.s32.totalorder %s83, %s84
      %p93 = scmp.eq.s32.totalorder %s31, 0
      %p94 = por %p92, %p93
      %p95 = scmp.ne.s32.totalorder %s83, %s84
      %p96 = scmp.eq.s32.totalorder %s32, 1
      %p97 = por %p95, %p96
      %p99 = scmp.ne.s32.totalorder %s84, %s98
      %p100 = scmp.eq.s32.totalorder %s32, 0
      %p101 = por %p99, %p100
      %s103 = sadd.s32 %s102, 1
      %p106 = scmp.eq.s32.totalorder %s26, 1
      %p107 = scmp.ne.s32.totalorder %s102, %s104
      %p108 = scmp.eq.s32.totalorder %s26, 0
      %p109 = por %p107, %p108
      %p110 = scmp.ne.s32.totalorder %s102, %s104
      %p111 = scmp.eq.s32.totalorder %s31, 1
      %p112 = por %p110, %p111
      %p113 = scmp.ne.s32.totalorder %s104, %s105
      %p114 = scmp.eq.s32.totalorder %s31, 0
      %p115 = por %p113, %p114
      %p116 = scmp.ne.s32.totalorder %s104, %s105
      %p117 = scmp.eq.s32.totalorder %s32, 1
      %p118 = por %p116, %p117
      %p120 = scmp.ne.s32.totalorder %s105, %s119
      %p121 = scmp.eq.s32.totalorder %s32, 0
      %p122 = por %p120, %p121
      %s124 = sadd.s32 %s123, 1
      %p127 = scmp.eq.s32.totalorder %s26, 1
      %p128 = scmp.ne.s32.totalorder %s123, %s125
      %p129 = scmp.eq.s32.totalorder %s26, 0
      %p130 = por %p128, %p129
      %p131 = scmp.ne.s32.totalorder %s123, %s125
      %p132 = scmp.eq.s32.totalorder %s31, 1
      %p133 = por %p131, %p132
      %p134 = scmp.ne.s32.totalorder %s125, %s126
      %p135 = scmp.eq.s32.totalorder %s31, 0
      %p136 = por %p134, %p135
      %p137 = scmp.ne.s32.totalorder %s125, %s126
      %p138 = scmp.eq.s32.totalorder %s32, 1
      %p139 = por %p137, %p138
      %p141 = scmp.ne.s32.totalorder %s126, %s140
      %p142 = scmp.eq.s32.totalorder %s32, 0
      %p143 = por %p141, %p142
      %s145 = sadd.s32 %s144, 1
      %p148 = scmp.eq.s32.totalorder %s26, 1
      %p149 = scmp.ne.s32.totalorder %s144, %s146
      %p150 = scmp.eq.s32.totalorder %s26, 0
      %p151 = por %p149, %p150
      %p152 = scmp.ne.s32.totalorder %s144, %s146
      %p153 = scmp.eq.s32.totalorder %s31, 1
      %p154 = por %p152, %p153
      %p155 = scmp.ne.s32.totalorder %s146, %s147
      %p156 = scmp.eq.s32.totalorder %s31, 0
      %p157 = por %p155, %p156
      %p158 = scmp.ne.s32.totalorder %s146, %s147
      %p159 = scmp.eq.s32.totalorder %s32, 1
      %p160 = por %p158, %p159
      %p162 = scmp.ne.s32.totalorder %s147, %s161
      %p163 = scmp.eq.s32.totalorder %s32, 0
      %p164 = por %p162, %p163
      %s166 = sadd.s32 %s165, 1
      %p169 = scmp.eq.s32.totalorder %s26, 1
      %p170 = scmp.ne.s32.totalorder %s165, %s167
      %p171 = scmp.eq.s32.totalorder %s26, 0
      %p172 = por %p170, %p171
      %p173 = scmp.ne.s32.totalorder %s165, %s167
      %p174 = scmp.eq.s32.totalorder %s31, 1
      %p175 = por %p173, %p174
      %p176 = scmp.ne.s32.totalorder %s167, %s168
      %p177 = scmp.eq.s32.totalorder %s31, 0
      %p178 = por %p176, %p177
      %p179 = scmp.ne.s32.totalorder %s167, %s168
      %p180 = scmp.eq.s32.totalorder %s32, 1
      %p181 = por %p179, %p180
      %p183 = scmp.ne.s32.totalorder %s168, %s182
      %p184 = scmp.eq.s32.totalorder %s32, 0
      %p185 = por %p183, %p184
      %s187 = sadd.s32 %s186, 1
      %p190 = scmp.eq.s32.totalorder %s26, 1
      %p191 = scmp.ne.s32.totalorder %s186, %s188
      %p192 = scmp.eq.s32.totalorder %s26, 0
      %p193 = por %p191, %p192
      %p194 = scmp.ne.s32.totalorder %s186, %s188
      %p195 = scmp.eq.s32.totalorder %s31, 1
      %p196 = por %p194, %p195
      %p197 = scmp.ne.s32.totalorder %s188, %s189
      %p198 = scmp.eq.s32.totalorder %s31, 0
      %p199 = por %p197, %p198
      %p200 = scmp.ne.s32.totalorder %s188, %s189
      %p201 = scmp.eq.s32.totalorder %s32, 1
      %p202 = por %p200, %p201
      %p204 = scmp.ne.s32.totalorder %s189, %s203
      %p205 = scmp.eq.s32.totalorder %s32, 0
      %p206 = por %p204, %p205
      %s208 = sadd.s32 %s207, 1
      %p211 = scmp.eq.s32.totalorder %s26, 1
      %p212 = scmp.ne.s32.totalorder %s207, %s209
      %p213 = scmp.eq.s32.totalorder %s26, 0
      %p214 = por %p212, %p213
      %p215 = scmp.ne.s32.totalorder %s207, %s209
      %p216 = scmp.eq.s32.totalorder %s31, 1
      %p217 = por %p215, %p216
      %p218 = scmp.ne.s32.totalorder %s209, %s210
      %p219 = scmp.eq.s32.totalorder %s31, 0
      %p220 = por %p218, %p219
      %p221 = scmp.ne.s32.totalorder %s209, %s210
      %p222 = scmp.eq.s32.totalorder %s32, 1
      %p223 = por %p221, %p222
      %p225 = scmp.ne.s32.totalorder %s210, %s224
      %p226 = scmp.eq.s32.totalorder %s32, 0
      %p227 = por %p225, %p226
      %s229 = sadd.s32 %s228, 1
      %p232 = scmp.eq.s32.totalorder %s26, 1
      %p233 = scmp.ne.s32.totalorder %s228, %s230
      %p234 = scmp.eq.s32.totalorder %s26, 0
      %p235 = por %p233, %p234
      %p236 = scmp.ne.s32.totalorder %s228, %s230
      %p237 = scmp.eq.s32.totalorder %s31, 1
      %p238 = por %p236, %p237
      %p239 = scmp.ne.s32.totalorder %s230, %s231
      %p240 = scmp.eq.s32.totalorder %s31, 0
      %p241 = por %p239, %p240
      %p242 = scmp.ne.s32.totalorder %s230, %s231
      %p243 = scmp.eq.s32.totalorder %s32, 1
      %p244 = por %p242, %p243
      %p246 = scmp.ne.s32.totalorder %s231, %s245
      %p247 = scmp.eq.s32.totalorder %s32, 0
      %p248 = por %p246, %p247
      %s250 = sadd.s32 %s249, 1
      %p253 = scmp.eq.s32.totalorder %s26, 1
      %p254 = scmp.ne.s32.totalorder %s249, %s251
      %p255 = scmp.eq.s32.totalorder %s26, 0
      %p256 = por %p254, %p255
      %p257 = scmp.ne.s32.totalorder %s249, %s251
      %p258 = scmp.eq.s32.totalorder %s31, 1
      %p259 = por %p257, %p258
      %p260 = scmp.ne.s32.totalorder %s251, %s252
      %p261 = scmp.eq.s32.totalorder %s31, 0
      %p262 = por %p260, %p261
      %p263 = scmp.ne.s32.totalorder %s251, %s252
      %p264 = scmp.eq.s32.totalorder %s32, 1
      %p265 = por %p263, %p264
      %p267 = scmp.ne.s32.totalorder %s252, %s266
      %p268 = scmp.eq.s32.totalorder %s32, 0
      %p269 = por %p267, %p268
      %s271 = sadd.s32 %s270, 1
      %p274 = scmp.eq.s32.totalorder %s26, 1
      %p275 = scmp.ne.s32.totalorder %s270, %s272
      %p276 = scmp.eq.s32.totalorder %s26, 0
      %p277 = por %p275, %p276
      %p278 = scmp.ne.s32.totalorder %s270, %s272
      %p279 = scmp.eq.s32.totalorder %s31, 1
      %p280 = por %p278, %p279
      %p281 = scmp.ne.s32.totalorder %s272, %s273
      %p282 = scmp.eq.s32.totalorder %s31, 0
      %p283 = por %p281, %p282
      %p284 = scmp.ne.s32.totalorder %s272, %s273
      %p285 = scmp.eq.s32.totalorder %s32, 1
      %p286 = por %p284, %p285
      %p288 = scmp.ne.s32.totalorder %s273, %s287
      %p289 = scmp.eq.s32.totalorder %s32, 0
      %p290 = por %p288, %p289
      %s292 = sadd.s32 %s291, 1
      %p295 = scmp.eq.s32.totalorder %s26, 1
      %p296 = scmp.ne.s32.totalorder %s291, %s293
      %p297 = scmp.eq.s32.totalorder %s26, 0
      %p298 = por %p296, %p297
      %p299 = scmp.ne.s32.totalorder %s291, %s293
      %p300 = scmp.eq.s32.totalorder %s31, 1
      %p301 = por %p299, %p300
      %p302 = scmp.ne.s32.totalorder %s293, %s294
      %p303 = scmp.eq.s32.totalorder %s31, 0
      %p304 = por %p302, %p303
      %p305 = scmp.ne.s32.totalorder %s293, %s294
      %p306 = scmp.eq.s32.totalorder %s32, 1
      %p307 = por %p305, %p306
      %p309 = scmp.ne.s32.totalorder %s294, %s308
      %p310 = scmp.eq.s32.totalorder %s32, 0
      %p311 = por %p309, %p310
      %s313 = sadd.s32 %s312, 1
      %p316 = scmp.eq.s32.totalorder %s26, 1
      %p317 = scmp.ne.s32.totalorder %s312, %s314
      %p318 = scmp.eq.s32.totalorder %s26, 0
      %p319 = por %p317, %p318
      %p320 = scmp.ne.s32.totalorder %s312, %s314
      %p321 = scmp.eq.s32.totalorder %s31, 1
      %p322 = por %p320, %p321
      %p323 = scmp.ne.s32.totalorder %s314, %s315
      %p324 = scmp.eq.s32.totalorder %s31, 0
      %p325 = por %p323, %p324
      %p326 = scmp.ne.s32.totalorder %s314, %s315
      %p327 = scmp.eq.s32.totalorder %s32, 1
      %p328 = por %p326, %p327
      %p330 = scmp.ne.s32.totalorder %s315, %s329
      %p331 = scmp.eq.s32.totalorder %s32, 0
      %p332 = por %p330, %p331
      %s334 = sadd.s32 %s333, 1
      %p337 = scmp.eq.s32.totalorder %s26, 1
      %p338 = scmp.ne.s32.totalorder %s333, %s335
      %p339 = scmp.eq.s32.totalorder %s26, 0
      %p340 = por %p338, %p339
      %p341 = scmp.ne.s32.totalorder %s333, %s335
      %p342 = scmp.eq.s32.totalorder %s31, 1
      %p343 = por %p341, %p342
      %p344 = scmp.ne.s32.totalorder %s335, %s336
      %p345 = scmp.eq.s32.totalorder %s31, 0
      %p346 = por %p344, %p345
      %p347 = scmp.ne.s32.totalorder %s335, %s336
      %p348 = scmp.eq.s32.totalorder %s32, 1
      %p349 = por %p347, %p348
      %p351 = scmp.ne.s32.totalorder %s336, %s350
      %p352 = scmp.eq.s32.totalorder %s32, 0
      %p353 = por %p351, %p352
      %s355 = sadd.s32 %s354, 1
      %p358 = scmp.eq.s32.totalorder %s26, 1
      %p359 = scmp.ne.s32.totalorder %s354, %s356
      %p360 = scmp.eq.s32.totalorder %s26, 0
      %p361 = por %p359, %p360
      %p362 = scmp.ne.s32.totalorder %s354, %s356
      %p363 = scmp.eq.s32.totalorder %s31, 1
      %p364 = por %p362, %p363
      %p365 = scmp.ne.s32.totalorder %s356, %s357
      %p366 = scmp.eq.s32.totalorder %s31, 0
      %p367 = por %p365, %p366
      %p368 = scmp.ne.s32.totalorder %s356, %s357
      %p369 = scmp.eq.s32.totalorder %s32, 1
      %p370 = por %p368, %p369
      %p372 = scmp.ne.s32.totalorder %s357, %s371
      %p373 = scmp.eq.s32.totalorder %s32, 0
      %p374 = por %p372, %p373
      %s376 = sadd.s32 %s375, 1
      %p379 = scmp.eq.s32.totalorder %s26, 1
      %p380 = scmp.ne.s32.totalorder %s375, %s377
      %p381 = scmp.eq.s32.totalorder %s26, 0
      %p382 = por %p380, %p381
      %p383 = scmp.ne.s32.totalorder %s375, %s377
      %p384 = scmp.eq.s32.totalorder %s31, 1
      %p385 = por %p383, %p384
      %p386 = scmp.ne.s32.totalorder %s377, %s378
      %p387 = scmp.eq.s32.totalorder %s31, 0
      %p388 = por %p386, %p387
      %p389 = scmp.ne.s32.totalorder %s377, %s378
      %p390 = scmp.eq.s32.totalorder %s32, 1
      %p391 = por %p389, %p390
      %p393 = scmp.ne.s32.totalorder %s378, %s392
      %p394 = scmp.eq.s32.totalorder %s32, 0
      %p395 = por %p393, %p394
      %s396 = ssub.s32 %s26, %s33
      %p397 = scmp.eq.s32.totalorder %s396, 0
      %s399 = sadd.s32 %s398, 1
      %s400 = scalar_select %p397, %s398, %s399
      %p403 = pneg %p397
      %p404 = scmp.eq.s32.totalorder %s26, 1
      %p405 = por %p403, %p404
      %p406 = scmp.ne.s32.totalorder %s398, %s401
      %p407 = scmp.eq.s32.totalorder %s26, 0
      %p408 = por %p406, %p407
      %p409 = scmp.ne.s32.totalorder %s398, %s401
      %p410 = scmp.eq.s32.totalorder %s31, 1
      %p411 = por %p409, %p410
      %p412 = scmp.ne.s32.totalorder %s401, %s402
      %p413 = scmp.eq.s32.totalorder %s31, 0
      %p414 = por %p412, %p413
      %p415 = scmp.ne.s32.totalorder %s401, %s402
      %p416 = scmp.eq.s32.totalorder %s32, 1
      %p417 = por %p415, %p416
      %p419 = scmp.ne.s32.totalorder %s402, %s418
      %p420 = scmp.eq.s32.totalorder %s32, 0
      %p421 = por %p419, %p420
      %p422 = scmp.le.s32.totalorder 1, %s26
      %p423 = scmp.lt.s32.totalorder %s26, 3
      %p424 = pnand %p422, %p423
      %p425 = pneg %p424
      // Predicated region
      $region9: #{block8_forward.1} parent=5 // pred_check
        _
      $region10: #{block8_forward.1} parent=5 // pred_check_branch
        %427 = sbr.rel (%p424) target = $region12
      $region11: #{block8_forward.1} parent=5 // pred_region
        %s428 = ssub.s32 %s26, 1
        // Predicated region
        $region13: #{block8_forward.1} parent=11 // pred_check
          %p429 = pneg %p73
        $region14: #{block8_forward.1} parent=11 // pred_check_branch
          %431 = sbr.rel (%p429) target = $region16
        $region15: #{block8_forward.1} parent=11 // pred_region
          _
        $region16: #{block8_forward.1} parent=11 // pred_fallthru
          _
        // Predicated region
        $region17: #{block8_forward.1} parent=11 // pred_check
          %p432 = pneg %p94
        $region18: #{block8_forward.1} parent=11 // pred_check_branch
          %434 = sbr.rel (%p432) target = $region20
        $region19: #{block8_forward.1} parent=11 // pred_region
          _
        $region20: #{block8_forward.1} parent=11 // pred_fallthru
          _
        // Predicated region
        $region21: #{block8_forward.1} parent=11 // pred_check
          %p435 = pneg %p115
        $region22: #{block8_forward.1} parent=11 // pred_check_branch
          %437 = sbr.rel (%p435) target = $region24
        $region23: #{block8_forward.1} parent=11 // pred_region
          _
        $region24: #{block8_forward.1} parent=11 // pred_fallthru
          _
        // Predicated region
        $region25: #{block8_forward.1} parent=11 // pred_check
          %p438 = pneg %p136
        $region26: #{block8_forward.1} parent=11 // pred_check_branch
          %440 = sbr.rel (%p438) target = $region28
        $region27: #{block8_forward.1} parent=11 // pred_region
          _
        $region28: #{block8_forward.1} parent=11 // pred_fallthru
          _
        // Predicated region
        $region29: #{block8_forward.1} parent=11 // pred_check
          %p441 = pneg %p157
        $region30: #{block8_forward.1} parent=11 // pred_check_branch
          %443 = sbr.rel (%p441) target = $region32
        $region31: #{block8_forward.1} parent=11 // pred_region
          _
        $region32: #{block8_forward.1} parent=11 // pred_fallthru
          _
        // Predicated region
        $region33: #{block8_forward.1} parent=11 // pred_check
          %p444 = pneg %p178
        $region34: #{block8_forward.1} parent=11 // pred_check_branch
          %446 = sbr.rel (%p444) target = $region36
        $region35: #{block8_forward.1} parent=11 // pred_region
          _
        $region36: #{block8_forward.1} parent=11 // pred_fallthru
          _
        // Predicated region
        $region37: #{block8_forward.1} parent=11 // pred_check
          %p447 = pneg %p199
        $region38: #{block8_forward.1} parent=11 // pred_check_branch
          %449 = sbr.rel (%p447) target = $region40
        $region39: #{block8_forward.1} parent=11 // pred_region
          _
        $region40: #{block8_forward.1} parent=11 // pred_fallthru
          _
        // Predicated region
        $region41: #{block8_forward.1} parent=11 // pred_check
          %p450 = pneg %p220
        $region42: #{block8_forward.1} parent=11 // pred_check_branch
          %452 = sbr.rel (%p450) target = $region44
        $region43: #{block8_forward.1} parent=11 // pred_region
          _
        $region44: #{block8_forward.1} parent=11 // pred_fallthru
          _
        // Predicated region
        $region45: #{block8_forward.1} parent=11 // pred_check
          %p453 = pneg %p241
        $region46: #{block8_forward.1} parent=11 // pred_check_branch
          %455 = sbr.rel (%p453) target = $region48
        $region47: #{block8_forward.1} parent=11 // pred_region
          _
        $region48: #{block8_forward.1} parent=11 // pred_fallthru
          _
        // Predicated region
        $region49: #{block8_forward.1} parent=11 // pred_check
          %p456 = pneg %p262
        $region50: #{block8_forward.1} parent=11 // pred_check_branch
          %458 = sbr.rel (%p456) target = $region52
        $region51: #{block8_forward.1} parent=11 // pred_region
          _
        $region52: #{block8_forward.1} parent=11 // pred_fallthru
          _
        // Predicated region
        $region53: #{block8_forward.1} parent=11 // pred_check
          %p459 = pneg %p283
        $region54: #{block8_forward.1} parent=11 // pred_check_branch
          %461 = sbr.rel (%p459) target = $region56
        $region55: #{block8_forward.1} parent=11 // pred_region
          _
        $region56: #{block8_forward.1} parent=11 // pred_fallthru
          _
        // Predicated region
        $region57: #{block8_forward.1} parent=11 // pred_check
          %p462 = pneg %p304
        $region58: #{block8_forward.1} parent=11 // pred_check_branch
          %464 = sbr.rel (%p462) target = $region60
        $region59: #{block8_forward.1} parent=11 // pred_region
          _
        $region60: #{block8_forward.1} parent=11 // pred_fallthru
          _
        // Predicated region
        $region61: #{block8_forward.1} parent=11 // pred_check
          %p465 = pneg %p325
        $region62: #{block8_forward.1} parent=11 // pred_check_branch
          %467 = sbr.rel (%p465) target = $region64
        $region63: #{block8_forward.1} parent=11 // pred_region
          _
        $region64: #{block8_forward.1} parent=11 // pred_fallthru
          _
        // Predicated region
        $region65: #{block8_forward.1} parent=11 // pred_check
          %p468 = pneg %p346
        $region66: #{block8_forward.1} parent=11 // pred_check_branch
          %470 = sbr.rel (%p468) target = $region68
        $region67: #{block8_forward.1} parent=11 // pred_region
          _
        $region68: #{block8_forward.1} parent=11 // pred_fallthru
          _
        // Predicated region
        $region69: #{block8_forward.1} parent=11 // pred_check
          %p471 = pneg %p367
        $region70: #{block8_forward.1} parent=11 // pred_check_branch
          %473 = sbr.rel (%p471) target = $region72
        $region71: #{block8_forward.1} parent=11 // pred_region
          _
        $region72: #{block8_forward.1} parent=11 // pred_fallthru
          _
        // Predicated region
        $region73: #{block8_forward.1} parent=11 // pred_check
          %p474 = pneg %p388
        $region74: #{block8_forward.1} parent=11 // pred_check_branch
          %476 = sbr.rel (%p474) target = $region76
        $region75: #{block8_forward.1} parent=11 // pred_region
          _
        $region76: #{block8_forward.1} parent=11 // pred_fallthru
          _
      $region12: #{block8_forward.1} parent=5 // pred_fallthru
        _
      %p477 = scmp.lt.s32.totalorder %s26, 2
      // Predicated region
      $region77: #{block8_forward.1} parent=5 // pred_check
        %p478 = pneg %p477
      $region78: #{block8_forward.1} parent=5 // pred_check_branch
        %480 = sbr.rel (%p478) target = $region80
      $region79: #{block8_forward.1} parent=5 // pred_region
        // Predicated region
        $region81: #{block8_forward.1} parent=79 // pred_check
          %p481 = pneg %p46
        $region82: #{block8_forward.1} parent=79 // pred_check_branch
          %483 = sbr.rel (%p481) target = $region84
        $region83: #{block8_forward.1} parent=79 // pred_region
          %p484 = scmp.lt.s32.totalorder %s26, 1
          %s485 = scalar_select %p484, %s26, 1
          %s486 = smul.addr %s485, 136
          %s487 = smul.addr %s486, 8
          %s488 = scalar_lea.vmem %s0, %s487
        $region84: #{block8_forward.1} parent=79 // pred_fallthru
          _
      $region80: #{block8_forward.1} parent=5 // pred_fallthru
        _
      %p489 = scmp.le.s32.totalorder 1, %s26
      %p490 = scmp.lt.s32.totalorder %s26, 3
      %p491 = pnand %p489, %p490
      %p492 = pneg %p491
      // Predicated region
      $region85: #{block8_forward.1} parent=5 // pred_check
        _
      $region86: #{block8_forward.1} parent=5 // pred_check_branch
        %494 = sbr.rel (%p491) target = $region88
      $region87: #{block8_forward.1} parent=5 // pred_region
        %s495 = ssub.s32 %s26, 1
        %p496 = scmp.lt.s32.totalorder %s31, 1
        %s497 = scalar_select %p496, %s31, 1
        %s498 = smul.addr %s497, 136
        %s499 = smul.addr %s498, 8
        %s500 = scalar_lea.vmem %s0, %s499
        %p501 = pneg %p52
        %p502 = pneg %p49
        %p503 = pneg %p73
        %p504 = pneg %p70
        %p505 = pneg %p94
        %p506 = pneg %p91
        %p507 = pneg %p115
        %p508 = pneg %p112
        %p509 = pneg %p136
        %p510 = pneg %p133
        %p511 = pneg %p157
        %p512 = pneg %p154
        %p513 = pneg %p178
        %p514 = pneg %p175
        %p515 = pneg %p199
        %p516 = pneg %p196
        %p517 = pneg %p220
        %p518 = pneg %p217
        %p519 = pneg %p241
        %p520 = pneg %p238
        %p521 = pneg %p262
        %p522 = pneg %p259
        %p523 = pneg %p283
        %p524 = pneg %p280
        %p525 = pneg %p304
        %p526 = pneg %p301
        %p527 = pneg %p325
        %p528 = pneg %p322
        %p529 = pneg %p346
        %p530 = pneg %p343
        %p531 = pneg %p367
        %p532 = pneg %p364
        %p533 = pneg %p388
        %p534 = pneg %p385
        %p535 = pneg %p414
        %p536 = pneg %p411
        %s537 = sand.u32 %s401, 1
        %s538 = scalar_lea.sflag [#allocation3], %s537
        %s539 = sand.u32 %s401, 1
        %s540 = smul.addr %s539, 1088
        %s541 = scalar_lea.vmem [#allocation2], %s540
        %p542 = scmp.lt.s32.totalorder %s31, 1
        %s543 = scalar_select %p542, %s31, 1
        %s544 = smul.addr %s543, 136
        %s545 = smul.addr %s544, 8
        %s546 = scalar_lea.vmem %s0, %s545
        %v548 = vld [vmem:[%s546] sm:$0xff]
        %v549 = vld [vmem:[%s546 + $0x8] sm:$0xff]
        %v550 = vld [vmem:[%s546 + $0x10] sm:$0xff]
        %v551 = vld [vmem:[%s546 + $0x18] sm:$0xff]
        %v552 = vld [vmem:[%s546 + $0x20] sm:$0xff]
        %v553 = vld [vmem:[%s546 + $0x28] sm:$0xff]
        %v554 = vld [vmem:[%s546 + $0x30] sm:$0xff]
        %v555 = vld [vmem:[%s546 + $0x38] sm:$0xff]
        %v556 = vld [vmem:[%s546 + $0x40] sm:$0xff]
        %v557 = vld [vmem:[%s546 + $0x48] sm:$0xff]
        %v558 = vld [vmem:[%s546 + $0x50] sm:$0xff]
        %v559 = vld [vmem:[%s546 + $0x58] sm:$0xff]
        %v560 = vld [vmem:[%s546 + $0x60] sm:$0xff]
        %v561 = vld [vmem:[%s546 + $0x68] sm:$0xff]
        %v562 = vld [vmem:[%s546 + $0x70] sm:$0xff]
        %v563 = vld [vmem:[%s546 + $0x78] sm:$0xff]
        %v564 = vld [vmem:[%s546 + $0x80] sm:$0xff]
        %v565 = vld [vmem:[%s546 + $0x88] sm:$0xff]
        %v566 = vld [vmem:[%s546 + $0x90] sm:$0xff]
        %v567 = vld [vmem:[%s546 + $0x98] sm:$0xff]
        %v568 = vld [vmem:[%s546 + $0xa0] sm:$0xff]
        %v569 = vld [vmem:[%s546 + $0xa8] sm:$0xff]
        %v570 = vld [vmem:[%s546 + $0xb0] sm:$0xff]
        %v571 = vld [vmem:[%s546 + $0xb8] sm:$0xff]
        %v572 = vld [vmem:[%s546 + $0xc0] sm:$0xff]
        %v573 = vld [vmem:[%s546 + $0xc8] sm:$0xff]
        %v574 = vld [vmem:[%s546 + $0xd0] sm:$0xff]
        %v575 = vld [vmem:[%s546 + $0xd8] sm:$0xff]
        %v576 = vld [vmem:[%s546 + $0xe0] sm:$0xff]
        %v577 = vld [vmem:[%s546 + $0xe8] sm:$0xff]
        %v578 = vld [vmem:[%s546 + $0xf0] sm:$0xff]
        %v579 = vld [vmem:[%s546 + $0xf8] sm:$0xff]
        %v580 = vld [vmem:[%s546 + $0x100] sm:$0xff]
        %v581 = vld [vmem:[%s546 + $0x108] sm:$0xff]
        %v582 = vld [vmem:[%s546 + $0x110] sm:$0xff]
        %v583 = vld [vmem:[%s546 + $0x118] sm:$0xff]
        %v584 = vld [vmem:[%s546 + $0x120] sm:$0xff]
        %v585 = vld [vmem:[%s546 + $0x128] sm:$0xff]
        %v586 = vld [vmem:[%s546 + $0x130] sm:$0xff]
        %v587 = vld [vmem:[%s546 + $0x138] sm:$0xff]
        %v588 = vld [vmem:[%s546 + $0x140] sm:$0xff]
        %v589 = vld [vmem:[%s546 + $0x148] sm:$0xff]
        %v590 = vld [vmem:[%s546 + $0x150] sm:$0xff]
        %v591 = vld [vmem:[%s546 + $0x158] sm:$0xff]
        %v592 = vld [vmem:[%s546 + $0x160] sm:$0xff]
        %v593 = vld [vmem:[%s546 + $0x168] sm:$0xff]
        %v594 = vld [vmem:[%s546 + $0x170] sm:$0xff]
        %v595 = vld [vmem:[%s546 + $0x178] sm:$0xff]
        %v596 = vld [vmem:[%s546 + $0x180] sm:$0xff]
        %v597 = vld [vmem:[%s546 + $0x188] sm:$0xff]
        %v598 = vld [vmem:[%s546 + $0x190] sm:$0xff]
        %v599 = vld [vmem:[%s546 + $0x198] sm:$0xff]
        %v600 = vld [vmem:[%s546 + $0x1a0] sm:$0xff]
        %v601 = vld [vmem:[%s546 + $0x1a8] sm:$0xff]
        %v602 = vld [vmem:[%s546 + $0x1b0] sm:$0xff]
        %v603 = vld [vmem:[%s546 + $0x1b8] sm:$0xff]
        %v604 = vld [vmem:[%s546 + $0x1c0] sm:$0xff]
        %v605 = vld [vmem:[%s546 + $0x1c8] sm:$0xff]
        %v606 = vld [vmem:[%s546 + $0x1d0] sm:$0xff]
        %v607 = vld [vmem:[%s546 + $0x1d8] sm:$0xff]
        %v608 = vld [vmem:[%s546 + $0x1e0] sm:$0xff]
        %v609 = vld [vmem:[%s546 + $0x1e8] sm:$0xff]
        %v610 = vld [vmem:[%s546 + $0x1f0] sm:$0xff]
        %v611 = vld [vmem:[%s546 + $0x1f8] sm:$0xff]
        %v612 = vld [vmem:[%s546 + $0x200] sm:$0xff]
        %v613 = vld [vmem:[%s546 + $0x208] sm:$0xff]
        %v614 = vld [vmem:[%s546 + $0x210] sm:$0xff]
        %v615 = vld [vmem:[%s546 + $0x218] sm:$0xff]
        %v616 = vld [vmem:[%s546 + $0x220] sm:$0xff]
        %v617 = vld [vmem:[%s546 + $0x228] sm:$0xff]
        %v618 = vld [vmem:[%s546 + $0x230] sm:$0xff]
        %v619 = vld [vmem:[%s546 + $0x238] sm:$0xff]
        %v620 = vld [vmem:[%s546 + $0x240] sm:$0xff]
        %v621 = vld [vmem:[%s546 + $0x248] sm:$0xff]
        %v622 = vld [vmem:[%s546 + $0x250] sm:$0xff]
        %v623 = vld [vmem:[%s546 + $0x258] sm:$0xff]
        %v624 = vld [vmem:[%s546 + $0x260] sm:$0xff]
        %v625 = vld [vmem:[%s546 + $0x268] sm:$0xff]
        %v626 = vld [vmem:[%s546 + $0x270] sm:$0xff]
        %v627 = vld [vmem:[%s546 + $0x278] sm:$0xff]
        %v628 = vld [vmem:[%s546 + $0x280] sm:$0xff]
        %v629 = vld [vmem:[%s546 + $0x288] sm:$0xff]
        %v630 = vld [vmem:[%s546 + $0x290] sm:$0xff]
        %v631 = vld [vmem:[%s546 + $0x298] sm:$0xff]
        %v632 = vld [vmem:[%s546 + $0x2a0] sm:$0xff]
        %v633 = vld [vmem:[%s546 + $0x2a8] sm:$0xff]
        %v634 = vld [vmem:[%s546 + $0x2b0] sm:$0xff]
        %v635 = vld [vmem:[%s546 + $0x2b8] sm:$0xff]
        %v636 = vld [vmem:[%s546 + $0x2c0] sm:$0xff]
        %v637 = vld [vmem:[%s546 + $0x2c8] sm:$0xff]
        %v638 = vld [vmem:[%s546 + $0x2d0] sm:$0xff]
        %v639 = vld [vmem:[%s546 + $0x2d8] sm:$0xff]
        %v640 = vld [vmem:[%s546 + $0x2e0] sm:$0xff]
        %v641 = vld [vmem:[%s546 + $0x2e8] sm:$0xff]
        %v642 = vld [vmem:[%s546 + $0x2f0] sm:$0xff]
        %v643 = vld [vmem:[%s546 + $0x2f8] sm:$0xff]
        %v644 = vld [vmem:[%s546 + $0x300] sm:$0xff]
        %v645 = vld [vmem:[%s546 + $0x308] sm:$0xff]
        %v646 = vld [vmem:[%s546 + $0x310] sm:$0xff]
        %v647 = vld [vmem:[%s546 + $0x318] sm:$0xff]
        %v648 = vld [vmem:[%s546 + $0x320] sm:$0xff]
        %v649 = vld [vmem:[%s546 + $0x328] sm:$0xff]
        %v650 = vld [vmem:[%s546 + $0x330] sm:$0xff]
        %v651 = vld [vmem:[%s546 + $0x338] sm:$0xff]
        %v652 = vld [vmem:[%s546 + $0x340] sm:$0xff]
        %v653 = vld [vmem:[%s546 + $0x348] sm:$0xff]
        %v654 = vld [vmem:[%s546 + $0x350] sm:$0xff]
        %v655 = vld [vmem:[%s546 + $0x358] sm:$0xff]
        %v656 = vld [vmem:[%s546 + $0x360] sm:$0xff]
        %v657 = vld [vmem:[%s546 + $0x368] sm:$0xff]
        %v658 = vld [vmem:[%s546 + $0x370] sm:$0xff]
        %v659 = vld [vmem:[%s546 + $0x378] sm:$0xff]
        %v660 = vld [vmem:[%s546 + $0x380] sm:$0xff]
        %v661 = vld [vmem:[%s546 + $0x388] sm:$0xff]
        %v662 = vld [vmem:[%s546 + $0x390] sm:$0xff]
        %v663 = vld [vmem:[%s546 + $0x398] sm:$0xff]
        %v664 = vld [vmem:[%s546 + $0x3a0] sm:$0xff]
        %v665 = vld [vmem:[%s546 + $0x3a8] sm:$0xff]
        %v666 = vld [vmem:[%s546 + $0x3b0] sm:$0xff]
        %v667 = vld [vmem:[%s546 + $0x3b8] sm:$0xff]
        %v668 = vld [vmem:[%s546 + $0x3c0] sm:$0xff]
        %v669 = vld [vmem:[%s546 + $0x3c8] sm:$0xff]
        %v670 = vld [vmem:[%s546 + $0x3d0] sm:$0xff]
        %v671 = vld [vmem:[%s546 + $0x3d8] sm:$0xff]
        %v672 = vld [vmem:[%s546 + $0x3e0] sm:$0xff]
        %v673 = vld [vmem:[%s546 + $0x3e8] sm:$0xff]
        %v674 = vld [vmem:[%s546 + $0x3f0] sm:$0xff]
        %v675 = vld [vmem:[%s546 + $0x3f8] sm:$0xff]
        %v676 = vld [vmem:[%s546 + $0x400] sm:$0xff]
        %v677 = vld [vmem:[%s546 + $0x408] sm:$0xff]
        %v678 = vld [vmem:[%s546 + $0x410] sm:$0xff]
        %v679 = vld [vmem:[%s546 + $0x418] sm:$0xff]
        %v680 = vld [vmem:[%s546 + $0x420] sm:$0xff]
        %v681 = vld [vmem:[%s546 + $0x428] sm:$0xff]
        %v682 = vld [vmem:[%s546 + $0x430] sm:$0xff]
        %v683 = vld [vmem:[%s546 + $0x438] sm:$0xff]
        %v684 = vpack.c.bf16 %v565, %v548
        %v685 = vpack.c.bf16 %v566, %v549
        %v686 = vpack.c.bf16 %v567, %v550
        %v687 = vpack.c.bf16 %v568, %v551
        %v688 = vpack.c.bf16 %v569, %v552
        %v689 = vpack.c.bf16 %v570, %v553
        %v690 = vpack.c.bf16 %v571, %v554
        %v691 = vpack.c.bf16 %v572, %v555
        %v692 = vpack.c.bf16 %v573, %v556
        %v693 = vpack.c.bf16 %v574, %v557
        %v694 = vpack.c.bf16 %v575, %v558
        %v695 = vpack.c.bf16 %v576, %v559
        %v696 = vpack.c.bf16 %v577, %v560
        %v697 = vpack.c.bf16 %v578, %v561
        %v698 = vpack.c.bf16 %v579, %v562
        %v699 = vpack.c.bf16 %v580, %v563
        %v700 = vpack.c.bf16 %v581, %v564
        %v701 = vpack.c.bf16 %v599, %v582
        %v702 = vpack.c.bf16 %v600, %v583
        %v703 = vpack.c.bf16 %v601, %v584
        %v704 = vpack.c.bf16 %v602, %v585
        %v705 = vpack.c.bf16 %v603, %v586
        %v706 = vpack.c.bf16 %v604, %v587
        %v707 = vpack.c.bf16 %v605, %v588
        %v708 = vpack.c.bf16 %v606, %v589
        %v709 = vpack.c.bf16 %v607, %v590
        %v710 = vpack.c.bf16 %v608, %v591
        %v711 = vpack.c.bf16 %v609, %v592
        %v712 = vpack.c.bf16 %v610, %v593
        %v713 = vpack.c.bf16 %v611, %v594
        %v714 = vpack.c.bf16 %v612, %v595
        %v715 = vpack.c.bf16 %v613, %v596
        %v716 = vpack.c.bf16 %v614, %v597
        %v717 = vpack.c.bf16 %v615, %v598
        %v718 = vpack.c.bf16 %v633, %v616
        %v719 = vpack.c.bf16 %v634, %v617
        %v720 = vpack.c.bf16 %v635, %v618
        %v721 = vpack.c.bf16 %v636, %v619
        %v722 = vpack.c.bf16 %v637, %v620
        %v723 = vpack.c.bf16 %v638, %v621
        %v724 = vpack.c.bf16 %v639, %v622
        %v725 = vpack.c.bf16 %v640, %v623
        %v726 = vpack.c.bf16 %v641, %v624
        %v727 = vpack.c.bf16 %v642, %v625
        %v728 = vpack.c.bf16 %v643, %v626
        %v729 = vpack.c.bf16 %v644, %v627
        %v730 = vpack.c.bf16 %v645, %v628
        %v731 = vpack.c.bf16 %v646, %v629
        %v732 = vpack.c.bf16 %v647, %v630
        %v733 = vpack.c.bf16 %v648, %v631
        %v734 = vpack.c.bf16 %v649, %v632
        %v735 = vpack.c.bf16 %v667, %v650
        %v736 = vpack.c.bf16 %v668, %v651
        %v737 = vpack.c.bf16 %v669, %v652
        %v738 = vpack.c.bf16 %v670, %v653
        %v739 = vpack.c.bf16 %v671, %v654
        %v740 = vpack.c.bf16 %v672, %v655
        %v741 = vpack.c.bf16 %v673, %v656
        %v742 = vpack.c.bf16 %v674, %v657
        %v743 = vpack.c.bf16 %v675, %v658
        %v744 = vpack.c.bf16 %v676, %v659
        %v745 = vpack.c.bf16 %v677, %v660
        %v746 = vpack.c.bf16 %v678, %v661
        %v747 = vpack.c.bf16 %v679, %v662
        %v748 = vpack.c.bf16 %v680, %v663
        %v749 = vpack.c.bf16 %v681, %v664
        %v750 = vpack.c.bf16 %v682, %v665
        %v751 = vpack.c.bf16 %v683, %v666
        %v752 = vld [vmem:[%s1] sm:$0xff]
        %v753 = vld [vmem:[%s1 + $0x8] sm:$0xff]
        %v754 = vld [vmem:[%s1 + $0x10] sm:$0xff]
        %v755 = vld [vmem:[%s1 + $0x18] sm:$0xff]
        %v756 = vld [vmem:[%s1 + $0x20] sm:$0xff]
        %v757 = vld [vmem:[%s1 + $0x28] sm:$0xff]
        %v758 = vld [vmem:[%s1 + $0x30] sm:$0xff]
        %v759 = vld [vmem:[%s1 + $0x38] sm:$0xff]
        %v760 = vld [vmem:[%s1 + $0x40] sm:$0xff]
        %v761 = vld [vmem:[%s1 + $0x48] sm:$0xff]
        %v762 = vld [vmem:[%s1 + $0x50] sm:$0xff]
        %v763 = vld [vmem:[%s1 + $0x58] sm:$0xff]
        %v764 = vld [vmem:[%s1 + $0x60] sm:$0xff]
        %v765 = vld [vmem:[%s1 + $0x68] sm:$0xff]
        %v766 = vld [vmem:[%s1 + $0x70] sm:$0xff]
        %v767 = vld [vmem:[%s1 + $0x78] sm:$0xff]
        %v768 = vld [vmem:[%s1 + $0x80] sm:$0xff]
        %v769 = vld [vmem:[%s1 + $0x88] sm:$0xff]
        %v770 = vld [vmem:[%s1 + $0x90] sm:$0xff]
        %v771 = vld [vmem:[%s1 + $0x98] sm:$0xff]
        %v772 = vld [vmem:[%s1 + $0xa0] sm:$0xff]
        %v773 = vld [vmem:[%s1 + $0xa8] sm:$0xff]
        %v774 = vld [vmem:[%s1 + $0xb0] sm:$0xff]
        %v775 = vld [vmem:[%s1 + $0xb8] sm:$0xff]
        %v776 = vld [vmem:[%s1 + $0xc0] sm:$0xff]
        %v777 = vld [vmem:[%s1 + $0xc8] sm:$0xff]
        %v778 = vld [vmem:[%s1 + $0xd0] sm:$0xff]
        %v779 = vld [vmem:[%s1 + $0xd8] sm:$0xff]
        %v780 = vld [vmem:[%s1 + $0xe0] sm:$0xff]
        %v781 = vld [vmem:[%s1 + $0xe8] sm:$0xff]
        %v782 = vld [vmem:[%s1 + $0xf0] sm:$0xff]
        %v783 = vld [vmem:[%s1 + $0xf8] sm:$0xff]
        %v784 = vld [vmem:[%s1 + $0x100] sm:$0xff]
        %v785 = vld [vmem:[%s1 + $0x108] sm:$0xff]
        %v786 = vld [vmem:[%s1 + $0x110] sm:$0xff]
        %v787 = vld [vmem:[%s1 + $0x118] sm:$0xff]
        %v788 = vld [vmem:[%s1 + $0x120] sm:$0xff]
        %v789 = vld [vmem:[%s1 + $0x128] sm:$0xff]
        %v790 = vld [vmem:[%s1 + $0x130] sm:$0xff]
        %v791 = vld [vmem:[%s1 + $0x138] sm:$0xff]
        %v792 = vld [vmem:[%s1 + $0x140] sm:$0xff]
        %v793 = vld [vmem:[%s1 + $0x148] sm:$0xff]
        %v794 = vld [vmem:[%s1 + $0x150] sm:$0xff]
        %v795 = vld [vmem:[%s1 + $0x158] sm:$0xff]
        %v796 = vld [vmem:[%s1 + $0x160] sm:$0xff]
        %v797 = vld [vmem:[%s1 + $0x168] sm:$0xff]
        %v798 = vld [vmem:[%s1 + $0x170] sm:$0xff]
        %v799 = vld [vmem:[%s1 + $0x178] sm:$0xff]
        %v800 = vld [vmem:[%s1 + $0x180] sm:$0xff]
        %v801 = vld [vmem:[%s1 + $0x188] sm:$0xff]
        %v802 = vld [vmem:[%s1 + $0x190] sm:$0xff]
        %v803 = vld [vmem:[%s1 + $0x198] sm:$0xff]
        %v804 = vld [vmem:[%s1 + $0x1a0] sm:$0xff]
        %v805 = vld [vmem:[%s1 + $0x1a8] sm:$0xff]
        %v806 = vld [vmem:[%s1 + $0x1b0] sm:$0xff]
        %v807 = vld [vmem:[%s1 + $0x1b8] sm:$0xff]
        %v808 = vld [vmem:[%s1 + $0x1c0] sm:$0xff]
        %v809 = vld [vmem:[%s1 + $0x1c8] sm:$0xff]
        %v810 = vld [vmem:[%s1 + $0x1d0] sm:$0xff]
        %v811 = vld [vmem:[%s1 + $0x1d8] sm:$0xff]
        %v812 = vld [vmem:[%s1 + $0x1e0] sm:$0xff]
        %v813 = vld [vmem:[%s1 + $0x1e8] sm:$0xff]
        %v814 = vld [vmem:[%s1 + $0x1f0] sm:$0xff]
        %v815 = vld [vmem:[%s1 + $0x1f8] sm:$0xff]
        %v816 = vld [vmem:[%s1 + $0x200] sm:$0xff]
        %v817 = vld [vmem:[%s1 + $0x208] sm:$0xff]
        %v818 = vld [vmem:[%s1 + $0x210] sm:$0xff]
        %v819 = vld [vmem:[%s1 + $0x218] sm:$0xff]
        %v820 = vld [vmem:[%s1 + $0x220] sm:$0xff]
        %v821 = vld [vmem:[%s1 + $0x228] sm:$0xff]
        %v822 = vld [vmem:[%s1 + $0x230] sm:$0xff]
        %v823 = vld [vmem:[%s1 + $0x238] sm:$0xff]
        %v824 = vld [vmem:[%s1 + $0x240] sm:$0xff]
        %v825 = vld [vmem:[%s1 + $0x248] sm:$0xff]
        %v826 = vld [vmem:[%s1 + $0x250] sm:$0xff]
        %v827 = vld [vmem:[%s1 + $0x258] sm:$0xff]
        %v828 = vld [vmem:[%s1 + $0x260] sm:$0xff]
        %v829 = vld [vmem:[%s1 + $0x268] sm:$0xff]
        %v830 = vld [vmem:[%s1 + $0x270] sm:$0xff]
        %v831 = vld [vmem:[%s1 + $0x278] sm:$0xff]
        %v832 = vld [vmem:[%s1 + $0x280] sm:$0xff]
        %v833 = vld [vmem:[%s1 + $0x288] sm:$0xff]
        %v834 = vld [vmem:[%s1 + $0x290] sm:$0xff]
        %v835 = vld [vmem:[%s1 + $0x298] sm:$0xff]
        %v836 = vld [vmem:[%s1 + $0x2a0] sm:$0xff]
        %v837 = vld [vmem:[%s1 + $0x2a8] sm:$0xff]
        %v838 = vld [vmem:[%s1 + $0x2b0] sm:$0xff]
        %v839 = vld [vmem:[%s1 + $0x2b8] sm:$0xff]
        %v840 = vld [vmem:[%s1 + $0x2c0] sm:$0xff]
        %v841 = vld [vmem:[%s1 + $0x2c8] sm:$0xff]
        %v842 = vld [vmem:[%s1 + $0x2d0] sm:$0xff]
        %v843 = vld [vmem:[%s1 + $0x2d8] sm:$0xff]
        %v844 = vld [vmem:[%s1 + $0x2e0] sm:$0xff]
        %v845 = vld [vmem:[%s1 + $0x2e8] sm:$0xff]
        %v846 = vld [vmem:[%s1 + $0x2f0] sm:$0xff]
        %v847 = vld [vmem:[%s1 + $0x2f8] sm:$0xff]
        %v848 = vld [vmem:[%s1 + $0x300] sm:$0xff]
        %v849 = vld [vmem:[%s1 + $0x308] sm:$0xff]
        %v850 = vld [vmem:[%s1 + $0x310] sm:$0xff]
        %v851 = vld [vmem:[%s1 + $0x318] sm:$0xff]
        %v852 = vld [vmem:[%s1 + $0x320] sm:$0xff]
        %v853 = vld [vmem:[%s1 + $0x328] sm:$0xff]
        %v854 = vld [vmem:[%s1 + $0x330] sm:$0xff]
        %v855 = vld [vmem:[%s1 + $0x338] sm:$0xff]
        %v856 = vld [vmem:[%s1 + $0x340] sm:$0xff]
        %v857 = vld [vmem:[%s1 + $0x348] sm:$0xff]
        %v858 = vld [vmem:[%s1 + $0x350] sm:$0xff]
        %v859 = vld [vmem:[%s1 + $0x358] sm:$0xff]
        %v860 = vld [vmem:[%s1 + $0x360] sm:$0xff]
        %v861 = vld [vmem:[%s1 + $0x368] sm:$0xff]
        %v862 = vld [vmem:[%s1 + $0x370] sm:$0xff]
        %v863 = vld [vmem:[%s1 + $0x378] sm:$0xff]
        %v864 = vld [vmem:[%s1 + $0x380] sm:$0xff]
        %v865 = vld [vmem:[%s1 + $0x388] sm:$0xff]
        %v866 = vld [vmem:[%s1 + $0x390] sm:$0xff]
        %v867 = vld [vmem:[%s1 + $0x398] sm:$0xff]
        %v868 = vld [vmem:[%s1 + $0x3a0] sm:$0xff]
        %v869 = vld [vmem:[%s1 + $0x3a8] sm:$0xff]
        %v870 = vld [vmem:[%s1 + $0x3b0] sm:$0xff]
        %v871 = vld [vmem:[%s1 + $0x3b8] sm:$0xff]
        %v872 = vld [vmem:[%s1 + $0x3c0] sm:$0xff]
        %v873 = vld [vmem:[%s1 + $0x3c8] sm:$0xff]
        %v874 = vld [vmem:[%s1 + $0x3d0] sm:$0xff]
        %v875 = vld [vmem:[%s1 + $0x3d8] sm:$0xff]
        %v876 = vld [vmem:[%s1 + $0x3e0] sm:$0xff]
        %v877 = vld [vmem:[%s1 + $0x3e8] sm:$0xff]
        %v878 = vld [vmem:[%s1 + $0x3f0] sm:$0xff]
        %v879 = vld [vmem:[%s1 + $0x3f8] sm:$0xff]
        %v880 = vld [vmem:[%s1 + $0x400] sm:$0xff]
        %v881 = vld [vmem:[%s1 + $0x408] sm:$0xff]
        %v882 = vld [vmem:[%s1 + $0x410] sm:$0xff]
        %v883 = vld [vmem:[%s1 + $0x418] sm:$0xff]
        %v884 = vld [vmem:[%s1 + $0x420] sm:$0xff]
        %v885 = vld [vmem:[%s1 + $0x428] sm:$0xff]
        %v886 = vld [vmem:[%s1 + $0x430] sm:$0xff]
        %v887 = vld [vmem:[%s1 + $0x438] sm:$0xff]
        %v888 = vld [vmem:[%s1 + $0x440] sm:$0xff]
        %v889 = vld [vmem:[%s1 + $0x448] sm:$0xff]
        %v890 = vld [vmem:[%s1 + $0x450] sm:$0xff]
        %v891 = vld [vmem:[%s1 + $0x458] sm:$0xff]
        %v892 = vld [vmem:[%s1 + $0x460] sm:$0xff]
        %v893 = vld [vmem:[%s1 + $0x468] sm:$0xff]
        %v894 = vld [vmem:[%s1 + $0x470] sm:$0xff]
        %v895 = vld [vmem:[%s1 + $0x478] sm:$0xff]
        %v896 = vld [vmem:[%s1 + $0x480] sm:$0xff]
        %v897 = vld [vmem:[%s1 + $0x488] sm:$0xff]
        %v898 = vld [vmem:[%s1 + $0x490] sm:$0xff]
        %v899 = vld [vmem:[%s1 + $0x498] sm:$0xff]
        %v900 = vld [vmem:[%s1 + $0x4a0] sm:$0xff]
        %v901 = vld [vmem:[%s1 + $0x4a8] sm:$0xff]
        %v902 = vld [vmem:[%s1 + $0x4b0] sm:$0xff]
        %v903 = vld [vmem:[%s1 + $0x4b8] sm:$0xff]
        %v904 = vld [vmem:[%s1 + $0x4c0] sm:$0xff]
        %v905 = vld [vmem:[%s1 + $0x4c8] sm:$0xff]
        %v906 = vld [vmem:[%s1 + $0x4d0] sm:$0xff]
        %v907 = vld [vmem:[%s1 + $0x4d8] sm:$0xff]
        %v908 = vld [vmem:[%s1 + $0x4e0] sm:$0xff]
        %v909 = vld [vmem:[%s1 + $0x4e8] sm:$0xff]
        %v910 = vld [vmem:[%s1 + $0x4f0] sm:$0xff]
        %v911 = vld [vmem:[%s1 + $0x4f8] sm:$0xff]
        %v912 = vld [vmem:[%s1 + $0x500] sm:$0xff]
        %v913 = vld [vmem:[%s1 + $0x508] sm:$0xff]
        %v914 = vld [vmem:[%s1 + $0x510] sm:$0xff]
        %v915 = vld [vmem:[%s1 + $0x518] sm:$0xff]
        %v916 = vld [vmem:[%s1 + $0x520] sm:$0xff]
        %v917 = vld [vmem:[%s1 + $0x528] sm:$0xff]
        %v918 = vld [vmem:[%s1 + $0x530] sm:$0xff]
        %v919 = vld [vmem:[%s1 + $0x538] sm:$0xff]
        %v920 = vld [vmem:[%s1 + $0x540] sm:$0xff]
        %v921 = vld [vmem:[%s1 + $0x548] sm:$0xff]
        %v922 = vld [vmem:[%s1 + $0x550] sm:$0xff]
        %v923 = vld [vmem:[%s1 + $0x558] sm:$0xff]
        %v924 = vld [vmem:[%s1 + $0x560] sm:$0xff]
        %v925 = vld [vmem:[%s1 + $0x568] sm:$0xff]
        %v926 = vld [vmem:[%s1 + $0x570] sm:$0xff]
        %v927 = vld [vmem:[%s1 + $0x578] sm:$0xff]
        %v928 = vld [vmem:[%s1 + $0x580] sm:$0xff]
        %v929 = vld [vmem:[%s1 + $0x588] sm:$0xff]
        %v930 = vld [vmem:[%s1 + $0x590] sm:$0xff]
        %v931 = vld [vmem:[%s1 + $0x598] sm:$0xff]
        %v932 = vld [vmem:[%s1 + $0x5a0] sm:$0xff]
        %v933 = vld [vmem:[%s1 + $0x5a8] sm:$0xff]
        %v934 = vld [vmem:[%s1 + $0x5b0] sm:$0xff]
        %v935 = vld [vmem:[%s1 + $0x5b8] sm:$0xff]
        %v936 = vld [vmem:[%s1 + $0x5c0] sm:$0xff]
        %v937 = vld [vmem:[%s1 + $0x5c8] sm:$0xff]
        %v938 = vld [vmem:[%s1 + $0x5d0] sm:$0xff]
        %v939 = vld [vmem:[%s1 + $0x5d8] sm:$0xff]
        %v940 = vld [vmem:[%s1 + $0x5e0] sm:$0xff]
        %v941 = vld [vmem:[%s1 + $0x5e8] sm:$0xff]
        %v942 = vld [vmem:[%s1 + $0x5f0] sm:$0xff]
        %v943 = vld [vmem:[%s1 + $0x5f8] sm:$0xff]
        %v944 = vld [vmem:[%s1 + $0x600] sm:$0xff]
        %v945 = vld [vmem:[%s1 + $0x608] sm:$0xff]
        %v946 = vld [vmem:[%s1 + $0x610] sm:$0xff]
        %v947 = vld [vmem:[%s1 + $0x618] sm:$0xff]
        %v948 = vld [vmem:[%s1 + $0x620] sm:$0xff]
        %v949 = vld [vmem:[%s1 + $0x628] sm:$0xff]
        %v950 = vld [vmem:[%s1 + $0x630] sm:$0xff]
        %v951 = vld [vmem:[%s1 + $0x638] sm:$0xff]
        %v952 = vld [vmem:[%s1 + $0x640] sm:$0xff]
        %v953 = vld [vmem:[%s1 + $0x648] sm:$0xff]
        %v954 = vld [vmem:[%s1 + $0x650] sm:$0xff]
        %v955 = vld [vmem:[%s1 + $0x658] sm:$0xff]
        %v956 = vld [vmem:[%s1 + $0x660] sm:$0xff]
        %v957 = vld [vmem:[%s1 + $0x668] sm:$0xff]
        %v958 = vld [vmem:[%s1 + $0x670] sm:$0xff]
        %v959 = vld [vmem:[%s1 + $0x678] sm:$0xff]
        %v960 = vld [vmem:[%s1 + $0x680] sm:$0xff]
        %v961 = vld [vmem:[%s1 + $0x688] sm:$0xff]
        %v962 = vld [vmem:[%s1 + $0x690] sm:$0xff]
        %v963 = vld [vmem:[%s1 + $0x698] sm:$0xff]
        %v964 = vld [vmem:[%s1 + $0x6a0] sm:$0xff]
        %v965 = vld [vmem:[%s1 + $0x6a8] sm:$0xff]
        %v966 = vld [vmem:[%s1 + $0x6b0] sm:$0xff]
        %v967 = vld [vmem:[%s1 + $0x6b8] sm:$0xff]
        %v968 = vld [vmem:[%s1 + $0x6c0] sm:$0xff]
        %v969 = vld [vmem:[%s1 + $0x6c8] sm:$0xff]
        %v970 = vld [vmem:[%s1 + $0x6d0] sm:$0xff]
        %v971 = vld [vmem:[%s1 + $0x6d8] sm:$0xff]
        %v972 = vld [vmem:[%s1 + $0x6e0] sm:$0xff]
        %v973 = vld [vmem:[%s1 + $0x6e8] sm:$0xff]
        %v974 = vld [vmem:[%s1 + $0x6f0] sm:$0xff]
        %v975 = vld [vmem:[%s1 + $0x6f8] sm:$0xff]
        %v976 = vld [vmem:[%s1 + $0x700] sm:$0xff]
        %v977 = vld [vmem:[%s1 + $0x708] sm:$0xff]
        %v978 = vld [vmem:[%s1 + $0x710] sm:$0xff]
        %v979 = vld [vmem:[%s1 + $0x718] sm:$0xff]
        %v980 = vld [vmem:[%s1 + $0x720] sm:$0xff]
        %v981 = vld [vmem:[%s1 + $0x728] sm:$0xff]
        %v982 = vld [vmem:[%s1 + $0x730] sm:$0xff]
        %v983 = vld [vmem:[%s1 + $0x738] sm:$0xff]
        %v984 = vld [vmem:[%s1 + $0x740] sm:$0xff]
        %v985 = vld [vmem:[%s1 + $0x748] sm:$0xff]
        %v986 = vld [vmem:[%s1 + $0x750] sm:$0xff]
        %v987 = vld [vmem:[%s1 + $0x758] sm:$0xff]
        %v988 = vld [vmem:[%s1 + $0x760] sm:$0xff]
        %v989 = vld [vmem:[%s1 + $0x768] sm:$0xff]
        %v990 = vld [vmem:[%s1 + $0x770] sm:$0xff]
        %v991 = vld [vmem:[%s1 + $0x778] sm:$0xff]
        %v992 = vld [vmem:[%s1 + $0x780] sm:$0xff]
        %v993 = vld [vmem:[%s1 + $0x788] sm:$0xff]
        %v994 = vld [vmem:[%s1 + $0x790] sm:$0xff]
        %v995 = vld [vmem:[%s1 + $0x798] sm:$0xff]
        %v996 = vld [vmem:[%s1 + $0x7a0] sm:$0xff]
        %v997 = vld [vmem:[%s1 + $0x7a8] sm:$0xff]
        %v998 = vld [vmem:[%s1 + $0x7b0] sm:$0xff]
        %v999 = vld [vmem:[%s1 + $0x7b8] sm:$0xff]
        %v1000 = vld [vmem:[%s1 + $0x7c0] sm:$0xff]
        %v1001 = vld [vmem:[%s1 + $0x7c8] sm:$0xff]
        %v1002 = vld [vmem:[%s1 + $0x7d0] sm:$0xff]
        %v1003 = vld [vmem:[%s1 + $0x7d8] sm:$0xff]
        %v1004 = vld [vmem:[%s1 + $0x7e0] sm:$0xff]
        %v1005 = vld [vmem:[%s1 + $0x7e8] sm:$0xff]
        %v1006 = vld [vmem:[%s1 + $0x7f0] sm:$0xff]
        %v1007 = vld [vmem:[%s1 + $0x7f8] sm:$0xff]
        %v1008 = vld [vmem:[%s1 + $0x800] sm:$0xff]
        %v1009 = vld [vmem:[%s1 + $0x808] sm:$0xff]
        %v1010 = vld [vmem:[%s1 + $0x810] sm:$0xff]
        %v1011 = vld [vmem:[%s1 + $0x818] sm:$0xff]
        %v1272 = vunpack.c.l.b16 %v752
        %v1273 = vunpack.c.h.b16 %v752
        %v1274 = vunpack.c.l.b16 %v753
        %v1275 = vunpack.c.h.b16 %v753
        %v1276 = vunpack.c.l.b16 %v754
        %v1277 = vunpack.c.h.b16 %v754
        %v1278 = vunpack.c.l.b16 %v755
        %v1279 = vunpack.c.h.b16 %v755
        %v1280 = vunpack.c.l.b16 %v756
        %v1281 = vunpack.c.h.b16 %v756
        %v1282 = vunpack.c.l.b16 %v757
        %v1283 = vunpack.c.h.b16 %v757
        %v1284 = vunpack.c.l.b16 %v758
        %v1285 = vunpack.c.h.b16 %v758
        %v1286 = vunpack.c.l.b16 %v759
        %v1287 = vunpack.c.h.b16 %v759
        %v1288 = vunpack.c.l.b16 %v760
        %v1289 = vunpack.c.h.b16 %v760
        %v1290 = vunpack.c.l.b16 %v761
        %v1291 = vunpack.c.h.b16 %v761
        %v1292 = vunpack.c.l.b16 %v762
        %v1293 = vunpack.c.h.b16 %v762
        %v1294 = vunpack.c.l.b16 %v763
        %v1295 = vunpack.c.h.b16 %v763
        %v1296 = vunpack.c.l.b16 %v764
        %v1297 = vunpack.c.h.b16 %v764
        %v1298 = vunpack.c.l.b16 %v765
        %v1299 = vunpack.c.h.b16 %v765
        %v1300 = vunpack.c.l.b16 %v766
        %v1301 = vunpack.c.h.b16 %v766
        %v1302 = vunpack.c.l.b16 %v767
        %v1303 = vunpack.c.h.b16 %v767
        %v1304 = vunpack.c.l.b16 %v768
        %v1305 = vunpack.c.h.b16 %v768
        %v1306 = vunpack.c.l.b16 %v769
        %v1307 = vunpack.c.h.b16 %v769
        %v1308 = vunpack.c.l.b16 %v770
        %v1309 = vunpack.c.h.b16 %v770
        %v1310 = vunpack.c.l.b16 %v771
        %v1311 = vunpack.c.h.b16 %v771
        %v1312 = vunpack.c.l.b16 %v772
        %v1313 = vunpack.c.h.b16 %v772
        %v1314 = vunpack.c.l.b16 %v773
        %v1315 = vunpack.c.h.b16 %v773
        %v1316 = vunpack.c.l.b16 %v774
        %v1317 = vunpack.c.h.b16 %v774
        %v1318 = vunpack.c.l.b16 %v775
        %v1319 = vunpack.c.h.b16 %v775
        %v1320 = vunpack.c.l.b16 %v776
        %v1321 = vunpack.c.h.b16 %v776
        %v1322 = vunpack.c.l.b16 %v777
        %v1323 = vunpack.c.h.b16 %v777
        %v1324 = vunpack.c.l.b16 %v778
        %v1325 = vunpack.c.h.b16 %v778
        %v1326 = vunpack.c.l.b16 %v779
        %v1327 = vunpack.c.h.b16 %v779
        %v1328 = vunpack.c.l.b16 %v780
        %v1329 = vunpack.c.h.b16 %v780
        %v1330 = vunpack.c.l.b16 %v781
        %v1331 = vunpack.c.h.b16 %v781
        %v1332 = vunpack.c.l.b16 %v782
        %v1333 = vunpack.c.h.b16 %v782
        %v1334 = vunpack.c.l.b16 %v783
        %v1335 = vunpack.c.h.b16 %v783
        %v1336 = vunpack.c.l.b16 %v784
        %v1337 = vunpack.c.h.b16 %v784
        %v1338 = vunpack.c.l.b16 %v785
        %v1339 = vunpack.c.h.b16 %v785
        %v1340 = vunpack.c.l.b16 %v786
        %v1341 = vunpack.c.h.b16 %v786
        %v1342 = vunpack.c.l.b16 %v787
        %v1343 = vunpack.c.h.b16 %v787
        %v1344 = vunpack.c.l.b16 %v788
        %v1345 = vunpack.c.h.b16 %v788
        %v1346 = vunpack.c.l.b16 %v789
        %v1347 = vunpack.c.h.b16 %v789
        %v1348 = vunpack.c.l.b16 %v790
        %v1349 = vunpack.c.h.b16 %v790
        %v1350 = vunpack.c.l.b16 %v791
        %v1351 = vunpack.c.h.b16 %v791
        %v1352 = vunpack.c.l.b16 %v792
        %v1353 = vunpack.c.h.b16 %v792
        %v1354 = vunpack.c.l.b16 %v793
        %v1355 = vunpack.c.h.b16 %v793
        %v1356 = vunpack.c.l.b16 %v794
        %v1357 = vunpack.c.h.b16 %v794
        %v1358 = vunpack.c.l.b16 %v795
        %v1359 = vunpack.c.h.b16 %v795
        %v1360 = vunpack.c.l.b16 %v796
        %v1361 = vunpack.c.h.b16 %v796
        %v1362 = vunpack.c.l.b16 %v797
        %v1363 = vunpack.c.h.b16 %v797
        %v1364 = vunpack.c.l.b16 %v798
        %v1365 = vunpack.c.h.b16 %v798
        %v1366 = vunpack.c.l.b16 %v799
        %v1367 = vunpack.c.h.b16 %v799
        %v1368 = vunpack.c.l.b16 %v800
        %v1369 = vunpack.c.h.b16 %v800
        %v1370 = vunpack.c.l.b16 %v801
        %v1371 = vunpack.c.h.b16 %v801
        %v1372 = vunpack.c.l.b16 %v802
        %v1373 = vunpack.c.h.b16 %v802
        %v1374 = vunpack.c.l.b16 %v803
        %v1375 = vunpack.c.h.b16 %v803
        %v1376 = vunpack.c.l.b16 %v804
        %v1377 = vunpack.c.h.b16 %v804
        %v1378 = vunpack.c.l.b16 %v805
        %v1379 = vunpack.c.h.b16 %v805
        %v1380 = vunpack.c.l.b16 %v806
        %v1381 = vunpack.c.h.b16 %v806
        %v1382 = vunpack.c.l.b16 %v807
        %v1383 = vunpack.c.h.b16 %v807
        %v1384 = vunpack.c.l.b16 %v808
        %v1385 = vunpack.c.h.b16 %v808
        %v1386 = vunpack.c.l.b16 %v809
        %v1387 = vunpack.c.h.b16 %v809
        %v1388 = vunpack.c.l.b16 %v810
        %v1389 = vunpack.c.h.b16 %v810
        %v1390 = vunpack.c.l.b16 %v811
        %v1391 = vunpack.c.h.b16 %v811
        %v1392 = vunpack.c.l.b16 %v812
        %v1393 = vunpack.c.h.b16 %v812
        %v1394 = vunpack.c.l.b16 %v813
        %v1395 = vunpack.c.h.b16 %v813
        %v1396 = vunpack.c.l.b16 %v814
        %v1397 = vunpack.c.h.b16 %v814
        %v1398 = vunpack.c.l.b16 %v815
        %v1399 = vunpack.c.h.b16 %v815
        %v1400 = vunpack.c.l.b16 %v816
        %v1401 = vunpack.c.h.b16 %v816
        %v1402 = vunpack.c.l.b16 %v817
        %v1403 = vunpack.c.h.b16 %v817
        %v1404 = vunpack.c.l.b16 %v818
        %v1405 = vunpack.c.h.b16 %v818
        %v1406 = vunpack.c.l.b16 %v819
        %v1407 = vunpack.c.h.b16 %v819
        %v1408 = vunpack.c.l.b16 %v820
        %v1409 = vunpack.c.h.b16 %v820
        %v1410 = vunpack.c.l.b16 %v821
        %v1411 = vunpack.c.h.b16 %v821
        %v1412 = vunpack.c.l.b16 %v822
        %v1413 = vunpack.c.h.b16 %v822
        %v1414 = vunpack.c.l.b16 %v823
        %v1415 = vunpack.c.h.b16 %v823
        %v1416 = vunpack.c.l.b16 %v824
        %v1417 = vunpack.c.h.b16 %v824
        %v1418 = vunpack.c.l.b16 %v825
        %v1419 = vunpack.c.h.b16 %v825
        %v1420 = vunpack.c.l.b16 %v826
        %v1421 = vunpack.c.h.b16 %v826
        %v1422 = vunpack.c.l.b16 %v827
        %v1423 = vunpack.c.h.b16 %v827
        %v1424 = vunpack.c.l.b16 %v828
        %v1425 = vunpack.c.h.b16 %v828
        %v1426 = vunpack.c.l.b16 %v829
        %v1427 = vunpack.c.h.b16 %v829
        %v1428 = vunpack.c.l.b16 %v830
        %v1429 = vunpack.c.h.b16 %v830
        %v1430 = vunpack.c.l.b16 %v831
        %v1431 = vunpack.c.h.b16 %v831
        %v1432 = vunpack.c.l.b16 %v832
        %v1433 = vunpack.c.h.b16 %v832
        %v1434 = vunpack.c.l.b16 %v833
        %v1435 = vunpack.c.h.b16 %v833
        %v1436 = vunpack.c.l.b16 %v834
        %v1437 = vunpack.c.h.b16 %v834
        %v1438 = vunpack.c.l.b16 %v835
        %v1439 = vunpack.c.h.b16 %v835
        %v1440 = vunpack.c.l.b16 %v836
        %v1441 = vunpack.c.h.b16 %v836
        %v1442 = vunpack.c.l.b16 %v837
        %v1443 = vunpack.c.h.b16 %v837
        %v1444 = vunpack.c.l.b16 %v838
        %v1445 = vunpack.c.h.b16 %v838
        %v1446 = vunpack.c.l.b16 %v839
        %v1447 = vunpack.c.h.b16 %v839
        %v1448 = vunpack.c.l.b16 %v840
        %v1449 = vunpack.c.h.b16 %v840
        %v1450 = vunpack.c.l.b16 %v841
        %v1451 = vunpack.c.h.b16 %v841
        %v1452 = vunpack.c.l.b16 %v842
        %v1453 = vunpack.c.h.b16 %v842
        %v1454 = vunpack.c.l.b16 %v843
        %v1455 = vunpack.c.h.b16 %v843
        %v1456 = vunpack.c.l.b16 %v844
        %v1457 = vunpack.c.h.b16 %v844
        %v1458 = vunpack.c.l.b16 %v845
        %v1459 = vunpack.c.h.b16 %v845
        %v1460 = vunpack.c.l.b16 %v846
        %v1461 = vunpack.c.h.b16 %v846
        %v1462 = vunpack.c.l.b16 %v847
        %v1463 = vunpack.c.h.b16 %v847
        %v1464 = vunpack.c.l.b16 %v848
        %v1465 = vunpack.c.h.b16 %v848
        %v1466 = vunpack.c.l.b16 %v849
        %v1467 = vunpack.c.h.b16 %v849
        %v1468 = vunpack.c.l.b16 %v850
        %v1469 = vunpack.c.h.b16 %v850
        %v1470 = vunpack.c.l.b16 %v851
        %v1471 = vunpack.c.h.b16 %v851
        %v1472 = vunpack.c.l.b16 %v852
        %v1473 = vunpack.c.h.b16 %v852
        %v1474 = vunpack.c.l.b16 %v853
        %v1475 = vunpack.c.h.b16 %v853
        %v1476 = vunpack.c.l.b16 %v854
        %v1477 = vunpack.c.h.b16 %v854
        %v1478 = vunpack.c.l.b16 %v855
        %v1479 = vunpack.c.h.b16 %v855
        %v1480 = vunpack.c.l.b16 %v856
        %v1481 = vunpack.c.h.b16 %v856
        %v1482 = vunpack.c.l.b16 %v857
        %v1483 = vunpack.c.h.b16 %v857
        %v1484 = vunpack.c.l.b16 %v858
        %v1485 = vunpack.c.h.b16 %v858
        %v1486 = vunpack.c.l.b16 %v859
        %v1487 = vunpack.c.h.b16 %v859
        %v1488 = vunpack.c.l.b16 %v860
        %v1489 = vunpack.c.h.b16 %v860
        %v1490 = vunpack.c.l.b16 %v861
        %v1491 = vunpack.c.h.b16 %v861
        %v1492 = vunpack.c.l.b16 %v862
        %v1493 = vunpack.c.h.b16 %v862
        %v1494 = vunpack.c.l.b16 %v863
        %v1495 = vunpack.c.h.b16 %v863
        %v1496 = vunpack.c.l.b16 %v864
        %v1497 = vunpack.c.h.b16 %v864
        %v1498 = vunpack.c.l.b16 %v865
        %v1499 = vunpack.c.h.b16 %v865
        %v1500 = vunpack.c.l.b16 %v866
        %v1501 = vunpack.c.h.b16 %v866
        %v1502 = vunpack.c.l.b16 %v867
        %v1503 = vunpack.c.h.b16 %v867
        %v1504 = vunpack.c.l.b16 %v868
        %v1505 = vunpack.c.h.b16 %v868
        %v1506 = vunpack.c.l.b16 %v869
        %v1507 = vunpack.c.h.b16 %v869
        %v1508 = vunpack.c.l.b16 %v870
        %v1509 = vunpack.c.h.b16 %v870
        %v1510 = vunpack.c.l.b16 %v871
        %v1511 = vunpack.c.h.b16 %v871
        %v1512 = vunpack.c.l.b16 %v872
        %v1513 = vunpack.c.h.b16 %v872
        %v1514 = vunpack.c.l.b16 %v873
        %v1515 = vunpack.c.h.b16 %v873
        %v1516 = vunpack.c.l.b16 %v874
        %v1517 = vunpack.c.h.b16 %v874
        %v1518 = vunpack.c.l.b16 %v875
        %v1519 = vunpack.c.h.b16 %v875
        %v1520 = vunpack.c.l.b16 %v876
        %v1521 = vunpack.c.h.b16 %v876
        %v1522 = vunpack.c.l.b16 %v877
        %v1523 = vunpack.c.h.b16 %v877
        %v1524 = vunpack.c.l.b16 %v878
        %v1525 = vunpack.c.h.b16 %v878
        %v1526 = vunpack.c.l.b16 %v879
        %v1527 = vunpack.c.h.b16 %v879
        %v1528 = vunpack.c.l.b16 %v880
        %v1529 = vunpack.c.h.b16 %v880
        %v1530 = vunpack.c.l.b16 %v881
        %v1531 = vunpack.c.h.b16 %v881
        %v1532 = vunpack.c.l.b16 %v882
        %v1533 = vunpack.c.h.b16 %v882
        %v1534 = vunpack.c.l.b16 %v883
        %v1535 = vunpack.c.h.b16 %v883
        %v1536 = vunpack.c.l.b16 %v884
        %v1537 = vunpack.c.h.b16 %v884
        %v1538 = vunpack.c.l.b16 %v885
        %v1539 = vunpack.c.h.b16 %v885
        %v1540 = vunpack.c.l.b16 %v886
        %v1541 = vunpack.c.h.b16 %v886
        %v1542 = vunpack.c.l.b16 %v887
        %v1543 = vunpack.c.h.b16 %v887
        %v1544 = vunpack.c.l.b16 %v888
        %v1545 = vunpack.c.h.b16 %v888
        %v1546 = vunpack.c.l.b16 %v889
        %v1547 = vunpack.c.h.b16 %v889
        %v1548 = vunpack.c.l.b16 %v890
        %v1549 = vunpack.c.h.b16 %v890
        %v1550 = vunpack.c.l.b16 %v891
        %v1551 = vunpack.c.h.b16 %v891
        %v1552 = vunpack.c.l.b16 %v892
        %v1553 = vunpack.c.h.b16 %v892
        %v1554 = vunpack.c.l.b16 %v893
        %v1555 = vunpack.c.h.b16 %v893
        %v1556 = vunpack.c.l.b16 %v894
        %v1557 = vunpack.c.h.b16 %v894
        %v1558 = vunpack.c.l.b16 %v895
        %v1559 = vunpack.c.h.b16 %v895
        %v1560 = vunpack.c.l.b16 %v896
        %v1561 = vunpack.c.h.b16 %v896
        %v1562 = vunpack.c.l.b16 %v897
        %v1563 = vunpack.c.h.b16 %v897
        %v1564 = vunpack.c.l.b16 %v898
        %v1565 = vunpack.c.h.b16 %v898
        %v1566 = vunpack.c.l.b16 %v899
        %v1567 = vunpack.c.h.b16 %v899
        %v1568 = vunpack.c.l.b16 %v900
        %v1569 = vunpack.c.h.b16 %v900
        %v1570 = vunpack.c.l.b16 %v901
        %v1571 = vunpack.c.h.b16 %v901
        %v1572 = vunpack.c.l.b16 %v902
        %v1573 = vunpack.c.h.b16 %v902
        %v1574 = vunpack.c.l.b16 %v903
        %v1575 = vunpack.c.h.b16 %v903
        %v1576 = vunpack.c.l.b16 %v904
        %v1577 = vunpack.c.h.b16 %v904
        %v1578 = vunpack.c.l.b16 %v905
        %v1579 = vunpack.c.h.b16 %v905
        %v1580 = vunpack.c.l.b16 %v906
        %v1581 = vunpack.c.h.b16 %v906
        %v1582 = vunpack.c.l.b16 %v907
        %v1583 = vunpack.c.h.b16 %v907
        %v1584 = vunpack.c.l.b16 %v908
        %v1585 = vunpack.c.h.b16 %v908
        %v1586 = vunpack.c.l.b16 %v909
        %v1587 = vunpack.c.h.b16 %v909
        %v1588 = vunpack.c.l.b16 %v910
        %v1589 = vunpack.c.h.b16 %v910
        %v1590 = vunpack.c.l.b16 %v911
        %v1591 = vunpack.c.h.b16 %v911
        %v1592 = vunpack.c.l.b16 %v912
        %v1593 = vunpack.c.h.b16 %v912
        %v1594 = vunpack.c.l.b16 %v913
        %v1595 = vunpack.c.h.b16 %v913
        %v1596 = vunpack.c.l.b16 %v914
        %v1597 = vunpack.c.h.b16 %v914
        %v1598 = vunpack.c.l.b16 %v915
        %v1599 = vunpack.c.h.b16 %v915
        %v1600 = vunpack.c.l.b16 %v916
        %v1601 = vunpack.c.h.b16 %v916
        %v1602 = vunpack.c.l.b16 %v917
        %v1603 = vunpack.c.h.b16 %v917
        %v1604 = vunpack.c.l.b16 %v918
        %v1605 = vunpack.c.h.b16 %v918
        %v1606 = vunpack.c.l.b16 %v919
        %v1607 = vunpack.c.h.b16 %v919
        %v1608 = vunpack.c.l.b16 %v920
        %v1609 = vunpack.c.h.b16 %v920
        %v1610 = vunpack.c.l.b16 %v921
        %v1611 = vunpack.c.h.b16 %v921
        %v1612 = vunpack.c.l.b16 %v922
        %v1613 = vunpack.c.h.b16 %v922
        %v1614 = vunpack.c.l.b16 %v923
        %v1615 = vunpack.c.h.b16 %v923
        %v1616 = vunpack.c.l.b16 %v924
        %v1617 = vunpack.c.h.b16 %v924
        %v1618 = vunpack.c.l.b16 %v925
        %v1619 = vunpack.c.h.b16 %v925
        %v1620 = vunpack.c.l.b16 %v926
        %v1621 = vunpack.c.h.b16 %v926
        %v1622 = vunpack.c.l.b16 %v927
        %v1623 = vunpack.c.h.b16 %v927
        %v1624 = vunpack.c.l.b16 %v928
        %v1625 = vunpack.c.h.b16 %v928
        %v1626 = vunpack.c.l.b16 %v929
        %v1627 = vunpack.c.h.b16 %v929
        %v1628 = vunpack.c.l.b16 %v930
        %v1629 = vunpack.c.h.b16 %v930
        %v1630 = vunpack.c.l.b16 %v931
        %v1631 = vunpack.c.h.b16 %v931
        %v1632 = vunpack.c.l.b16 %v932
        %v1633 = vunpack.c.h.b16 %v932
        %v1634 = vunpack.c.l.b16 %v933
        %v1635 = vunpack.c.h.b16 %v933
        %v1636 = vunpack.c.l.b16 %v934
        %v1637 = vunpack.c.h.b16 %v934
        %v1638 = vunpack.c.l.b16 %v935
        %v1639 = vunpack.c.h.b16 %v935
        %v1640 = vunpack.c.l.b16 %v936
        %v1641 = vunpack.c.h.b16 %v936
        %v1642 = vunpack.c.l.b16 %v937
        %v1643 = vunpack.c.h.b16 %v937
        %v1644 = vunpack.c.l.b16 %v938
        %v1645 = vunpack.c.h.b16 %v938
        %v1646 = vunpack.c.l.b16 %v939
        %v1647 = vunpack.c.h.b16 %v939
        %v1648 = vunpack.c.l.b16 %v940
        %v1649 = vunpack.c.h.b16 %v940
        %v1650 = vunpack.c.l.b16 %v941
        %v1651 = vunpack.c.h.b16 %v941
        %v1652 = vunpack.c.l.b16 %v942
        %v1653 = vunpack.c.h.b16 %v942
        %v1654 = vunpack.c.l.b16 %v943
        %v1655 = vunpack.c.h.b16 %v943
        %v1656 = vunpack.c.l.b16 %v944
        %v1657 = vunpack.c.h.b16 %v944
        %v1658 = vunpack.c.l.b16 %v945
        %v1659 = vunpack.c.h.b16 %v945
        %v1660 = vunpack.c.l.b16 %v946
        %v1661 = vunpack.c.h.b16 %v946
        %v1662 = vunpack.c.l.b16 %v947
        %v1663 = vunpack.c.h.b16 %v947
        %v1664 = vunpack.c.l.b16 %v948
        %v1665 = vunpack.c.h.b16 %v948
        %v1666 = vunpack.c.l.b16 %v949
        %v1667 = vunpack.c.h.b16 %v949
        %v1668 = vunpack.c.l.b16 %v950
        %v1669 = vunpack.c.h.b16 %v950
        %v1670 = vunpack.c.l.b16 %v951
        %v1671 = vunpack.c.h.b16 %v951
        %v1672 = vunpack.c.l.b16 %v952
        %v1673 = vunpack.c.h.b16 %v952
        %v1674 = vunpack.c.l.b16 %v953
        %v1675 = vunpack.c.h.b16 %v953
        %v1676 = vunpack.c.l.b16 %v954
        %v1677 = vunpack.c.h.b16 %v954
        %v1678 = vunpack.c.l.b16 %v955
        %v1679 = vunpack.c.h.b16 %v955
        %v1680 = vunpack.c.l.b16 %v956
        %v1681 = vunpack.c.h.b16 %v956
        %v1682 = vunpack.c.l.b16 %v957
        %v1683 = vunpack.c.h.b16 %v957
        %v1684 = vunpack.c.l.b16 %v958
        %v1685 = vunpack.c.h.b16 %v958
        %v1686 = vunpack.c.l.b16 %v959
        %v1687 = vunpack.c.h.b16 %v959
        %v1688 = vunpack.c.l.b16 %v960
        %v1689 = vunpack.c.h.b16 %v960
        %v1690 = vunpack.c.l.b16 %v961
        %v1691 = vunpack.c.h.b16 %v961
        %v1692 = vunpack.c.l.b16 %v962
        %v1693 = vunpack.c.h.b16 %v962
        %v1694 = vunpack.c.l.b16 %v963
        %v1695 = vunpack.c.h.b16 %v963
        %v1696 = vunpack.c.l.b16 %v964
        %v1697 = vunpack.c.h.b16 %v964
        %v1698 = vunpack.c.l.b16 %v965
        %v1699 = vunpack.c.h.b16 %v965
        %v1700 = vunpack.c.l.b16 %v966
        %v1701 = vunpack.c.h.b16 %v966
        %v1702 = vunpack.c.l.b16 %v967
        %v1703 = vunpack.c.h.b16 %v967
        %v1704 = vunpack.c.l.b16 %v968
        %v1705 = vunpack.c.h.b16 %v968
        %v1706 = vunpack.c.l.b16 %v969
        %v1707 = vunpack.c.h.b16 %v969
        %v1708 = vunpack.c.l.b16 %v970
        %v1709 = vunpack.c.h.b16 %v970
        %v1710 = vunpack.c.l.b16 %v971
        %v1711 = vunpack.c.h.b16 %v971
        %v1712 = vunpack.c.l.b16 %v972
        %v1713 = vunpack.c.h.b16 %v972
        %v1714 = vunpack.c.l.b16 %v973
        %v1715 = vunpack.c.h.b16 %v973
        %v1716 = vunpack.c.l.b16 %v974
        %v1717 = vunpack.c.h.b16 %v974
        %v1718 = vunpack.c.l.b16 %v975
        %v1719 = vunpack.c.h.b16 %v975
        %v1720 = vunpack.c.l.b16 %v976
        %v1721 = vunpack.c.h.b16 %v976
        %v1722 = vunpack.c.l.b16 %v977
        %v1723 = vunpack.c.h.b16 %v977
        %v1724 = vunpack.c.l.b16 %v978
        %v1725 = vunpack.c.h.b16 %v978
        %v1726 = vunpack.c.l.b16 %v979
        %v1727 = vunpack.c.h.b16 %v979
        %v1728 = vunpack.c.l.b16 %v980
        %v1729 = vunpack.c.h.b16 %v980
        %v1730 = vunpack.c.l.b16 %v981
        %v1731 = vunpack.c.h.b16 %v981
        %v1732 = vunpack.c.l.b16 %v982
        %v1733 = vunpack.c.h.b16 %v982
        %v1734 = vunpack.c.l.b16 %v983
        %v1735 = vunpack.c.h.b16 %v983
        %v1736 = vunpack.c.l.b16 %v984
        %v1737 = vunpack.c.h.b16 %v984
        %v1738 = vunpack.c.l.b16 %v985
        %v1739 = vunpack.c.h.b16 %v985
        %v1740 = vunpack.c.l.b16 %v986
        %v1741 = vunpack.c.h.b16 %v986
        %v1742 = vunpack.c.l.b16 %v987
        %v1743 = vunpack.c.h.b16 %v987
        %v1744 = vunpack.c.l.b16 %v988
        %v1745 = vunpack.c.h.b16 %v988
        %v1746 = vunpack.c.l.b16 %v989
        %v1747 = vunpack.c.h.b16 %v989
        %v1748 = vunpack.c.l.b16 %v990
        %v1749 = vunpack.c.h.b16 %v990
        %v1750 = vunpack.c.l.b16 %v991
        %v1751 = vunpack.c.h.b16 %v991
        %v1752 = vunpack.c.l.b16 %v992
        %v1753 = vunpack.c.h.b16 %v992
        %v1754 = vunpack.c.l.b16 %v993
        %v1755 = vunpack.c.h.b16 %v993
        %v1756 = vunpack.c.l.b16 %v994
        %v1757 = vunpack.c.h.b16 %v994
        %v1758 = vunpack.c.l.b16 %v995
        %v1759 = vunpack.c.h.b16 %v995
        %v1760 = vunpack.c.l.b16 %v996
        %v1761 = vunpack.c.h.b16 %v996
        %v1762 = vunpack.c.l.b16 %v997
        %v1763 = vunpack.c.h.b16 %v997
        %v1764 = vunpack.c.l.b16 %v998
        %v1765 = vunpack.c.h.b16 %v998
        %v1766 = vunpack.c.l.b16 %v999
        %v1767 = vunpack.c.h.b16 %v999
        %v1768 = vunpack.c.l.b16 %v1000
        %v1769 = vunpack.c.h.b16 %v1000
        %v1770 = vunpack.c.l.b16 %v1001
        %v1771 = vunpack.c.h.b16 %v1001
        %v1772 = vunpack.c.l.b16 %v1002
        %v1773 = vunpack.c.h.b16 %v1002
        %v1774 = vunpack.c.l.b16 %v1003
        %v1775 = vunpack.c.h.b16 %v1003
        %v1776 = vunpack.c.l.b16 %v1004
        %v1777 = vunpack.c.h.b16 %v1004
        %v1778 = vunpack.c.l.b16 %v1005
        %v1779 = vunpack.c.h.b16 %v1005
        %v1780 = vunpack.c.l.b16 %v1006
        %v1781 = vunpack.c.h.b16 %v1006
        %v1782 = vunpack.c.l.b16 %v1007
        %v1783 = vunpack.c.h.b16 %v1007
        %v1784 = vunpack.c.l.b16 %v1008
        %v1785 = vunpack.c.h.b16 %v1008
        %v1786 = vunpack.c.l.b16 %v1009
        %v1787 = vunpack.c.h.b16 %v1009
        %v1788 = vunpack.c.l.b16 %v1010
        %v1789 = vunpack.c.h.b16 %v1010
        %v1790 = vunpack.c.l.b16 %v1011
        %v1791 = vunpack.c.h.b16 %v1011
        %v1792 = vpack.c.b16 %v1274, %v1272
        %v1793 = vpack.c.b16 %v1275, %v1273
        %v1794 = vpack.c.b16 %v1278, %v1276
        %v1795 = vpack.c.b16 %v1279, %v1277
        %v1796 = vpack.c.b16 %v1282, %v1280
        %v1797 = vpack.c.b16 %v1283, %v1281
        %v1798 = vpack.c.b16 %v1286, %v1284
        %v1799 = vpack.c.b16 %v1287, %v1285
        %v1800 = vpack.c.b16 %v1290, %v1288
        %v1801 = vpack.c.b16 %v1291, %v1289
        %v1802 = vpack.c.b16 %v1294, %v1292
        %v1803 = vpack.c.b16 %v1295, %v1293
        %v1804 = vpack.c.b16 %v1298, %v1296
        %v1805 = vpack.c.b16 %v1299, %v1297
        %v1806 = vpack.c.b16 %v1302, %v1300
        %v1807 = vpack.c.b16 %v1303, %v1301
        %v1808 = vpack.c.b16 %v1306, %v1304
        %v1809 = vpack.c.b16 %v1307, %v1305
        %v1810 = vpack.c.b16 %v1310, %v1308
        %v1811 = vpack.c.b16 %v1311, %v1309
        %v1812 = vpack.c.b16 %v1314, %v1312
        %v1813 = vpack.c.b16 %v1315, %v1313
        %v1814 = vpack.c.b16 %v1318, %v1316
        %v1815 = vpack.c.b16 %v1319, %v1317
        %v1816 = vpack.c.b16 %v1322, %v1320
        %v1817 = vpack.c.b16 %v1323, %v1321
        %v1818 = vpack.c.b16 %v1326, %v1324
        %v1819 = vpack.c.b16 %v1327, %v1325
        %v1820 = vpack.c.b16 %v1330, %v1328
        %v1821 = vpack.c.b16 %v1331, %v1329
        %v1822 = vpack.c.b16 %v1334, %v1332
        %v1823 = vpack.c.b16 %v1335, %v1333
        %v1824 = vpack.c.b16 %v1338, %v1336
        %v1825 = vpack.c.b16 %v1339, %v1337
        %v1826 = vpack.c.b16 %v1342, %v1340
        %v1827 = vpack.c.b16 %v1343, %v1341
        %v1828 = vpack.c.b16 %v1346, %v1344
        %v1829 = vpack.c.b16 %v1347, %v1345
        %v1830 = vpack.c.b16 %v1350, %v1348
        %v1831 = vpack.c.b16 %v1351, %v1349
        %v1832 = vpack.c.b16 %v1354, %v1352
        %v1833 = vpack.c.b16 %v1355, %v1353
        %v1834 = vpack.c.b16 %v1358, %v1356
        %v1835 = vpack.c.b16 %v1359, %v1357
        %v1836 = vpack.c.b16 %v1362, %v1360
        %v1837 = vpack.c.b16 %v1363, %v1361
        %v1838 = vpack.c.b16 %v1366, %v1364
        %v1839 = vpack.c.b16 %v1367, %v1365
        %v1840 = vpack.c.b16 %v1370, %v1368
        %v1841 = vpack.c.b16 %v1371, %v1369
        %v1842 = vpack.c.b16 %v1374, %v1372
        %v1843 = vpack.c.b16 %v1375, %v1373
        %v1844 = vpack.c.b16 %v1378, %v1376
        %v1845 = vpack.c.b16 %v1379, %v1377
        %v1846 = vpack.c.b16 %v1382, %v1380
        %v1847 = vpack.c.b16 %v1383, %v1381
        %v1848 = vpack.c.b16 %v1386, %v1384
        %v1849 = vpack.c.b16 %v1387, %v1385
        %v1850 = vpack.c.b16 %v1390, %v1388
        %v1851 = vpack.c.b16 %v1391, %v1389
        %v1852 = vpack.c.b16 %v1394, %v1392
        %v1853 = vpack.c.b16 %v1395, %v1393
        %v1854 = vpack.c.b16 %v1398, %v1396
        %v1855 = vpack.c.b16 %v1399, %v1397
        %v1856 = vpack.c.b16 %v1402, %v1400
        %v1857 = vpack.c.b16 %v1403, %v1401
        %v1858 = vpack.c.b16 %v1406, %v1404
        %v1859 = vpack.c.b16 %v1407, %v1405
        %v1860 = vpack.c.b16 %v1410, %v1408
        %v1861 = vpack.c.b16 %v1411, %v1409
        %v1862 = vpack.c.b16 %v1414, %v1412
        %v1863 = vpack.c.b16 %v1415, %v1413
        %v1864 = vpack.c.b16 %v1418, %v1416
        %v1865 = vpack.c.b16 %v1419, %v1417
        %v1866 = vpack.c.b16 %v1422, %v1420
        %v1867 = vpack.c.b16 %v1423, %v1421
        %v1868 = vpack.c.b16 %v1426, %v1424
        %v1869 = vpack.c.b16 %v1427, %v1425
        %v1870 = vpack.c.b16 %v1430, %v1428
        %v1871 = vpack.c.b16 %v1431, %v1429
        %v1872 = vpack.c.b16 %v1434, %v1432
        %v1873 = vpack.c.b16 %v1435, %v1433
        %v1874 = vpack.c.b16 %v1438, %v1436
        %v1875 = vpack.c.b16 %v1439, %v1437
        %v1876 = vpack.c.b16 %v1442, %v1440
        %v1877 = vpack.c.b16 %v1443, %v1441
        %v1878 = vpack.c.b16 %v1446, %v1444
        %v1879 = vpack.c.b16 %v1447, %v1445
        %v1880 = vpack.c.b16 %v1450, %v1448
        %v1881 = vpack.c.b16 %v1451, %v1449
        %v1882 = vpack.c.b16 %v1454, %v1452
        %v1883 = vpack.c.b16 %v1455, %v1453
        %v1884 = vpack.c.b16 %v1458, %v1456
        %v1885 = vpack.c.b16 %v1459, %v1457
        %v1886 = vpack.c.b16 %v1462, %v1460
        %v1887 = vpack.c.b16 %v1463, %v1461
        %v1888 = vpack.c.b16 %v1466, %v1464
        %v1889 = vpack.c.b16 %v1467, %v1465
        %v1890 = vpack.c.b16 %v1470, %v1468
        %v1891 = vpack.c.b16 %v1471, %v1469
        %v1892 = vpack.c.b16 %v1474, %v1472
        %v1893 = vpack.c.b16 %v1475, %v1473
        %v1894 = vpack.c.b16 %v1478, %v1476
        %v1895 = vpack.c.b16 %v1479, %v1477
        %v1896 = vpack.c.b16 %v1482, %v1480
        %v1897 = vpack.c.b16 %v1483, %v1481
        %v1898 = vpack.c.b16 %v1486, %v1484
        %v1899 = vpack.c.b16 %v1487, %v1485
        %v1900 = vpack.c.b16 %v1490, %v1488
        %v1901 = vpack.c.b16 %v1491, %v1489
        %v1902 = vpack.c.b16 %v1494, %v1492
        %v1903 = vpack.c.b16 %v1495, %v1493
        %v1904 = vpack.c.b16 %v1498, %v1496
        %v1905 = vpack.c.b16 %v1499, %v1497
        %v1906 = vpack.c.b16 %v1502, %v1500
        %v1907 = vpack.c.b16 %v1503, %v1501
        %v1908 = vpack.c.b16 %v1506, %v1504
        %v1909 = vpack.c.b16 %v1507, %v1505
        %v1910 = vpack.c.b16 %v1510, %v1508
        %v1911 = vpack.c.b16 %v1511, %v1509
        %v1912 = vpack.c.b16 %v1514, %v1512
        %v1913 = vpack.c.b16 %v1515, %v1513
        %v1914 = vpack.c.b16 %v1518, %v1516
        %v1915 = vpack.c.b16 %v1519, %v1517
        %v1916 = vpack.c.b16 %v1522, %v1520
        %v1917 = vpack.c.b16 %v1523, %v1521
        %v1918 = vpack.c.b16 %v1526, %v1524
        %v1919 = vpack.c.b16 %v1527, %v1525
        %v1920 = vpack.c.b16 %v1530, %v1528
        %v1921 = vpack.c.b16 %v1531, %v1529
        %v1922 = vpack.c.b16 %v1534, %v1532
        %v1923 = vpack.c.b16 %v1535, %v1533
        %v1924 = vpack.c.b16 %v1538, %v1536
        %v1925 = vpack.c.b16 %v1539, %v1537
        %v1926 = vpack.c.b16 %v1542, %v1540
        %v1927 = vpack.c.b16 %v1543, %v1541
        %v1928 = vpack.c.b16 %v1546, %v1544
        %v1929 = vpack.c.b16 %v1547, %v1545
        %v1930 = vpack.c.b16 %v1550, %v1548
        %v1931 = vpack.c.b16 %v1551, %v1549
        %v1932 = vpack.c.b16 %v1554, %v1552
        %v1933 = vpack.c.b16 %v1555, %v1553
        %v1934 = vpack.c.b16 %v1558, %v1556
        %v1935 = vpack.c.b16 %v1559, %v1557
        %v1936 = vpack.c.b16 %v1562, %v1560
        %v1937 = vpack.c.b16 %v1563, %v1561
        %v1938 = vpack.c.b16 %v1566, %v1564
        %v1939 = vpack.c.b16 %v1567, %v1565
        %v1940 = vpack.c.b16 %v1570, %v1568
        %v1941 = vpack.c.b16 %v1571, %v1569
        %v1942 = vpack.c.b16 %v1574, %v1572
        %v1943 = vpack.c.b16 %v1575, %v1573
        %v1944 = vpack.c.b16 %v1578, %v1576
        %v1945 = vpack.c.b16 %v1579, %v1577
        %v1946 = vpack.c.b16 %v1582, %v1580
        %v1947 = vpack.c.b16 %v1583, %v1581
        %v1948 = vpack.c.b16 %v1586, %v1584
        %v1949 = vpack.c.b16 %v1587, %v1585
        %v1950 = vpack.c.b16 %v1590, %v1588
        %v1951 = vpack.c.b16 %v1591, %v1589
        %v1952 = vpack.c.b16 %v1594, %v1592
        %v1953 = vpack.c.b16 %v1595, %v1593
        %v1954 = vpack.c.b16 %v1598, %v1596
        %v1955 = vpack.c.b16 %v1599, %v1597
        %v1956 = vpack.c.b16 %v1602, %v1600
        %v1957 = vpack.c.b16 %v1603, %v1601
        %v1958 = vpack.c.b16 %v1606, %v1604
        %v1959 = vpack.c.b16 %v1607, %v1605
        %v1960 = vpack.c.b16 %v1610, %v1608
        %v1961 = vpack.c.b16 %v1611, %v1609
        %v1962 = vpack.c.b16 %v1614, %v1612
        %v1963 = vpack.c.b16 %v1615, %v1613
        %v1964 = vpack.c.b16 %v1618, %v1616
        %v1965 = vpack.c.b16 %v1619, %v1617
        %v1966 = vpack.c.b16 %v1622, %v1620
        %v1967 = vpack.c.b16 %v1623, %v1621
        %v1968 = vpack.c.b16 %v1626, %v1624
        %v1969 = vpack.c.b16 %v1627, %v1625
        %v1970 = vpack.c.b16 %v1630, %v1628
        %v1971 = vpack.c.b16 %v1631, %v1629
        %v1972 = vpack.c.b16 %v1634, %v1632
        %v1973 = vpack.c.b16 %v1635, %v1633
        %v1974 = vpack.c.b16 %v1638, %v1636
        %v1975 = vpack.c.b16 %v1639, %v1637
        %v1976 = vpack.c.b16 %v1642, %v1640
        %v1977 = vpack.c.b16 %v1643, %v1641
        %v1978 = vpack.c.b16 %v1646, %v1644
        %v1979 = vpack.c.b16 %v1647, %v1645
        %v1980 = vpack.c.b16 %v1650, %v1648
        %v1981 = vpack.c.b16 %v1651, %v1649
        %v1982 = vpack.c.b16 %v1654, %v1652
        %v1983 = vpack.c.b16 %v1655, %v1653
        %v1984 = vpack.c.b16 %v1658, %v1656
        %v1985 = vpack.c.b16 %v1659, %v1657
        %v1986 = vpack.c.b16 %v1662, %v1660
        %v1987 = vpack.c.b16 %v1663, %v1661
        %v1988 = vpack.c.b16 %v1666, %v1664
        %v1989 = vpack.c.b16 %v1667, %v1665
        %v1990 = vpack.c.b16 %v1670, %v1668
        %v1991 = vpack.c.b16 %v1671, %v1669
        %v1992 = vpack.c.b16 %v1674, %v1672
        %v1993 = vpack.c.b16 %v1675, %v1673
        %v1994 = vpack.c.b16 %v1678, %v1676
        %v1995 = vpack.c.b16 %v1679, %v1677
        %v1996 = vpack.c.b16 %v1682, %v1680
        %v1997 = vpack.c.b16 %v1683, %v1681
        %v1998 = vpack.c.b16 %v1686, %v1684
        %v1999 = vpack.c.b16 %v1687, %v1685
        %v2000 = vpack.c.b16 %v1690, %v1688
        %v2001 = vpack.c.b16 %v1691, %v1689
        %v2002 = vpack.c.b16 %v1694, %v1692
        %v2003 = vpack.c.b16 %v1695, %v1693
        %v2004 = vpack.c.b16 %v1698, %v1696
        %v2005 = vpack.c.b16 %v1699, %v1697
        %v2006 = vpack.c.b16 %v1702, %v1700
        %v2007 = vpack.c.b16 %v1703, %v1701
        %v2008 = vpack.c.b16 %v1706, %v1704
        %v2009 = vpack.c.b16 %v1707, %v1705
        %v2010 = vpack.c.b16 %v1710, %v1708
        %v2011 = vpack.c.b16 %v1711, %v1709
        %v2012 = vpack.c.b16 %v1714, %v1712
        %v2013 = vpack.c.b16 %v1715, %v1713
        %v2014 = vpack.c.b16 %v1718, %v1716
        %v2015 = vpack.c.b16 %v1719, %v1717
        %v2016 = vpack.c.b16 %v1722, %v1720
        %v2017 = vpack.c.b16 %v1723, %v1721
        %v2018 = vpack.c.b16 %v1726, %v1724
        %v2019 = vpack.c.b16 %v1727, %v1725
        %v2020 = vpack.c.b16 %v1730, %v1728
        %v2021 = vpack.c.b16 %v1731, %v1729
        %v2022 = vpack.c.b16 %v1734, %v1732
        %v2023 = vpack.c.b16 %v1735, %v1733
        %v2024 = vpack.c.b16 %v1738, %v1736
        %v2025 = vpack.c.b16 %v1739, %v1737
        %v2026 = vpack.c.b16 %v1742, %v1740
        %v2027 = vpack.c.b16 %v1743, %v1741
        %v2028 = vpack.c.b16 %v1746, %v1744
        %v2029 = vpack.c.b16 %v1747, %v1745
        %v2030 = vpack.c.b16 %v1750, %v1748
        %v2031 = vpack.c.b16 %v1751, %v1749
        %v2032 = vpack.c.b16 %v1754, %v1752
        %v2033 = vpack.c.b16 %v1755, %v1753
        %v2034 = vpack.c.b16 %v1758, %v1756
        %v2035 = vpack.c.b16 %v1759, %v1757
        %v2036 = vpack.c.b16 %v1762, %v1760
        %v2037 = vpack.c.b16 %v1763, %v1761
        %v2038 = vpack.c.b16 %v1766, %v1764
        %v2039 = vpack.c.b16 %v1767, %v1765
        %v2040 = vpack.c.b16 %v1770, %v1768
        %v2041 = vpack.c.b16 %v1771, %v1769
        %v2042 = vpack.c.b16 %v1774, %v1772
        %v2043 = vpack.c.b16 %v1775, %v1773
        %v2044 = vpack.c.b16 %v1778, %v1776
        %v2045 = vpack.c.b16 %v1779, %v1777
        %v2046 = vpack.c.b16 %v1782, %v1780
        %v2047 = vpack.c.b16 %v1783, %v1781
        %v2048 = vpack.c.b16 %v1786, %v1784
        %v2049 = vpack.c.b16 %v1787, %v1785
        %v2050 = vpack.c.b16 %v1790, %v1788
        %v2051 = vpack.c.b16 %v1791, %v1789
        %vm2312 = vcmask 261120
        %v2314 = vsel %vm2312, %v700, 0
        %v2317 = vsel %vm2312, %v717, 0
        %v2320 = vsel %vm2312, %v734, 0
        %v2323 = vsel %vm2312, %v751, 0
        %2325 = vmatprep.subr.bf16.mxu0 %v1793
        %2326 = vmatpush1.bf16.msra.mxu0 %v1792
        %2327 = vmatprep.subr.bf16.mxu0 %v1795
        %2328 = vmatpush1.bf16.msra.mxu0 %v1794
        %2329 = vmatprep.subr.bf16.mxu0 %v1797
        %2330 = vmatpush1.bf16.msra.mxu0 %v1796
        %2331 = vmatprep.subr.bf16.mxu0 %v1799
        %2332 = vmatpush1.bf16.msra.mxu0 %v1798
        %2333 = vmatprep.subr.bf16.mxu0 %v1801
        %2334 = vmatpush1.bf16.msra.mxu0 %v1800
        %2335 = vmatprep.subr.bf16.mxu0 %v1803
        %2336 = vmatpush1.bf16.msra.mxu0 %v1802
        %2337 = vmatprep.subr.bf16.mxu0 %v1805
        %2338 = vmatpush1.bf16.msra.mxu0 %v1804
        %2339 = vmatprep.subr.bf16.mxu0 %v1807
        %2340 = vmatpush1.bf16.msra.mxu0 %v1806
        %2341 = vmatprep.subr.bf16.mxu0 %v1809
        %2342 = vmatpush1.bf16.msra.mxu0 %v1808
        %2343 = vmatprep.subr.bf16.mxu0 %v1811
        %2344 = vmatpush1.bf16.msra.mxu0 %v1810
        %2345 = vmatprep.subr.bf16.mxu0 %v1813
        %2346 = vmatpush1.bf16.msra.mxu0 %v1812
        %2347 = vmatprep.subr.bf16.mxu0 %v1815
        %2348 = vmatpush1.bf16.msra.mxu0 %v1814
        %2349 = vmatprep.subr.bf16.mxu0 %v1817
        %2350 = vmatpush1.bf16.msra.mxu0 %v1816
        %2351 = vmatprep.subr.bf16.mxu0 %v1819
        %2352 = vmatpush1.bf16.msra.mxu0 %v1818
        %2353 = vmatprep.subr.bf16.mxu0 %v1821
        %2354 = vmatpush1.bf16.msra.mxu0 %v1820
        %2355 = vmatprep.subr.bf16.mxu0 %v1823
        %2356 = vmatpush1.bf16.msra.mxu0 %v1822
        %2357 = vmatprep.mubr.bf16.mxu0 %v685
        %2358 = vmatmul.mubr.bf16.gmra.mrb[0].mxu0 %v684
        %v2359 = vpop.f32.mrb[0].mxu0
        %v2360 = vadd.f32 0.0, %v2359
        %v2361 = vpop.f32.mrb[0].mxu0
        %v2362 = vadd.f32 0.0, %v2361
        %v2363 = vpop.f32.mrb[0].mxu0
        %v2364 = vadd.f32 0.0, %v2363
        %v2365 = vpop.f32.mrb[0].mxu0
        %v2366 = vadd.f32 0.0, %v2365
        %2367 = vmatprep.mubr.bf16.mxu0 %v702
        %2368 = vmatmul.mubr.bf16.gmra.mrb[0].mxu0 %v701
        %v2369 = vpop.f32.mrb[0].mxu0
        %v2370 = vadd.f32 0.0, %v2369
        %v2371 = vpop.f32.mrb[0].mxu0
        %v2372 = vadd.f32 0.0, %v2371
        %v2373 = vpop.f32.mrb[0].mxu0
        %v2374 = vadd.f32 0.0, %v2373
        %v2375 = vpop.f32.mrb[0].mxu0
        %v2376 = vadd.f32 0.0, %v2375
        %2377 = vmatprep.mubr.bf16.mxu0 %v719
        %2378 = vmatmul.mubr.bf16.gmra.mrb[0].mxu0 %v718
        %v2379 = vpop.f32.mrb[0].mxu0
        %v2380 = vadd.f32 0.0, %v2379
        %v2381 = vpop.f32.mrb[0].mxu0
        %v2382 = vadd.f32 0.0, %v2381
        %v2383 = vpop.f32.mrb[0].mxu0
        %v2384 = vadd.f32 0.0, %v2383
        %v2385 = vpop.f32.mrb[0].mxu0
        %v2386 = vadd.f32 0.0, %v2385
        %2387 = vmatprep.mubr.bf16.mxu0 %v736
        %2388 = vmatmul.mubr.bf16.gmra.mrb[0].mxu0 %v735
        %v2389 = vpop.f32.mrb[0].mxu0
        %v2390 = vadd.f32 0.0, %v2389
        %v2391 = vpop.f32.mrb[0].mxu0
        %v2392 = vadd.f32 0.0, %v2391
        %v2393 = vpop.f32.mrb[0].mxu0
        %v2394 = vadd.f32 0.0, %v2393
        %v2395 = vpop.f32.mrb[0].mxu0
        %v2396 = vadd.f32 0.0, %v2395
        %2397 = vdwg.mxu0
        %2398 = vmatprep.subr.bf16.mxu0 %v1825
        %2399 = vmatpush1.bf16.msra.mxu0 %v1824
        %2400 = vmatprep.subr.bf16.mxu0 %v1827
        %2401 = vmatpush1.bf16.msra.mxu0 %v1826
        %2402 = vmatprep.subr.bf16.mxu0 %v1829
        %2403 = vmatpush1.bf16.msra.mxu0 %v1828
        %2404 = vmatprep.subr.bf16.mxu0 %v1831
        %2405 = vmatpush1.bf16.msra.mxu0 %v1830
        %2406 = vmatprep.subr.bf16.mxu0 %v1833
        %2407 = vmatpush1.bf16.msra.mxu0 %v1832
        %2408 = vmatprep.subr.bf16.mxu0 %v1835
        %2409 = vmatpush1.bf16.msra.mxu0 %v1834
        %2410 = vmatprep.subr.bf16.mxu0 %v1837
        %2411 = vmatpush1.bf16.msra.mxu0 %v1836
        %2412 = vmatprep.subr.bf16.mxu0 %v1839
        %2413 = vmatpush1.bf16.msra.mxu0 %v1838
        %2414 = vmatprep.subr.bf16.mxu0 %v1841
        %2415 = vmatpush1.bf16.msra.mxu0 %v1840
        %2416 = vmatprep.subr.bf16.mxu0 %v1843
        %2417 = vmatpush1.bf16.msra.mxu0 %v1842
        %2418 = vmatprep.subr.bf16.mxu0 %v1845
        %2419 = vmatpush1.bf16.msra.mxu0 %v1844
        %2420 = vmatprep.subr.bf16.mxu0 %v1847
        %2421 = vmatpush1.bf16.msra.mxu0 %v1846
        %2422 = vmatprep.subr.bf16.mxu0 %v1849
        %2423 = vmatpush1.bf16.msra.mxu0 %v1848
        %2424 = vmatprep.subr.bf16.mxu0 %v1851
        %2425 = vmatpush1.bf16.msra.mxu0 %v1850
        %2426 = vmatprep.subr.bf16.mxu0 %v1853
        %2427 = vmatpush1.bf16.msra.mxu0 %v1852
        %2428 = vmatprep.subr.bf16.mxu0 %v1855
        %2429 = vmatpush1.bf16.msra.mxu0 %v1854
        %2430 = vmatprep.mubr.bf16.mxu0 %v687
        %2431 = vmatmul.mubr.bf16.gmra.mrb[0].mxu0 %v686
        %v2432 = vpop.f32.mrb[0].mxu0
        %v2433 = vadd.f32 %v2360, %v2432
        %v2434 = vpop.f32.mrb[0].mxu0
        %v2435 = vadd.f32 %v2362, %v2434
        %v2436 = vpop.f32.mrb[0].mxu0
        %v2437 = vadd.f32 %v2364, %v2436
        %v2438 = vpop.f32.mrb[0].mxu0
        %v2439 = vadd.f32 %v2366, %v2438
        %2440 = vmatprep.mubr.bf16.mxu0 %v704
        %2441 = vmatmul.mubr.bf16.gmra.mrb[0].mxu0 %v703
        %v2442 = vpop.f32.mrb[0].mxu0
        %v2443 = vadd.f32 %v2370, %v2442
        %v2444 = vpop.f32.mrb[0].mxu0
        %v2445 = vadd.f32 %v2372, %v2444
        %v2446 = vpop.f32.mrb[0].mxu0
        %v2447 = vadd.f32 %v2374, %v2446
        %v2448 = vpop.f32.mrb[0].mxu0
        %v2449 = vadd.f32 %v2376, %v2448
        %2450 = vmatprep.mubr.bf16.mxu0 %v721
        %2451 = vmatmul.mubr.bf16.gmra.mrb[0].mxu0 %v720
        %v2452 = vpop.f32.mrb[0].mxu0
        %v2453 = vadd.f32 %v2380, %v2452
        %v2454 = vpop.f32.mrb[0].mxu0
        %v2455 = vadd.f32 %v2382, %v2454
        %v2456 = vpop.f32.mrb[0].mxu0
        %v2457 = vadd.f32 %v2384, %v2456
        %v2458 = vpop.f32.mrb[0].mxu0
        %v2459 = vadd.f32 %v2386, %v2458
        %2460 = vmatprep.mubr.bf16.mxu0 %v738
        %2461 = vmatmul.mubr.bf16.gmra.mrb[0].mxu0 %v737
        %v2462 = vpop.f32.mrb[0].mxu0
        %v2463 = vadd.f32 %v2390, %v2462
        %v2464 = vpop.f32.mrb[0].mxu0
        %v2465 = vadd.f32 %v2392, %v2464
        %v2466 = vpop.f32.mrb[0].mxu0
        %v2467 = vadd.f32 %v2394, %v2466
        %v2468 = vpop.f32.mrb[0].mxu0
        %v2469 = vadd.f32 %v2396, %v2468
        %2470 = vdwg.mxu0
        %2471 = vmatprep.subr.bf16.mxu0 %v1857
        %2472 = vmatpush1.bf16.msra.mxu0 %v1856
        %2473 = vmatprep.subr.bf16.mxu0 %v1859
        %2474 = vmatpush1.bf16.msra.mxu0 %v1858
        %2475 = vmatprep.subr.bf16.mxu0 %v1861
        %2476 = vmatpush1.bf16.msra.mxu0 %v1860
        %2477 = vmatprep.subr.bf16.mxu0 %v1863
        %2478 = vmatpush1.bf16.msra.mxu0 %v1862
        %2479 = vmatprep.subr.bf16.mxu0 %v1865
        %2480 = vmatpush1.bf16.msra.mxu0 %v1864
        %2481 = vmatprep.subr.bf16.mxu0 %v1867
        %2482 = vmatpush1.bf16.msra.mxu0 %v1866
        %2483 = vmatprep.subr.bf16.mxu0 %v1869
        %2484 = vmatpush1.bf16.msra.mxu0 %v1868
        %2485 = vmatprep.subr.bf16.mxu0 %v1871
        %2486 = vmatpush1.bf16.msra.mxu0 %v1870
        %2487 = vmatprep.subr.bf16.mxu0 %v1873
        %2488 = vmatpush1.bf16.msra.mxu0 %v1872
        %2489 = vmatprep.subr.bf16.mxu0 %v1875
        %2490 = vmatpush1.bf16.msra.mxu0 %v1874
        %2491 = vmatprep.subr.bf16.mxu0 %v1877
        %2492 = vmatpush1.bf16.msra.mxu0 %v1876
        %2493 = vmatprep.subr.bf16.mxu0 %v1879
        %2494 = vmatpush1.bf16.msra.mxu0 %v1878
        %2495 = vmatprep.subr.bf16.mxu0 %v1881
        %2496 = vmatpush1.bf16.msra.mxu0 %v1880
        %2497 = vmatprep.subr.bf16.mxu0 %v1883
        %2498 = vmatpush1.bf16.msra.mxu0 %v1882
        %2499 = vmatprep.subr.bf16.mxu0 %v1885
        %2500 = vmatpush1.bf16.msra.mxu0 %v1884
        %2501 = vmatprep.subr.bf16.mxu0 %v1887
        %2502 = vmatpush1.bf16.msra.mxu0 %v1886
        %2503 = vmatprep.mubr.bf16.mxu0 %v689
        %2504 = vmatmul.mubr.bf16.gmra.mrb[0].mxu0 %v688
        %v2505 = vpop.f32.mrb[0].mxu0
        %v2506 = vadd.f32 %v2433, %v2505
        %v2507 = vpop.f32.mrb[0].mxu0
        %v2508 = vadd.f32 %v2435, %v2507
        %v2509 = vpop.f32.mrb[0].mxu0
        %v2510 = vadd.f32 %v2437, %v2509
        %v2511 = vpop.f32.mrb[0].mxu0
        %v2512 = vadd.f32 %v2439, %v2511
        %2513 = vmatprep.mubr.bf16.mxu0 %v706
        %2514 = vmatmul.mubr.bf16.gmra.mrb[0].mxu0 %v705
        %v2515 = vpop.f32.mrb[0].mxu0
        %v2516 = vadd.f32 %v2443, %v2515
        %v2517 = vpop.f32.mrb[0].mxu0
        %v2518 = vadd.f32 %v2445, %v2517
        %v2519 = vpop.f32.mrb[0].mxu0
        %v2520 = vadd.f32 %v2447, %v2519
        %v2521 = vpop.f32.mrb[0].mxu0
        %v2522 = vadd.f32 %v2449, %v2521
        %2523 = vmatprep.mubr.bf16.mxu0 %v723
        %2524 = vmatmul.mubr.bf16.gmra.mrb[0].mxu0 %v722
        %v2525 = vpop.f32.mrb[0].mxu0
        %v2526 = vadd.f32 %v2453, %v2525
        %v2527 = vpop.f32.mrb[0].mxu0
        %v2528 = vadd.f32 %v2455, %v2527
        %v2529 = vpop.f32.mrb[0].mxu0
        %v2530 = vadd.f32 %v2457, %v2529
        %v2531 = vpop.f32.mrb[0].mxu0
        %v2532 = vadd.f32 %v2459, %v2531
        %2533 = vmatprep.mubr.bf16.mxu0 %v740
        %2534 = vmatmul.mubr.bf16.gmra.mrb[0].mxu0 %v739
        %v2535 = vpop.f32.mrb[0].mxu0
        %v2536 = vadd.f32 %v2463, %v2535
        %v2537 = vpop.f32.mrb[0].mxu0
        %v2538 = vadd.f32 %v2465, %v2537
        %v2539 = vpop.f32.mrb[0].mxu0
        %v2540 = vadd.f32 %v2467, %v2539
        %v2541 = vpop.f32.mrb[0].mxu0
        %v2542 = vadd.f32 %v2469, %v2541
        %2543 = vdwg.mxu0
        %2544 = vmatprep.subr.bf16.mxu0 %v1889
        %2545 = vmatpush1.bf16.msra.mxu0 %v1888
        %2546 = vmatprep.subr.bf16.mxu0 %v1891
        %2547 = vmatpush1.bf16.msra.mxu0 %v1890
        %2548 = vmatprep.subr.bf16.mxu0 %v1893
        %2549 = vmatpush1.bf16.msra.mxu0 %v1892
        %2550 = vmatprep.subr.bf16.mxu0 %v1895
        %2551 = vmatpush1.bf16.msra.mxu0 %v1894
        %2552 = vmatprep.subr.bf16.mxu0 %v1897
        %2553 = vmatpush1.bf16.msra.mxu0 %v1896
        %2554 = vmatprep.subr.bf16.mxu0 %v1899
        %2555 = vmatpush1.bf16.msra.mxu0 %v1898
        %2556 = vmatprep.subr.bf16.mxu0 %v1901
        %2557 = vmatpush1.bf16.msra.mxu0 %v1900
        %2558 = vmatprep.subr.bf16.mxu0 %v1903
        %2559 = vmatpush1.bf16.msra.mxu0 %v1902
        %2560 = vmatprep.subr.bf16.mxu0 %v1905
        %2561 = vmatpush1.bf16.msra.mxu0 %v1904
        %2562 = vmatprep.subr.bf16.mxu0 %v1907
        %2563 = vmatpush1.bf16.msra.mxu0 %v1906
        %2564 = vmatprep.subr.bf16.mxu0 %v1909
        %2565 = vmatpush1.bf16.msra.mxu0 %v1908
        %2566 = vmatprep.subr.bf16.mxu0 %v1911
        %2567 = vmatpush1.bf16.msra.mxu0 %v1910
        %2568 = vmatprep.subr.bf16.mxu0 %v1913
        %2569 = vmatpush1.bf16.msra.mxu0 %v1912
        %2570 = vmatprep.subr.bf16.mxu0 %v1915
        %2571 = vmatpush1.bf16.msra.mxu0 %v1914
        %2572 = vmatprep.subr.bf16.mxu0 %v1917
        %2573 = vmatpush1.bf16.msra.mxu0 %v1916
        %2574 = vmatprep.subr.bf16.mxu0 %v1919
        %2575 = vmatpush1.bf16.msra.mxu0 %v1918
        %2576 = vmatprep.mubr.bf16.mxu0 %v691
        %2577 = vmatmul.mubr.bf16.gmra.mrb[0].mxu0 %v690
        %v2578 = vpop.f32.mrb[0].mxu0
        %v2579 = vadd.f32 %v2506, %v2578
        %v2580 = vpop.f32.mrb[0].mxu0
        %v2581 = vadd.f32 %v2508, %v2580
        %v2582 = vpop.f32.mrb[0].mxu0
        %v2583 = vadd.f32 %v2510, %v2582
        %v2584 = vpop.f32.mrb[0].mxu0
        %v2585 = vadd.f32 %v2512, %v2584
        %2586 = vmatprep.mubr.bf16.mxu0 %v708
        %2587 = vmatmul.mubr.bf16.gmra.mrb[0].mxu0 %v707
        %v2588 = vpop.f32.mrb[0].mxu0
        %v2589 = vadd.f32 %v2516, %v2588
        %v2590 = vpop.f32.mrb[0].mxu0
        %v2591 = vadd.f32 %v2518, %v2590
        %v2592 = vpop.f32.mrb[0].mxu0
        %v2593 = vadd.f32 %v2520, %v2592
        %v2594 = vpop.f32.mrb[0].mxu0
        %v2595 = vadd.f32 %v2522, %v2594
        %2596 = vmatprep.mubr.bf16.mxu0 %v725
        %2597 = vmatmul.mubr.bf16.gmra.mrb[0].mxu0 %v724
        %v2598 = vpop.f32.mrb[0].mxu0
        %v2599 = vadd.f32 %v2526, %v2598
        %v2600 = vpop.f32.mrb[0].mxu0
        %v2601 = vadd.f32 %v2528, %v2600
        %v2602 = vpop.f32.mrb[0].mxu0
        %v2603 = vadd.f32 %v2530, %v2602
        %v2604 = vpop.f32.mrb[0].mxu0
        %v2605 = vadd.f32 %v2532, %v2604
        %2606 = vmatprep.mubr.bf16.mxu0 %v742
        %2607 = vmatmul.mubr.bf16.gmra.mrb[0].mxu0 %v741
        %v2608 = vpop.f32.mrb[0].mxu0
        %v2609 = vadd.f32 %v2536, %v2608
        %v2610 = vpop.f32.mrb[0].mxu0
        %v2611 = vadd.f32 %v2538, %v2610
        %v2612 = vpop.f32.mrb[0].mxu0
        %v2613 = vadd.f32 %v2540, %v2612
        %v2614 = vpop.f32.mrb[0].mxu0
        %v2615 = vadd.f32 %v2542, %v2614
        %2616 = vdwg.mxu0
        %2617 = vmatprep.subr.bf16.mxu0 %v1921
        %2618 = vmatpush1.bf16.msra.mxu0 %v1920
        %2619 = vmatprep.subr.bf16.mxu0 %v1923
        %2620 = vmatpush1.bf16.msra.mxu0 %v1922
        %2621 = vmatprep.subr.bf16.mxu0 %v1925
        %2622 = vmatpush1.bf16.msra.mxu0 %v1924
        %2623 = vmatprep.subr.bf16.mxu0 %v1927
        %2624 = vmatpush1.bf16.msra.mxu0 %v1926
        %2625 = vmatprep.subr.bf16.mxu0 %v1929
        %2626 = vmatpush1.bf16.msra.mxu0 %v1928
        %2627 = vmatprep.subr.bf16.mxu0 %v1931
        %2628 = vmatpush1.bf16.msra.mxu0 %v1930
        %2629 = vmatprep.subr.bf16.mxu0 %v1933
        %2630 = vmatpush1.bf16.msra.mxu0 %v1932
        %2631 = vmatprep.subr.bf16.mxu0 %v1935
        %2632 = vmatpush1.bf16.msra.mxu0 %v1934
        %2633 = vmatprep.subr.bf16.mxu0 %v1937
        %2634 = vmatpush1.bf16.msra.mxu0 %v1936
        %2635 = vmatprep.subr.bf16.mxu0 %v1939
        %2636 = vmatpush1.bf16.msra.mxu0 %v1938
        %2637 = vmatprep.subr.bf16.mxu0 %v1941
        %2638 = vmatpush1.bf16.msra.mxu0 %v1940
        %2639 = vmatprep.subr.bf16.mxu0 %v1943
        %2640 = vmatpush1.bf16.msra.mxu0 %v1942
        %2641 = vmatprep.subr.bf16.mxu0 %v1945
        %2642 = vmatpush1.bf16.msra.mxu0 %v1944
        %2643 = vmatprep.subr.bf16.mxu0 %v1947
        %2644 = vmatpush1.bf16.msra.mxu0 %v1946
        %2645 = vmatprep.subr.bf16.mxu0 %v1949
        %2646 = vmatpush1.bf16.msra.mxu0 %v1948
        %2647 = vmatprep.subr.bf16.mxu0 %v1951
        %2648 = vmatpush1.bf16.msra.mxu0 %v1950
        %2649 = vmatprep.mubr.bf16.mxu0 %v693
        %2650 = vmatmul.mubr.bf16.gmra.mrb[0].mxu0 %v692
        %v2651 = vpop.f32.mrb[0].mxu0
        %v2652 = vadd.f32 %v2579, %v2651
        %v2653 = vpop.f32.mrb[0].mxu0
        %v2654 = vadd.f32 %v2581, %v2653
        %v2655 = vpop.f32.mrb[0].mxu0
        %v2656 = vadd.f32 %v2583, %v2655
        %v2657 = vpop.f32.mrb[0].mxu0
        %v2658 = vadd.f32 %v2585, %v2657
        %2659 = vmatprep.mubr.bf16.mxu0 %v710
        %2660 = vmatmul.mubr.bf16.gmra.mrb[0].mxu0 %v709
        %v2661 = vpop.f32.mrb[0].mxu0
        %v2662 = vadd.f32 %v2589, %v2661
        %v2663 = vpop.f32.mrb[0].mxu0
        %v2664 = vadd.f32 %v2591, %v2663
        %v2665 = vpop.f32.mrb[0].mxu0
        %v2666 = vadd.f32 %v2593, %v2665
        %v2667 = vpop.f32.mrb[0].mxu0
        %v2668 = vadd.f32 %v2595, %v2667
        %2669 = vmatprep.mubr.bf16.mxu0 %v727
        %2670 = vmatmul.mubr.bf16.gmra.mrb[0].mxu0 %v726
        %v2671 = vpop.f32.mrb[0].mxu0
        %v2672 = vadd.f32 %v2599, %v2671
        %v2673 = vpop.f32.mrb[0].mxu0
        %v2674 = vadd.f32 %v2601, %v2673
        %v2675 = vpop.f32.mrb[0].mxu0
        %v2676 = vadd.f32 %v2603, %v2675
        %v2677 = vpop.f32.mrb[0].mxu0
        %v2678 = vadd.f32 %v2605, %v2677
        %2679 = vmatprep.mubr.bf16.mxu0 %v744
        %2680 = vmatmul.mubr.bf16.gmra.mrb[0].mxu0 %v743
        %v2681 = vpop.f32.mrb[0].mxu0
        %v2682 = vadd.f32 %v2609, %v2681
        %v2683 = vpop.f32.mrb[0].mxu0
        %v2684 = vadd.f32 %v2611, %v2683
        %v2685 = vpop.f32.mrb[0].mxu0
        %v2686 = vadd.f32 %v2613, %v2685
        %v2687 = vpop.f32.mrb[0].mxu0
        %v2688 = vadd.f32 %v2615, %v2687
        %2689 = vdwg.mxu0
        %2690 = vmatprep.subr.bf16.mxu0 %v1953
        %2691 = vmatpush1.bf16.msra.mxu0 %v1952
        %2692 = vmatprep.subr.bf16.mxu0 %v1955
        %2693 = vmatpush1.bf16.msra.mxu0 %v1954
        %2694 = vmatprep.subr.bf16.mxu0 %v1957
        %2695 = vmatpush1.bf16.msra.mxu0 %v1956
        %2696 = vmatprep.subr.bf16.mxu0 %v1959
        %2697 = vmatpush1.bf16.msra.mxu0 %v1958
        %2698 = vmatprep.subr.bf16.mxu0 %v1961
        %2699 = vmatpush1.bf16.msra.mxu0 %v1960
        %2700 = vmatprep.subr.bf16.mxu0 %v1963
        %2701 = vmatpush1.bf16.msra.mxu0 %v1962
        %2702 = vmatprep.subr.bf16.mxu0 %v1965
        %2703 = vmatpush1.bf16.msra.mxu0 %v1964
        %2704 = vmatprep.subr.bf16.mxu0 %v1967
        %2705 = vmatpush1.bf16.msra.mxu0 %v1966
        %2706 = vmatprep.subr.bf16.mxu0 %v1969
        %2707 = vmatpush1.bf16.msra.mxu0 %v1968
        %2708 = vmatprep.subr.bf16.mxu0 %v1971
        %2709 = vmatpush1.bf16.msra.mxu0 %v1970
        %2710 = vmatprep.subr.bf16.mxu0 %v1973
        %2711 = vmatpush1.bf16.msra.mxu0 %v1972
        %2712 = vmatprep.subr.bf16.mxu0 %v1975
        %2713 = vmatpush1.bf16.msra.mxu0 %v1974
        %2714 = vmatprep.subr.bf16.mxu0 %v1977
        %2715 = vmatpush1.bf16.msra.mxu0 %v1976
        %2716 = vmatprep.subr.bf16.mxu0 %v1979
        %2717 = vmatpush1.bf16.msra.mxu0 %v1978
        %2718 = vmatprep.subr.bf16.mxu0 %v1981
        %2719 = vmatpush1.bf16.msra.mxu0 %v1980
        %2720 = vmatprep.subr.bf16.mxu0 %v1983
        %2721 = vmatpush1.bf16.msra.mxu0 %v1982
        %2722 = vmatprep.mubr.bf16.mxu0 %v695
        %2723 = vmatmul.mubr.bf16.gmra.mrb[0].mxu0 %v694
        %v2724 = vpop.f32.mrb[0].mxu0
        %v2725 = vadd.f32 %v2652, %v2724
        %v2726 = vpop.f32.mrb[0].mxu0
        %v2727 = vadd.f32 %v2654, %v2726
        %v2728 = vpop.f32.mrb[0].mxu0
        %v2729 = vadd.f32 %v2656, %v2728
        %v2730 = vpop.f32.mrb[0].mxu0
        %v2731 = vadd.f32 %v2658, %v2730
        %2732 = vmatprep.mubr.bf16.mxu0 %v712
        %2733 = vmatmul.mubr.bf16.gmra.mrb[0].mxu0 %v711
        %v2734 = vpop.f32.mrb[0].mxu0
        %v2735 = vadd.f32 %v2662, %v2734
        %v2736 = vpop.f32.mrb[0].mxu0
        %v2737 = vadd.f32 %v2664, %v2736
        %v2738 = vpop.f32.mrb[0].mxu0
        %v2739 = vadd.f32 %v2666, %v2738
        %v2740 = vpop.f32.mrb[0].mxu0
        %v2741 = vadd.f32 %v2668, %v2740
        %2742 = vmatprep.mubr.bf16.mxu0 %v729
        %2743 = vmatmul.mubr.bf16.gmra.mrb[0].mxu0 %v728
        %v2744 = vpop.f32.mrb[0].mxu0
        %v2745 = vadd.f32 %v2672, %v2744
        %v2746 = vpop.f32.mrb[0].mxu0
        %v2747 = vadd.f32 %v2674, %v2746
        %v2748 = vpop.f32.mrb[0].mxu0
        %v2749 = vadd.f32 %v2676, %v2748
        %v2750 = vpop.f32.mrb[0].mxu0
        %v2751 = vadd.f32 %v2678, %v2750
        %2752 = vmatprep.mubr.bf16.mxu0 %v746
        %2753 = vmatmul.mubr.bf16.gmra.mrb[0].mxu0 %v745
        %v2754 = vpop.f32.mrb[0].mxu0
        %v2755 = vadd.f32 %v2682, %v2754
        %v2756 = vpop.f32.mrb[0].mxu0
        %v2757 = vadd.f32 %v2684, %v2756
        %v2758 = vpop.f32.mrb[0].mxu0
        %v2759 = vadd.f32 %v2686, %v2758
        %v2760 = vpop.f32.mrb[0].mxu0
        %v2761 = vadd.f32 %v2688, %v2760
        %2762 = vdwg.mxu0
        %2763 = vmatprep.subr.bf16.mxu0 %v1985
        %2764 = vmatpush1.bf16.msra.mxu0 %v1984
        %2765 = vmatprep.subr.bf16.mxu0 %v1987
        %2766 = vmatpush1.bf16.msra.mxu0 %v1986
        %2767 = vmatprep.subr.bf16.mxu0 %v1989
        %2768 = vmatpush1.bf16.msra.mxu0 %v1988
        %2769 = vmatprep.subr.bf16.mxu0 %v1991
        %2770 = vmatpush1.bf16.msra.mxu0 %v1990
        %2771 = vmatprep.subr.bf16.mxu0 %v1993
        %2772 = vmatpush1.bf16.msra.mxu0 %v1992
        %2773 = vmatprep.subr.bf16.mxu0 %v1995
        %2774 = vmatpush1.bf16.msra.mxu0 %v1994
        %2775 = vmatprep.subr.bf16.mxu0 %v1997
        %2776 = vmatpush1.bf16.msra.mxu0 %v1996
        %2777 = vmatprep.subr.bf16.mxu0 %v1999
        %2778 = vmatpush1.bf16.msra.mxu0 %v1998
        %2779 = vmatprep.subr.bf16.mxu0 %v2001
        %2780 = vmatpush1.bf16.msra.mxu0 %v2000
        %2781 = vmatprep.subr.bf16.mxu0 %v2003
        %2782 = vmatpush1.bf16.msra.mxu0 %v2002
        %2783 = vmatprep.subr.bf16.mxu0 %v2005
        %2784 = vmatpush1.bf16.msra.mxu0 %v2004
        %2785 = vmatprep.subr.bf16.mxu0 %v2007
        %2786 = vmatpush1.bf16.msra.mxu0 %v2006
        %2787 = vmatprep.subr.bf16.mxu0 %v2009
        %2788 = vmatpush1.bf16.msra.mxu0 %v2008
        %2789 = vmatprep.subr.bf16.mxu0 %v2011
        %2790 = vmatpush1.bf16.msra.mxu0 %v2010
        %2791 = vmatprep.subr.bf16.mxu0 %v2013
        %2792 = vmatpush1.bf16.msra.mxu0 %v2012
        %2793 = vmatprep.subr.bf16.mxu0 %v2015
        %2794 = vmatpush1.bf16.msra.mxu0 %v2014
        %2795 = vmatprep.mubr.bf16.mxu0 %v697
        %2796 = vmatmul.mubr.bf16.gmra.mrb[0].mxu0 %v696
        %v2797 = vpop.f32.mrb[0].mxu0
        %v2798 = vadd.f32 %v2725, %v2797
        %v2799 = vpop.f32.mrb[0].mxu0
        %v2800 = vadd.f32 %v2727, %v2799
        %v2801 = vpop.f32.mrb[0].mxu0
        %v2802 = vadd.f32 %v2729, %v2801
        %v2803 = vpop.f32.mrb[0].mxu0
        %v2804 = vadd.f32 %v2731, %v2803
        %2805 = vmatprep.mubr.bf16.mxu0 %v714
        %2806 = vmatmul.mubr.bf16.gmra.mrb[0].mxu0 %v713
        %v2807 = vpop.f32.mrb[0].mxu0
        %v2808 = vadd.f32 %v2735, %v2807
        %v2809 = vpop.f32.mrb[0].mxu0
        %v2810 = vadd.f32 %v2737, %v2809
        %v2811 = vpop.f32.mrb[0].mxu0
        %v2812 = vadd.f32 %v2739, %v2811
        %v2813 = vpop.f32.mrb[0].mxu0
        %v2814 = vadd.f32 %v2741, %v2813
        %2815 = vmatprep.mubr.bf16.mxu0 %v731
        %2816 = vmatmul.mubr.bf16.gmra.mrb[0].mxu0 %v730
        %v2817 = vpop.f32.mrb[0].mxu0
        %v2818 = vadd.f32 %v2745, %v2817
        %v2819 = vpop.f32.mrb[0].mxu0
        %v2820 = vadd.f32 %v2747, %v2819
        %v2821 = vpop.f32.mrb[0].mxu0
        %v2822 = vadd.f32 %v2749, %v2821
        %v2823 = vpop.f32.mrb[0].mxu0
        %v2824 = vadd.f32 %v2751, %v2823
        %2825 = vmatprep.mubr.bf16.mxu0 %v748
        %2826 = vmatmul.mubr.bf16.gmra.mrb[0].mxu0 %v747
        %v2827 = vpop.f32.mrb[0].mxu0
        %v2828 = vadd.f32 %v2755, %v2827
        %v2829 = vpop.f32.mrb[0].mxu0
        %v2830 = vadd.f32 %v2757, %v2829
        %v2831 = vpop.f32.mrb[0].mxu0
        %v2832 = vadd.f32 %v2759, %v2831
        %v2833 = vpop.f32.mrb[0].mxu0
        %v2834 = vadd.f32 %v2761, %v2833
        %2835 = vdwg.mxu0
        %2836 = vmatprep.subr.bf16.mxu0 %v2017
        %2837 = vmatpush1.bf16.msra.mxu0 %v2016
        %2838 = vmatprep.subr.bf16.mxu0 %v2019
        %2839 = vmatpush1.bf16.msra.mxu0 %v2018
        %2840 = vmatprep.subr.bf16.mxu0 %v2021
        %2841 = vmatpush1.bf16.msra.mxu0 %v2020
        %2842 = vmatprep.subr.bf16.mxu0 %v2023
        %2843 = vmatpush1.bf16.msra.mxu0 %v2022
        %2844 = vmatprep.subr.bf16.mxu0 %v2025
        %2845 = vmatpush1.bf16.msra.mxu0 %v2024
        %2846 = vmatprep.subr.bf16.mxu0 %v2027
        %2847 = vmatpush1.bf16.msra.mxu0 %v2026
        %2848 = vmatprep.subr.bf16.mxu0 %v2029
        %2849 = vmatpush1.bf16.msra.mxu0 %v2028
        %2850 = vmatprep.subr.bf16.mxu0 %v2031
        %2851 = vmatpush1.bf16.msra.mxu0 %v2030
        %2852 = vmatprep.subr.bf16.mxu0 %v2033
        %2853 = vmatpush1.bf16.msra.mxu0 %v2032
        %2854 = vmatprep.subr.bf16.mxu0 %v2035
        %2855 = vmatpush1.bf16.msra.mxu0 %v2034
        %2856 = vmatprep.subr.bf16.mxu0 %v2037
        %2857 = vmatpush1.bf16.msra.mxu0 %v2036
        %2858 = vmatprep.subr.bf16.mxu0 %v2039
        %2859 = vmatpush1.bf16.msra.mxu0 %v2038
        %2860 = vmatprep.subr.bf16.mxu0 %v2041
        %2861 = vmatpush1.bf16.msra.mxu0 %v2040
        %2862 = vmatprep.subr.bf16.mxu0 %v2043
        %2863 = vmatpush1.bf16.msra.mxu0 %v2042
        %2864 = vmatprep.subr.bf16.mxu0 %v2045
        %2865 = vmatpush1.bf16.msra.mxu0 %v2044
        %2866 = vmatprep.subr.bf16.mxu0 %v2047
        %2867 = vmatpush1.bf16.msra.mxu0 %v2046
        %2868 = vmatprep.mubr.bf16.mxu0 %v699
        %2869 = vmatmul.mubr.bf16.gmra.mrb[0].mxu0 %v698
        %v2870 = vpop.f32.mrb[0].mxu0
        %v2871 = vadd.f32 %v2798, %v2870
        %v2872 = vpop.f32.mrb[0].mxu0
        %v2873 = vadd.f32 %v2800, %v2872
        %v2874 = vpop.f32.mrb[0].mxu0
        %v2875 = vadd.f32 %v2802, %v2874
        %v2876 = vpop.f32.mrb[0].mxu0
        %v2877 = vadd.f32 %v2804, %v2876
        %2878 = vmatprep.mubr.bf16.mxu0 %v716
        %2879 = vmatmul.mubr.bf16.gmra.mrb[0].mxu0 %v715
        %v2880 = vpop.f32.mrb[0].mxu0
        %v2881 = vadd.f32 %v2808, %v2880
        %v2882 = vpop.f32.mrb[0].mxu0
        %v2883 = vadd.f32 %v2810, %v2882
        %v2884 = vpop.f32.mrb[0].mxu0
        %v2885 = vadd.f32 %v2812, %v2884
        %v2886 = vpop.f32.mrb[0].mxu0
        %v2887 = vadd.f32 %v2814, %v2886
        %2888 = vmatprep.mubr.bf16.mxu0 %v733
        %2889 = vmatmul.mubr.bf16.gmra.mrb[0].mxu0 %v732
        %v2890 = vpop.f32.mrb[0].mxu0
        %v2891 = vadd.f32 %v2818, %v2890
        %v2892 = vpop.f32.mrb[0].mxu0
        %v2893 = vadd.f32 %v2820, %v2892
        %v2894 = vpop.f32.mrb[0].mxu0
        %v2895 = vadd.f32 %v2822, %v2894
        %v2896 = vpop.f32.mrb[0].mxu0
        %v2897 = vadd.f32 %v2824, %v2896
        %2898 = vmatprep.mubr.bf16.mxu0 %v750
        %2899 = vmatmul.mubr.bf16.gmra.mrb[0].mxu0 %v749
        %v2900 = vpop.f32.mrb[0].mxu0
        %v2901 = vadd.f32 %v2828, %v2900
        %v2902 = vpop.f32.mrb[0].mxu0
        %v2903 = vadd.f32 %v2830, %v2902
        %v2904 = vpop.f32.mrb[0].mxu0
        %v2905 = vadd.f32 %v2832, %v2904
        %v2906 = vpop.f32.mrb[0].mxu0
        %v2907 = vadd.f32 %v2834, %v2906
        %2908 = vdwg.mxu0
        %2909 = vmatprep.subr.bf16.mxu0 %v2049
        %2910 = vmatpush1.bf16.msra.mxu0 %v2048
        %2911 = vmatprep.subr.bf16.mxu0 %v2051
        %2912 = vmatpush1.bf16.msra.mxu0 %v2050
        %2913 = vmatprep.subr.bf16.mxu0 0
        %2914 = vmatpush1.bf16.msra.mxu0 0
        %2915 = vmatprep.subr.bf16.mxu0 0
        %2916 = vmatpush1.bf16.msra.mxu0 0
        %2917 = vmatprep.subr.bf16.mxu0 0
        %2918 = vmatpush1.bf16.msra.mxu0 0
        %2919 = vmatprep.subr.bf16.mxu0 0
        %2920 = vmatpush1.bf16.msra.mxu0 0
        %2921 = vmatprep.subr.bf16.mxu0 0
        %2922 = vmatpush1.bf16.msra.mxu0 0
        %2923 = vmatprep.subr.bf16.mxu0 0
        %2924 = vmatpush1.bf16.msra.mxu0 0
        %2925 = vmatprep.subr.bf16.mxu0 0
        %2926 = vmatpush1.bf16.msra.mxu0 0
        %2927 = vmatprep.subr.bf16.mxu0 0
        %2928 = vmatpush1.bf16.msra.mxu0 0
        %2929 = vmatprep.subr.bf16.mxu0 0
        %2930 = vmatpush1.bf16.msra.mxu0 0
        %2931 = vmatprep.subr.bf16.mxu0 0
        %2932 = vmatpush1.bf16.msra.mxu0 0
        %2933 = vmatprep.subr.bf16.mxu0 0
        %2934 = vmatpush1.bf16.msra.mxu0 0
        %2935 = vmatprep.subr.bf16.mxu0 0
        %2936 = vmatpush1.bf16.msra.mxu0 0
        %2937 = vmatprep.subr.bf16.mxu0 0
        %2938 = vmatpush1.bf16.msra.mxu0 0
        %2939 = vmatprep.subr.bf16.mxu0 0
        %2940 = vmatpush1.bf16.msra.mxu0 0
        %2941 = vmatprep.mubr.bf16.mxu0 0
        %2942 = vmatmul.mubr.bf16.gmra.mrb[0].mxu0 %v2314
        %v2943 = vpop.f32.mrb[0].mxu0
        %v2944 = vadd.f32 %v2871, %v2943
        %v2945 = vpop.f32.mrb[0].mxu0
        %v2946 = vadd.f32 %v2873, %v2945
        %v2947 = vpop.f32.mrb[0].mxu0
        %v2948 = vadd.f32 %v2875, %v2947
        %v2949 = vpop.f32.mrb[0].mxu0
        %v2950 = vadd.f32 %v2877, %v2949
        %2951 = vmatprep.mubr.bf16.mxu0 0
        %2952 = vmatmul.mubr.bf16.gmra.mrb[0].mxu0 %v2317
        %v2953 = vpop.f32.mrb[0].mxu0
        %v2954 = vadd.f32 %v2881, %v2953
        %v2955 = vpop.f32.mrb[0].mxu0
        %v2956 = vadd.f32 %v2883, %v2955
        %v2957 = vpop.f32.mrb[0].mxu0
        %v2958 = vadd.f32 %v2885, %v2957
        %v2959 = vpop.f32.mrb[0].mxu0
        %v2960 = vadd.f32 %v2887, %v2959
        %2961 = vmatprep.mubr.bf16.mxu0 0
        %2962 = vmatmul.mubr.bf16.gmra.mrb[0].mxu0 %v2320
        %v2963 = vpop.f32.mrb[0].mxu0
        %v2964 = vadd.f32 %v2891, %v2963
        %v2965 = vpop.f32.mrb[0].mxu0
        %v2966 = vadd.f32 %v2893, %v2965
        %v2967 = vpop.f32.mrb[0].mxu0
        %v2968 = vadd.f32 %v2895, %v2967
        %v2969 = vpop.f32.mrb[0].mxu0
        %v2970 = vadd.f32 %v2897, %v2969
        %2971 = vmatprep.mubr.bf16.mxu0 0
        %2972 = vmatmul.mubr.bf16.gmra.mrb[0].mxu0 %v2323
        %v2973 = vpop.f32.mrb[0].mxu0
        %v2974 = vadd.f32 %v2901, %v2973
        %v2975 = vpop.f32.mrb[0].mxu0
        %v2976 = vadd.f32 %v2903, %v2975
        %v2977 = vpop.f32.mrb[0].mxu0
        %v2978 = vadd.f32 %v2905, %v2977
        %v2979 = vpop.f32.mrb[0].mxu0
        %v2980 = vadd.f32 %v2907, %v2979
        %2981 = vdwg.mxu0
        %v2982 = vld [vmem:[%s2] sm:$0x3]
        %v2984 = vlaneseq
        %v2985 = vshrl.u32 %v2984, 7
        %v2986 = vsub.s32 0, %v2985
        %v2987 = vrot.slane %v2982, %v2986
        %v2988 = vlaneseq
        %v2989 = vshrl.u32 %v2988, 7
        %v2990 = vsub.s32 1, %v2989
        %v2991 = vrot.slane %v2982, %v2990
        %v2994 = vmul.f32 %v2944, %v2987
        %v2995 = vmul.f32 %v2946, %v2991
        %v2996 = vmul.f32 %v2948, %v2987
        %v2997 = vmul.f32 %v2950, %v2991
        %v2998 = vmul.f32 %v2954, %v2987
        %v2999 = vmul.f32 %v2956, %v2991
        %v3000 = vmul.f32 %v2958, %v2987
        %v3001 = vmul.f32 %v2960, %v2991
        %v3002 = vmul.f32 %v2964, %v2987
        %v3003 = vmul.f32 %v2966, %v2991
        %v3004 = vmul.f32 %v2968, %v2987
        %v3005 = vmul.f32 %v2970, %v2991
        %v3006 = vmul.f32 %v2974, %v2987
        %v3007 = vmul.f32 %v2976, %v2991
        %v3008 = vmul.f32 %v2978, %v2987
        %v3009 = vmul.f32 %v2980, %v2991
        %v3010 = vld [vmem:[%s3] sm:$0x3]
        %v3012 = vlaneseq
        %v3013 = vshrl.u32 %v3012, 7
        %v3014 = vsub.s32 0, %v3013
        %v3015 = vrot.slane %v3010, %v3014
        %v3016 = vlaneseq
        %v3017 = vshrl.u32 %v3016, 7
        %v3018 = vsub.s32 1, %v3017
        %v3019 = vrot.slane %v3010, %v3018
        %v3022 = vadd.f32 %v2994, %v3015
        %v3023 = vadd.f32 %v2995, %v3019
        %v3024 = vadd.f32 %v2996, %v3015
        %v3025 = vadd.f32 %v2997, %v3019
        %v3026 = vadd.f32 %v2998, %v3015
        %v3027 = vadd.f32 %v2999, %v3019
        %v3028 = vadd.f32 %v3000, %v3015
        %v3029 = vadd.f32 %v3001, %v3019
        %v3030 = vadd.f32 %v3002, %v3015
        %v3031 = vadd.f32 %v3003, %v3019
        %v3032 = vadd.f32 %v3004, %v3015
        %v3033 = vadd.f32 %v3005, %v3019
        %v3034 = vadd.f32 %v3006, %v3015
        %v3035 = vadd.f32 %v3007, %v3019
        %v3036 = vadd.f32 %v3008, %v3015
        %v3037 = vadd.f32 %v3009, %v3019
        %v3038 = vmax.f32 %v3022, 0.0
        %v3039 = vmax.f32 %v3023, 0.0
        %v3040 = vmax.f32 %v3024, 0.0
        %v3041 = vmax.f32 %v3025, 0.0
        %v3042 = vmax.f32 %v3026, 0.0
        %v3043 = vmax.f32 %v3027, 0.0
        %v3044 = vmax.f32 %v3028, 0.0
        %v3045 = vmax.f32 %v3029, 0.0
        %v3046 = vmax.f32 %v3030, 0.0
        %v3047 = vmax.f32 %v3031, 0.0
        %v3048 = vmax.f32 %v3032, 0.0
        %v3049 = vmax.f32 %v3033, 0.0
        %v3050 = vmax.f32 %v3034, 0.0
        %v3051 = vmax.f32 %v3035, 0.0
        %v3052 = vmax.f32 %v3036, 0.0
        %v3053 = vmax.f32 %v3037, 0.0
        %v3054 = vld [vmem:[%s4] sm:$0xff]
        %v3055 = vld [vmem:[%s4 + $0x8] sm:$0xff]
        %v3056 = vld [vmem:[%s4 + $0x10] sm:$0xff]
        %v3057 = vld [vmem:[%s4 + $0x18] sm:$0xff]
        %v3058 = vld [vmem:[%s4 + $0x20] sm:$0xff]
        %v3059 = vld [vmem:[%s4 + $0x28] sm:$0xff]
        %v3060 = vld [vmem:[%s4 + $0x30] sm:$0xff]
        %v3061 = vld [vmem:[%s4 + $0x38] sm:$0xff]
        %v3062 = vld [vmem:[%s4 + $0x40] sm:$0xff]
        %v3063 = vld [vmem:[%s4 + $0x48] sm:$0xff]
        %v3064 = vld [vmem:[%s4 + $0x50] sm:$0xff]
        %v3065 = vld [vmem:[%s4 + $0x58] sm:$0xff]
        %v3066 = vld [vmem:[%s4 + $0x60] sm:$0xff]
        %v3067 = vld [vmem:[%s4 + $0x68] sm:$0xff]
        %v3068 = vld [vmem:[%s4 + $0x70] sm:$0xff]
        %v3069 = vld [vmem:[%s4 + $0x78] sm:$0xff]
        %v3070 = vld [vmem:[%s4 + $0x80] sm:$0xff]
        %v3071 = vld [vmem:[%s4 + $0x88] sm:$0xff]
        %v3072 = vld [vmem:[%s4 + $0x90] sm:$0xff]
        %v3073 = vld [vmem:[%s4 + $0x98] sm:$0xff]
        %v3074 = vld [vmem:[%s4 + $0xa0] sm:$0xff]
        %v3075 = vld [vmem:[%s4 + $0xa8] sm:$0xff]
        %v3076 = vld [vmem:[%s4 + $0xb0] sm:$0xff]
        %v3077 = vld [vmem:[%s4 + $0xb8] sm:$0xff]
        %v3078 = vld [vmem:[%s4 + $0xc0] sm:$0xff]
        %v3079 = vld [vmem:[%s4 + $0xc8] sm:$0xff]
        %v3080 = vld [vmem:[%s4 + $0xd0] sm:$0xff]
        %v3081 = vld [vmem:[%s4 + $0xd8] sm:$0xff]
        %v3082 = vld [vmem:[%s4 + $0xe0] sm:$0xff]
        %v3083 = vld [vmem:[%s4 + $0xe8] sm:$0xff]
        %v3084 = vld [vmem:[%s4 + $0xf0] sm:$0xff]
        %v3085 = vld [vmem:[%s4 + $0xf8] sm:$0xff]
        %v3086 = vld [vmem:[%s4 + $0x100] sm:$0xff]
        %v3087 = vld [vmem:[%s4 + $0x108] sm:$0xff]
        %v3088 = vld [vmem:[%s4 + $0x110] sm:$0xff]
        %v3089 = vld [vmem:[%s4 + $0x118] sm:$0xff]
        %v3090 = vld [vmem:[%s4 + $0x120] sm:$0xff]
        %v3091 = vld [vmem:[%s4 + $0x128] sm:$0xff]
        %v3092 = vld [vmem:[%s4 + $0x130] sm:$0xff]
        %v3093 = vld [vmem:[%s4 + $0x138] sm:$0xff]
        %v3094 = vld [vmem:[%s4 + $0x140] sm:$0xff]
        %v3095 = vld [vmem:[%s4 + $0x148] sm:$0xff]
        %v3096 = vld [vmem:[%s4 + $0x150] sm:$0xff]
        %v3097 = vld [vmem:[%s4 + $0x158] sm:$0xff]
        %v3098 = vld [vmem:[%s4 + $0x160] sm:$0xff]
        %v3099 = vld [vmem:[%s4 + $0x168] sm:$0xff]
        %v3100 = vld [vmem:[%s4 + $0x170] sm:$0xff]
        %v3101 = vld [vmem:[%s4 + $0x178] sm:$0xff]
        %v3102 = vld [vmem:[%s4 + $0x180] sm:$0xff]
        %v3103 = vld [vmem:[%s4 + $0x188] sm:$0xff]
        %v3104 = vld [vmem:[%s4 + $0x190] sm:$0xff]
        %v3105 = vld [vmem:[%s4 + $0x198] sm:$0xff]
        %v3106 = vld [vmem:[%s4 + $0x1a0] sm:$0xff]
        %v3107 = vld [vmem:[%s4 + $0x1a8] sm:$0xff]
        %v3108 = vld [vmem:[%s4 + $0x1b0] sm:$0xff]
        %v3109 = vld [vmem:[%s4 + $0x1b8] sm:$0xff]
        %v3110 = vld [vmem:[%s4 + $0x1c0] sm:$0xff]
        %v3111 = vld [vmem:[%s4 + $0x1c8] sm:$0xff]
        %v3112 = vld [vmem:[%s4 + $0x1d0] sm:$0xff]
        %v3113 = vld [vmem:[%s4 + $0x1d8] sm:$0xff]
        %v3114 = vld [vmem:[%s4 + $0x1e0] sm:$0xff]
        %v3115 = vld [vmem:[%s4 + $0x1e8] sm:$0xff]
        %v3116 = vld [vmem:[%s4 + $0x1f0] sm:$0xff]
        %v3117 = vld [vmem:[%s4 + $0x1f8] sm:$0xff]
        %v3118 = vld [vmem:[%s4 + $0x200] sm:$0xff]
        %v3119 = vld [vmem:[%s4 + $0x208] sm:$0xff]
        %v3120 = vld [vmem:[%s4 + $0x210] sm:$0xff]
        %v3121 = vld [vmem:[%s4 + $0x218] sm:$0xff]
        %v3122 = vld [vmem:[%s4 + $0x220] sm:$0xff]
        %v3123 = vld [vmem:[%s4 + $0x228] sm:$0xff]
        %v3124 = vld [vmem:[%s4 + $0x230] sm:$0xff]
        %v3125 = vld [vmem:[%s4 + $0x238] sm:$0xff]
        %v3126 = vld [vmem:[%s4 + $0x240] sm:$0xff]
        %v3127 = vld [vmem:[%s4 + $0x248] sm:$0xff]
        %v3128 = vld [vmem:[%s4 + $0x250] sm:$0xff]
        %v3129 = vld [vmem:[%s4 + $0x258] sm:$0xff]
        %v3130 = vld [vmem:[%s4 + $0x260] sm:$0xff]
        %v3131 = vld [vmem:[%s4 + $0x268] sm:$0xff]
        %v3132 = vld [vmem:[%s4 + $0x270] sm:$0xff]
        %v3133 = vld [vmem:[%s4 + $0x278] sm:$0xff]
        %v3134 = vld [vmem:[%s4 + $0x280] sm:$0xff]
        %v3135 = vld [vmem:[%s4 + $0x288] sm:$0xff]
        %v3136 = vld [vmem:[%s4 + $0x290] sm:$0xff]
        %v3137 = vld [vmem:[%s4 + $0x298] sm:$0xff]
        %v3138 = vld [vmem:[%s4 + $0x2a0] sm:$0xff]
        %v3139 = vld [vmem:[%s4 + $0x2a8] sm:$0xff]
        %v3140 = vld [vmem:[%s4 + $0x2b0] sm:$0xff]
        %v3141 = vld [vmem:[%s4 + $0x2b8] sm:$0xff]
        %v3142 = vld [vmem:[%s4 + $0x2c0] sm:$0xff]
        %v3143 = vld [vmem:[%s4 + $0x2c8] sm:$0xff]
        %v3144 = vld [vmem:[%s4 + $0x2d0] sm:$0xff]
        %v3145 = vld [vmem:[%s4 + $0x2d8] sm:$0xff]
        %v3146 = vld [vmem:[%s4 + $0x2e0] sm:$0xff]
        %v3147 = vld [vmem:[%s4 + $0x2e8] sm:$0xff]
        %v3148 = vld [vmem:[%s4 + $0x2f0] sm:$0xff]
        %v3149 = vld [vmem:[%s4 + $0x2f8] sm:$0xff]
        %v3150 = vld [vmem:[%s4 + $0x300] sm:$0xff]
        %v3151 = vld [vmem:[%s4 + $0x308] sm:$0xff]
        %v3152 = vld [vmem:[%s4 + $0x310] sm:$0xff]
        %v3153 = vld [vmem:[%s4 + $0x318] sm:$0xff]
        %v3154 = vld [vmem:[%s4 + $0x320] sm:$0xff]
        %v3155 = vld [vmem:[%s4 + $0x328] sm:$0xff]
        %v3156 = vld [vmem:[%s4 + $0x330] sm:$0xff]
        %v3157 = vld [vmem:[%s4 + $0x338] sm:$0xff]
        %v3158 = vld [vmem:[%s4 + $0x340] sm:$0xff]
        %v3159 = vld [vmem:[%s4 + $0x348] sm:$0xff]
        %v3160 = vld [vmem:[%s4 + $0x350] sm:$0xff]
        %v3161 = vld [vmem:[%s4 + $0x358] sm:$0xff]
        %v3162 = vld [vmem:[%s4 + $0x360] sm:$0xff]
        %v3163 = vld [vmem:[%s4 + $0x368] sm:$0xff]
        %v3164 = vld [vmem:[%s4 + $0x370] sm:$0xff]
        %v3165 = vld [vmem:[%s4 + $0x378] sm:$0xff]
        %v3166 = vld [vmem:[%s4 + $0x380] sm:$0xff]
        %v3167 = vld [vmem:[%s4 + $0x388] sm:$0xff]
        %v3168 = vld [vmem:[%s4 + $0x390] sm:$0xff]
        %v3169 = vld [vmem:[%s4 + $0x398] sm:$0xff]
        %v3170 = vld [vmem:[%s4 + $0x3a0] sm:$0xff]
        %v3171 = vld [vmem:[%s4 + $0x3a8] sm:$0xff]
        %v3172 = vld [vmem:[%s4 + $0x3b0] sm:$0xff]
        %v3173 = vld [vmem:[%s4 + $0x3b8] sm:$0xff]
        %v3174 = vld [vmem:[%s4 + $0x3c0] sm:$0xff]
        %v3175 = vld [vmem:[%s4 + $0x3c8] sm:$0xff]
        %v3176 = vld [vmem:[%s4 + $0x3d0] sm:$0xff]
        %v3177 = vld [vmem:[%s4 + $0x3d8] sm:$0xff]
        %v3178 = vld [vmem:[%s4 + $0x3e0] sm:$0xff]
        %v3179 = vld [vmem:[%s4 + $0x3e8] sm:$0xff]
        %v3180 = vld [vmem:[%s4 + $0x3f0] sm:$0xff]
        %v3181 = vld [vmem:[%s4 + $0x3f8] sm:$0xff]
        %v3182 = vld [vmem:[%s4 + $0x400] sm:$0xff]
        %v3183 = vld [vmem:[%s4 + $0x408] sm:$0xff]
        %v3184 = vld [vmem:[%s4 + $0x410] sm:$0xff]
        %v3185 = vld [vmem:[%s4 + $0x418] sm:$0xff]
        %v3186 = vld [vmem:[%s4 + $0x420] sm:$0xff]
        %v3187 = vld [vmem:[%s4 + $0x428] sm:$0xff]
        %v3188 = vld [vmem:[%s4 + $0x430] sm:$0xff]
        %v3189 = vld [vmem:[%s4 + $0x438] sm:$0xff]
        %v3190 = vld [vmem:[%s4 + $0x440] sm:$0xff]
        %v3191 = vld [vmem:[%s4 + $0x448] sm:$0xff]
        %v3192 = vld [vmem:[%s4 + $0x450] sm:$0xff]
        %v3193 = vld [vmem:[%s4 + $0x458] sm:$0xff]
        %v3194 = vld [vmem:[%s4 + $0x460] sm:$0xff]
        %v3195 = vld [vmem:[%s4 + $0x468] sm:$0xff]
        %v3196 = vld [vmem:[%s4 + $0x470] sm:$0xff]
        %v3197 = vld [vmem:[%s4 + $0x478] sm:$0xff]
        %v3198 = vld [vmem:[%s4 + $0x480] sm:$0xff]
        %v3199 = vld [vmem:[%s4 + $0x488] sm:$0xff]
        %v3200 = vld [vmem:[%s4 + $0x490] sm:$0xff]
        %v3201 = vld [vmem:[%s4 + $0x498] sm:$0xff]
        %v3202 = vld [vmem:[%s4 + $0x4a0] sm:$0xff]
        %v3203 = vld [vmem:[%s4 + $0x4a8] sm:$0xff]
        %v3204 = vld [vmem:[%s4 + $0x4b0] sm:$0xff]
        %v3205 = vld [vmem:[%s4 + $0x4b8] sm:$0xff]
        %v3206 = vld [vmem:[%s4 + $0x4c0] sm:$0xff]
        %v3207 = vld [vmem:[%s4 + $0x4c8] sm:$0xff]
        %v3208 = vld [vmem:[%s4 + $0x4d0] sm:$0xff]
        %v3209 = vld [vmem:[%s4 + $0x4d8] sm:$0xff]
        %v3210 = vld [vmem:[%s4 + $0x4e0] sm:$0xff]
        %v3211 = vld [vmem:[%s4 + $0x4e8] sm:$0xff]
        %v3212 = vld [vmem:[%s4 + $0x4f0] sm:$0xff]
        %v3213 = vld [vmem:[%s4 + $0x4f8] sm:$0xff]
        %v3214 = vld [vmem:[%s4 + $0x500] sm:$0xff]
        %v3215 = vld [vmem:[%s4 + $0x508] sm:$0xff]
        %v3216 = vld [vmem:[%s4 + $0x510] sm:$0xff]
        %v3217 = vld [vmem:[%s4 + $0x518] sm:$0xff]
        %v3218 = vld [vmem:[%s4 + $0x520] sm:$0xff]
        %v3219 = vld [vmem:[%s4 + $0x528] sm:$0xff]
        %v3220 = vld [vmem:[%s4 + $0x530] sm:$0xff]
        %v3221 = vld [vmem:[%s4 + $0x538] sm:$0xff]
        %v3222 = vld [vmem:[%s4 + $0x540] sm:$0xff]
        %v3223 = vld [vmem:[%s4 + $0x548] sm:$0xff]
        %v3224 = vld [vmem:[%s4 + $0x550] sm:$0xff]
        %v3225 = vld [vmem:[%s4 + $0x558] sm:$0xff]
        %v3226 = vld [vmem:[%s4 + $0x560] sm:$0xff]
        %v3227 = vld [vmem:[%s4 + $0x568] sm:$0xff]
        %v3228 = vld [vmem:[%s4 + $0x570] sm:$0xff]
        %v3229 = vld [vmem:[%s4 + $0x578] sm:$0xff]
        %v3230 = vld [vmem:[%s4 + $0x580] sm:$0xff]
        %v3231 = vld [vmem:[%s4 + $0x588] sm:$0xff]
        %v3232 = vld [vmem:[%s4 + $0x590] sm:$0xff]
        %v3233 = vld [vmem:[%s4 + $0x598] sm:$0xff]
        %v3234 = vld [vmem:[%s4 + $0x5a0] sm:$0xff]
        %v3235 = vld [vmem:[%s4 + $0x5a8] sm:$0xff]
        %v3236 = vld [vmem:[%s4 + $0x5b0] sm:$0xff]
        %v3237 = vld [vmem:[%s4 + $0x5b8] sm:$0xff]
        %v3238 = vld [vmem:[%s4 + $0x5c0] sm:$0xff]
        %v3239 = vld [vmem:[%s4 + $0x5c8] sm:$0xff]
        %v3240 = vld [vmem:[%s4 + $0x5d0] sm:$0xff]
        %v3241 = vld [vmem:[%s4 + $0x5d8] sm:$0xff]
        %v3242 = vld [vmem:[%s4 + $0x5e0] sm:$0xff]
        %v3243 = vld [vmem:[%s4 + $0x5e8] sm:$0xff]
        %v3244 = vld [vmem:[%s4 + $0x5f0] sm:$0xff]
        %v3245 = vld [vmem:[%s4 + $0x5f8] sm:$0xff]
        %v3246 = vld [vmem:[%s4 + $0x600] sm:$0xff]
        %v3247 = vld [vmem:[%s4 + $0x608] sm:$0xff]
        %v3248 = vld [vmem:[%s4 + $0x610] sm:$0xff]
        %v3249 = vld [vmem:[%s4 + $0x618] sm:$0xff]
        %v3250 = vld [vmem:[%s4 + $0x620] sm:$0xff]
        %v3251 = vld [vmem:[%s4 + $0x628] sm:$0xff]
        %v3252 = vld [vmem:[%s4 + $0x630] sm:$0xff]
        %v3253 = vld [vmem:[%s4 + $0x638] sm:$0xff]
        %v3254 = vld [vmem:[%s4 + $0x640] sm:$0xff]
        %v3255 = vld [vmem:[%s4 + $0x648] sm:$0xff]
        %v3256 = vld [vmem:[%s4 + $0x650] sm:$0xff]
        %v3257 = vld [vmem:[%s4 + $0x658] sm:$0xff]
        %v3258 = vld [vmem:[%s4 + $0x660] sm:$0xff]
        %v3259 = vld [vmem:[%s4 + $0x668] sm:$0xff]
        %v3260 = vld [vmem:[%s4 + $0x670] sm:$0xff]
        %v3261 = vld [vmem:[%s4 + $0x678] sm:$0xff]
        %v3262 = vld [vmem:[%s4 + $0x680] sm:$0xff]
        %v3263 = vld [vmem:[%s4 + $0x688] sm:$0xff]
        %v3264 = vld [vmem:[%s4 + $0x690] sm:$0xff]
        %v3265 = vld [vmem:[%s4 + $0x698] sm:$0xff]
        %v3266 = vld [vmem:[%s4 + $0x6a0] sm:$0xff]
        %v3267 = vld [vmem:[%s4 + $0x6a8] sm:$0xff]
        %v3268 = vld [vmem:[%s4 + $0x6b0] sm:$0xff]
        %v3269 = vld [vmem:[%s4 + $0x6b8] sm:$0xff]
        %v3270 = vld [vmem:[%s4 + $0x6c0] sm:$0xff]
        %v3271 = vld [vmem:[%s4 + $0x6c8] sm:$0xff]
        %v3272 = vld [vmem:[%s4 + $0x6d0] sm:$0xff]
        %v3273 = vld [vmem:[%s4 + $0x6d8] sm:$0xff]
        %v3274 = vld [vmem:[%s4 + $0x6e0] sm:$0xff]
        %v3275 = vld [vmem:[%s4 + $0x6e8] sm:$0xff]
        %v3276 = vld [vmem:[%s4 + $0x6f0] sm:$0xff]
        %v3277 = vld [vmem:[%s4 + $0x6f8] sm:$0xff]
        %v3278 = vld [vmem:[%s4 + $0x700] sm:$0xff]
        %v3279 = vld [vmem:[%s4 + $0x708] sm:$0xff]
        %v3280 = vld [vmem:[%s4 + $0x710] sm:$0xff]
        %v3281 = vld [vmem:[%s4 + $0x718] sm:$0xff]
        %v3282 = vld [vmem:[%s4 + $0x720] sm:$0xff]
        %v3283 = vld [vmem:[%s4 + $0x728] sm:$0xff]
        %v3284 = vld [vmem:[%s4 + $0x730] sm:$0xff]
        %v3285 = vld [vmem:[%s4 + $0x738] sm:$0xff]
        %v3286 = vld [vmem:[%s4 + $0x740] sm:$0xff]
        %v3287 = vld [vmem:[%s4 + $0x748] sm:$0xff]
        %v3288 = vld [vmem:[%s4 + $0x750] sm:$0xff]
        %v3289 = vld [vmem:[%s4 + $0x758] sm:$0xff]
        %v3290 = vld [vmem:[%s4 + $0x760] sm:$0xff]
        %v3291 = vld [vmem:[%s4 + $0x768] sm:$0xff]
        %v3292 = vld [vmem:[%s4 + $0x770] sm:$0xff]
        %v3293 = vld [vmem:[%s4 + $0x778] sm:$0xff]
        %v3294 = vld [vmem:[%s4 + $0x780] sm:$0xff]
        %v3295 = vld [vmem:[%s4 + $0x788] sm:$0xff]
        %v3296 = vld [vmem:[%s4 + $0x790] sm:$0xff]
        %v3297 = vld [vmem:[%s4 + $0x798] sm:$0xff]
        %v3298 = vld [vmem:[%s4 + $0x7a0] sm:$0xff]
        %v3299 = vld [vmem:[%s4 + $0x7a8] sm:$0xff]
        %v3300 = vld [vmem:[%s4 + $0x7b0] sm:$0xff]
        %v3301 = vld [vmem:[%s4 + $0x7b8] sm:$0xff]
        %v3302 = vld [vmem:[%s4 + $0x7c0] sm:$0xff]
        %v3303 = vld [vmem:[%s4 + $0x7c8] sm:$0xff]
        %v3304 = vld [vmem:[%s4 + $0x7d0] sm:$0xff]
        %v3305 = vld [vmem:[%s4 + $0x7d8] sm:$0xff]
        %v3306 = vld [vmem:[%s4 + $0x7e0] sm:$0xff]
        %v3307 = vld [vmem:[%s4 + $0x7e8] sm:$0xff]
        %v3308 = vld [vmem:[%s4 + $0x7f0] sm:$0xff]
        %v3309 = vld [vmem:[%s4 + $0x7f8] sm:$0xff]
        %v3310 = vld [vmem:[%s4 + $0x800] sm:$0xff]
        %v3311 = vld [vmem:[%s4 + $0x808] sm:$0xff]
        %v3312 = vld [vmem:[%s4 + $0x810] sm:$0xff]
        %v3313 = vld [vmem:[%s4 + $0x818] sm:$0xff]
        %v3574 = vunpack.c.l.b16 %v3054
        %v3575 = vunpack.c.h.b16 %v3054
        %v3576 = vunpack.c.l.b16 %v3055
        %v3577 = vunpack.c.h.b16 %v3055
        %v3578 = vunpack.c.l.b16 %v3056
        %v3579 = vunpack.c.h.b16 %v3056
        %v3580 = vunpack.c.l.b16 %v3057
        %v3581 = vunpack.c.h.b16 %v3057
        %v3582 = vunpack.c.l.b16 %v3058
        %v3583 = vunpack.c.h.b16 %v3058
        %v3584 = vunpack.c.l.b16 %v3059
        %v3585 = vunpack.c.h.b16 %v3059
        %v3586 = vunpack.c.l.b16 %v3060
        %v3587 = vunpack.c.h.b16 %v3060
        %v3588 = vunpack.c.l.b16 %v3061
        %v3589 = vunpack.c.h.b16 %v3061
        %v3590 = vunpack.c.l.b16 %v3062
        %v3591 = vunpack.c.h.b16 %v3062
        %v3592 = vunpack.c.l.b16 %v3063
        %v3593 = vunpack.c.h.b16 %v3063
        %v3594 = vunpack.c.l.b16 %v3064
        %v3595 = vunpack.c.h.b16 %v3064
        %v3596 = vunpack.c.l.b16 %v3065
        %v3597 = vunpack.c.h.b16 %v3065
        %v3598 = vunpack.c.l.b16 %v3066
        %v3599 = vunpack.c.h.b16 %v3066
        %v3600 = vunpack.c.l.b16 %v3067
        %v3601 = vunpack.c.h.b16 %v3067
        %v3602 = vunpack.c.l.b16 %v3068
        %v3603 = vunpack.c.h.b16 %v3068
        %v3604 = vunpack.c.l.b16 %v3069
        %v3605 = vunpack.c.h.b16 %v3069
        %v3606 = vunpack.c.l.b16 %v3070
        %v3607 = vunpack.c.h.b16 %v3070
        %v3608 = vunpack.c.l.b16 %v3071
        %v3609 = vunpack.c.h.b16 %v3071
        %v3610 = vunpack.c.l.b16 %v3072
        %v3611 = vunpack.c.h.b16 %v3072
        %v3612 = vunpack.c.l.b16 %v3073
        %v3613 = vunpack.c.h.b16 %v3073
        %v3614 = vunpack.c.l.b16 %v3074
        %v3615 = vunpack.c.h.b16 %v3074
        %v3616 = vunpack.c.l.b16 %v3075
        %v3617 = vunpack.c.h.b16 %v3075
        %v3618 = vunpack.c.l.b16 %v3076
        %v3619 = vunpack.c.h.b16 %v3076
        %v3620 = vunpack.c.l.b16 %v3077
        %v3621 = vunpack.c.h.b16 %v3077
        %v3622 = vunpack.c.l.b16 %v3078
        %v3623 = vunpack.c.h.b16 %v3078
        %v3624 = vunpack.c.l.b16 %v3079
        %v3625 = vunpack.c.h.b16 %v3079
        %v3626 = vunpack.c.l.b16 %v3080
        %v3627 = vunpack.c.h.b16 %v3080
        %v3628 = vunpack.c.l.b16 %v3081
        %v3629 = vunpack.c.h.b16 %v3081
        %v3630 = vunpack.c.l.b16 %v3082
        %v3631 = vunpack.c.h.b16 %v3082
        %v3632 = vunpack.c.l.b16 %v3083
        %v3633 = vunpack.c.h.b16 %v3083
        %v3634 = vunpack.c.l.b16 %v3084
        %v3635 = vunpack.c.h.b16 %v3084
        %v3636 = vunpack.c.l.b16 %v3085
        %v3637 = vunpack.c.h.b16 %v3085
        %v3638 = vunpack.c.l.b16 %v3086
        %v3639 = vunpack.c.h.b16 %v3086
        %v3640 = vunpack.c.l.b16 %v3087
        %v3641 = vunpack.c.h.b16 %v3087
        %v3642 = vunpack.c.l.b16 %v3088
        %v3643 = vunpack.c.h.b16 %v3088
        %v3644 = vunpack.c.l.b16 %v3089
        %v3645 = vunpack.c.h.b16 %v3089
        %v3646 = vunpack.c.l.b16 %v3090
        %v3647 = vunpack.c.h.b16 %v3090
        %v3648 = vunpack.c.l.b16 %v3091
        %v3649 = vunpack.c.h.b16 %v3091
        %v3650 = vunpack.c.l.b16 %v3092
        %v3651 = vunpack.c.h.b16 %v3092
        %v3652 = vunpack.c.l.b16 %v3093
        %v3653 = vunpack.c.h.b16 %v3093
        %v3654 = vunpack.c.l.b16 %v3094
        %v3655 = vunpack.c.h.b16 %v3094
        %v3656 = vunpack.c.l.b16 %v3095
        %v3657 = vunpack.c.h.b16 %v3095
        %v3658 = vunpack.c.l.b16 %v3096
        %v3659 = vunpack.c.h.b16 %v3096
        %v3660 = vunpack.c.l.b16 %v3097
        %v3661 = vunpack.c.h.b16 %v3097
        %v3662 = vunpack.c.l.b16 %v3098
        %v3663 = vunpack.c.h.b16 %v3098
        %v3664 = vunpack.c.l.b16 %v3099
        %v3665 = vunpack.c.h.b16 %v3099
        %v3666 = vunpack.c.l.b16 %v3100
        %v3667 = vunpack.c.h.b16 %v3100
        %v3668 = vunpack.c.l.b16 %v3101
        %v3669 = vunpack.c.h.b16 %v3101
        %v3670 = vunpack.c.l.b16 %v3102
        %v3671 = vunpack.c.h.b16 %v3102
        %v3672 = vunpack.c.l.b16 %v3103
        %v3673 = vunpack.c.h.b16 %v3103
        %v3674 = vunpack.c.l.b16 %v3104
        %v3675 = vunpack.c.h.b16 %v3104
        %v3676 = vunpack.c.l.b16 %v3105
        %v3677 = vunpack.c.h.b16 %v3105
        %v3678 = vunpack.c.l.b16 %v3106
        %v3679 = vunpack.c.h.b16 %v3106
        %v3680 = vunpack.c.l.b16 %v3107
        %v3681 = vunpack.c.h.b16 %v3107
        %v3682 = vunpack.c.l.b16 %v3108
        %v3683 = vunpack.c.h.b16 %v3108
        %v3684 = vunpack.c.l.b16 %v3109
        %v3685 = vunpack.c.h.b16 %v3109
        %v3686 = vunpack.c.l.b16 %v3110
        %v3687 = vunpack.c.h.b16 %v3110
        %v3688 = vunpack.c.l.b16 %v3111
        %v3689 = vunpack.c.h.b16 %v3111
        %v3690 = vunpack.c.l.b16 %v3112
        %v3691 = vunpack.c.h.b16 %v3112
        %v3692 = vunpack.c.l.b16 %v3113
        %v3693 = vunpack.c.h.b16 %v3113
        %v3694 = vunpack.c.l.b16 %v3114
        %v3695 = vunpack.c.h.b16 %v3114
        %v3696 = vunpack.c.l.b16 %v3115
        %v3697 = vunpack.c.h.b16 %v3115
        %v3698 = vunpack.c.l.b16 %v3116
        %v3699 = vunpack.c.h.b16 %v3116
        %v3700 = vunpack.c.l.b16 %v3117
        %v3701 = vunpack.c.h.b16 %v3117
        %v3702 = vunpack.c.l.b16 %v3118
        %v3703 = vunpack.c.h.b16 %v3118
        %v3704 = vunpack.c.l.b16 %v3119
        %v3705 = vunpack.c.h.b16 %v3119
        %v3706 = vunpack.c.l.b16 %v3120
        %v3707 = vunpack.c.h.b16 %v3120
        %v3708 = vunpack.c.l.b16 %v3121
        %v3709 = vunpack.c.h.b16 %v3121
        %v3710 = vunpack.c.l.b16 %v3122
        %v3711 = vunpack.c.h.b16 %v3122
        %v3712 = vunpack.c.l.b16 %v3123
        %v3713 = vunpack.c.h.b16 %v3123
        %v3714 = vunpack.c.l.b16 %v3124
        %v3715 = vunpack.c.h.b16 %v3124
        %v3716 = vunpack.c.l.b16 %v3125
        %v3717 = vunpack.c.h.b16 %v3125
        %v3718 = vunpack.c.l.b16 %v3126
        %v3719 = vunpack.c.h.b16 %v3126
        %v3720 = vunpack.c.l.b16 %v3127
        %v3721 = vunpack.c.h.b16 %v3127
        %v3722 = vunpack.c.l.b16 %v3128
        %v3723 = vunpack.c.h.b16 %v3128
        %v3724 = vunpack.c.l.b16 %v3129
        %v3725 = vunpack.c.h.b16 %v3129
        %v3726 = vunpack.c.l.b16 %v3130
        %v3727 = vunpack.c.h.b16 %v3130
        %v3728 = vunpack.c.l.b16 %v3131
        %v3729 = vunpack.c.h.b16 %v3131
        %v3730 = vunpack.c.l.b16 %v3132
        %v3731 = vunpack.c.h.b16 %v3132
        %v3732 = vunpack.c.l.b16 %v3133
        %v3733 = vunpack.c.h.b16 %v3133
        %v3734 = vunpack.c.l.b16 %v3134
        %v3735 = vunpack.c.h.b16 %v3134
        %v3736 = vunpack.c.l.b16 %v3135
        %v3737 = vunpack.c.h.b16 %v3135
        %v3738 = vunpack.c.l.b16 %v3136
        %v3739 = vunpack.c.h.b16 %v3136
        %v3740 = vunpack.c.l.b16 %v3137
        %v3741 = vunpack.c.h.b16 %v3137
        %v3742 = vunpack.c.l.b16 %v3138
        %v3743 = vunpack.c.h.b16 %v3138
        %v3744 = vunpack.c.l.b16 %v3139
        %v3745 = vunpack.c.h.b16 %v3139
        %v3746 = vunpack.c.l.b16 %v3140
        %v3747 = vunpack.c.h.b16 %v3140
        %v3748 = vunpack.c.l.b16 %v3141
        %v3749 = vunpack.c.h.b16 %v3141
        %v3750 = vunpack.c.l.b16 %v3142
        %v3751 = vunpack.c.h.b16 %v3142
        %v3752 = vunpack.c.l.b16 %v3143
        %v3753 = vunpack.c.h.b16 %v3143
        %v3754 = vunpack.c.l.b16 %v3144
        %v3755 = vunpack.c.h.b16 %v3144
        %v3756 = vunpack.c.l.b16 %v3145
        %v3757 = vunpack.c.h.b16 %v3145
        %v3758 = vunpack.c.l.b16 %v3146
        %v3759 = vunpack.c.h.b16 %v3146
        %v3760 = vunpack.c.l.b16 %v3147
        %v3761 = vunpack.c.h.b16 %v3147
        %v3762 = vunpack.c.l.b16 %v3148
        %v3763 = vunpack.c.h.b16 %v3148
        %v3764 = vunpack.c.l.b16 %v3149
        %v3765 = vunpack.c.h.b16 %v3149
        %v3766 = vunpack.c.l.b16 %v3150
        %v3767 = vunpack.c.h.b16 %v3150
        %v3768 = vunpack.c.l.b16 %v3151
        %v3769 = vunpack.c.h.b16 %v3151
        %v3770 = vunpack.c.l.b16 %v3152
        %v3771 = vunpack.c.h.b16 %v3152
        %v3772 = vunpack.c.l.b16 %v3153
        %v3773 = vunpack.c.h.b16 %v3153
        %v3774 = vunpack.c.l.b16 %v3154
        %v3775 = vunpack.c.h.b16 %v3154
        %v3776 = vunpack.c.l.b16 %v3155
        %v3777 = vunpack.c.h.b16 %v3155
        %v3778 = vunpack.c.l.b16 %v3156
        %v3779 = vunpack.c.h.b16 %v3156
        %v3780 = vunpack.c.l.b16 %v3157
        %v3781 = vunpack.c.h.b16 %v3157
        %v3782 = vunpack.c.l.b16 %v3158
        %v3783 = vunpack.c.h.b16 %v3158
        %v3784 = vunpack.c.l.b16 %v3159
        %v3785 = vunpack.c.h.b16 %v3159
        %v3786 = vunpack.c.l.b16 %v3160
        %v3787 = vunpack.c.h.b16 %v3160
        %v3788 = vunpack.c.l.b16 %v3161
        %v3789 = vunpack.c.h.b16 %v3161
        %v3790 = vunpack.c.l.b16 %v3162
        %v3791 = vunpack.c.h.b16 %v3162
        %v3792 = vunpack.c.l.b16 %v3163
        %v3793 = vunpack.c.h.b16 %v3163
        %v3794 = vunpack.c.l.b16 %v3164
        %v3795 = vunpack.c.h.b16 %v3164
        %v3796 = vunpack.c.l.b16 %v3165
        %v3797 = vunpack.c.h.b16 %v3165
        %v3798 = vunpack.c.l.b16 %v3166
        %v3799 = vunpack.c.h.b16 %v3166
        %v3800 = vunpack.c.l.b16 %v3167
        %v3801 = vunpack.c.h.b16 %v3167
        %v3802 = vunpack.c.l.b16 %v3168
        %v3803 = vunpack.c.h.b16 %v3168
        %v3804 = vunpack.c.l.b16 %v3169
        %v3805 = vunpack.c.h.b16 %v3169
        %v3806 = vunpack.c.l.b16 %v3170
        %v3807 = vunpack.c.h.b16 %v3170
        %v3808 = vunpack.c.l.b16 %v3171
        %v3809 = vunpack.c.h.b16 %v3171
        %v3810 = vunpack.c.l.b16 %v3172
        %v3811 = vunpack.c.h.b16 %v3172
        %v3812 = vunpack.c.l.b16 %v3173
        %v3813 = vunpack.c.h.b16 %v3173
        %v3814 = vunpack.c.l.b16 %v3174
        %v3815 = vunpack.c.h.b16 %v3174
        %v3816 = vunpack.c.l.b16 %v3175
        %v3817 = vunpack.c.h.b16 %v3175
        %v3818 = vunpack.c.l.b16 %v3176
        %v3819 = vunpack.c.h.b16 %v3176
        %v3820 = vunpack.c.l.b16 %v3177
        %v3821 = vunpack.c.h.b16 %v3177
        %v3822 = vunpack.c.l.b16 %v3178
        %v3823 = vunpack.c.h.b16 %v3178
        %v3824 = vunpack.c.l.b16 %v3179
        %v3825 = vunpack.c.h.b16 %v3179
        %v3826 = vunpack.c.l.b16 %v3180
        %v3827 = vunpack.c.h.b16 %v3180
        %v3828 = vunpack.c.l.b16 %v3181
        %v3829 = vunpack.c.h.b16 %v3181
        %v3830 = vunpack.c.l.b16 %v3182
        %v3831 = vunpack.c.h.b16 %v3182
        %v3832 = vunpack.c.l.b16 %v3183
        %v3833 = vunpack.c.h.b16 %v3183
        %v3834 = vunpack.c.l.b16 %v3184
        %v3835 = vunpack.c.h.b16 %v3184
        %v3836 = vunpack.c.l.b16 %v3185
        %v3837 = vunpack.c.h.b16 %v3185
        %v3838 = vunpack.c.l.b16 %v3186
        %v3839 = vunpack.c.h.b16 %v3186
        %v3840 = vunpack.c.l.b16 %v3187
        %v3841 = vunpack.c.h.b16 %v3187
        %v3842 = vunpack.c.l.b16 %v3188
        %v3843 = vunpack.c.h.b16 %v3188
        %v3844 = vunpack.c.l.b16 %v3189
        %v3845 = vunpack.c.h.b16 %v3189
        %v3846 = vunpack.c.l.b16 %v3190
        %v3847 = vunpack.c.h.b16 %v3190
        %v3848 = vunpack.c.l.b16 %v3191
        %v3849 = vunpack.c.h.b16 %v3191
        %v3850 = vunpack.c.l.b16 %v3192
        %v3851 = vunpack.c.h.b16 %v3192
        %v3852 = vunpack.c.l.b16 %v3193
        %v3853 = vunpack.c.h.b16 %v3193
        %v3854 = vunpack.c.l.b16 %v3194
        %v3855 = vunpack.c.h.b16 %v3194
        %v3856 = vunpack.c.l.b16 %v3195
        %v3857 = vunpack.c.h.b16 %v3195
        %v3858 = vunpack.c.l.b16 %v3196
        %v3859 = vunpack.c.h.b16 %v3196
        %v3860 = vunpack.c.l.b16 %v3197
        %v3861 = vunpack.c.h.b16 %v3197
        %v3862 = vunpack.c.l.b16 %v3198
        %v3863 = vunpack.c.h.b16 %v3198
        %v3864 = vunpack.c.l.b16 %v3199
        %v3865 = vunpack.c.h.b16 %v3199
        %v3866 = vunpack.c.l.b16 %v3200
        %v3867 = vunpack.c.h.b16 %v3200
        %v3868 = vunpack.c.l.b16 %v3201
        %v3869 = vunpack.c.h.b16 %v3201
        %v3870 = vunpack.c.l.b16 %v3202
        %v3871 = vunpack.c.h.b16 %v3202
        %v3872 = vunpack.c.l.b16 %v3203
        %v3873 = vunpack.c.h.b16 %v3203
        %v3874 = vunpack.c.l.b16 %v3204
        %v3875 = vunpack.c.h.b16 %v3204
        %v3876 = vunpack.c.l.b16 %v3205
        %v3877 = vunpack.c.h.b16 %v3205
        %v3878 = vunpack.c.l.b16 %v3206
        %v3879 = vunpack.c.h.b16 %v3206
        %v3880 = vunpack.c.l.b16 %v3207
        %v3881 = vunpack.c.h.b16 %v3207
        %v3882 = vunpack.c.l.b16 %v3208
        %v3883 = vunpack.c.h.b16 %v3208
        %v3884 = vunpack.c.l.b16 %v3209
        %v3885 = vunpack.c.h.b16 %v3209
        %v3886 = vunpack.c.l.b16 %v3210
        %v3887 = vunpack.c.h.b16 %v3210
        %v3888 = vunpack.c.l.b16 %v3211
        %v3889 = vunpack.c.h.b16 %v3211
        %v3890 = vunpack.c.l.b16 %v3212
        %v3891 = vunpack.c.h.b16 %v3212
        %v3892 = vunpack.c.l.b16 %v3213
        %v3893 = vunpack.c.h.b16 %v3213
        %v3894 = vunpack.c.l.b16 %v3214
        %v3895 = vunpack.c.h.b16 %v3214
        %v3896 = vunpack.c.l.b16 %v3215
        %v3897 = vunpack.c.h.b16 %v3215
        %v3898 = vunpack.c.l.b16 %v3216
        %v3899 = vunpack.c.h.b16 %v3216
        %v3900 = vunpack.c.l.b16 %v3217
        %v3901 = vunpack.c.h.b16 %v3217
        %v3902 = vunpack.c.l.b16 %v3218
        %v3903 = vunpack.c.h.b16 %v3218
        %v3904 = vunpack.c.l.b16 %v3219
        %v3905 = vunpack.c.h.b16 %v3219
        %v3906 = vunpack.c.l.b16 %v3220
        %v3907 = vunpack.c.h.b16 %v3220
        %v3908 = vunpack.c.l.b16 %v3221
        %v3909 = vunpack.c.h.b16 %v3221
        %v3910 = vunpack.c.l.b16 %v3222
        %v3911 = vunpack.c.h.b16 %v3222
        %v3912 = vunpack.c.l.b16 %v3223
        %v3913 = vunpack.c.h.b16 %v3223
        %v3914 = vunpack.c.l.b16 %v3224
        %v3915 = vunpack.c.h.b16 %v3224
        %v3916 = vunpack.c.l.b16 %v3225
        %v3917 = vunpack.c.h.b16 %v3225
        %v3918 = vunpack.c.l.b16 %v3226
        %v3919 = vunpack.c.h.b16 %v3226
        %v3920 = vunpack.c.l.b16 %v3227
        %v3921 = vunpack.c.h.b16 %v3227
        %v3922 = vunpack.c.l.b16 %v3228
        %v3923 = vunpack.c.h.b16 %v3228
        %v3924 = vunpack.c.l.b16 %v3229
        %v3925 = vunpack.c.h.b16 %v3229
        %v3926 = vunpack.c.l.b16 %v3230
        %v3927 = vunpack.c.h.b16 %v3230
        %v3928 = vunpack.c.l.b16 %v3231
        %v3929 = vunpack.c.h.b16 %v3231
        %v3930 = vunpack.c.l.b16 %v3232
        %v3931 = vunpack.c.h.b16 %v3232
        %v3932 = vunpack.c.l.b16 %v3233
        %v3933 = vunpack.c.h.b16 %v3233
        %v3934 = vunpack.c.l.b16 %v3234
        %v3935 = vunpack.c.h.b16 %v3234
        %v3936 = vunpack.c.l.b16 %v3235
        %v3937 = vunpack.c.h.b16 %v3235
        %v3938 = vunpack.c.l.b16 %v3236
        %v3939 = vunpack.c.h.b16 %v3236
        %v3940 = vunpack.c.l.b16 %v3237
        %v3941 = vunpack.c.h.b16 %v3237
        %v3942 = vunpack.c.l.b16 %v3238
        %v3943 = vunpack.c.h.b16 %v3238
        %v3944 = vunpack.c.l.b16 %v3239
        %v3945 = vunpack.c.h.b16 %v3239
        %v3946 = vunpack.c.l.b16 %v3240
        %v3947 = vunpack.c.h.b16 %v3240
        %v3948 = vunpack.c.l.b16 %v3241
        %v3949 = vunpack.c.h.b16 %v3241
        %v3950 = vunpack.c.l.b16 %v3242
        %v3951 = vunpack.c.h.b16 %v3242
        %v3952 = vunpack.c.l.b16 %v3243
        %v3953 = vunpack.c.h.b16 %v3243
        %v3954 = vunpack.c.l.b16 %v3244
        %v3955 = vunpack.c.h.b16 %v3244
        %v3956 = vunpack.c.l.b16 %v3245
        %v3957 = vunpack.c.h.b16 %v3245
        %v3958 = vunpack.c.l.b16 %v3246
        %v3959 = vunpack.c.h.b16 %v3246
        %v3960 = vunpack.c.l.b16 %v3247
        %v3961 = vunpack.c.h.b16 %v3247
        %v3962 = vunpack.c.l.b16 %v3248
        %v3963 = vunpack.c.h.b16 %v3248
        %v3964 = vunpack.c.l.b16 %v3249
        %v3965 = vunpack.c.h.b16 %v3249
        %v3966 = vunpack.c.l.b16 %v3250
        %v3967 = vunpack.c.h.b16 %v3250
        %v3968 = vunpack.c.l.b16 %v3251
        %v3969 = vunpack.c.h.b16 %v3251
        %v3970 = vunpack.c.l.b16 %v3252
        %v3971 = vunpack.c.h.b16 %v3252
        %v3972 = vunpack.c.l.b16 %v3253
        %v3973 = vunpack.c.h.b16 %v3253
        %v3974 = vunpack.c.l.b16 %v3254
        %v3975 = vunpack.c.h.b16 %v3254
        %v3976 = vunpack.c.l.b16 %v3255
        %v3977 = vunpack.c.h.b16 %v3255
        %v3978 = vunpack.c.l.b16 %v3256
        %v3979 = vunpack.c.h.b16 %v3256
        %v3980 = vunpack.c.l.b16 %v3257
        %v3981 = vunpack.c.h.b16 %v3257
        %v3982 = vunpack.c.l.b16 %v3258
        %v3983 = vunpack.c.h.b16 %v3258
        %v3984 = vunpack.c.l.b16 %v3259
        %v3985 = vunpack.c.h.b16 %v3259
        %v3986 = vunpack.c.l.b16 %v3260
        %v3987 = vunpack.c.h.b16 %v3260
        %v3988 = vunpack.c.l.b16 %v3261
        %v3989 = vunpack.c.h.b16 %v3261
        %v3990 = vunpack.c.l.b16 %v3262
        %v3991 = vunpack.c.h.b16 %v3262
        %v3992 = vunpack.c.l.b16 %v3263
        %v3993 = vunpack.c.h.b16 %v3263
        %v3994 = vunpack.c.l.b16 %v3264
        %v3995 = vunpack.c.h.b16 %v3264
        %v3996 = vunpack.c.l.b16 %v3265
        %v3997 = vunpack.c.h.b16 %v3265
        %v3998 = vunpack.c.l.b16 %v3266
        %v3999 = vunpack.c.h.b16 %v3266
        %v4000 = vunpack.c.l.b16 %v3267
        %v4001 = vunpack.c.h.b16 %v3267
        %v4002 = vunpack.c.l.b16 %v3268
        %v4003 = vunpack.c.h.b16 %v3268
        %v4004 = vunpack.c.l.b16 %v3269
        %v4005 = vunpack.c.h.b16 %v3269
        %v4006 = vunpack.c.l.b16 %v3270
        %v4007 = vunpack.c.h.b16 %v3270
        %v4008 = vunpack.c.l.b16 %v3271
        %v4009 = vunpack.c.h.b16 %v3271
        %v4010 = vunpack.c.l.b16 %v3272
        %v4011 = vunpack.c.h.b16 %v3272
        %v4012 = vunpack.c.l.b16 %v3273
        %v4013 = vunpack.c.h.b16 %v3273
        %v4014 = vunpack.c.l.b16 %v3274
        %v4015 = vunpack.c.h.b16 %v3274
        %v4016 = vunpack.c.l.b16 %v3275
        %v4017 = vunpack.c.h.b16 %v3275
        %v4018 = vunpack.c.l.b16 %v3276
        %v4019 = vunpack.c.h.b16 %v3276
        %v4020 = vunpack.c.l.b16 %v3277
        %v4021 = vunpack.c.h.b16 %v3277
        %v4022 = vunpack.c.l.b16 %v3278
        %v4023 = vunpack.c.h.b16 %v3278
        %v4024 = vunpack.c.l.b16 %v3279
        %v4025 = vunpack.c.h.b16 %v3279
        %v4026 = vunpack.c.l.b16 %v3280
        %v4027 = vunpack.c.h.b16 %v3280
        %v4028 = vunpack.c.l.b16 %v3281
        %v4029 = vunpack.c.h.b16 %v3281
        %v4030 = vunpack.c.l.b16 %v3282
        %v4031 = vunpack.c.h.b16 %v3282
        %v4032 = vunpack.c.l.b16 %v3283
        %v4033 = vunpack.c.h.b16 %v3283
        %v4034 = vunpack.c.l.b16 %v3284
        %v4035 = vunpack.c.h.b16 %v3284
        %v4036 = vunpack.c.l.b16 %v3285
        %v4037 = vunpack.c.h.b16 %v3285
        %v4038 = vunpack.c.l.b16 %v3286
        %v4039 = vunpack.c.h.b16 %v3286
        %v4040 = vunpack.c.l.b16 %v3287
        %v4041 = vunpack.c.h.b16 %v3287
        %v4042 = vunpack.c.l.b16 %v3288
        %v4043 = vunpack.c.h.b16 %v3288
        %v4044 = vunpack.c.l.b16 %v3289
        %v4045 = vunpack.c.h.b16 %v3289
        %v4046 = vunpack.c.l.b16 %v3290
        %v4047 = vunpack.c.h.b16 %v3290
        %v4048 = vunpack.c.l.b16 %v3291
        %v4049 = vunpack.c.h.b16 %v3291
        %v4050 = vunpack.c.l.b16 %v3292
        %v4051 = vunpack.c.h.b16 %v3292
        %v4052 = vunpack.c.l.b16 %v3293
        %v4053 = vunpack.c.h.b16 %v3293
        %v4054 = vunpack.c.l.b16 %v3294
        %v4055 = vunpack.c.h.b16 %v3294
        %v4056 = vunpack.c.l.b16 %v3295
        %v4057 = vunpack.c.h.b16 %v3295
        %v4058 = vunpack.c.l.b16 %v3296
        %v4059 = vunpack.c.h.b16 %v3296
        %v4060 = vunpack.c.l.b16 %v3297
        %v4061 = vunpack.c.h.b16 %v3297
        %v4062 = vunpack.c.l.b16 %v3298
        %v4063 = vunpack.c.h.b16 %v3298
        %v4064 = vunpack.c.l.b16 %v3299
        %v4065 = vunpack.c.h.b16 %v3299
        %v4066 = vunpack.c.l.b16 %v3300
        %v4067 = vunpack.c.h.b16 %v3300
        %v4068 = vunpack.c.l.b16 %v3301
        %v4069 = vunpack.c.h.b16 %v3301
        %v4070 = vunpack.c.l.b16 %v3302
        %v4071 = vunpack.c.h.b16 %v3302
        %v4072 = vunpack.c.l.b16 %v3303
        %v4073 = vunpack.c.h.b16 %v3303
        %v4074 = vunpack.c.l.b16 %v3304
        %v4075 = vunpack.c.h.b16 %v3304
        %v4076 = vunpack.c.l.b16 %v3305
        %v4077 = vunpack.c.h.b16 %v3305
        %v4078 = vunpack.c.l.b16 %v3306
        %v4079 = vunpack.c.h.b16 %v3306
        %v4080 = vunpack.c.l.b16 %v3307
        %v4081 = vunpack.c.h.b16 %v3307
        %v4082 = vunpack.c.l.b16 %v3308
        %v4083 = vunpack.c.h.b16 %v3308
        %v4084 = vunpack.c.l.b16 %v3309
        %v4085 = vunpack.c.h.b16 %v3309
        %v4086 = vunpack.c.l.b16 %v3310
        %v4087 = vunpack.c.h.b16 %v3310
        %v4088 = vunpack.c.l.b16 %v3311
        %v4089 = vunpack.c.h.b16 %v3311
        %v4090 = vunpack.c.l.b16 %v3312
        %v4091 = vunpack.c.h.b16 %v3312
        %v4092 = vunpack.c.l.b16 %v3313
        %v4093 = vunpack.c.h.b16 %v3313
        %v4094 = vpack.c.b16 %v3576, %v3574
        %v4095 = vpack.c.b16 %v3577, %v3575
        %v4096 = vpack.c.b16 %v3580, %v3578
        %v4097 = vpack.c.b16 %v3581, %v3579
        %v4098 = vpack.c.b16 %v3584, %v3582
        %v4099 = vpack.c.b16 %v3585, %v3583
        %v4100 = vpack.c.b16 %v3588, %v3586
        %v4101 = vpack.c.b16 %v3589, %v3587
        %v4102 = vpack.c.b16 %v3592, %v3590
        %v4103 = vpack.c.b16 %v3593, %v3591
        %v4104 = vpack.c.b16 %v3596, %v3594
        %v4105 = vpack.c.b16 %v3597, %v3595
        %v4106 = vpack.c.b16 %v3600, %v3598
        %v4107 = vpack.c.b16 %v3601, %v3599
        %v4108 = vpack.c.b16 %v3604, %v3602
        %v4109 = vpack.c.b16 %v3605, %v3603
        %v4110 = vpack.c.b16 %v3608, %v3606
        %v4111 = vpack.c.b16 %v3609, %v3607
        %v4112 = vpack.c.b16 %v3612, %v3610
        %v4113 = vpack.c.b16 %v3613, %v3611
        %v4114 = vpack.c.b16 %v3616, %v3614
        %v4115 = vpack.c.b16 %v3617, %v3615
        %v4116 = vpack.c.b16 %v3620, %v3618
        %v4117 = vpack.c.b16 %v3621, %v3619
        %v4118 = vpack.c.b16 %v3624, %v3622
        %v4119 = vpack.c.b16 %v3625, %v3623
        %v4120 = vpack.c.b16 %v3628, %v3626
        %v4121 = vpack.c.b16 %v3629, %v3627
        %v4122 = vpack.c.b16 %v3632, %v3630
        %v4123 = vpack.c.b16 %v3633, %v3631
        %v4124 = vpack.c.b16 %v3636, %v3634
        %v4125 = vpack.c.b16 %v3637, %v3635
        %v4126 = vpack.c.b16 %v3640, %v3638
        %v4127 = vpack.c.b16 %v3641, %v3639
        %v4128 = vpack.c.b16 %v3644, %v3642
        %v4129 = vpack.c.b16 %v3645, %v3643
        %v4130 = vpack.c.b16 %v3648, %v3646
        %v4131 = vpack.c.b16 %v3649, %v3647
        %v4132 = vpack.c.b16 %v3652, %v3650
        %v4133 = vpack.c.b16 %v3653, %v3651
        %v4134 = vpack.c.b16 %v3656, %v3654
        %v4135 = vpack.c.b16 %v3657, %v3655
        %v4136 = vpack.c.b16 %v3660, %v3658
        %v4137 = vpack.c.b16 %v3661, %v3659
        %v4138 = vpack.c.b16 %v3664, %v3662
        %v4139 = vpack.c.b16 %v3665, %v3663
        %v4140 = vpack.c.b16 %v3668, %v3666
        %v4141 = vpack.c.b16 %v3669, %v3667
        %v4142 = vpack.c.b16 %v3672, %v3670
        %v4143 = vpack.c.b16 %v3673, %v3671
        %v4144 = vpack.c.b16 %v3676, %v3674
        %v4145 = vpack.c.b16 %v3677, %v3675
        %v4146 = vpack.c.b16 %v3680, %v3678
        %v4147 = vpack.c.b16 %v3681, %v3679
        %v4148 = vpack.c.b16 %v3684, %v3682
        %v4149 = vpack.c.b16 %v3685, %v3683
        %v4150 = vpack.c.b16 %v3688, %v3686
        %v4151 = vpack.c.b16 %v3689, %v3687
        %v4152 = vpack.c.b16 %v3692, %v3690
        %v4153 = vpack.c.b16 %v3693, %v3691
        %v4154 = vpack.c.b16 %v3696, %v3694
        %v4155 = vpack.c.b16 %v3697, %v3695
        %v4156 = vpack.c.b16 %v3700, %v3698
        %v4157 = vpack.c.b16 %v3701, %v3699
        %v4158 = vpack.c.b16 %v3704, %v3702
        %v4159 = vpack.c.b16 %v3705, %v3703
        %v4160 = vpack.c.b16 %v3708, %v3706
        %v4161 = vpack.c.b16 %v3709, %v3707
        %v4162 = vpack.c.b16 %v3712, %v3710
        %v4163 = vpack.c.b16 %v3713, %v3711
        %v4164 = vpack.c.b16 %v3716, %v3714
        %v4165 = vpack.c.b16 %v3717, %v3715
        %v4166 = vpack.c.b16 %v3720, %v3718
        %v4167 = vpack.c.b16 %v3721, %v3719
        %v4168 = vpack.c.b16 %v3724, %v3722
        %v4169 = vpack.c.b16 %v3725, %v3723
        %v4170 = vpack.c.b16 %v3728, %v3726
        %v4171 = vpack.c.b16 %v3729, %v3727
        %v4172 = vpack.c.b16 %v3732, %v3730
        %v4173 = vpack.c.b16 %v3733, %v3731
        %v4174 = vpack.c.b16 %v3736, %v3734
        %v4175 = vpack.c.b16 %v3737, %v3735
        %v4176 = vpack.c.b16 %v3740, %v3738
        %v4177 = vpack.c.b16 %v3741, %v3739
        %v4178 = vpack.c.b16 %v3744, %v3742
        %v4179 = vpack.c.b16 %v3745, %v3743
        %v4180 = vpack.c.b16 %v3748, %v3746
        %v4181 = vpack.c.b16 %v3749, %v3747
        %v4182 = vpack.c.b16 %v3752, %v3750
        %v4183 = vpack.c.b16 %v3753, %v3751
        %v4184 = vpack.c.b16 %v3756, %v3754
        %v4185 = vpack.c.b16 %v3757, %v3755
        %v4186 = vpack.c.b16 %v3760, %v3758
        %v4187 = vpack.c.b16 %v3761, %v3759
        %v4188 = vpack.c.b16 %v3764, %v3762
        %v4189 = vpack.c.b16 %v3765, %v3763
        %v4190 = vpack.c.b16 %v3768, %v3766
        %v4191 = vpack.c.b16 %v3769, %v3767
        %v4192 = vpack.c.b16 %v3772, %v3770
        %v4193 = vpack.c.b16 %v3773, %v3771
        %v4194 = vpack.c.b16 %v3776, %v3774
        %v4195 = vpack.c.b16 %v3777, %v3775
        %v4196 = vpack.c.b16 %v3780, %v3778
        %v4197 = vpack.c.b16 %v3781, %v3779
        %v4198 = vpack.c.b16 %v3784, %v3782
        %v4199 = vpack.c.b16 %v3785, %v3783
        %v4200 = vpack.c.b16 %v3788, %v3786
        %v4201 = vpack.c.b16 %v3789, %v3787
        %v4202 = vpack.c.b16 %v3792, %v3790
        %v4203 = vpack.c.b16 %v3793, %v3791
        %v4204 = vpack.c.b16 %v3796, %v3794
        %v4205 = vpack.c.b16 %v3797, %v3795
        %v4206 = vpack.c.b16 %v3800, %v3798
        %v4207 = vpack.c.b16 %v3801, %v3799
        %v4208 = vpack.c.b16 %v3804, %v3802
        %v4209 = vpack.c.b16 %v3805, %v3803
        %v4210 = vpack.c.b16 %v3808, %v3806
        %v4211 = vpack.c.b16 %v3809, %v3807
        %v4212 = vpack.c.b16 %v3812, %v3810
        %v4213 = vpack.c.b16 %v3813, %v3811
        %v4214 = vpack.c.b16 %v3816, %v3814
        %v4215 = vpack.c.b16 %v3817, %v3815
        %v4216 = vpack.c.b16 %v3820, %v3818
        %v4217 = vpack.c.b16 %v3821, %v3819
        %v4218 = vpack.c.b16 %v3824, %v3822
        %v4219 = vpack.c.b16 %v3825, %v3823
        %v4220 = vpack.c.b16 %v3828, %v3826
        %v4221 = vpack.c.b16 %v3829, %v3827
        %v4222 = vpack.c.b16 %v3832, %v3830
        %v4223 = vpack.c.b16 %v3833, %v3831
        %v4224 = vpack.c.b16 %v3836, %v3834
        %v4225 = vpack.c.b16 %v3837, %v3835
        %v4226 = vpack.c.b16 %v3840, %v3838
        %v4227 = vpack.c.b16 %v3841, %v3839
        %v4228 = vpack.c.b16 %v3844, %v3842
        %v4229 = vpack.c.b16 %v3845, %v3843
        %v4230 = vpack.c.b16 %v3848, %v3846
        %v4231 = vpack.c.b16 %v3849, %v3847
        %v4232 = vpack.c.b16 %v3852, %v3850
        %v4233 = vpack.c.b16 %v3853, %v3851
        %v4234 = vpack.c.b16 %v3856, %v3854
        %v4235 = vpack.c.b16 %v3857, %v3855
        %v4236 = vpack.c.b16 %v3860, %v3858
        %v4237 = vpack.c.b16 %v3861, %v3859
        %v4238 = vpack.c.b16 %v3864, %v3862
        %v4239 = vpack.c.b16 %v3865, %v3863
        %v4240 = vpack.c.b16 %v3868, %v3866
        %v4241 = vpack.c.b16 %v3869, %v3867
        %v4242 = vpack.c.b16 %v3872, %v3870
        %v4243 = vpack.c.b16 %v3873, %v3871
        %v4244 = vpack.c.b16 %v3876, %v3874
        %v4245 = vpack.c.b16 %v3877, %v3875
        %v4246 = vpack.c.b16 %v3880, %v3878
        %v4247 = vpack.c.b16 %v3881, %v3879
        %v4248 = vpack.c.b16 %v3884, %v3882
        %v4249 = vpack.c.b16 %v3885, %v3883
        %v4250 = vpack.c.b16 %v3888, %v3886
        %v4251 = vpack.c.b16 %v3889, %v3887
        %v4252 = vpack.c.b16 %v3892, %v3890
        %v4253 = vpack.c.b16 %v3893, %v3891
        %v4254 = vpack.c.b16 %v3896, %v3894
        %v4255 = vpack.c.b16 %v3897, %v3895
        %v4256 = vpack.c.b16 %v3900, %v3898
        %v4257 = vpack.c.b16 %v3901, %v3899
        %v4258 = vpack.c.b16 %v3904, %v3902
        %v4259 = vpack.c.b16 %v3905, %v3903
        %v4260 = vpack.c.b16 %v3908, %v3906
        %v4261 = vpack.c.b16 %v3909, %v3907
        %v4262 = vpack.c.b16 %v3912, %v3910
        %v4263 = vpack.c.b16 %v3913, %v3911
        %v4264 = vpack.c.b16 %v3916, %v3914
        %v4265 = vpack.c.b16 %v3917, %v3915
        %v4266 = vpack.c.b16 %v3920, %v3918
        %v4267 = vpack.c.b16 %v3921, %v3919
        %v4268 = vpack.c.b16 %v3924, %v3922
        %v4269 = vpack.c.b16 %v3925, %v3923
        %v4270 = vpack.c.b16 %v3928, %v3926
        %v4271 = vpack.c.b16 %v3929, %v3927
        %v4272 = vpack.c.b16 %v3932, %v3930
        %v4273 = vpack.c.b16 %v3933, %v3931
        %v4274 = vpack.c.b16 %v3936, %v3934
        %v4275 = vpack.c.b16 %v3937, %v3935
        %v4276 = vpack.c.b16 %v3940, %v3938
        %v4277 = vpack.c.b16 %v3941, %v3939
        %v4278 = vpack.c.b16 %v3944, %v3942
        %v4279 = vpack.c.b16 %v3945, %v3943
        %v4280 = vpack.c.b16 %v3948, %v3946
        %v4281 = vpack.c.b16 %v3949, %v3947
        %v4282 = vpack.c.b16 %v3952, %v3950
        %v4283 = vpack.c.b16 %v3953, %v3951
        %v4284 = vpack.c.b16 %v3956, %v3954
        %v4285 = vpack.c.b16 %v3957, %v3955
        %v4286 = vpack.c.b16 %v3960, %v3958
        %v4287 = vpack.c.b16 %v3961, %v3959
        %v4288 = vpack.c.b16 %v3964, %v3962
        %v4289 = vpack.c.b16 %v3965, %v3963
        %v4290 = vpack.c.b16 %v3968, %v3966
        %v4291 = vpack.c.b16 %v3969, %v3967
        %v4292 = vpack.c.b16 %v3972, %v3970
        %v4293 = vpack.c.b16 %v3973, %v3971
        %v4294 = vpack.c.b16 %v3976, %v3974
        %v4295 = vpack.c.b16 %v3977, %v3975
        %v4296 = vpack.c.b16 %v3980, %v3978
        %v4297 = vpack.c.b16 %v3981, %v3979
        %v4298 = vpack.c.b16 %v3984, %v3982
        %v4299 = vpack.c.b16 %v3985, %v3983
        %v4300 = vpack.c.b16 %v3988, %v3986
        %v4301 = vpack.c.b16 %v3989, %v3987
        %v4302 = vpack.c.b16 %v3992, %v3990
        %v4303 = vpack.c.b16 %v3993, %v3991
        %v4304 = vpack.c.b16 %v3996, %v3994
        %v4305 = vpack.c.b16 %v3997, %v3995
        %v4306 = vpack.c.b16 %v4000, %v3998
        %v4307 = vpack.c.b16 %v4001, %v3999
        %v4308 = vpack.c.b16 %v4004, %v4002
        %v4309 = vpack.c.b16 %v4005, %v4003
        %v4310 = vpack.c.b16 %v4008, %v4006
        %v4311 = vpack.c.b16 %v4009, %v4007
        %v4312 = vpack.c.b16 %v4012, %v4010
        %v4313 = vpack.c.b16 %v4013, %v4011
        %v4314 = vpack.c.b16 %v4016, %v4014
        %v4315 = vpack.c.b16 %v4017, %v4015
        %v4316 = vpack.c.b16 %v4020, %v4018
        %v4317 = vpack.c.b16 %v4021, %v4019
        %v4318 = vpack.c.b16 %v4024, %v4022
        %v4319 = vpack.c.b16 %v4025, %v4023
        %v4320 = vpack.c.b16 %v4028, %v4026
        %v4321 = vpack.c.b16 %v4029, %v4027
        %v4322 = vpack.c.b16 %v4032, %v4030
        %v4323 = vpack.c.b16 %v4033, %v4031
        %v4324 = vpack.c.b16 %v4036, %v4034
        %v4325 = vpack.c.b16 %v4037, %v4035
        %v4326 = vpack.c.b16 %v4040, %v4038
        %v4327 = vpack.c.b16 %v4041, %v4039
        %v4328 = vpack.c.b16 %v4044, %v4042
        %v4329 = vpack.c.b16 %v4045, %v4043
        %v4330 = vpack.c.b16 %v4048, %v4046
        %v4331 = vpack.c.b16 %v4049, %v4047
        %v4332 = vpack.c.b16 %v4052, %v4050
        %v4333 = vpack.c.b16 %v4053, %v4051
        %v4334 = vpack.c.b16 %v4056, %v4054
        %v4335 = vpack.c.b16 %v4057, %v4055
        %v4336 = vpack.c.b16 %v4060, %v4058
        %v4337 = vpack.c.b16 %v4061, %v4059
        %v4338 = vpack.c.b16 %v4064, %v4062
        %v4339 = vpack.c.b16 %v4065, %v4063
        %v4340 = vpack.c.b16 %v4068, %v4066
        %v4341 = vpack.c.b16 %v4069, %v4067
        %v4342 = vpack.c.b16 %v4072, %v4070
        %v4343 = vpack.c.b16 %v4073, %v4071
        %v4344 = vpack.c.b16 %v4076, %v4074
        %v4345 = vpack.c.b16 %v4077, %v4075
        %v4346 = vpack.c.b16 %v4080, %v4078
        %v4347 = vpack.c.b16 %v4081, %v4079
        %v4348 = vpack.c.b16 %v4084, %v4082
        %v4349 = vpack.c.b16 %v4085, %v4083
        %v4350 = vpack.c.b16 %v4088, %v4086
        %v4351 = vpack.c.b16 %v4089, %v4087
        %v4352 = vpack.c.b16 %v4092, %v4090
        %v4353 = vpack.c.b16 %v4093, %v4091
        %4614 = vmatprep.subr.bf16.mxu0 %v4095
        %4615 = vmatpush1.bf16.msra.mxu0 %v4094
        %4616 = vmatprep.subr.bf16.mxu0 %v4097
        %4617 = vmatpush1.bf16.msra.mxu0 %v4096
        %4618 = vmatprep.subr.bf16.mxu0 %v4099
        %4619 = vmatpush1.bf16.msra.mxu0 %v4098
        %4620 = vmatprep.subr.bf16.mxu0 %v4101
        %4621 = vmatpush1.bf16.msra.mxu0 %v4100
        %4622 = vmatprep.subr.bf16.mxu0 %v4103
        %4623 = vmatpush1.bf16.msra.mxu0 %v4102
        %4624 = vmatprep.subr.bf16.mxu0 %v4105
        %4625 = vmatpush1.bf16.msra.mxu0 %v4104
        %4626 = vmatprep.subr.bf16.mxu0 %v4107
        %4627 = vmatpush1.bf16.msra.mxu0 %v4106
        %4628 = vmatprep.subr.bf16.mxu0 %v4109
        %4629 = vmatpush1.bf16.msra.mxu0 %v4108
        %4630 = vmatprep.subr.bf16.mxu0 %v4111
        %4631 = vmatpush1.bf16.msra.mxu0 %v4110
        %4632 = vmatprep.subr.bf16.mxu0 %v4113
        %4633 = vmatpush1.bf16.msra.mxu0 %v4112
        %4634 = vmatprep.subr.bf16.mxu0 %v4115
        %4635 = vmatpush1.bf16.msra.mxu0 %v4114
        %4636 = vmatprep.subr.bf16.mxu0 %v4117
        %4637 = vmatpush1.bf16.msra.mxu0 %v4116
        %4638 = vmatprep.subr.bf16.mxu0 %v4119
        %4639 = vmatpush1.bf16.msra.mxu0 %v4118
        %4640 = vmatprep.subr.bf16.mxu0 %v4121
        %4641 = vmatpush1.bf16.msra.mxu0 %v4120
        %4642 = vmatprep.subr.bf16.mxu0 %v4123
        %4643 = vmatpush1.bf16.msra.mxu0 %v4122
        %4644 = vmatprep.subr.bf16.mxu0 %v4125
        %4645 = vmatpush1.bf16.msra.mxu0 %v4124
        %4646 = vmatprep.mubr.bf16.mxu0 %v685
        %4647 = vmatmul.mubr.bf16.gmra.mrb[0].mxu0 %v684
        %v4648 = vpop.f32.mrb[0].mxu0
        %v4649 = vadd.f32 0.0, %v4648
        %v4650 = vpop.f32.mrb[0].mxu0
        %v4651 = vadd.f32 0.0, %v4650
        %v4652 = vpop.f32.mrb[0].mxu0
        %v4653 = vadd.f32 0.0, %v4652
        %v4654 = vpop.f32.mrb[0].mxu0
        %v4655 = vadd.f32 0.0, %v4654
        %4656 = vmatprep.mubr.bf16.mxu0 %v702
        %4657 = vmatmul.mubr.bf16.gmra.mrb[0].mxu0 %v701
        %v4658 = vpop.f32.mrb[0].mxu0
        %v4659 = vadd.f32 0.0, %v4658
        %v4660 = vpop.f32.mrb[0].mxu0
        %v4661 = vadd.f32 0.0, %v4660
        %v4662 = vpop.f32.mrb[0].mxu0
        %v4663 = vadd.f32 0.0, %v4662
        %v4664 = vpop.f32.mrb[0].mxu0
        %v4665 = vadd.f32 0.0, %v4664
        %4666 = vmatprep.mubr.bf16.mxu0 %v719
        %4667 = vmatmul.mubr.bf16.gmra.mrb[0].mxu0 %v718
        %v4668 = vpop.f32.mrb[0].mxu0
        %v4669 = vadd.f32 0.0, %v4668
        %v4670 = vpop.f32.mrb[0].mxu0
        %v4671 = vadd.f32 0.0, %v4670
        %v4672 = vpop.f32.mrb[0].mxu0
        %v4673 = vadd.f32 0.0, %v4672
        %v4674 = vpop.f32.mrb[0].mxu0
        %v4675 = vadd.f32 0.0, %v4674
        %4676 = vmatprep.mubr.bf16.mxu0 %v736
        %4677 = vmatmul.mubr.bf16.gmra.mrb[0].mxu0 %v735
        %v4678 = vpop.f32.mrb[0].mxu0
        %v4679 = vadd.f32 0.0, %v4678
        %v4680 = vpop.f32.mrb[0].mxu0
        %v4681 = vadd.f32 0.0, %v4680
        %v4682 = vpop.f32.mrb[0].mxu0
        %v4683 = vadd.f32 0.0, %v4682
        %v4684 = vpop.f32.mrb[0].mxu0
        %v4685 = vadd.f32 0.0, %v4684
        %4686 = vdwg.mxu0
        %4687 = vmatprep.subr.bf16.mxu0 %v4127
        %4688 = vmatpush1.bf16.msra.mxu0 %v4126
        %4689 = vmatprep.subr.bf16.mxu0 %v4129
        %4690 = vmatpush1.bf16.msra.mxu0 %v4128
        %4691 = vmatprep.subr.bf16.mxu0 %v4131
        %4692 = vmatpush1.bf16.msra.mxu0 %v4130
        %4693 = vmatprep.subr.bf16.mxu0 %v4133
        %4694 = vmatpush1.bf16.msra.mxu0 %v4132
        %4695 = vmatprep.subr.bf16.mxu0 %v4135
        %4696 = vmatpush1.bf16.msra.mxu0 %v4134
        %4697 = vmatprep.subr.bf16.mxu0 %v4137
        %4698 = vmatpush1.bf16.msra.mxu0 %v4136
        %4699 = vmatprep.subr.bf16.mxu0 %v4139
        %4700 = vmatpush1.bf16.msra.mxu0 %v4138
        %4701 = vmatprep.subr.bf16.mxu0 %v4141
        %4702 = vmatpush1.bf16.msra.mxu0 %v4140
        %4703 = vmatprep.subr.bf16.mxu0 %v4143
        %4704 = vmatpush1.bf16.msra.mxu0 %v4142
        %4705 = vmatprep.subr.bf16.mxu0 %v4145
        %4706 = vmatpush1.bf16.msra.mxu0 %v4144
        %4707 = vmatprep.subr.bf16.mxu0 %v4147
        %4708 = vmatpush1.bf16.msra.mxu0 %v4146
        %4709 = vmatprep.subr.bf16.mxu0 %v4149
        %4710 = vmatpush1.bf16.msra.mxu0 %v4148
        %4711 = vmatprep.subr.bf16.mxu0 %v4151
        %4712 = vmatpush1.bf16.msra.mxu0 %v4150
        %4713 = vmatprep.subr.bf16.mxu0 %v4153
        %4714 = vmatpush1.bf16.msra.mxu0 %v4152
        %4715 = vmatprep.subr.bf16.mxu0 %v4155
        %4716 = vmatpush1.bf16.msra.mxu0 %v4154
        %4717 = vmatprep.subr.bf16.mxu0 %v4157
        %4718 = vmatpush1.bf16.msra.mxu0 %v4156
        %4719 = vmatprep.mubr.bf16.mxu0 %v687
        %4720 = vmatmul.mubr.bf16.gmra.mrb[0].mxu0 %v686
        %v4721 = vpop.f32.mrb[0].mxu0
        %v4722 = vadd.f32 %v4649, %v4721
        %v4723 = vpop.f32.mrb[0].mxu0
        %v4724 = vadd.f32 %v4651, %v4723
        %v4725 = vpop.f32.mrb[0].mxu0
        %v4726 = vadd.f32 %v4653, %v4725
        %v4727 = vpop.f32.mrb[0].mxu0
        %v4728 = vadd.f32 %v4655, %v4727
        %4729 = vmatprep.mubr.bf16.mxu0 %v704
        %4730 = vmatmul.mubr.bf16.gmra.mrb[0].mxu0 %v703
        %v4731 = vpop.f32.mrb[0].mxu0
        %v4732 = vadd.f32 %v4659, %v4731
        %v4733 = vpop.f32.mrb[0].mxu0
        %v4734 = vadd.f32 %v4661, %v4733
        %v4735 = vpop.f32.mrb[0].mxu0
        %v4736 = vadd.f32 %v4663, %v4735
        %v4737 = vpop.f32.mrb[0].mxu0
        %v4738 = vadd.f32 %v4665, %v4737
        %4739 = vmatprep.mubr.bf16.mxu0 %v721
        %4740 = vmatmul.mubr.bf16.gmra.mrb[0].mxu0 %v720
        %v4741 = vpop.f32.mrb[0].mxu0
        %v4742 = vadd.f32 %v4669, %v4741
        %v4743 = vpop.f32.mrb[0].mxu0
        %v4744 = vadd.f32 %v4671, %v4743
        %v4745 = vpop.f32.mrb[0].mxu0
        %v4746 = vadd.f32 %v4673, %v4745
        %v4747 = vpop.f32.mrb[0].mxu0
        %v4748 = vadd.f32 %v4675, %v4747
        %4749 = vmatprep.mubr.bf16.mxu0 %v738
        %4750 = vmatmul.mubr.bf16.gmra.mrb[0].mxu0 %v737
        %v4751 = vpop.f32.mrb[0].mxu0
        %v4752 = vadd.f32 %v4679, %v4751
        %v4753 = vpop.f32.mrb[0].mxu0
        %v4754 = vadd.f32 %v4681, %v4753
        %v4755 = vpop.f32.mrb[0].mxu0
        %v4756 = vadd.f32 %v4683, %v4755
        %v4757 = vpop.f32.mrb[0].mxu0
        %v4758 = vadd.f32 %v4685, %v4757
        %4759 = vdwg.mxu0
        %4760 = vmatprep.subr.bf16.mxu0 %v4159
        %4761 = vmatpush1.bf16.msra.mxu0 %v4158
        %4762 = vmatprep.subr.bf16.mxu0 %v4161
        %4763 = vmatpush1.bf16.msra.mxu0 %v4160
        %4764 = vmatprep.subr.bf16.mxu0 %v4163
        %4765 = vmatpush1.bf16.msra.mxu0 %v4162
        %4766 = vmatprep.subr.bf16.mxu0 %v4165
        %4767 = vmatpush1.bf16.msra.mxu0 %v4164
        %4768 = vmatprep.subr.bf16.mxu0 %v4167
        %4769 = vmatpush1.bf16.msra.mxu0 %v4166
        %4770 = vmatprep.subr.bf16.mxu0 %v4169
        %4771 = vmatpush1.bf16.msra.mxu0 %v4168
        %4772 = vmatprep.subr.bf16.mxu0 %v4171
        %4773 = vmatpush1.bf16.msra.mxu0 %v4170
        %4774 = vmatprep.subr.bf16.mxu0 %v4173
        %4775 = vmatpush1.bf16.msra.mxu0 %v4172
        %4776 = vmatprep.subr.bf16.mxu0 %v4175
        %4777 = vmatpush1.bf16.msra.mxu0 %v4174
        %4778 = vmatprep.subr.bf16.mxu0 %v4177
        %4779 = vmatpush1.bf16.msra.mxu0 %v4176
        %4780 = vmatprep.subr.bf16.mxu0 %v4179
        %4781 = vmatpush1.bf16.msra.mxu0 %v4178
        %4782 = vmatprep.subr.bf16.mxu0 %v4181
        %4783 = vmatpush1.bf16.msra.mxu0 %v4180
        %4784 = vmatprep.subr.bf16.mxu0 %v4183
        %4785 = vmatpush1.bf16.msra.mxu0 %v4182
        %4786 = vmatprep.subr.bf16.mxu0 %v4185
        %4787 = vmatpush1.bf16.msra.mxu0 %v4184
        %4788 = vmatprep.subr.bf16.mxu0 %v4187
        %4789 = vmatpush1.bf16.msra.mxu0 %v4186
        %4790 = vmatprep.subr.bf16.mxu0 %v4189
        %4791 = vmatpush1.bf16.msra.mxu0 %v4188
        %4792 = vmatprep.mubr.bf16.mxu0 %v689
        %4793 = vmatmul.mubr.bf16.gmra.mrb[0].mxu0 %v688
        %v4794 = vpop.f32.mrb[0].mxu0
        %v4795 = vadd.f32 %v4722, %v4794
        %v4796 = vpop.f32.mrb[0].mxu0
        %v4797 = vadd.f32 %v4724, %v4796
        %v4798 = vpop.f32.mrb[0].mxu0
        %v4799 = vadd.f32 %v4726, %v4798
        %v4800 = vpop.f32.mrb[0].mxu0
        %v4801 = vadd.f32 %v4728, %v4800
        %4802 = vmatprep.mubr.bf16.mxu0 %v706
        %4803 = vmatmul.mubr.bf16.gmra.mrb[0].mxu0 %v705
        %v4804 = vpop.f32.mrb[0].mxu0
        %v4805 = vadd.f32 %v4732, %v4804
        %v4806 = vpop.f32.mrb[0].mxu0
        %v4807 = vadd.f32 %v4734, %v4806
        %v4808 = vpop.f32.mrb[0].mxu0
        %v4809 = vadd.f32 %v4736, %v4808
        %v4810 = vpop.f32.mrb[0].mxu0
        %v4811 = vadd.f32 %v4738, %v4810
        %4812 = vmatprep.mubr.bf16.mxu0 %v723
        %4813 = vmatmul.mubr.bf16.gmra.mrb[0].mxu0 %v722
        %v4814 = vpop.f32.mrb[0].mxu0
        %v4815 = vadd.f32 %v4742, %v4814
        %v4816 = vpop.f32.mrb[0].mxu0
        %v4817 = vadd.f32 %v4744, %v4816
        %v4818 = vpop.f32.mrb[0].mxu0
        %v4819 = vadd.f32 %v4746, %v4818
        %v4820 = vpop.f32.mrb[0].mxu0
        %v4821 = vadd.f32 %v4748, %v4820
        %4822 = vmatprep.mubr.bf16.mxu0 %v740
        %4823 = vmatmul.mubr.bf16.gmra.mrb[0].mxu0 %v739
        %v4824 = vpop.f32.mrb[0].mxu0
        %v4825 = vadd.f32 %v4752, %v4824
        %v4826 = vpop.f32.mrb[0].mxu0
        %v4827 = vadd.f32 %v4754, %v4826
        %v4828 = vpop.f32.mrb[0].mxu0
        %v4829 = vadd.f32 %v4756, %v4828
        %v4830 = vpop.f32.mrb[0].mxu0
        %v4831 = vadd.f32 %v4758, %v4830
        %4832 = vdwg.mxu0
        %4833 = vmatprep.subr.bf16.mxu0 %v4191
        %4834 = vmatpush1.bf16.msra.mxu0 %v4190
        %4835 = vmatprep.subr.bf16.mxu0 %v4193
        %4836 = vmatpush1.bf16.msra.mxu0 %v4192
        %4837 = vmatprep.subr.bf16.mxu0 %v4195
        %4838 = vmatpush1.bf16.msra.mxu0 %v4194
        %4839 = vmatprep.subr.bf16.mxu0 %v4197
        %4840 = vmatpush1.bf16.msra.mxu0 %v4196
        %4841 = vmatprep.subr.bf16.mxu0 %v4199
        %4842 = vmatpush1.bf16.msra.mxu0 %v4198
        %4843 = vmatprep.subr.bf16.mxu0 %v4201
        %4844 = vmatpush1.bf16.msra.mxu0 %v4200
        %4845 = vmatprep.subr.bf16.mxu0 %v4203
        %4846 = vmatpush1.bf16.msra.mxu0 %v4202
        %4847 = vmatprep.subr.bf16.mxu0 %v4205
        %4848 = vmatpush1.bf16.msra.mxu0 %v4204
        %4849 = vmatprep.subr.bf16.mxu0 %v4207
        %4850 = vmatpush1.bf16.msra.mxu0 %v4206
        %4851 = vmatprep.subr.bf16.mxu0 %v4209
        %4852 = vmatpush1.bf16.msra.mxu0 %v4208
        %4853 = vmatprep.subr.bf16.mxu0 %v4211
        %4854 = vmatpush1.bf16.msra.mxu0 %v4210
        %4855 = vmatprep.subr.bf16.mxu0 %v4213
        %4856 = vmatpush1.bf16.msra.mxu0 %v4212
        %4857 = vmatprep.subr.bf16.mxu0 %v4215
        %4858 = vmatpush1.bf16.msra.mxu0 %v4214
        %4859 = vmatprep.subr.bf16.mxu0 %v4217
        %4860 = vmatpush1.bf16.msra.mxu0 %v4216
        %4861 = vmatprep.subr.bf16.mxu0 %v4219
        %4862 = vmatpush1.bf16.msra.mxu0 %v4218
        %4863 = vmatprep.subr.bf16.mxu0 %v4221
        %4864 = vmatpush1.bf16.msra.mxu0 %v4220
        %4865 = vmatprep.mubr.bf16.mxu0 %v691
        %4866 = vmatmul.mubr.bf16.gmra.mrb[0].mxu0 %v690
        %v4867 = vpop.f32.mrb[0].mxu0
        %v4868 = vadd.f32 %v4795, %v4867
        %v4869 = vpop.f32.mrb[0].mxu0
        %v4870 = vadd.f32 %v4797, %v4869
        %v4871 = vpop.f32.mrb[0].mxu0
        %v4872 = vadd.f32 %v4799, %v4871
        %v4873 = vpop.f32.mrb[0].mxu0
        %v4874 = vadd.f32 %v4801, %v4873
        %4875 = vmatprep.mubr.bf16.mxu0 %v708
        %4876 = vmatmul.mubr.bf16.gmra.mrb[0].mxu0 %v707
        %v4877 = vpop.f32.mrb[0].mxu0
        %v4878 = vadd.f32 %v4805, %v4877
        %v4879 = vpop.f32.mrb[0].mxu0
        %v4880 = vadd.f32 %v4807, %v4879
        %v4881 = vpop.f32.mrb[0].mxu0
        %v4882 = vadd.f32 %v4809, %v4881
        %v4883 = vpop.f32.mrb[0].mxu0
        %v4884 = vadd.f32 %v4811, %v4883
        %4885 = vmatprep.mubr.bf16.mxu0 %v725
        %4886 = vmatmul.mubr.bf16.gmra.mrb[0].mxu0 %v724
        %v4887 = vpop.f32.mrb[0].mxu0
        %v4888 = vadd.f32 %v4815, %v4887
        %v4889 = vpop.f32.mrb[0].mxu0
        %v4890 = vadd.f32 %v4817, %v4889
        %v4891 = vpop.f32.mrb[0].mxu0
        %v4892 = vadd.f32 %v4819, %v4891
        %v4893 = vpop.f32.mrb[0].mxu0
        %v4894 = vadd.f32 %v4821, %v4893
        %4895 = vmatprep.mubr.bf16.mxu0 %v742
        %4896 = vmatmul.mubr.bf16.gmra.mrb[0].mxu0 %v741
        %v4897 = vpop.f32.mrb[0].mxu0
        %v4898 = vadd.f32 %v4825, %v4897
        %v4899 = vpop.f32.mrb[0].mxu0
        %v4900 = vadd.f32 %v4827, %v4899
        %v4901 = vpop.f32.mrb[0].mxu0
        %v4902 = vadd.f32 %v4829, %v4901
        %v4903 = vpop.f32.mrb[0].mxu0
        %v4904 = vadd.f32 %v4831, %v4903
        %4905 = vdwg.mxu0
        %4906 = vmatprep.subr.bf16.mxu0 %v4223
        %4907 = vmatpush1.bf16.msra.mxu0 %v4222
        %4908 = vmatprep.subr.bf16.mxu0 %v4225
        %4909 = vmatpush1.bf16.msra.mxu0 %v4224
        %4910 = vmatprep.subr.bf16.mxu0 %v4227
        %4911 = vmatpush1.bf16.msra.mxu0 %v4226
        %4912 = vmatprep.subr.bf16.mxu0 %v4229
        %4913 = vmatpush1.bf16.msra.mxu0 %v4228
        %4914 = vmatprep.subr.bf16.mxu0 %v4231
        %4915 = vmatpush1.bf16.msra.mxu0 %v4230
        %4916 = vmatprep.subr.bf16.mxu0 %v4233
        %4917 = vmatpush1.bf16.msra.mxu0 %v4232
        %4918 = vmatprep.subr.bf16.mxu0 %v4235
        %4919 = vmatpush1.bf16.msra.mxu0 %v4234
        %4920 = vmatprep.subr.bf16.mxu0 %v4237
        %4921 = vmatpush1.bf16.msra.mxu0 %v4236
        %4922 = vmatprep.subr.bf16.mxu0 %v4239
        %4923 = vmatpush1.bf16.msra.mxu0 %v4238
        %4924 = vmatprep.subr.bf16.mxu0 %v4241
        %4925 = vmatpush1.bf16.msra.mxu0 %v4240
        %4926 = vmatprep.subr.bf16.mxu0 %v4243
        %4927 = vmatpush1.bf16.msra.mxu0 %v4242
        %4928 = vmatprep.subr.bf16.mxu0 %v4245
        %4929 = vmatpush1.bf16.msra.mxu0 %v4244
        %4930 = vmatprep.subr.bf16.mxu0 %v4247
        %4931 = vmatpush1.bf16.msra.mxu0 %v4246
        %4932 = vmatprep.subr.bf16.mxu0 %v4249
        %4933 = vmatpush1.bf16.msra.mxu0 %v4248
        %4934 = vmatprep.subr.bf16.mxu0 %v4251
        %4935 = vmatpush1.bf16.msra.mxu0 %v4250
        %4936 = vmatprep.subr.bf16.mxu0 %v4253
        %4937 = vmatpush1.bf16.msra.mxu0 %v4252
        %4938 = vmatprep.mubr.bf16.mxu0 %v693
        %4939 = vmatmul.mubr.bf16.gmra.mrb[0].mxu0 %v692
        %v4940 = vpop.f32.mrb[0].mxu0
        %v4941 = vadd.f32 %v4868, %v4940
        %v4942 = vpop.f32.mrb[0].mxu0
        %v4943 = vadd.f32 %v4870, %v4942
        %v4944 = vpop.f32.mrb[0].mxu0
        %v4945 = vadd.f32 %v4872, %v4944
        %v4946 = vpop.f32.mrb[0].mxu0
        %v4947 = vadd.f32 %v4874, %v4946
        %4948 = vmatprep.mubr.bf16.mxu0 %v710
        %4949 = vmatmul.mubr.bf16.gmra.mrb[0].mxu0 %v709
        %v4950 = vpop.f32.mrb[0].mxu0
        %v4951 = vadd.f32 %v4878, %v4950
        %v4952 = vpop.f32.mrb[0].mxu0
        %v4953 = vadd.f32 %v4880, %v4952
        %v4954 = vpop.f32.mrb[0].mxu0
        %v4955 = vadd.f32 %v4882, %v4954
        %v4956 = vpop.f32.mrb[0].mxu0
        %v4957 = vadd.f32 %v4884, %v4956
        %4958 = vmatprep.mubr.bf16.mxu0 %v727
        %4959 = vmatmul.mubr.bf16.gmra.mrb[0].mxu0 %v726
        %v4960 = vpop.f32.mrb[0].mxu0
        %v4961 = vadd.f32 %v4888, %v4960
        %v4962 = vpop.f32.mrb[0].mxu0
        %v4963 = vadd.f32 %v4890, %v4962
        %v4964 = vpop.f32.mrb[0].mxu0
        %v4965 = vadd.f32 %v4892, %v4964
        %v4966 = vpop.f32.mrb[0].mxu0
        %v4967 = vadd.f32 %v4894, %v4966
        %4968 = vmatprep.mubr.bf16.mxu0 %v744
        %4969 = vmatmul.mubr.bf16.gmra.mrb[0].mxu0 %v743
        %v4970 = vpop.f32.mrb[0].mxu0
        %v4971 = vadd.f32 %v4898, %v4970
        %v4972 = vpop.f32.mrb[0].mxu0
        %v4973 = vadd.f32 %v4900, %v4972
        %v4974 = vpop.f32.mrb[0].mxu0
        %v4975 = vadd.f32 %v4902, %v4974
        %v4976 = vpop.f32.mrb[0].mxu0
        %v4977 = vadd.f32 %v4904, %v4976
        %4978 = vdwg.mxu0
        %4979 = vmatprep.subr.bf16.mxu0 %v4255
        %4980 = vmatpush1.bf16.msra.mxu0 %v4254
        %4981 = vmatprep.subr.bf16.mxu0 %v4257
        %4982 = vmatpush1.bf16.msra.mxu0 %v4256
        %4983 = vmatprep.subr.bf16.mxu0 %v4259
        %4984 = vmatpush1.bf16.msra.mxu0 %v4258
        %4985 = vmatprep.subr.bf16.mxu0 %v4261
        %4986 = vmatpush1.bf16.msra.mxu0 %v4260
        %4987 = vmatprep.subr.bf16.mxu0 %v4263
        %4988 = vmatpush1.bf16.msra.mxu0 %v4262
        %4989 = vmatprep.subr.bf16.mxu0 %v4265
        %4990 = vmatpush1.bf16.msra.mxu0 %v4264
        %4991 = vmatprep.subr.bf16.mxu0 %v4267
        %4992 = vmatpush1.bf16.msra.mxu0 %v4266
        %4993 = vmatprep.subr.bf16.mxu0 %v4269
        %4994 = vmatpush1.bf16.msra.mxu0 %v4268
        %4995 = vmatprep.subr.bf16.mxu0 %v4271
        %4996 = vmatpush1.bf16.msra.mxu0 %v4270
        %4997 = vmatprep.subr.bf16.mxu0 %v4273
        %4998 = vmatpush1.bf16.msra.mxu0 %v4272
        %4999 = vmatprep.subr.bf16.mxu0 %v4275
        %5000 = vmatpush1.bf16.msra.mxu0 %v4274
        %5001 = vmatprep.subr.bf16.mxu0 %v4277
        %5002 = vmatpush1.bf16.msra.mxu0 %v4276
        %5003 = vmatprep.subr.bf16.mxu0 %v4279
        %5004 = vmatpush1.bf16.msra.mxu0 %v4278
        %5005 = vmatprep.subr.bf16.mxu0 %v4281
        %5006 = vmatpush1.bf16.msra.mxu0 %v4280
        %5007 = vmatprep.subr.bf16.mxu0 %v4283
        %5008 = vmatpush1.bf16.msra.mxu0 %v4282
        %5009 = vmatprep.subr.bf16.mxu0 %v4285
        %5010 = vmatpush1.bf16.msra.mxu0 %v4284
        %5011 = vmatprep.mubr.bf16.mxu0 %v695
        %5012 = vmatmul.mubr.bf16.gmra.mrb[0].mxu0 %v694
        %v5013 = vpop.f32.mrb[0].mxu0
        %v5014 = vadd.f32 %v4941, %v5013
        %v5015 = vpop.f32.mrb[0].mxu0
        %v5016 = vadd.f32 %v4943, %v5015
        %v5017 = vpop.f32.mrb[0].mxu0
        %v5018 = vadd.f32 %v4945, %v5017
        %v5019 = vpop.f32.mrb[0].mxu0
        %v5020 = vadd.f32 %v4947, %v5019
        %5021 = vmatprep.mubr.bf16.mxu0 %v712
        %5022 = vmatmul.mubr.bf16.gmra.mrb[0].mxu0 %v711
        %v5023 = vpop.f32.mrb[0].mxu0
        %v5024 = vadd.f32 %v4951, %v5023
        %v5025 = vpop.f32.mrb[0].mxu0
        %v5026 = vadd.f32 %v4953, %v5025
        %v5027 = vpop.f32.mrb[0].mxu0
        %v5028 = vadd.f32 %v4955, %v5027
        %v5029 = vpop.f32.mrb[0].mxu0
        %v5030 = vadd.f32 %v4957, %v5029
        %5031 = vmatprep.mubr.bf16.mxu0 %v729
        %5032 = vmatmul.mubr.bf16.gmra.mrb[0].mxu0 %v728
        %v5033 = vpop.f32.mrb[0].mxu0
        %v5034 = vadd.f32 %v4961, %v5033
        %v5035 = vpop.f32.mrb[0].mxu0
        %v5036 = vadd.f32 %v4963, %v5035
        %v5037 = vpop.f32.mrb[0].mxu0
        %v5038 = vadd.f32 %v4965, %v5037
        %v5039 = vpop.f32.mrb[0].mxu0
        %v5040 = vadd.f32 %v4967, %v5039
        %5041 = vmatprep.mubr.bf16.mxu0 %v746
        %5042 = vmatmul.mubr.bf16.gmra.mrb[0].mxu0 %v745
        %v5043 = vpop.f32.mrb[0].mxu0
        %v5044 = vadd.f32 %v4971, %v5043
        %v5045 = vpop.f32.mrb[0].mxu0
        %v5046 = vadd.f32 %v4973, %v5045
        %v5047 = vpop.f32.mrb[0].mxu0
        %v5048 = vadd.f32 %v4975, %v5047
        %v5049 = vpop.f32.mrb[0].mxu0
        %v5050 = vadd.f32 %v4977, %v5049
        %5051 = vdwg.mxu0
        %5052 = vmatprep.subr.bf16.mxu0 %v4287
        %5053 = vmatpush1.bf16.msra.mxu0 %v4286
        %5054 = vmatprep.subr.bf16.mxu0 %v4289
        %5055 = vmatpush1.bf16.msra.mxu0 %v4288
        %5056 = vmatprep.subr.bf16.mxu0 %v4291
        %5057 = vmatpush1.bf16.msra.mxu0 %v4290
        %5058 = vmatprep.subr.bf16.mxu0 %v4293
        %5059 = vmatpush1.bf16.msra.mxu0 %v4292
        %5060 = vmatprep.subr.bf16.mxu0 %v4295
        %5061 = vmatpush1.bf16.msra.mxu0 %v4294
        %5062 = vmatprep.subr.bf16.mxu0 %v4297
        %5063 = vmatpush1.bf16.msra.mxu0 %v4296
        %5064 = vmatprep.subr.bf16.mxu0 %v4299
        %5065 = vmatpush1.bf16.msra.mxu0 %v4298
        %5066 = vmatprep.subr.bf16.mxu0 %v4301
        %5067 = vmatpush1.bf16.msra.mxu0 %v4300
        %5068 = vmatprep.subr.bf16.mxu0 %v4303
        %5069 = vmatpush1.bf16.msra.mxu0 %v4302
        %5070 = vmatprep.subr.bf16.mxu0 %v4305
        %5071 = vmatpush1.bf16.msra.mxu0 %v4304
        %5072 = vmatprep.subr.bf16.mxu0 %v4307
        %5073 = vmatpush1.bf16.msra.mxu0 %v4306
        %5074 = vmatprep.subr.bf16.mxu0 %v4309
        %5075 = vmatpush1.bf16.msra.mxu0 %v4308
        %5076 = vmatprep.subr.bf16.mxu0 %v4311
        %5077 = vmatpush1.bf16.msra.mxu0 %v4310
        %5078 = vmatprep.subr.bf16.mxu0 %v4313
        %5079 = vmatpush1.bf16.msra.mxu0 %v4312
        %5080 = vmatprep.subr.bf16.mxu0 %v4315
        %5081 = vmatpush1.bf16.msra.mxu0 %v4314
        %5082 = vmatprep.subr.bf16.mxu0 %v4317
        %5083 = vmatpush1.bf16.msra.mxu0 %v4316
        %5084 = vmatprep.mubr.bf16.mxu0 %v697
        %5085 = vmatmul.mubr.bf16.gmra.mrb[0].mxu0 %v696
        %v5086 = vpop.f32.mrb[0].mxu0
        %v5087 = vadd.f32 %v5014, %v5086
        %v5088 = vpop.f32.mrb[0].mxu0
        %v5089 = vadd.f32 %v5016, %v5088
        %v5090 = vpop.f32.mrb[0].mxu0
        %v5091 = vadd.f32 %v5018, %v5090
        %v5092 = vpop.f32.mrb[0].mxu0
        %v5093 = vadd.f32 %v5020, %v5092
        %5094 = vmatprep.mubr.bf16.mxu0 %v714
        %5095 = vmatmul.mubr.bf16.gmra.mrb[0].mxu0 %v713
        %v5096 = vpop.f32.mrb[0].mxu0
        %v5097 = vadd.f32 %v5024, %v5096
        %v5098 = vpop.f32.mrb[0].mxu0
        %v5099 = vadd.f32 %v5026, %v5098
        %v5100 = vpop.f32.mrb[0].mxu0
        %v5101 = vadd.f32 %v5028, %v5100
        %v5102 = vpop.f32.mrb[0].mxu0
        %v5103 = vadd.f32 %v5030, %v5102
        %5104 = vmatprep.mubr.bf16.mxu0 %v731
        %5105 = vmatmul.mubr.bf16.gmra.mrb[0].mxu0 %v730
        %v5106 = vpop.f32.mrb[0].mxu0
        %v5107 = vadd.f32 %v5034, %v5106
        %v5108 = vpop.f32.mrb[0].mxu0
        %v5109 = vadd.f32 %v5036, %v5108
        %v5110 = vpop.f32.mrb[0].mxu0
        %v5111 = vadd.f32 %v5038, %v5110
        %v5112 = vpop.f32.mrb[0].mxu0
        %v5113 = vadd.f32 %v5040, %v5112
        %5114 = vmatprep.mubr.bf16.mxu0 %v748
        %5115 = vmatmul.mubr.bf16.gmra.mrb[0].mxu0 %v747
        %v5116 = vpop.f32.mrb[0].mxu0
        %v5117 = vadd.f32 %v5044, %v5116
        %v5118 = vpop.f32.mrb[0].mxu0
        %v5119 = vadd.f32 %v5046, %v5118
        %v5120 = vpop.f32.mrb[0].mxu0
        %v5121 = vadd.f32 %v5048, %v5120
        %v5122 = vpop.f32.mrb[0].mxu0
        %v5123 = vadd.f32 %v5050, %v5122
        %5124 = vdwg.mxu0
        %5125 = vmatprep.subr.bf16.mxu0 %v4319
        %5126 = vmatpush1.bf16.msra.mxu0 %v4318
        %5127 = vmatprep.subr.bf16.mxu0 %v4321
        %5128 = vmatpush1.bf16.msra.mxu0 %v4320
        %5129 = vmatprep.subr.bf16.mxu0 %v4323
        %5130 = vmatpush1.bf16.msra.mxu0 %v4322
        %5131 = vmatprep.subr.bf16.mxu0 %v4325
        %5132 = vmatpush1.bf16.msra.mxu0 %v4324
        %5133 = vmatprep.subr.bf16.mxu0 %v4327
        %5134 = vmatpush1.bf16.msra.mxu0 %v4326
        %5135 = vmatprep.subr.bf16.mxu0 %v4329
        %5136 = vmatpush1.bf16.msra.mxu0 %v4328
        %5137 = vmatprep.subr.bf16.mxu0 %v4331
        %5138 = vmatpush1.bf16.msra.mxu0 %v4330
        %5139 = vmatprep.subr.bf16.mxu0 %v4333
        %5140 = vmatpush1.bf16.msra.mxu0 %v4332
        %5141 = vmatprep.subr.bf16.mxu0 %v4335
        %5142 = vmatpush1.bf16.msra.mxu0 %v4334
        %5143 = vmatprep.subr.bf16.mxu0 %v4337
        %5144 = vmatpush1.bf16.msra.mxu0 %v4336
        %5145 = vmatprep.subr.bf16.mxu0 %v4339
        %5146 = vmatpush1.bf16.msra.mxu0 %v4338
        %5147 = vmatprep.subr.bf16.mxu0 %v4341
        %5148 = vmatpush1.bf16.msra.mxu0 %v4340
        %5149 = vmatprep.subr.bf16.mxu0 %v4343
        %5150 = vmatpush1.bf16.msra.mxu0 %v4342
        %5151 = vmatprep.subr.bf16.mxu0 %v4345
        %5152 = vmatpush1.bf16.msra.mxu0 %v4344
        %5153 = vmatprep.subr.bf16.mxu0 %v4347
        %5154 = vmatpush1.bf16.msra.mxu0 %v4346
        %5155 = vmatprep.subr.bf16.mxu0 %v4349
        %5156 = vmatpush1.bf16.msra.mxu0 %v4348
        %5157 = vmatprep.mubr.bf16.mxu0 %v699
        %5158 = vmatmul.mubr.bf16.gmra.mrb[0].mxu0 %v698
        %v5159 = vpop.f32.mrb[0].mxu0
        %v5160 = vadd.f32 %v5087, %v5159
        %v5161 = vpop.f32.mrb[0].mxu0
        %v5162 = vadd.f32 %v5089, %v5161
        %v5163 = vpop.f32.mrb[0].mxu0
        %v5164 = vadd.f32 %v5091, %v5163
        %v5165 = vpop.f32.mrb[0].mxu0
        %v5166 = vadd.f32 %v5093, %v5165
        %5167 = vmatprep.mubr.bf16.mxu0 %v716
        %5168 = vmatmul.mubr.bf16.gmra.mrb[0].mxu0 %v715
        %v5169 = vpop.f32.mrb[0].mxu0
        %v5170 = vadd.f32 %v5097, %v5169
        %v5171 = vpop.f32.mrb[0].mxu0
        %v5172 = vadd.f32 %v5099, %v5171
        %v5173 = vpop.f32.mrb[0].mxu0
        %v5174 = vadd.f32 %v5101, %v5173
        %v5175 = vpop.f32.mrb[0].mxu0
        %v5176 = vadd.f32 %v5103, %v5175
        %5177 = vmatprep.mubr.bf16.mxu0 %v733
        %5178 = vmatmul.mubr.bf16.gmra.mrb[0].mxu0 %v732
        %v5179 = vpop.f32.mrb[0].mxu0
        %v5180 = vadd.f32 %v5107, %v5179
        %v5181 = vpop.f32.mrb[0].mxu0
        %v5182 = vadd.f32 %v5109, %v5181
        %v5183 = vpop.f32.mrb[0].mxu0
        %v5184 = vadd.f32 %v5111, %v5183
        %v5185 = vpop.f32.mrb[0].mxu0
        %v5186 = vadd.f32 %v5113, %v5185
        %5187 = vmatprep.mubr.bf16.mxu0 %v750
        %5188 = vmatmul.mubr.bf16.gmra.mrb[0].mxu0 %v749
        %v5189 = vpop.f32.mrb[0].mxu0
        %v5190 = vadd.f32 %v5117, %v5189
        %v5191 = vpop.f32.mrb[0].mxu0
        %v5192 = vadd.f32 %v5119, %v5191
        %v5193 = vpop.f32.mrb[0].mxu0
        %v5194 = vadd.f32 %v5121, %v5193
        %v5195 = vpop.f32.mrb[0].mxu0
        %v5196 = vadd.f32 %v5123, %v5195
        %5197 = vdwg.mxu0
        %5198 = vmatprep.subr.bf16.mxu0 %v4351
        %5199 = vmatpush1.bf16.msra.mxu0 %v4350
        %5200 = vmatprep.subr.bf16.mxu0 %v4353
        %5201 = vmatpush1.bf16.msra.mxu0 %v4352
        %5202 = vmatprep.subr.bf16.mxu0 0
        %5203 = vmatpush1.bf16.msra.mxu0 0
        %5204 = vmatprep.subr.bf16.mxu0 0
        %5205 = vmatpush1.bf16.msra.mxu0 0
        %5206 = vmatprep.subr.bf16.mxu0 0
        %5207 = vmatpush1.bf16.msra.mxu0 0
        %5208 = vmatprep.subr.bf16.mxu0 0
        %5209 = vmatpush1.bf16.msra.mxu0 0
        %5210 = vmatprep.subr.bf16.mxu0 0
        %5211 = vmatpush1.bf16.msra.mxu0 0
        %5212 = vmatprep.subr.bf16.mxu0 0
        %5213 = vmatpush1.bf16.msra.mxu0 0
        %5214 = vmatprep.subr.bf16.mxu0 0
        %5215 = vmatpush1.bf16.msra.mxu0 0
        %5216 = vmatprep.subr.bf16.mxu0 0
        %5217 = vmatpush1.bf16.msra.mxu0 0
        %5218 = vmatprep.subr.bf16.mxu0 0
        %5219 = vmatpush1.bf16.msra.mxu0 0
        %5220 = vmatprep.subr.bf16.mxu0 0
        %5221 = vmatpush1.bf16.msra.mxu0 0
        %5222 = vmatprep.subr.bf16.mxu0 0
        %5223 = vmatpush1.bf16.msra.mxu0 0
        %5224 = vmatprep.subr.bf16.mxu0 0
        %5225 = vmatpush1.bf16.msra.mxu0 0
        %5226 = vmatprep.subr.bf16.mxu0 0
        %5227 = vmatpush1.bf16.msra.mxu0 0
        %5228 = vmatprep.subr.bf16.mxu0 0
        %5229 = vmatpush1.bf16.msra.mxu0 0
        %5230 = vmatprep.mubr.bf16.mxu0 0
        %5231 = vmatmul.mubr.bf16.gmra.mrb[0].mxu0 %v2314
        %v5232 = vpop.f32.mrb[0].mxu0
        %v5233 = vadd.f32 %v5160, %v5232
        %v5234 = vpop.f32.mrb[0].mxu0
        %v5235 = vadd.f32 %v5162, %v5234
        %v5236 = vpop.f32.mrb[0].mxu0
        %v5237 = vadd.f32 %v5164, %v5236
        %v5238 = vpop.f32.mrb[0].mxu0
        %v5239 = vadd.f32 %v5166, %v5238
        %5240 = vmatprep.mubr.bf16.mxu0 0
        %5241 = vmatmul.mubr.bf16.gmra.mrb[0].mxu0 %v2317
        %v5242 = vpop.f32.mrb[0].mxu0
        %v5243 = vadd.f32 %v5170, %v5242
        %v5244 = vpop.f32.mrb[0].mxu0
        %v5245 = vadd.f32 %v5172, %v5244
        %v5246 = vpop.f32.mrb[0].mxu0
        %v5247 = vadd.f32 %v5174, %v5246
        %v5248 = vpop.f32.mrb[0].mxu0
        %v5249 = vadd.f32 %v5176, %v5248
        %5250 = vmatprep.mubr.bf16.mxu0 0
        %5251 = vmatmul.mubr.bf16.gmra.mrb[0].mxu0 %v2320
        %v5252 = vpop.f32.mrb[0].mxu0
        %v5253 = vadd.f32 %v5180, %v5252
        %v5254 = vpop.f32.mrb[0].mxu0
        %v5255 = vadd.f32 %v5182, %v5254
        %v5256 = vpop.f32.mrb[0].mxu0
        %v5257 = vadd.f32 %v5184, %v5256
        %v5258 = vpop.f32.mrb[0].mxu0
        %v5259 = vadd.f32 %v5186, %v5258
        %5260 = vmatprep.mubr.bf16.mxu0 0
        %5261 = vmatmul.mubr.bf16.gmra.mrb[0].mxu0 %v2323
        %v5262 = vpop.f32.mrb[0].mxu0
        %v5263 = vadd.f32 %v5190, %v5262
        %v5264 = vpop.f32.mrb[0].mxu0
        %v5265 = vadd.f32 %v5192, %v5264
        %v5266 = vpop.f32.mrb[0].mxu0
        %v5267 = vadd.f32 %v5194, %v5266
        %v5268 = vpop.f32.mrb[0].mxu0
        %v5269 = vadd.f32 %v5196, %v5268
        %5270 = vdwg.mxu0
        %v5271 = vld [vmem:[%s5] sm:$0x3]
        %v5273 = vlaneseq
        %v5274 = vshrl.u32 %v5273, 7
        %v5275 = vsub.s32 0, %v5274
        %v5276 = vrot.slane %v5271, %v5275
        %v5277 = vlaneseq
        %v5278 = vshrl.u32 %v5277, 7
        %v5279 = vsub.s32 1, %v5278
        %v5280 = vrot.slane %v5271, %v5279
        %v5283 = vmul.f32 %v5233, %v5276
        %v5284 = vmul.f32 %v5235, %v5280
        %v5285 = vmul.f32 %v5237, %v5276
        %v5286 = vmul.f32 %v5239, %v5280
        %v5287 = vmul.f32 %v5243, %v5276
        %v5288 = vmul.f32 %v5245, %v5280
        %v5289 = vmul.f32 %v5247, %v5276
        %v5290 = vmul.f32 %v5249, %v5280
        %v5291 = vmul.f32 %v5253, %v5276
        %v5292 = vmul.f32 %v5255, %v5280
        %v5293 = vmul.f32 %v5257, %v5276
        %v5294 = vmul.f32 %v5259, %v5280
        %v5295 = vmul.f32 %v5263, %v5276
        %v5296 = vmul.f32 %v5265, %v5280
        %v5297 = vmul.f32 %v5267, %v5276
        %v5298 = vmul.f32 %v5269, %v5280
        %v5299 = vld [vmem:[%s6] sm:$0x3]
        %v5301 = vlaneseq
        %v5302 = vshrl.u32 %v5301, 7
        %v5303 = vsub.s32 0, %v5302
        %v5304 = vrot.slane %v5299, %v5303
        %v5305 = vlaneseq
        %v5306 = vshrl.u32 %v5305, 7
        %v5307 = vsub.s32 1, %v5306
        %v5308 = vrot.slane %v5299, %v5307
        %v5311 = vadd.f32 %v5283, %v5304
        %v5312 = vadd.f32 %v5284, %v5308
        %v5313 = vadd.f32 %v5285, %v5304
        %v5314 = vadd.f32 %v5286, %v5308
        %v5315 = vadd.f32 %v5287, %v5304
        %v5316 = vadd.f32 %v5288, %v5308
        %v5317 = vadd.f32 %v5289, %v5304
        %v5318 = vadd.f32 %v5290, %v5308
        %v5319 = vadd.f32 %v5291, %v5304
        %v5320 = vadd.f32 %v5292, %v5308
        %v5321 = vadd.f32 %v5293, %v5304
        %v5322 = vadd.f32 %v5294, %v5308
        %v5323 = vadd.f32 %v5295, %v5304
        %v5324 = vadd.f32 %v5296, %v5308
        %v5325 = vadd.f32 %v5297, %v5304
        %v5326 = vadd.f32 %v5298, %v5308
        %v5327 = vmax.f32 %v5311, 0.0
        %v5328 = vmax.f32 %v5312, 0.0
        %v5329 = vmax.f32 %v5313, 0.0
        %v5330 = vmax.f32 %v5314, 0.0
        %v5331 = vmax.f32 %v5315, 0.0
        %v5332 = vmax.f32 %v5316, 0.0
        %v5333 = vmax.f32 %v5317, 0.0
        %v5334 = vmax.f32 %v5318, 0.0
        %v5335 = vmax.f32 %v5319, 0.0
        %v5336 = vmax.f32 %v5320, 0.0
        %v5337 = vmax.f32 %v5321, 0.0
        %v5338 = vmax.f32 %v5322, 0.0
        %v5339 = vmax.f32 %v5323, 0.0
        %v5340 = vmax.f32 %v5324, 0.0
        %v5341 = vmax.f32 %v5325, 0.0
        %v5342 = vmax.f32 %v5326, 0.0
        %v5343 = vpack.c.bf16 %v3040, %v3038
        %v5344 = vpack.c.bf16 %v3041, %v3039
        %v5345 = vpack.c.bf16 %v3044, %v3042
        %v5346 = vpack.c.bf16 %v3045, %v3043
        %v5347 = vpack.c.bf16 %v3048, %v3046
        %v5348 = vpack.c.bf16 %v3049, %v3047
        %v5349 = vpack.c.bf16 %v3052, %v3050
        %v5350 = vpack.c.bf16 %v3053, %v3051
        %v5351 = vpack.c.bf16 %v5329, %v5327
        %v5352 = vpack.c.bf16 %v5330, %v5328
        %v5353 = vpack.c.bf16 %v5333, %v5331
        %v5354 = vpack.c.bf16 %v5334, %v5332
        %v5355 = vpack.c.bf16 %v5337, %v5335
        %v5356 = vpack.c.bf16 %v5338, %v5336
        %v5357 = vpack.c.bf16 %v5341, %v5339
        %v5358 = vpack.c.bf16 %v5342, %v5340
        %v5359 = vld [vmem:[%s7] sm:$0xf]
        %v5360 = vld [vmem:[%s7 + $0x4] sm:$0xf]
        %v5361 = vld [vmem:[%s7 + $0x8] sm:$0xf]
        %v5362 = vld [vmem:[%s7 + $0xc] sm:$0xf]
        %v5363 = vld [vmem:[%s7 + $0x10] sm:$0xf]
        %v5364 = vld [vmem:[%s7 + $0x14] sm:$0xf]
        %v5365 = vld [vmem:[%s7 + $0x18] sm:$0xf]
        %v5366 = vld [vmem:[%s7 + $0x1c] sm:$0xf]
        %v5375 = vunpack.c.l.b16 %v5359
        %v5376 = vunpack.c.l.b16 %v5360
        %v5377 = vunpack.c.l.b16 %v5361
        %v5378 = vunpack.c.l.b16 %v5362
        %v5379 = vunpack.c.l.b16 %v5363
        %v5380 = vunpack.c.l.b16 %v5364
        %v5381 = vunpack.c.l.b16 %v5365
        %v5382 = vunpack.c.l.b16 %v5366
        %v5383 = vpack.c.b16 %v5376, %v5375
        %v5384 = vpack.c.b16 %v5378, %v5377
        %v5385 = vpack.c.b16 %v5380, %v5379
        %v5386 = vpack.c.b16 %v5382, %v5381
        %vm5387 = vcmask 523264
        %v5389 = vsel %vm5387, %v5383, 0
        %v5392 = vsel %vm5387, %v5384, 0
        %v5395 = vsel %vm5387, %v5385, 0
        %v5398 = vsel %vm5387, %v5386, 0
        %5400 = vmatprep.subr.bf16.mxu0 %v5352
        %5401 = vmatpush1.bf16.msra.mxu0 %v5351
        %5402 = vmatprep.subr.bf16.mxu0 %v5354
        %5403 = vmatpush1.bf16.msra.mxu0 %v5353
        %5404 = vmatprep.subr.bf16.mxu0 %v5356
        %5405 = vmatpush1.bf16.msra.mxu0 %v5355
        %5406 = vmatprep.subr.bf16.mxu0 %v5358
        %5407 = vmatpush1.bf16.msra.mxu0 %v5357
        %5408 = vmatprep.subr.bf16.mxu0 0
        %5409 = vmatpush1.bf16.msra.mxu0 0
        %5410 = vmatprep.subr.bf16.mxu0 0
        %5411 = vmatpush1.bf16.msra.mxu0 0
        %5412 = vmatprep.subr.bf16.mxu0 0
        %5413 = vmatpush1.bf16.msra.mxu0 0
        %5414 = vmatprep.subr.bf16.mxu0 0
        %5415 = vmatpush1.bf16.msra.mxu0 0
        %5416 = vmatprep.subr.bf16.mxu0 0
        %5417 = vmatpush1.bf16.msra.mxu0 0
        %5418 = vmatprep.subr.bf16.mxu0 0
        %5419 = vmatpush1.bf16.msra.mxu0 0
        %5420 = vmatprep.subr.bf16.mxu0 0
        %5421 = vmatpush1.bf16.msra.mxu0 0
        %5422 = vmatprep.subr.bf16.mxu0 0
        %5423 = vmatpush1.bf16.msra.mxu0 0
        %5424 = vmatprep.subr.bf16.mxu0 0
        %5425 = vmatpush1.bf16.msra.mxu0 0
        %5426 = vmatprep.subr.bf16.mxu0 0
        %5427 = vmatpush1.bf16.msra.mxu0 0
        %5428 = vmatprep.subr.bf16.mxu0 0
        %5429 = vmatpush1.bf16.msra.mxu0 0
        %5430 = vmatprep.subr.bf16.mxu0 0
        %5431 = vmatpush1.bf16.msra.mxu0 0
        %5432 = vmatprep.mubr.bf16.mxu0 0
        %5433 = vmatmul.mubr.bf16.gmra.mrb[0].mxu0 %v5389
        %v5434 = vpop.f32.mrb[0].mxu0
        %v5435 = vadd.f32 0.0, %v5434
        %v5436 = vpop.f32.mrb[0].mxu0
        %v5437 = vadd.f32 0.0, %v5436
        %v5438 = vpop.f32.mrb[0].mxu0
        %v5439 = vadd.f32 0.0, %v5438
        %v5440 = vpop.f32.mrb[0].mxu0
        %v5441 = vadd.f32 0.0, %v5440
        %5442 = vmatprep.mubr.bf16.mxu0 0
        %5443 = vmatmul.mubr.bf16.gmra.mrb[0].mxu0 %v5392
        %v5444 = vpop.f32.mrb[0].mxu0
        %v5445 = vadd.f32 0.0, %v5444
        %v5446 = vpop.f32.mrb[0].mxu0
        %v5447 = vadd.f32 0.0, %v5446
        %v5448 = vpop.f32.mrb[0].mxu0
        %v5449 = vadd.f32 0.0, %v5448
        %v5450 = vpop.f32.mrb[0].mxu0
        %v5451 = vadd.f32 0.0, %v5450
        %5452 = vmatprep.mubr.bf16.mxu0 0
        %5453 = vmatmul.mubr.bf16.gmra.mrb[0].mxu0 %v5395
        %v5454 = vpop.f32.mrb[0].mxu0
        %v5455 = vadd.f32 0.0, %v5454
        %v5456 = vpop.f32.mrb[0].mxu0
        %v5457 = vadd.f32 0.0, %v5456
        %v5458 = vpop.f32.mrb[0].mxu0
        %v5459 = vadd.f32 0.0, %v5458
        %v5460 = vpop.f32.mrb[0].mxu0
        %v5461 = vadd.f32 0.0, %v5460
        %5462 = vmatprep.mubr.bf16.mxu0 0
        %5463 = vmatmul.mubr.bf16.gmra.mrb[0].mxu0 %v5398
        %v5464 = vpop.f32.mrb[0].mxu0
        %v5465 = vadd.f32 0.0, %v5464
        %v5466 = vpop.f32.mrb[0].mxu0
        %v5467 = vadd.f32 0.0, %v5466
        %v5468 = vpop.f32.mrb[0].mxu0
        %v5469 = vadd.f32 0.0, %v5468
        %v5470 = vpop.f32.mrb[0].mxu0
        %v5471 = vadd.f32 0.0, %v5470
        %5472 = vdwg.mxu0
        %v5473 = vpack.c.bf16 %v5439, %v5435
        %v5474 = vpack.c.bf16 %v5441, %v5437
        %v5475 = vpack.c.bf16 %v5449, %v5445
        %v5476 = vpack.c.bf16 %v5451, %v5447
        %v5477 = vpack.c.bf16 %v5459, %v5455
        %v5478 = vpack.c.bf16 %v5461, %v5457
        %v5479 = vpack.c.bf16 %v5469, %v5465
        %v5480 = vpack.c.bf16 %v5471, %v5467
        %s5481 = scalar_lea.vmem %s7, 32
        %v5482 = vld [vmem:[%s5481] sm:$0xf]
        %v5483 = vld [vmem:[%s5481 + $0x4] sm:$0xf]
        %v5484 = vld [vmem:[%s5481 + $0x8] sm:$0xf]
        %v5485 = vld [vmem:[%s5481 + $0xc] sm:$0xf]
        %v5486 = vld [vmem:[%s5481 + $0x10] sm:$0xf]
        %v5487 = vld [vmem:[%s5481 + $0x14] sm:$0xf]
        %v5488 = vld [vmem:[%s5481 + $0x18] sm:$0xf]
        %v5489 = vld [vmem:[%s5481 + $0x1c] sm:$0xf]
        %v5498 = vunpack.c.l.b16 %v5482
        %v5499 = vunpack.c.l.b16 %v5483
        %v5500 = vunpack.c.l.b16 %v5484
        %v5501 = vunpack.c.l.b16 %v5485
        %v5502 = vunpack.c.l.b16 %v5486
        %v5503 = vunpack.c.l.b16 %v5487
        %v5504 = vunpack.c.l.b16 %v5488
        %v5505 = vunpack.c.l.b16 %v5489
        %v5506 = vpack.c.b16 %v5499, %v5498
        %v5507 = vpack.c.b16 %v5501, %v5500
        %v5508 = vpack.c.b16 %v5503, %v5502
        %v5509 = vpack.c.b16 %v5505, %v5504
        %v5511 = vsel %vm5387, %v5506, 0
        %v5514 = vsel %vm5387, %v5507, 0
        %v5517 = vsel %vm5387, %v5508, 0
        %v5520 = vsel %vm5387, %v5509, 0
        %5522 = vmatprep.subr.bf16.mxu0 %v5352
        %5523 = vmatpush1.bf16.msra.mxu0 %v5351
        %5524 = vmatprep.subr.bf16.mxu0 %v5354
        %5525 = vmatpush1.bf16.msra.mxu0 %v5353
        %5526 = vmatprep.subr.bf16.mxu0 %v5356
        %5527 = vmatpush1.bf16.msra.mxu0 %v5355
        %5528 = vmatprep.subr.bf16.mxu0 %v5358
        %5529 = vmatpush1.bf16.msra.mxu0 %v5357
        %5530 = vmatprep.subr.bf16.mxu0 0
        %5531 = vmatpush1.bf16.msra.mxu0 0
        %5532 = vmatprep.subr.bf16.mxu0 0
        %5533 = vmatpush1.bf16.msra.mxu0 0
        %5534 = vmatprep.subr.bf16.mxu0 0
        %5535 = vmatpush1.bf16.msra.mxu0 0
        %5536 = vmatprep.subr.bf16.mxu0 0
        %5537 = vmatpush1.bf16.msra.mxu0 0
        %5538 = vmatprep.subr.bf16.mxu0 0
        %5539 = vmatpush1.bf16.msra.mxu0 0
        %5540 = vmatprep.subr.bf16.mxu0 0
        %5541 = vmatpush1.bf16.msra.mxu0 0
        %5542 = vmatprep.subr.bf16.mxu0 0
        %5543 = vmatpush1.bf16.msra.mxu0 0
        %5544 = vmatprep.subr.bf16.mxu0 0
        %5545 = vmatpush1.bf16.msra.mxu0 0
        %5546 = vmatprep.subr.bf16.mxu0 0
        %5547 = vmatpush1.bf16.msra.mxu0 0
        %5548 = vmatprep.subr.bf16.mxu0 0
        %5549 = vmatpush1.bf16.msra.mxu0 0
        %5550 = vmatprep.subr.bf16.mxu0 0
        %5551 = vmatpush1.bf16.msra.mxu0 0
        %5552 = vmatprep.subr.bf16.mxu0 0
        %5553 = vmatpush1.bf16.msra.mxu0 0
        %5554 = vmatprep.mubr.bf16.mxu0 0
        %5555 = vmatmul.mubr.bf16.gmra.mrb[0].mxu0 %v5511
        %v5556 = vpop.f32.mrb[0].mxu0
        %v5557 = vadd.f32 0.0, %v5556
        %v5558 = vpop.f32.mrb[0].mxu0
        %v5559 = vadd.f32 0.0, %v5558
        %v5560 = vpop.f32.mrb[0].mxu0
        %v5561 = vadd.f32 0.0, %v5560
        %v5562 = vpop.f32.mrb[0].mxu0
        %v5563 = vadd.f32 0.0, %v5562
        %5564 = vmatprep.mubr.bf16.mxu0 0
        %5565 = vmatmul.mubr.bf16.gmra.mrb[0].mxu0 %v5514
        %v5566 = vpop.f32.mrb[0].mxu0
        %v5567 = vadd.f32 0.0, %v5566
        %v5568 = vpop.f32.mrb[0].mxu0
        %v5569 = vadd.f32 0.0, %v5568
        %v5570 = vpop.f32.mrb[0].mxu0
        %v5571 = vadd.f32 0.0, %v5570
        %v5572 = vpop.f32.mrb[0].mxu0
        %v5573 = vadd.f32 0.0, %v5572
        %5574 = vmatprep.mubr.bf16.mxu0 0
        %5575 = vmatmul.mubr.bf16.gmra.mrb[0].mxu0 %v5517
        %v5576 = vpop.f32.mrb[0].mxu0
        %v5577 = vadd.f32 0.0, %v5576
        %v5578 = vpop.f32.mrb[0].mxu0
        %v5579 = vadd.f32 0.0, %v5578
        %v5580 = vpop.f32.mrb[0].mxu0
        %v5581 = vadd.f32 0.0, %v5580
        %v5582 = vpop.f32.mrb[0].mxu0
        %v5583 = vadd.f32 0.0, %v5582
        %5584 = vmatprep.mubr.bf16.mxu0 0
        %5585 = vmatmul.mubr.bf16.gmra.mrb[0].mxu0 %v5520
        %v5586 = vpop.f32.mrb[0].mxu0
        %v5587 = vadd.f32 0.0, %v5586
        %v5588 = vpop.f32.mrb[0].mxu0
        %v5589 = vadd.f32 0.0, %v5588
        %v5590 = vpop.f32.mrb[0].mxu0
        %v5591 = vadd.f32 0.0, %v5590
        %v5592 = vpop.f32.mrb[0].mxu0
        %v5593 = vadd.f32 0.0, %v5592
        %5594 = vdwg.mxu0
        %v5595 = vpack.c.bf16 %v5561, %v5557
        %v5596 = vpack.c.bf16 %v5563, %v5559
        %v5597 = vpack.c.bf16 %v5571, %v5567
        %v5598 = vpack.c.bf16 %v5573, %v5569
        %v5599 = vpack.c.bf16 %v5581, %v5577
        %v5600 = vpack.c.bf16 %v5583, %v5579
        %v5601 = vpack.c.bf16 %v5591, %v5587
        %v5602 = vpack.c.bf16 %v5593, %v5589
        %v5603 = vld [vmem:[%s8] sm:$0xff]
        %v5604 = vld [vmem:[%s8 + $0x8] sm:$0xff]
        %v5605 = vld [vmem:[%s8 + $0x10] sm:$0xff]
        %v5606 = vld [vmem:[%s8 + $0x18] sm:$0xff]
        %v5607 = vld [vmem:[%s8 + $0x20] sm:$0xff]
        %v5608 = vld [vmem:[%s8 + $0x28] sm:$0xff]
        %v5609 = vld [vmem:[%s8 + $0x30] sm:$0xff]
        %v5610 = vld [vmem:[%s8 + $0x38] sm:$0xff]
        %v5611 = vld [vmem:[%s8 + $0x40] sm:$0xff]
        %v5612 = vld [vmem:[%s8 + $0x48] sm:$0xff]
        %v5613 = vld [vmem:[%s8 + $0x50] sm:$0xff]
        %v5614 = vld [vmem:[%s8 + $0x58] sm:$0xff]
        %v5615 = vld [vmem:[%s8 + $0x60] sm:$0xff]
        %v5616 = vld [vmem:[%s8 + $0x68] sm:$0xff]
        %v5617 = vld [vmem:[%s8 + $0x70] sm:$0xff]
        %v5618 = vld [vmem:[%s8 + $0x78] sm:$0xff]
        %v5619 = vld [vmem:[%s8 + $0x80] sm:$0xff]
        %v5620 = vld [vmem:[%s8 + $0x88] sm:$0xff]
        %v5621 = vld [vmem:[%s8 + $0x90] sm:$0xff]
        %v5622 = vld [vmem:[%s8 + $0x98] sm:$0xff]
        %v5623 = vld [vmem:[%s8 + $0xa0] sm:$0xff]
        %v5624 = vld [vmem:[%s8 + $0xa8] sm:$0xff]
        %v5625 = vld [vmem:[%s8 + $0xb0] sm:$0xff]
        %v5626 = vld [vmem:[%s8 + $0xb8] sm:$0xff]
        %s5627 = scalar_lea.vmem %s8, 192
        %v5628 = vld [vmem:[%s5627] sm:$0xff]
        %v5629 = vld [vmem:[%s5627 + $0x8] sm:$0xff]
        %v5630 = vld [vmem:[%s5627 + $0x10] sm:$0xff]
        %v5631 = vld [vmem:[%s5627 + $0x18] sm:$0xff]
        %v5632 = vld [vmem:[%s5627 + $0x20] sm:$0xff]
        %v5633 = vld [vmem:[%s5627 + $0x28] sm:$0xff]
        %v5634 = vld [vmem:[%s5627 + $0x30] sm:$0xff]
        %v5635 = vld [vmem:[%s5627 + $0x38] sm:$0xff]
        %v5636 = vld [vmem:[%s5627 + $0x40] sm:$0xff]
        %v5637 = vld [vmem:[%s5627 + $0x48] sm:$0xff]
        %v5638 = vld [vmem:[%s5627 + $0x50] sm:$0xff]
        %v5639 = vld [vmem:[%s5627 + $0x58] sm:$0xff]
        %v5640 = vld [vmem:[%s5627 + $0x60] sm:$0xff]
        %v5641 = vld [vmem:[%s5627 + $0x68] sm:$0xff]
        %v5642 = vld [vmem:[%s5627 + $0x70] sm:$0xff]
        %v5643 = vld [vmem:[%s5627 + $0x78] sm:$0xff]
        %v5644 = vld [vmem:[%s5627 + $0x80] sm:$0xff]
        %v5645 = vld [vmem:[%s5627 + $0x88] sm:$0xff]
        %v5646 = vld [vmem:[%s5627 + $0x90] sm:$0xff]
        %v5647 = vld [vmem:[%s5627 + $0x98] sm:$0xff]
        %v5648 = vld [vmem:[%s5627 + $0xa0] sm:$0xff]
        %v5649 = vld [vmem:[%s5627 + $0xa8] sm:$0xff]
        %v5650 = vld [vmem:[%s5627 + $0xb0] sm:$0xff]
        %v5651 = vld [vmem:[%s5627 + $0xb8] sm:$0xff]
        %v5676 = vunpack.c.l.b16 %v5628
        %v5677 = vunpack.c.h.b16 %v5628
        %v5678 = vunpack.c.l.b16 %v5629
        %v5679 = vunpack.c.h.b16 %v5629
        %v5680 = vunpack.c.l.b16 %v5630
        %v5681 = vunpack.c.h.b16 %v5630
        %v5682 = vunpack.c.l.b16 %v5631
        %v5683 = vunpack.c.h.b16 %v5631
        %v5684 = vunpack.c.l.b16 %v5632
        %v5685 = vunpack.c.h.b16 %v5632
        %v5686 = vunpack.c.l.b16 %v5633
        %v5687 = vunpack.c.h.b16 %v5633
        %v5688 = vunpack.c.l.b16 %v5634
        %v5689 = vunpack.c.h.b16 %v5634
        %v5690 = vunpack.c.l.b16 %v5635
        %v5691 = vunpack.c.h.b16 %v5635
        %v5692 = vunpack.c.l.b16 %v5636
        %v5693 = vunpack.c.h.b16 %v5636
        %v5694 = vunpack.c.l.b16 %v5637
        %v5695 = vunpack.c.h.b16 %v5637
        %v5696 = vunpack.c.l.b16 %v5638
        %v5697 = vunpack.c.h.b16 %v5638
        %v5698 = vunpack.c.l.b16 %v5639
        %v5699 = vunpack.c.h.b16 %v5639
        %v5700 = vunpack.c.l.b16 %v5640
        %v5701 = vunpack.c.h.b16 %v5640
        %v5702 = vunpack.c.l.b16 %v5641
        %v5703 = vunpack.c.h.b16 %v5641
        %v5704 = vunpack.c.l.b16 %v5642
        %v5705 = vunpack.c.h.b16 %v5642
        %v5706 = vunpack.c.l.b16 %v5643
        %v5707 = vunpack.c.h.b16 %v5643
        %v5708 = vunpack.c.l.b16 %v5644
        %v5709 = vunpack.c.h.b16 %v5644
        %v5710 = vunpack.c.l.b16 %v5645
        %v5711 = vunpack.c.h.b16 %v5645
        %v5712 = vunpack.c.l.b16 %v5646
        %v5713 = vunpack.c.h.b16 %v5646
        %v5714 = vunpack.c.l.b16 %v5647
        %v5715 = vunpack.c.h.b16 %v5647
        %v5716 = vunpack.c.l.b16 %v5648
        %v5717 = vunpack.c.h.b16 %v5648
        %v5718 = vunpack.c.l.b16 %v5649
        %v5719 = vunpack.c.h.b16 %v5649
        %v5720 = vunpack.c.l.b16 %v5650
        %v5721 = vunpack.c.h.b16 %v5650
        %v5722 = vunpack.c.l.b16 %v5651
        %v5723 = vunpack.c.h.b16 %v5651
        %v5724 = vpack.c.b16 %v5678, %v5676
        %v5725 = vpack.c.b16 %v5679, %v5677
        %v5726 = vpack.c.b16 %v5682, %v5680
        %v5727 = vpack.c.b16 %v5683, %v5681
        %v5728 = vpack.c.b16 %v5686, %v5684
        %v5729 = vpack.c.b16 %v5687, %v5685
        %v5730 = vpack.c.b16 %v5690, %v5688
        %v5731 = vpack.c.b16 %v5691, %v5689
        %v5732 = vpack.c.b16 %v5694, %v5692
        %v5733 = vpack.c.b16 %v5695, %v5693
        %v5734 = vpack.c.b16 %v5698, %v5696
        %v5735 = vpack.c.b16 %v5699, %v5697
        %v5736 = vpack.c.b16 %v5702, %v5700
        %v5737 = vpack.c.b16 %v5703, %v5701
        %v5738 = vpack.c.b16 %v5706, %v5704
        %v5739 = vpack.c.b16 %v5707, %v5705
        %v5740 = vpack.c.b16 %v5710, %v5708
        %v5741 = vpack.c.b16 %v5711, %v5709
        %v5742 = vpack.c.b16 %v5714, %v5712
        %v5743 = vpack.c.b16 %v5715, %v5713
        %v5744 = vpack.c.b16 %v5718, %v5716
        %v5745 = vpack.c.b16 %v5719, %v5717
        %v5746 = vpack.c.b16 %v5722, %v5720
        %v5747 = vpack.c.b16 %v5723, %v5721
        %v5773 = vsel %vm5387, %v5352, 0
        %v5776 = vsel %vm5387, %v5354, 0
        %v5779 = vsel %vm5387, %v5356, 0
        %v5782 = vsel %vm5387, %v5358, 0
        %5784 = vmatprep.subr.bf16.mxu0 %v5725
        %5785 = vmatpush1.bf16.msra.mxu0 %v5724
        %5786 = vmatprep.subr.bf16.mxu0 %v5727
        %5787 = vmatpush1.bf16.msra.mxu0 %v5726
        %5788 = vmatprep.subr.bf16.mxu0 %v5729
        %5789 = vmatpush1.bf16.msra.mxu0 %v5728
        %5790 = vmatprep.subr.bf16.mxu0 %v5731
        %5791 = vmatpush1.bf16.msra.mxu0 %v5730
        %5792 = vmatprep.subr.bf16.mxu0 %v5733
        %5793 = vmatpush1.bf16.msra.mxu0 %v5732
        %5794 = vmatprep.subr.bf16.mxu0 %v5735
        %5795 = vmatpush1.bf16.msra.mxu0 %v5734
        %5796 = vmatprep.subr.bf16.mxu0 %v5737
        %5797 = vmatpush1.bf16.msra.mxu0 %v5736
        %5798 = vmatprep.subr.bf16.mxu0 %v5739
        %5799 = vmatpush1.bf16.msra.mxu0 %v5738
        %5800 = vmatprep.subr.bf16.mxu0 %v5741
        %5801 = vmatpush1.bf16.msra.mxu0 %v5740
        %5802 = vmatprep.subr.bf16.mxu0 %v5743
        %5803 = vmatpush1.bf16.msra.mxu0 %v5742
        %5804 = vmatprep.subr.bf16.mxu0 %v5745
        %5805 = vmatpush1.bf16.msra.mxu0 %v5744
        %5806 = vmatprep.subr.bf16.mxu0 %v5747
        %5807 = vmatpush1.bf16.msra.mxu0 %v5746
        %5808 = vmatprep.subr.bf16.mxu0 0
        %5809 = vmatpush1.bf16.msra.mxu0 0
        %5810 = vmatprep.subr.bf16.mxu0 0
        %5811 = vmatpush1.bf16.msra.mxu0 0
        %5812 = vmatprep.subr.bf16.mxu0 0
        %5813 = vmatpush1.bf16.msra.mxu0 0
        %5814 = vmatprep.subr.bf16.mxu0 0
        %5815 = vmatpush1.bf16.msra.mxu0 0
        %5816 = vmatprep.mubr.bf16.mxu0 %v5773
        %5817 = vmatmul.mubr.bf16.gmra.mrb[0].mxu0 %v5351
        %v5818 = vpop.f32.mrb[0].mxu0
        %v5819 = vadd.f32 0.0, %v5818
        %v5820 = vpop.f32.mrb[0].mxu0
        %v5821 = vadd.f32 0.0, %v5820
        %v5822 = vpop.f32.mrb[0].mxu0
        %v5823 = vadd.f32 0.0, %v5822
        %v5824 = vpop.f32.mrb[0].mxu0
        %v5825 = vadd.f32 0.0, %v5824
        %5826 = vmatprep.mubr.bf16.mxu0 %v5776
        %5827 = vmatmul.mubr.bf16.gmra.mrb[0].mxu0 %v5353
        %v5828 = vpop.f32.mrb[0].mxu0
        %v5829 = vadd.f32 0.0, %v5828
        %v5830 = vpop.f32.mrb[0].mxu0
        %v5831 = vadd.f32 0.0, %v5830
        %v5832 = vpop.f32.mrb[0].mxu0
        %v5833 = vadd.f32 0.0, %v5832
        %v5834 = vpop.f32.mrb[0].mxu0
        %v5835 = vadd.f32 0.0, %v5834
        %5836 = vmatprep.mubr.bf16.mxu0 %v5779
        %5837 = vmatmul.mubr.bf16.gmra.mrb[0].mxu0 %v5355
        %v5838 = vpop.f32.mrb[0].mxu0
        %v5839 = vadd.f32 0.0, %v5838
        %v5840 = vpop.f32.mrb[0].mxu0
        %v5841 = vadd.f32 0.0, %v5840
        %v5842 = vpop.f32.mrb[0].mxu0
        %v5843 = vadd.f32 0.0, %v5842
        %v5844 = vpop.f32.mrb[0].mxu0
        %v5845 = vadd.f32 0.0, %v5844
        %5846 = vmatprep.mubr.bf16.mxu0 %v5782
        %5847 = vmatmul.mubr.bf16.gmra.mrb[0].mxu0 %v5357
        %v5848 = vpop.f32.mrb[0].mxu0
        %v5849 = vadd.f32 0.0, %v5848
        %v5850 = vpop.f32.mrb[0].mxu0
        %v5851 = vadd.f32 0.0, %v5850
        %v5852 = vpop.f32.mrb[0].mxu0
        %v5853 = vadd.f32 0.0, %v5852
        %v5854 = vpop.f32.mrb[0].mxu0
        %v5855 = vadd.f32 0.0, %v5854
        %5856 = vdwg.mxu0
        %v5881 = vunpack.c.l.b16 %v5603
        %v5882 = vunpack.c.h.b16 %v5603
        %v5883 = vunpack.c.l.b16 %v5604
        %v5884 = vunpack.c.h.b16 %v5604
        %v5885 = vunpack.c.l.b16 %v5605
        %v5886 = vunpack.c.h.b16 %v5605
        %v5887 = vunpack.c.l.b16 %v5606
        %v5888 = vunpack.c.h.b16 %v5606
        %v5889 = vunpack.c.l.b16 %v5607
        %v5890 = vunpack.c.h.b16 %v5607
        %v5891 = vunpack.c.l.b16 %v5608
        %v5892 = vunpack.c.h.b16 %v5608
        %v5893 = vunpack.c.l.b16 %v5609
        %v5894 = vunpack.c.h.b16 %v5609
        %v5895 = vunpack.c.l.b16 %v5610
        %v5896 = vunpack.c.h.b16 %v5610
        %v5897 = vunpack.c.l.b16 %v5611
        %v5898 = vunpack.c.h.b16 %v5611
        %v5899 = vunpack.c.l.b16 %v5612
        %v5900 = vunpack.c.h.b16 %v5612
        %v5901 = vunpack.c.l.b16 %v5613
        %v5902 = vunpack.c.h.b16 %v5613
        %v5903 = vunpack.c.l.b16 %v5614
        %v5904 = vunpack.c.h.b16 %v5614
        %v5905 = vunpack.c.l.b16 %v5615
        %v5906 = vunpack.c.h.b16 %v5615
        %v5907 = vunpack.c.l.b16 %v5616
        %v5908 = vunpack.c.h.b16 %v5616
        %v5909 = vunpack.c.l.b16 %v5617
        %v5910 = vunpack.c.h.b16 %v5617
        %v5911 = vunpack.c.l.b16 %v5618
        %v5912 = vunpack.c.h.b16 %v5618
        %v5913 = vunpack.c.l.b16 %v5619
        %v5914 = vunpack.c.h.b16 %v5619
        %v5915 = vunpack.c.l.b16 %v5620
        %v5916 = vunpack.c.h.b16 %v5620
        %v5917 = vunpack.c.l.b16 %v5621
        %v5918 = vunpack.c.h.b16 %v5621
        %v5919 = vunpack.c.l.b16 %v5622
        %v5920 = vunpack.c.h.b16 %v5622
        %v5921 = vunpack.c.l.b16 %v5623
        %v5922 = vunpack.c.h.b16 %v5623
        %v5923 = vunpack.c.l.b16 %v5624
        %v5924 = vunpack.c.h.b16 %v5624
        %v5925 = vunpack.c.l.b16 %v5625
        %v5926 = vunpack.c.h.b16 %v5625
        %v5927 = vunpack.c.l.b16 %v5626
        %v5928 = vunpack.c.h.b16 %v5626
        %v5929 = vpack.c.b16 %v5883, %v5881
        %v5930 = vpack.c.b16 %v5884, %v5882
        %v5931 = vpack.c.b16 %v5887, %v5885
        %v5932 = vpack.c.b16 %v5888, %v5886
        %v5933 = vpack.c.b16 %v5891, %v5889
        %v5934 = vpack.c.b16 %v5892, %v5890
        %v5935 = vpack.c.b16 %v5895, %v5893
        %v5936 = vpack.c.b16 %v5896, %v5894
        %v5937 = vpack.c.b16 %v5899, %v5897
        %v5938 = vpack.c.b16 %v5900, %v5898
        %v5939 = vpack.c.b16 %v5903, %v5901
        %v5940 = vpack.c.b16 %v5904, %v5902
        %v5941 = vpack.c.b16 %v5907, %v5905
        %v5942 = vpack.c.b16 %v5908, %v5906
        %v5943 = vpack.c.b16 %v5911, %v5909
        %v5944 = vpack.c.b16 %v5912, %v5910
        %v5945 = vpack.c.b16 %v5915, %v5913
        %v5946 = vpack.c.b16 %v5916, %v5914
        %v5947 = vpack.c.b16 %v5919, %v5917
        %v5948 = vpack.c.b16 %v5920, %v5918
        %v5949 = vpack.c.b16 %v5923, %v5921
        %v5950 = vpack.c.b16 %v5924, %v5922
        %v5951 = vpack.c.b16 %v5927, %v5925
        %v5952 = vpack.c.b16 %v5928, %v5926
        %v5978 = vsel %vm5387, %v5474, 0
        %v5981 = vsel %vm5387, %v5476, 0
        %v5984 = vsel %vm5387, %v5478, 0
        %v5987 = vsel %vm5387, %v5480, 0
        %5989 = vmatprep.subr.bf16.mxu0 %v5930
        %5990 = vmatpush1.bf16.msra.mxu0 %v5929
        %5991 = vmatprep.subr.bf16.mxu0 %v5932
        %5992 = vmatpush1.bf16.msra.mxu0 %v5931
        %5993 = vmatprep.subr.bf16.mxu0 %v5934
        %5994 = vmatpush1.bf16.msra.mxu0 %v5933
        %5995 = vmatprep.subr.bf16.mxu0 %v5936
        %5996 = vmatpush1.bf16.msra.mxu0 %v5935
        %5997 = vmatprep.subr.bf16.mxu0 %v5938
        %5998 = vmatpush1.bf16.msra.mxu0 %v5937
        %5999 = vmatprep.subr.bf16.mxu0 %v5940
        %6000 = vmatpush1.bf16.msra.mxu0 %v5939
        %6001 = vmatprep.subr.bf16.mxu0 %v5942
        %6002 = vmatpush1.bf16.msra.mxu0 %v5941
        %6003 = vmatprep.subr.bf16.mxu0 %v5944
        %6004 = vmatpush1.bf16.msra.mxu0 %v5943
        %6005 = vmatprep.subr.bf16.mxu0 %v5946
        %6006 = vmatpush1.bf16.msra.mxu0 %v5945
        %6007 = vmatprep.subr.bf16.mxu0 %v5948
        %6008 = vmatpush1.bf16.msra.mxu0 %v5947
        %6009 = vmatprep.subr.bf16.mxu0 %v5950
        %6010 = vmatpush1.bf16.msra.mxu0 %v5949
        %6011 = vmatprep.subr.bf16.mxu0 %v5952
        %6012 = vmatpush1.bf16.msra.mxu0 %v5951
        %6013 = vmatprep.subr.bf16.mxu0 0
        %6014 = vmatpush1.bf16.msra.mxu0 0
        %6015 = vmatprep.subr.bf16.mxu0 0
        %6016 = vmatpush1.bf16.msra.mxu0 0
        %6017 = vmatprep.subr.bf16.mxu0 0
        %6018 = vmatpush1.bf16.msra.mxu0 0
        %6019 = vmatprep.subr.bf16.mxu0 0
        %6020 = vmatpush1.bf16.msra.mxu0 0
        %6021 = vmatprep.mubr.bf16.mxu0 %v5978
        %6022 = vmatmul.mubr.bf16.gmra.mrb[0].mxu0 %v5473
        %v6023 = vpop.f32.mrb[0].mxu0
        %v6024 = vadd.f32 %v5819, %v6023
        %v6025 = vpop.f32.mrb[0].mxu0
        %v6026 = vadd.f32 %v5821, %v6025
        %v6027 = vpop.f32.mrb[0].mxu0
        %v6028 = vadd.f32 %v5823, %v6027
        %v6029 = vpop.f32.mrb[0].mxu0
        %v6030 = vadd.f32 %v5825, %v6029
        %6031 = vmatprep.mubr.bf16.mxu0 %v5981
        %6032 = vmatmul.mubr.bf16.gmra.mrb[0].mxu0 %v5475
        %v6033 = vpop.f32.mrb[0].mxu0
        %v6034 = vadd.f32 %v5829, %v6033
        %v6035 = vpop.f32.mrb[0].mxu0
        %v6036 = vadd.f32 %v5831, %v6035
        %v6037 = vpop.f32.mrb[0].mxu0
        %v6038 = vadd.f32 %v5833, %v6037
        %v6039 = vpop.f32.mrb[0].mxu0
        %v6040 = vadd.f32 %v5835, %v6039
        %6041 = vmatprep.mubr.bf16.mxu0 %v5984
        %6042 = vmatmul.mubr.bf16.gmra.mrb[0].mxu0 %v5477
        %v6043 = vpop.f32.mrb[0].mxu0
        %v6044 = vadd.f32 %v5839, %v6043
        %v6045 = vpop.f32.mrb[0].mxu0
        %v6046 = vadd.f32 %v5841, %v6045
        %v6047 = vpop.f32.mrb[0].mxu0
        %v6048 = vadd.f32 %v5843, %v6047
        %v6049 = vpop.f32.mrb[0].mxu0
        %v6050 = vadd.f32 %v5845, %v6049
        %6051 = vmatprep.mubr.bf16.mxu0 %v5987
        %6052 = vmatmul.mubr.bf16.gmra.mrb[0].mxu0 %v5479
        %v6053 = vpop.f32.mrb[0].mxu0
        %v6054 = vadd.f32 %v5849, %v6053
        %v6055 = vpop.f32.mrb[0].mxu0
        %v6056 = vadd.f32 %v5851, %v6055
        %v6057 = vpop.f32.mrb[0].mxu0
        %v6058 = vadd.f32 %v5853, %v6057
        %v6059 = vpop.f32.mrb[0].mxu0
        %v6060 = vadd.f32 %v5855, %v6059
        %6061 = vdwg.mxu0
        %s6062 = scalar_lea.vmem %s8, 384
        %v6063 = vld [vmem:[%s6062] sm:$0xff]
        %v6064 = vld [vmem:[%s6062 + $0x8] sm:$0xff]
        %v6065 = vld [vmem:[%s6062 + $0x10] sm:$0xff]
        %v6066 = vld [vmem:[%s6062 + $0x18] sm:$0xff]
        %v6067 = vld [vmem:[%s6062 + $0x20] sm:$0xff]
        %v6068 = vld [vmem:[%s6062 + $0x28] sm:$0xff]
        %v6069 = vld [vmem:[%s6062 + $0x30] sm:$0xff]
        %v6070 = vld [vmem:[%s6062 + $0x38] sm:$0xff]
        %v6071 = vld [vmem:[%s6062 + $0x40] sm:$0xff]
        %v6072 = vld [vmem:[%s6062 + $0x48] sm:$0xff]
        %v6073 = vld [vmem:[%s6062 + $0x50] sm:$0xff]
        %v6074 = vld [vmem:[%s6062 + $0x58] sm:$0xff]
        %v6075 = vld [vmem:[%s6062 + $0x60] sm:$0xff]
        %v6076 = vld [vmem:[%s6062 + $0x68] sm:$0xff]
        %v6077 = vld [vmem:[%s6062 + $0x70] sm:$0xff]
        %v6078 = vld [vmem:[%s6062 + $0x78] sm:$0xff]
        %v6079 = vld [vmem:[%s6062 + $0x80] sm:$0xff]
        %v6080 = vld [vmem:[%s6062 + $0x88] sm:$0xff]
        %v6081 = vld [vmem:[%s6062 + $0x90] sm:$0xff]
        %v6082 = vld [vmem:[%s6062 + $0x98] sm:$0xff]
        %v6083 = vld [vmem:[%s6062 + $0xa0] sm:$0xff]
        %v6084 = vld [vmem:[%s6062 + $0xa8] sm:$0xff]
        %v6085 = vld [vmem:[%s6062 + $0xb0] sm:$0xff]
        %v6086 = vld [vmem:[%s6062 + $0xb8] sm:$0xff]
        %v6111 = vunpack.c.l.b16 %v6063
        %v6112 = vunpack.c.h.b16 %v6063
        %v6113 = vunpack.c.l.b16 %v6064
        %v6114 = vunpack.c.h.b16 %v6064
        %v6115 = vunpack.c.l.b16 %v6065
        %v6116 = vunpack.c.h.b16 %v6065
        %v6117 = vunpack.c.l.b16 %v6066
        %v6118 = vunpack.c.h.b16 %v6066
        %v6119 = vunpack.c.l.b16 %v6067
        %v6120 = vunpack.c.h.b16 %v6067
        %v6121 = vunpack.c.l.b16 %v6068
        %v6122 = vunpack.c.h.b16 %v6068
        %v6123 = vunpack.c.l.b16 %v6069
        %v6124 = vunpack.c.h.b16 %v6069
        %v6125 = vunpack.c.l.b16 %v6070
        %v6126 = vunpack.c.h.b16 %v6070
        %v6127 = vunpack.c.l.b16 %v6071
        %v6128 = vunpack.c.h.b16 %v6071
        %v6129 = vunpack.c.l.b16 %v6072
        %v6130 = vunpack.c.h.b16 %v6072
        %v6131 = vunpack.c.l.b16 %v6073
        %v6132 = vunpack.c.h.b16 %v6073
        %v6133 = vunpack.c.l.b16 %v6074
        %v6134 = vunpack.c.h.b16 %v6074
        %v6135 = vunpack.c.l.b16 %v6075
        %v6136 = vunpack.c.h.b16 %v6075
        %v6137 = vunpack.c.l.b16 %v6076
        %v6138 = vunpack.c.h.b16 %v6076
        %v6139 = vunpack.c.l.b16 %v6077
        %v6140 = vunpack.c.h.b16 %v6077
        %v6141 = vunpack.c.l.b16 %v6078
        %v6142 = vunpack.c.h.b16 %v6078
        %v6143 = vunpack.c.l.b16 %v6079
        %v6144 = vunpack.c.h.b16 %v6079
        %v6145 = vunpack.c.l.b16 %v6080
        %v6146 = vunpack.c.h.b16 %v6080
        %v6147 = vunpack.c.l.b16 %v6081
        %v6148 = vunpack.c.h.b16 %v6081
        %v6149 = vunpack.c.l.b16 %v6082
        %v6150 = vunpack.c.h.b16 %v6082
        %v6151 = vunpack.c.l.b16 %v6083
        %v6152 = vunpack.c.h.b16 %v6083
        %v6153 = vunpack.c.l.b16 %v6084
        %v6154 = vunpack.c.h.b16 %v6084
        %v6155 = vunpack.c.l.b16 %v6085
        %v6156 = vunpack.c.h.b16 %v6085
        %v6157 = vunpack.c.l.b16 %v6086
        %v6158 = vunpack.c.h.b16 %v6086
        %v6159 = vpack.c.b16 %v6113, %v6111
        %v6160 = vpack.c.b16 %v6114, %v6112
        %v6161 = vpack.c.b16 %v6117, %v6115
        %v6162 = vpack.c.b16 %v6118, %v6116
        %v6163 = vpack.c.b16 %v6121, %v6119
        %v6164 = vpack.c.b16 %v6122, %v6120
        %v6165 = vpack.c.b16 %v6125, %v6123
        %v6166 = vpack.c.b16 %v6126, %v6124
        %v6167 = vpack.c.b16 %v6129, %v6127
        %v6168 = vpack.c.b16 %v6130, %v6128
        %v6169 = vpack.c.b16 %v6133, %v6131
        %v6170 = vpack.c.b16 %v6134, %v6132
        %v6171 = vpack.c.b16 %v6137, %v6135
        %v6172 = vpack.c.b16 %v6138, %v6136
        %v6173 = vpack.c.b16 %v6141, %v6139
        %v6174 = vpack.c.b16 %v6142, %v6140
        %v6175 = vpack.c.b16 %v6145, %v6143
        %v6176 = vpack.c.b16 %v6146, %v6144
        %v6177 = vpack.c.b16 %v6149, %v6147
        %v6178 = vpack.c.b16 %v6150, %v6148
        %v6179 = vpack.c.b16 %v6153, %v6151
        %v6180 = vpack.c.b16 %v6154, %v6152
        %v6181 = vpack.c.b16 %v6157, %v6155
        %v6182 = vpack.c.b16 %v6158, %v6156
        %v6208 = vsel %vm5387, %v5596, 0
        %v6211 = vsel %vm5387, %v5598, 0
        %v6214 = vsel %vm5387, %v5600, 0
        %v6217 = vsel %vm5387, %v5602, 0
        %6219 = vmatprep.subr.bf16.mxu0 %v6160
        %6220 = vmatpush1.bf16.msra.mxu0 %v6159
        %6221 = vmatprep.subr.bf16.mxu0 %v6162
        %6222 = vmatpush1.bf16.msra.mxu0 %v6161
        %6223 = vmatprep.subr.bf16.mxu0 %v6164
        %6224 = vmatpush1.bf16.msra.mxu0 %v6163
        %6225 = vmatprep.subr.bf16.mxu0 %v6166
        %6226 = vmatpush1.bf16.msra.mxu0 %v6165
        %6227 = vmatprep.subr.bf16.mxu0 %v6168
        %6228 = vmatpush1.bf16.msra.mxu0 %v6167
        %6229 = vmatprep.subr.bf16.mxu0 %v6170
        %6230 = vmatpush1.bf16.msra.mxu0 %v6169
        %6231 = vmatprep.subr.bf16.mxu0 %v6172
        %6232 = vmatpush1.bf16.msra.mxu0 %v6171
        %6233 = vmatprep.subr.bf16.mxu0 %v6174
        %6234 = vmatpush1.bf16.msra.mxu0 %v6173
        %6235 = vmatprep.subr.bf16.mxu0 %v6176
        %6236 = vmatpush1.bf16.msra.mxu0 %v6175
        %6237 = vmatprep.subr.bf16.mxu0 %v6178
        %6238 = vmatpush1.bf16.msra.mxu0 %v6177
        %6239 = vmatprep.subr.bf16.mxu0 %v6180
        %6240 = vmatpush1.bf16.msra.mxu0 %v6179
        %6241 = vmatprep.subr.bf16.mxu0 %v6182
        %6242 = vmatpush1.bf16.msra.mxu0 %v6181
        %6243 = vmatprep.subr.bf16.mxu0 0
        %6244 = vmatpush1.bf16.msra.mxu0 0
        %6245 = vmatprep.subr.bf16.mxu0 0
        %6246 = vmatpush1.bf16.msra.mxu0 0
        %6247 = vmatprep.subr.bf16.mxu0 0
        %6248 = vmatpush1.bf16.msra.mxu0 0
        %6249 = vmatprep.subr.bf16.mxu0 0
        %6250 = vmatpush1.bf16.msra.mxu0 0
        %6251 = vmatprep.mubr.bf16.mxu0 %v6208
        %6252 = vmatmul.mubr.bf16.gmra.mrb[0].mxu0 %v5595
        %v6253 = vpop.f32.mrb[0].mxu0
        %v6254 = vadd.f32 0.0, %v6253
        %v6255 = vpop.f32.mrb[0].mxu0
        %v6256 = vadd.f32 0.0, %v6255
        %v6257 = vpop.f32.mrb[0].mxu0
        %v6258 = vadd.f32 0.0, %v6257
        %v6259 = vpop.f32.mrb[0].mxu0
        %v6260 = vadd.f32 0.0, %v6259
        %6261 = vmatprep.mubr.bf16.mxu0 %v6211
        %6262 = vmatmul.mubr.bf16.gmra.mrb[0].mxu0 %v5597
        %v6263 = vpop.f32.mrb[0].mxu0
        %v6264 = vadd.f32 0.0, %v6263
        %v6265 = vpop.f32.mrb[0].mxu0
        %v6266 = vadd.f32 0.0, %v6265
        %v6267 = vpop.f32.mrb[0].mxu0
        %v6268 = vadd.f32 0.0, %v6267
        %v6269 = vpop.f32.mrb[0].mxu0
        %v6270 = vadd.f32 0.0, %v6269
        %6271 = vmatprep.mubr.bf16.mxu0 %v6214
        %6272 = vmatmul.mubr.bf16.gmra.mrb[0].mxu0 %v5599
        %v6273 = vpop.f32.mrb[0].mxu0
        %v6274 = vadd.f32 0.0, %v6273
        %v6275 = vpop.f32.mrb[0].mxu0
        %v6276 = vadd.f32 0.0, %v6275
        %v6277 = vpop.f32.mrb[0].mxu0
        %v6278 = vadd.f32 0.0, %v6277
        %v6279 = vpop.f32.mrb[0].mxu0
        %v6280 = vadd.f32 0.0, %v6279
        %6281 = vmatprep.mubr.bf16.mxu0 %v6217
        %6282 = vmatmul.mubr.bf16.gmra.mrb[0].mxu0 %v5601
        %v6283 = vpop.f32.mrb[0].mxu0
        %v6284 = vadd.f32 0.0, %v6283
        %v6285 = vpop.f32.mrb[0].mxu0
        %v6286 = vadd.f32 0.0, %v6285
        %v6287 = vpop.f32.mrb[0].mxu0
        %v6288 = vadd.f32 0.0, %v6287
        %v6289 = vpop.f32.mrb[0].mxu0
        %v6290 = vadd.f32 0.0, %v6289
        %6291 = vdwg.mxu0
        %v6292 = vadd.f32 %v6024, %v6254
        %v6293 = vadd.f32 %v6026, %v6256
        %v6294 = vadd.f32 %v6028, %v6258
        %v6295 = vadd.f32 %v6030, %v6260
        %v6296 = vadd.f32 %v6034, %v6264
        %v6297 = vadd.f32 %v6036, %v6266
        %v6298 = vadd.f32 %v6038, %v6268
        %v6299 = vadd.f32 %v6040, %v6270
        %v6300 = vadd.f32 %v6044, %v6274
        %v6301 = vadd.f32 %v6046, %v6276
        %v6302 = vadd.f32 %v6048, %v6278
        %v6303 = vadd.f32 %v6050, %v6280
        %v6304 = vadd.f32 %v6054, %v6284
        %v6305 = vadd.f32 %v6056, %v6286
        %v6306 = vadd.f32 %v6058, %v6288
        %v6307 = vadd.f32 %v6060, %v6290
        %v6308 = vld [vmem:[%s9] sm:$0x3]
        %v6310 = vlaneseq
        %v6311 = vshrl.u32 %v6310, 7
        %v6312 = vsub.s32 0, %v6311
        %v6313 = vrot.slane %v6308, %v6312
        %v6314 = vlaneseq
        %v6315 = vshrl.u32 %v6314, 7
        %v6316 = vsub.s32 1, %v6315
        %v6317 = vrot.slane %v6308, %v6316
        %v6320 = vmul.f32 %v6292, %v6313
        %v6321 = vmul.f32 %v6293, %v6317
        %v6322 = vmul.f32 %v6294, %v6313
        %v6323 = vmul.f32 %v6295, %v6317
        %v6324 = vmul.f32 %v6296, %v6313
        %v6325 = vmul.f32 %v6297, %v6317
        %v6326 = vmul.f32 %v6298, %v6313
        %v6327 = vmul.f32 %v6299, %v6317
        %v6328 = vmul.f32 %v6300, %v6313
        %v6329 = vmul.f32 %v6301, %v6317
        %v6330 = vmul.f32 %v6302, %v6313
        %v6331 = vmul.f32 %v6303, %v6317
        %v6332 = vmul.f32 %v6304, %v6313
        %v6333 = vmul.f32 %v6305, %v6317
        %v6334 = vmul.f32 %v6306, %v6313
        %v6335 = vmul.f32 %v6307, %v6317
        %v6336 = vld [vmem:[%s10] sm:$0x3]
        %v6338 = vlaneseq
        %v6339 = vshrl.u32 %v6338, 7
        %v6340 = vsub.s32 0, %v6339
        %v6341 = vrot.slane %v6336, %v6340
        %v6342 = vlaneseq
        %v6343 = vshrl.u32 %v6342, 7
        %v6344 = vsub.s32 1, %v6343
        %v6345 = vrot.slane %v6336, %v6344
        %v6348 = vadd.f32 %v6320, %v6341
        %v6349 = vadd.f32 %v6321, %v6345
        %v6350 = vadd.f32 %v6322, %v6341
        %v6351 = vadd.f32 %v6323, %v6345
        %v6352 = vadd.f32 %v6324, %v6341
        %v6353 = vadd.f32 %v6325, %v6345
        %v6354 = vadd.f32 %v6326, %v6341
        %v6355 = vadd.f32 %v6327, %v6345
        %v6356 = vadd.f32 %v6328, %v6341
        %v6357 = vadd.f32 %v6329, %v6345
        %v6358 = vadd.f32 %v6330, %v6341
        %v6359 = vadd.f32 %v6331, %v6345
        %v6360 = vadd.f32 %v6332, %v6341
        %v6361 = vadd.f32 %v6333, %v6345
        %v6362 = vadd.f32 %v6334, %v6341
        %v6363 = vadd.f32 %v6335, %v6345
        %v6364 = vmax.f32 %v6348, 0.0
        %v6365 = vmax.f32 %v6349, 0.0
        %v6366 = vmax.f32 %v6350, 0.0
        %v6367 = vmax.f32 %v6351, 0.0
        %v6368 = vmax.f32 %v6352, 0.0
        %v6369 = vmax.f32 %v6353, 0.0
        %v6370 = vmax.f32 %v6354, 0.0
        %v6371 = vmax.f32 %v6355, 0.0
        %v6372 = vmax.f32 %v6356, 0.0
        %v6373 = vmax.f32 %v6357, 0.0
        %v6374 = vmax.f32 %v6358, 0.0
        %v6375 = vmax.f32 %v6359, 0.0
        %v6376 = vmax.f32 %v6360, 0.0
        %v6377 = vmax.f32 %v6361, 0.0
        %v6378 = vmax.f32 %v6362, 0.0
        %v6379 = vmax.f32 %v6363, 0.0
        %v6380 = vpack.c.bf16 %v6366, %v6364
        %v6381 = vpack.c.bf16 %v6367, %v6365
        %v6382 = vpack.c.bf16 %v6370, %v6368
        %v6383 = vpack.c.bf16 %v6371, %v6369
        %v6384 = vpack.c.bf16 %v6374, %v6372
        %v6385 = vpack.c.bf16 %v6375, %v6373
        %v6386 = vpack.c.bf16 %v6378, %v6376
        %v6387 = vpack.c.bf16 %v6379, %v6377
        %s6388 = scalar_lea.vmem %s7, 64
        %v6389 = vld [vmem:[%s6388] sm:$0xf]
        %v6390 = vld [vmem:[%s6388 + $0x4] sm:$0xf]
        %v6391 = vld [vmem:[%s6388 + $0x8] sm:$0xf]
        %v6392 = vld [vmem:[%s6388 + $0xc] sm:$0xf]
        %v6393 = vld [vmem:[%s6388 + $0x10] sm:$0xf]
        %v6394 = vld [vmem:[%s6388 + $0x14] sm:$0xf]
        %v6395 = vld [vmem:[%s6388 + $0x18] sm:$0xf]
        %v6396 = vld [vmem:[%s6388 + $0x1c] sm:$0xf]
        %v6405 = vunpack.c.l.b16 %v6389
        %v6406 = vunpack.c.l.b16 %v6390
        %v6407 = vunpack.c.l.b16 %v6391
        %v6408 = vunpack.c.l.b16 %v6392
        %v6409 = vunpack.c.l.b16 %v6393
        %v6410 = vunpack.c.l.b16 %v6394
        %v6411 = vunpack.c.l.b16 %v6395
        %v6412 = vunpack.c.l.b16 %v6396
        %v6413 = vpack.c.b16 %v6406, %v6405
        %v6414 = vpack.c.b16 %v6408, %v6407
        %v6415 = vpack.c.b16 %v6410, %v6409
        %v6416 = vpack.c.b16 %v6412, %v6411
        %v6418 = vsel %vm5387, %v6413, 0
        %v6421 = vsel %vm5387, %v6414, 0
        %v6424 = vsel %vm5387, %v6415, 0
        %v6427 = vsel %vm5387, %v6416, 0
        %6429 = vmatprep.subr.bf16.mxu0 %v6381
        %6430 = vmatpush1.bf16.msra.mxu0 %v6380
        %6431 = vmatprep.subr.bf16.mxu0 %v6383
        %6432 = vmatpush1.bf16.msra.mxu0 %v6382
        %6433 = vmatprep.subr.bf16.mxu0 %v6385
        %6434 = vmatpush1.bf16.msra.mxu0 %v6384
        %6435 = vmatprep.subr.bf16.mxu0 %v6387
        %6436 = vmatpush1.bf16.msra.mxu0 %v6386
        %6437 = vmatprep.subr.bf16.mxu0 0
        %6438 = vmatpush1.bf16.msra.mxu0 0
        %6439 = vmatprep.subr.bf16.mxu0 0
        %6440 = vmatpush1.bf16.msra.mxu0 0
        %6441 = vmatprep.subr.bf16.mxu0 0
        %6442 = vmatpush1.bf16.msra.mxu0 0
        %6443 = vmatprep.subr.bf16.mxu0 0
        %6444 = vmatpush1.bf16.msra.mxu0 0
        %6445 = vmatprep.subr.bf16.mxu0 0
        %6446 = vmatpush1.bf16.msra.mxu0 0
        %6447 = vmatprep.subr.bf16.mxu0 0
        %6448 = vmatpush1.bf16.msra.mxu0 0
        %6449 = vmatprep.subr.bf16.mxu0 0
        %6450 = vmatpush1.bf16.msra.mxu0 0
        %6451 = vmatprep.subr.bf16.mxu0 0
        %6452 = vmatpush1.bf16.msra.mxu0 0
        %6453 = vmatprep.subr.bf16.mxu0 0
        %6454 = vmatpush1.bf16.msra.mxu0 0
        %6455 = vmatprep.subr.bf16.mxu0 0
        %6456 = vmatpush1.bf16.msra.mxu0 0
        %6457 = vmatprep.subr.bf16.mxu0 0
        %6458 = vmatpush1.bf16.msra.mxu0 0
        %6459 = vmatprep.subr.bf16.mxu0 0
        %6460 = vmatpush1.bf16.msra.mxu0 0
        %6461 = vmatprep.mubr.bf16.mxu0 0
        %6462 = vmatmul.mubr.bf16.gmra.mrb[0].mxu0 %v6418
        %v6463 = vpop.f32.mrb[0].mxu0
        %v6464 = vadd.f32 0.0, %v6463
        %v6465 = vpop.f32.mrb[0].mxu0
        %v6466 = vadd.f32 0.0, %v6465
        %v6467 = vpop.f32.mrb[0].mxu0
        %v6468 = vadd.f32 0.0, %v6467
        %v6469 = vpop.f32.mrb[0].mxu0
        %v6470 = vadd.f32 0.0, %v6469
        %6471 = vmatprep.mubr.bf16.mxu0 0
        %6472 = vmatmul.mubr.bf16.gmra.mrb[0].mxu0 %v6421
        %v6473 = vpop.f32.mrb[0].mxu0
        %v6474 = vadd.f32 0.0, %v6473
        %v6475 = vpop.f32.mrb[0].mxu0
        %v6476 = vadd.f32 0.0, %v6475
        %v6477 = vpop.f32.mrb[0].mxu0
        %v6478 = vadd.f32 0.0, %v6477
        %v6479 = vpop.f32.mrb[0].mxu0
        %v6480 = vadd.f32 0.0, %v6479
        %6481 = vmatprep.mubr.bf16.mxu0 0
        %6482 = vmatmul.mubr.bf16.gmra.mrb[0].mxu0 %v6424
        %v6483 = vpop.f32.mrb[0].mxu0
        %v6484 = vadd.f32 0.0, %v6483
        %v6485 = vpop.f32.mrb[0].mxu0
        %v6486 = vadd.f32 0.0, %v6485
        %v6487 = vpop.f32.mrb[0].mxu0
        %v6488 = vadd.f32 0.0, %v6487
        %v6489 = vpop.f32.mrb[0].mxu0
        %v6490 = vadd.f32 0.0, %v6489
        %6491 = vmatprep.mubr.bf16.mxu0 0
        %6492 = vmatmul.mubr.bf16.gmra.mrb[0].mxu0 %v6427
        %v6493 = vpop.f32.mrb[0].mxu0
        %v6494 = vadd.f32 0.0, %v6493
        %v6495 = vpop.f32.mrb[0].mxu0
        %v6496 = vadd.f32 0.0, %v6495
        %v6497 = vpop.f32.mrb[0].mxu0
        %v6498 = vadd.f32 0.0, %v6497
        %v6499 = vpop.f32.mrb[0].mxu0
        %v6500 = vadd.f32 0.0, %v6499
        %6501 = vdwg.mxu0
        %v6502 = vpack.c.bf16 %v6468, %v6464
        %v6503 = vpack.c.bf16 %v6470, %v6466
        %v6504 = vpack.c.bf16 %v6478, %v6474
        %v6505 = vpack.c.bf16 %v6480, %v6476
        %v6506 = vpack.c.bf16 %v6488, %v6484
        %v6507 = vpack.c.bf16 %v6490, %v6486
        %v6508 = vpack.c.bf16 %v6498, %v6494
        %v6509 = vpack.c.bf16 %v6500, %v6496
        %s6510 = scalar_lea.vmem %s7, 96
        %v6511 = vld [vmem:[%s6510] sm:$0xf]
        %v6512 = vld [vmem:[%s6510 + $0x4] sm:$0xf]
        %v6513 = vld [vmem:[%s6510 + $0x8] sm:$0xf]
        %v6514 = vld [vmem:[%s6510 + $0xc] sm:$0xf]
        %v6515 = vld [vmem:[%s6510 + $0x10] sm:$0xf]
        %v6516 = vld [vmem:[%s6510 + $0x14] sm:$0xf]
        %v6517 = vld [vmem:[%s6510 + $0x18] sm:$0xf]
        %v6518 = vld [vmem:[%s6510 + $0x1c] sm:$0xf]
        %v6527 = vunpack.c.l.b16 %v6511
        %v6528 = vunpack.c.l.b16 %v6512
        %v6529 = vunpack.c.l.b16 %v6513
        %v6530 = vunpack.c.l.b16 %v6514
        %v6531 = vunpack.c.l.b16 %v6515
        %v6532 = vunpack.c.l.b16 %v6516
        %v6533 = vunpack.c.l.b16 %v6517
        %v6534 = vunpack.c.l.b16 %v6518
        %v6535 = vpack.c.b16 %v6528, %v6527
        %v6536 = vpack.c.b16 %v6530, %v6529
        %v6537 = vpack.c.b16 %v6532, %v6531
        %v6538 = vpack.c.b16 %v6534, %v6533
        %v6540 = vsel %vm5387, %v6535, 0
        %v6543 = vsel %vm5387, %v6536, 0
        %v6546 = vsel %vm5387, %v6537, 0
        %v6549 = vsel %vm5387, %v6538, 0
        %6551 = vmatprep.subr.bf16.mxu0 %v6381
        %6552 = vmatpush1.bf16.msra.mxu0 %v6380
        %6553 = vmatprep.subr.bf16.mxu0 %v6383
        %6554 = vmatpush1.bf16.msra.mxu0 %v6382
        %6555 = vmatprep.subr.bf16.mxu0 %v6385
        %6556 = vmatpush1.bf16.msra.mxu0 %v6384
        %6557 = vmatprep.subr.bf16.mxu0 %v6387
        %6558 = vmatpush1.bf16.msra.mxu0 %v6386
        %6559 = vmatprep.subr.bf16.mxu0 0
        %6560 = vmatpush1.bf16.msra.mxu0 0
        %6561 = vmatprep.subr.bf16.mxu0 0
        %6562 = vmatpush1.bf16.msra.mxu0 0
        %6563 = vmatprep.subr.bf16.mxu0 0
        %6564 = vmatpush1.bf16.msra.mxu0 0
        %6565 = vmatprep.subr.bf16.mxu0 0
        %6566 = vmatpush1.bf16.msra.mxu0 0
        %6567 = vmatprep.subr.bf16.mxu0 0
        %6568 = vmatpush1.bf16.msra.mxu0 0
        %6569 = vmatprep.subr.bf16.mxu0 0
        %6570 = vmatpush1.bf16.msra.mxu0 0
        %6571 = vmatprep.subr.bf16.mxu0 0
        %6572 = vmatpush1.bf16.msra.mxu0 0
        %6573 = vmatprep.subr.bf16.mxu0 0
        %6574 = vmatpush1.bf16.msra.mxu0 0
        %6575 = vmatprep.subr.bf16.mxu0 0
        %6576 = vmatpush1.bf16.msra.mxu0 0
        %6577 = vmatprep.subr.bf16.mxu0 0
        %6578 = vmatpush1.bf16.msra.mxu0 0
        %6579 = vmatprep.subr.bf16.mxu0 0
        %6580 = vmatpush1.bf16.msra.mxu0 0
        %6581 = vmatprep.subr.bf16.mxu0 0
        %6582 = vmatpush1.bf16.msra.mxu0 0
        %6583 = vmatprep.mubr.bf16.mxu0 0
        %6584 = vmatmul.mubr.bf16.gmra.mrb[0].mxu0 %v6540
        %v6585 = vpop.f32.mrb[0].mxu0
        %v6586 = vadd.f32 0.0, %v6585
        %v6587 = vpop.f32.mrb[0].mxu0
        %v6588 = vadd.f32 0.0, %v6587
        %v6589 = vpop.f32.mrb[0].mxu0
        %v6590 = vadd.f32 0.0, %v6589
        %v6591 = vpop.f32.mrb[0].mxu0
        %v6592 = vadd.f32 0.0, %v6591
        %6593 = vmatprep.mubr.bf16.mxu0 0
        %6594 = vmatmul.mubr.bf16.gmra.mrb[0].mxu0 %v6543
        %v6595 = vpop.f32.mrb[0].mxu0
        %v6596 = vadd.f32 0.0, %v6595
        %v6597 = vpop.f32.mrb[0].mxu0
        %v6598 = vadd.f32 0.0, %v6597
        %v6599 = vpop.f32.mrb[0].mxu0
        %v6600 = vadd.f32 0.0, %v6599
        %v6601 = vpop.f32.mrb[0].mxu0
        %v6602 = vadd.f32 0.0, %v6601
        %6603 = vmatprep.mubr.bf16.mxu0 0
        %6604 = vmatmul.mubr.bf16.gmra.mrb[0].mxu0 %v6546
        %v6605 = vpop.f32.mrb[0].mxu0
        %v6606 = vadd.f32 0.0, %v6605
        %v6607 = vpop.f32.mrb[0].mxu0
        %v6608 = vadd.f32 0.0, %v6607
        %v6609 = vpop.f32.mrb[0].mxu0
        %v6610 = vadd.f32 0.0, %v6609
        %v6611 = vpop.f32.mrb[0].mxu0
        %v6612 = vadd.f32 0.0, %v6611
        %6613 = vmatprep.mubr.bf16.mxu0 0
        %6614 = vmatmul.mubr.bf16.gmra.mrb[0].mxu0 %v6549
        %v6615 = vpop.f32.mrb[0].mxu0
        %v6616 = vadd.f32 0.0, %v6615
        %v6617 = vpop.f32.mrb[0].mxu0
        %v6618 = vadd.f32 0.0, %v6617
        %v6619 = vpop.f32.mrb[0].mxu0
        %v6620 = vadd.f32 0.0, %v6619
        %v6621 = vpop.f32.mrb[0].mxu0
        %v6622 = vadd.f32 0.0, %v6621
        %6623 = vdwg.mxu0
        %v6624 = vpack.c.bf16 %v6590, %v6586
        %v6625 = vpack.c.bf16 %v6592, %v6588
        %v6626 = vpack.c.bf16 %v6600, %v6596
        %v6627 = vpack.c.bf16 %v6602, %v6598
        %v6628 = vpack.c.bf16 %v6610, %v6606
        %v6629 = vpack.c.bf16 %v6612, %v6608
        %v6630 = vpack.c.bf16 %v6620, %v6616
        %v6631 = vpack.c.bf16 %v6622, %v6618
        %v6632 = vld [vmem:[%s11] sm:$0xff]
        %v6633 = vld [vmem:[%s11 + $0x8] sm:$0xff]
        %v6634 = vld [vmem:[%s11 + $0x10] sm:$0xff]
        %v6635 = vld [vmem:[%s11 + $0x18] sm:$0xff]
        %v6636 = vld [vmem:[%s11 + $0x20] sm:$0xff]
        %v6637 = vld [vmem:[%s11 + $0x28] sm:$0xff]
        %v6638 = vld [vmem:[%s11 + $0x30] sm:$0xff]
        %v6639 = vld [vmem:[%s11 + $0x38] sm:$0xff]
        %v6640 = vld [vmem:[%s11 + $0x40] sm:$0xff]
        %v6641 = vld [vmem:[%s11 + $0x48] sm:$0xff]
        %v6642 = vld [vmem:[%s11 + $0x50] sm:$0xff]
        %v6643 = vld [vmem:[%s11 + $0x58] sm:$0xff]
        %v6644 = vld [vmem:[%s11 + $0x60] sm:$0xff]
        %v6645 = vld [vmem:[%s11 + $0x68] sm:$0xff]
        %v6646 = vld [vmem:[%s11 + $0x70] sm:$0xff]
        %v6647 = vld [vmem:[%s11 + $0x78] sm:$0xff]
        %v6648 = vld [vmem:[%s11 + $0x80] sm:$0xff]
        %v6649 = vld [vmem:[%s11 + $0x88] sm:$0xff]
        %v6650 = vld [vmem:[%s11 + $0x90] sm:$0xff]
        %v6651 = vld [vmem:[%s11 + $0x98] sm:$0xff]
        %v6652 = vld [vmem:[%s11 + $0xa0] sm:$0xff]
        %v6653 = vld [vmem:[%s11 + $0xa8] sm:$0xff]
        %v6654 = vld [vmem:[%s11 + $0xb0] sm:$0xff]
        %v6655 = vld [vmem:[%s11 + $0xb8] sm:$0xff]
        %v6656 = vld [vmem:[%s11 + $0xc0] sm:$0xff]
        %v6657 = vld [vmem:[%s11 + $0xc8] sm:$0xff]
        %v6658 = vld [vmem:[%s11 + $0xd0] sm:$0xff]
        %v6659 = vld [vmem:[%s11 + $0xd8] sm:$0xff]
        %s6660 = scalar_lea.vmem %s11, 224
        %v6661 = vld [vmem:[%s6660] sm:$0xff]
        %v6662 = vld [vmem:[%s6660 + $0x8] sm:$0xff]
        %v6663 = vld [vmem:[%s6660 + $0x10] sm:$0xff]
        %v6664 = vld [vmem:[%s6660 + $0x18] sm:$0xff]
        %v6665 = vld [vmem:[%s6660 + $0x20] sm:$0xff]
        %v6666 = vld [vmem:[%s6660 + $0x28] sm:$0xff]
        %v6667 = vld [vmem:[%s6660 + $0x30] sm:$0xff]
        %v6668 = vld [vmem:[%s6660 + $0x38] sm:$0xff]
        %v6669 = vld [vmem:[%s6660 + $0x40] sm:$0xff]
        %v6670 = vld [vmem:[%s6660 + $0x48] sm:$0xff]
        %v6671 = vld [vmem:[%s6660 + $0x50] sm:$0xff]
        %v6672 = vld [vmem:[%s6660 + $0x58] sm:$0xff]
        %v6673 = vld [vmem:[%s6660 + $0x60] sm:$0xff]
        %v6674 = vld [vmem:[%s6660 + $0x68] sm:$0xff]
        %v6675 = vld [vmem:[%s6660 + $0x70] sm:$0xff]
        %v6676 = vld [vmem:[%s6660 + $0x78] sm:$0xff]
        %v6677 = vld [vmem:[%s6660 + $0x80] sm:$0xff]
        %v6678 = vld [vmem:[%s6660 + $0x88] sm:$0xff]
        %v6679 = vld [vmem:[%s6660 + $0x90] sm:$0xff]
        %v6680 = vld [vmem:[%s6660 + $0x98] sm:$0xff]
        %v6681 = vld [vmem:[%s6660 + $0xa0] sm:$0xff]
        %v6682 = vld [vmem:[%s6660 + $0xa8] sm:$0xff]
        %v6683 = vld [vmem:[%s6660 + $0xb0] sm:$0xff]
        %v6684 = vld [vmem:[%s6660 + $0xb8] sm:$0xff]
        %v6685 = vld [vmem:[%s6660 + $0xc0] sm:$0xff]
        %v6686 = vld [vmem:[%s6660 + $0xc8] sm:$0xff]
        %v6687 = vld [vmem:[%s6660 + $0xd0] sm:$0xff]
        %v6688 = vld [vmem:[%s6660 + $0xd8] sm:$0xff]
        %v6717 = vunpack.c.l.b16 %v6661
        %v6718 = vunpack.c.h.b16 %v6661
        %v6719 = vunpack.c.l.b16 %v6662
        %v6720 = vunpack.c.h.b16 %v6662
        %v6721 = vunpack.c.l.b16 %v6663
        %v6722 = vunpack.c.h.b16 %v6663
        %v6723 = vunpack.c.l.b16 %v6664
        %v6724 = vunpack.c.h.b16 %v6664
        %v6725 = vunpack.c.l.b16 %v6665
        %v6726 = vunpack.c.h.b16 %v6665
        %v6727 = vunpack.c.l.b16 %v6666
        %v6728 = vunpack.c.h.b16 %v6666
        %v6729 = vunpack.c.l.b16 %v6667
        %v6730 = vunpack.c.h.b16 %v6667
        %v6731 = vunpack.c.l.b16 %v6668
        %v6732 = vunpack.c.h.b16 %v6668
        %v6733 = vunpack.c.l.b16 %v6669
        %v6734 = vunpack.c.h.b16 %v6669
        %v6735 = vunpack.c.l.b16 %v6670
        %v6736 = vunpack.c.h.b16 %v6670
        %v6737 = vunpack.c.l.b16 %v6671
        %v6738 = vunpack.c.h.b16 %v6671
        %v6739 = vunpack.c.l.b16 %v6672
        %v6740 = vunpack.c.h.b16 %v6672
        %v6741 = vunpack.c.l.b16 %v6673
        %v6742 = vunpack.c.h.b16 %v6673
        %v6743 = vunpack.c.l.b16 %v6674
        %v6744 = vunpack.c.h.b16 %v6674
        %v6745 = vunpack.c.l.b16 %v6675
        %v6746 = vunpack.c.h.b16 %v6675
        %v6747 = vunpack.c.l.b16 %v6676
        %v6748 = vunpack.c.h.b16 %v6676
        %v6749 = vunpack.c.l.b16 %v6677
        %v6750 = vunpack.c.h.b16 %v6677
        %v6751 = vunpack.c.l.b16 %v6678
        %v6752 = vunpack.c.h.b16 %v6678
        %v6753 = vunpack.c.l.b16 %v6679
        %v6754 = vunpack.c.h.b16 %v6679
        %v6755 = vunpack.c.l.b16 %v6680
        %v6756 = vunpack.c.h.b16 %v6680
        %v6757 = vunpack.c.l.b16 %v6681
        %v6758 = vunpack.c.h.b16 %v6681
        %v6759 = vunpack.c.l.b16 %v6682
        %v6760 = vunpack.c.h.b16 %v6682
        %v6761 = vunpack.c.l.b16 %v6683
        %v6762 = vunpack.c.h.b16 %v6683
        %v6763 = vunpack.c.l.b16 %v6684
        %v6764 = vunpack.c.h.b16 %v6684
        %v6765 = vunpack.c.l.b16 %v6685
        %v6766 = vunpack.c.h.b16 %v6685
        %v6767 = vunpack.c.l.b16 %v6686
        %v6768 = vunpack.c.h.b16 %v6686
        %v6769 = vunpack.c.l.b16 %v6687
        %v6770 = vunpack.c.h.b16 %v6687
        %v6771 = vunpack.c.l.b16 %v6688
        %v6772 = vunpack.c.h.b16 %v6688
        %v6773 = vpack.c.b16 %v6719, %v6717
        %v6774 = vpack.c.b16 %v6720, %v6718
        %v6775 = vpack.c.b16 %v6723, %v6721
        %v6776 = vpack.c.b16 %v6724, %v6722
        %v6777 = vpack.c.b16 %v6727, %v6725
        %v6778 = vpack.c.b16 %v6728, %v6726
        %v6779 = vpack.c.b16 %v6731, %v6729
        %v6780 = vpack.c.b16 %v6732, %v6730
        %v6781 = vpack.c.b16 %v6735, %v6733
        %v6782 = vpack.c.b16 %v6736, %v6734
        %v6783 = vpack.c.b16 %v6739, %v6737
        %v6784 = vpack.c.b16 %v6740, %v6738
        %v6785 = vpack.c.b16 %v6743, %v6741
        %v6786 = vpack.c.b16 %v6744, %v6742
        %v6787 = vpack.c.b16 %v6747, %v6745
        %v6788 = vpack.c.b16 %v6748, %v6746
        %v6789 = vpack.c.b16 %v6751, %v6749
        %v6790 = vpack.c.b16 %v6752, %v6750
        %v6791 = vpack.c.b16 %v6755, %v6753
        %v6792 = vpack.c.b16 %v6756, %v6754
        %v6793 = vpack.c.b16 %v6759, %v6757
        %v6794 = vpack.c.b16 %v6760, %v6758
        %v6795 = vpack.c.b16 %v6763, %v6761
        %v6796 = vpack.c.b16 %v6764, %v6762
        %v6797 = vpack.c.b16 %v6767, %v6765
        %v6798 = vpack.c.b16 %v6768, %v6766
        %v6799 = vpack.c.b16 %v6771, %v6769
        %v6800 = vpack.c.b16 %v6772, %v6770
        %vm6829 = vcmask 785408
        %v6831 = vsel %vm6829, %v6381, 0
        %v6834 = vsel %vm6829, %v6383, 0
        %v6837 = vsel %vm6829, %v6385, 0
        %v6840 = vsel %vm6829, %v6387, 0
        %6842 = vmatprep.subr.bf16.mxu0 %v6774
        %6843 = vmatpush1.bf16.msra.mxu0 %v6773
        %6844 = vmatprep.subr.bf16.mxu0 %v6776
        %6845 = vmatpush1.bf16.msra.mxu0 %v6775
        %6846 = vmatprep.subr.bf16.mxu0 %v6778
        %6847 = vmatpush1.bf16.msra.mxu0 %v6777
        %6848 = vmatprep.subr.bf16.mxu0 %v6780
        %6849 = vmatpush1.bf16.msra.mxu0 %v6779
        %6850 = vmatprep.subr.bf16.mxu0 %v6782
        %6851 = vmatpush1.bf16.msra.mxu0 %v6781
        %6852 = vmatprep.subr.bf16.mxu0 %v6784
        %6853 = vmatpush1.bf16.msra.mxu0 %v6783
        %6854 = vmatprep.subr.bf16.mxu0 %v6786
        %6855 = vmatpush1.bf16.msra.mxu0 %v6785
        %6856 = vmatprep.subr.bf16.mxu0 %v6788
        %6857 = vmatpush1.bf16.msra.mxu0 %v6787
        %6858 = vmatprep.subr.bf16.mxu0 %v6790
        %6859 = vmatpush1.bf16.msra.mxu0 %v6789
        %6860 = vmatprep.subr.bf16.mxu0 %v6792
        %6861 = vmatpush1.bf16.msra.mxu0 %v6791
        %6862 = vmatprep.subr.bf16.mxu0 %v6794
        %6863 = vmatpush1.bf16.msra.mxu0 %v6793
        %6864 = vmatprep.subr.bf16.mxu0 %v6796
        %6865 = vmatpush1.bf16.msra.mxu0 %v6795
        %6866 = vmatprep.subr.bf16.mxu0 %v6798
        %6867 = vmatpush1.bf16.msra.mxu0 %v6797
        %6868 = vmatprep.subr.bf16.mxu0 %v6800
        %6869 = vmatpush1.bf16.msra.mxu0 %v6799
        %6870 = vmatprep.subr.bf16.mxu0 0
        %6871 = vmatpush1.bf16.msra.mxu0 0
        %6872 = vmatprep.subr.bf16.mxu0 0
        %6873 = vmatpush1.bf16.msra.mxu0 0
        %6874 = vmatprep.mubr.bf16.mxu0 %v6831
        %6875 = vmatmul.mubr.bf16.gmra.mrb[0].mxu0 %v6380
        %v6876 = vpop.f32.mrb[0].mxu0
        %v6877 = vadd.f32 0.0, %v6876
        %v6878 = vpop.f32.mrb[0].mxu0
        %v6879 = vadd.f32 0.0, %v6878
        %v6880 = vpop.f32.mrb[0].mxu0
        %v6881 = vadd.f32 0.0, %v6880
        %v6882 = vpop.f32.mrb[0].mxu0
        %v6883 = vadd.f32 0.0, %v6882
        %6884 = vmatprep.mubr.bf16.mxu0 %v6834
        %6885 = vmatmul.mubr.bf16.gmra.mrb[0].mxu0 %v6382
        %v6886 = vpop.f32.mrb[0].mxu0
        %v6887 = vadd.f32 0.0, %v6886
        %v6888 = vpop.f32.mrb[0].mxu0
        %v6889 = vadd.f32 0.0, %v6888
        %v6890 = vpop.f32.mrb[0].mxu0
        %v6891 = vadd.f32 0.0, %v6890
        %v6892 = vpop.f32.mrb[0].mxu0
        %v6893 = vadd.f32 0.0, %v6892
        %6894 = vmatprep.mubr.bf16.mxu0 %v6837
        %6895 = vmatmul.mubr.bf16.gmra.mrb[0].mxu0 %v6384
        %v6896 = vpop.f32.mrb[0].mxu0
        %v6897 = vadd.f32 0.0, %v6896
        %v6898 = vpop.f32.mrb[0].mxu0
        %v6899 = vadd.f32 0.0, %v6898
        %v6900 = vpop.f32.mrb[0].mxu0
        %v6901 = vadd.f32 0.0, %v6900
        %v6902 = vpop.f32.mrb[0].mxu0
        %v6903 = vadd.f32 0.0, %v6902
        %6904 = vmatprep.mubr.bf16.mxu0 %v6840
        %6905 = vmatmul.mubr.bf16.gmra.mrb[0].mxu0 %v6386
        %v6906 = vpop.f32.mrb[0].mxu0
        %v6907 = vadd.f32 0.0, %v6906
        %v6908 = vpop.f32.mrb[0].mxu0
        %v6909 = vadd.f32 0.0, %v6908
        %v6910 = vpop.f32.mrb[0].mxu0
        %v6911 = vadd.f32 0.0, %v6910
        %v6912 = vpop.f32.mrb[0].mxu0
        %v6913 = vadd.f32 0.0, %v6912
        %6914 = vdwg.mxu0
        %v6943 = vunpack.c.l.b16 %v6632
        %v6944 = vunpack.c.h.b16 %v6632
        %v6945 = vunpack.c.l.b16 %v6633
        %v6946 = vunpack.c.h.b16 %v6633
        %v6947 = vunpack.c.l.b16 %v6634
        %v6948 = vunpack.c.h.b16 %v6634
        %v6949 = vunpack.c.l.b16 %v6635
        %v6950 = vunpack.c.h.b16 %v6635
        %v6951 = vunpack.c.l.b16 %v6636
        %v6952 = vunpack.c.h.b16 %v6636
        %v6953 = vunpack.c.l.b16 %v6637
        %v6954 = vunpack.c.h.b16 %v6637
        %v6955 = vunpack.c.l.b16 %v6638
        %v6956 = vunpack.c.h.b16 %v6638
        %v6957 = vunpack.c.l.b16 %v6639
        %v6958 = vunpack.c.h.b16 %v6639
        %v6959 = vunpack.c.l.b16 %v6640
        %v6960 = vunpack.c.h.b16 %v6640
        %v6961 = vunpack.c.l.b16 %v6641
        %v6962 = vunpack.c.h.b16 %v6641
        %v6963 = vunpack.c.l.b16 %v6642
        %v6964 = vunpack.c.h.b16 %v6642
        %v6965 = vunpack.c.l.b16 %v6643
        %v6966 = vunpack.c.h.b16 %v6643
        %v6967 = vunpack.c.l.b16 %v6644
        %v6968 = vunpack.c.h.b16 %v6644
        %v6969 = vunpack.c.l.b16 %v6645
        %v6970 = vunpack.c.h.b16 %v6645
        %v6971 = vunpack.c.l.b16 %v6646
        %v6972 = vunpack.c.h.b16 %v6646
        %v6973 = vunpack.c.l.b16 %v6647
        %v6974 = vunpack.c.h.b16 %v6647
        %v6975 = vunpack.c.l.b16 %v6648
        %v6976 = vunpack.c.h.b16 %v6648
        %v6977 = vunpack.c.l.b16 %v6649
        %v6978 = vunpack.c.h.b16 %v6649
        %v6979 = vunpack.c.l.b16 %v6650
        %v6980 = vunpack.c.h.b16 %v6650
        %v6981 = vunpack.c.l.b16 %v6651
        %v6982 = vunpack.c.h.b16 %v6651
        %v6983 = vunpack.c.l.b16 %v6652
        %v6984 = vunpack.c.h.b16 %v6652
        %v6985 = vunpack.c.l.b16 %v6653
        %v6986 = vunpack.c.h.b16 %v6653
        %v6987 = vunpack.c.l.b16 %v6654
        %v6988 = vunpack.c.h.b16 %v6654
        %v6989 = vunpack.c.l.b16 %v6655
        %v6990 = vunpack.c.h.b16 %v6655
        %v6991 = vunpack.c.l.b16 %v6656
        %v6992 = vunpack.c.h.b16 %v6656
        %v6993 = vunpack.c.l.b16 %v6657
        %v6994 = vunpack.c.h.b16 %v6657
        %v6995 = vunpack.c.l.b16 %v6658
        %v6996 = vunpack.c.h.b16 %v6658
        %v6997 = vunpack.c.l.b16 %v6659
        %v6998 = vunpack.c.h.b16 %v6659
        %v6999 = vpack.c.b16 %v6945, %v6943
        %v7000 = vpack.c.b16 %v6946, %v6944
        %v7001 = vpack.c.b16 %v6949, %v6947
        %v7002 = vpack.c.b16 %v6950, %v6948
        %v7003 = vpack.c.b16 %v6953, %v6951
        %v7004 = vpack.c.b16 %v6954, %v6952
        %v7005 = vpack.c.b16 %v6957, %v6955
        %v7006 = vpack.c.b16 %v6958, %v6956
        %v7007 = vpack.c.b16 %v6961, %v6959
        %v7008 = vpack.c.b16 %v6962, %v6960
        %v7009 = vpack.c.b16 %v6965, %v6963
        %v7010 = vpack.c.b16 %v6966, %v6964
        %v7011 = vpack.c.b16 %v6969, %v6967
        %v7012 = vpack.c.b16 %v6970, %v6968
        %v7013 = vpack.c.b16 %v6973, %v6971
        %v7014 = vpack.c.b16 %v6974, %v6972
        %v7015 = vpack.c.b16 %v6977, %v6975
        %v7016 = vpack.c.b16 %v6978, %v6976
        %v7017 = vpack.c.b16 %v6981, %v6979
        %v7018 = vpack.c.b16 %v6982, %v6980
        %v7019 = vpack.c.b16 %v6985, %v6983
        %v7020 = vpack.c.b16 %v6986, %v6984
        %v7021 = vpack.c.b16 %v6989, %v6987
        %v7022 = vpack.c.b16 %v6990, %v6988
        %v7023 = vpack.c.b16 %v6993, %v6991
        %v7024 = vpack.c.b16 %v6994, %v6992
        %v7025 = vpack.c.b16 %v6997, %v6995
        %v7026 = vpack.c.b16 %v6998, %v6996
        %v7056 = vsel %vm6829, %v6503, 0
        %v7059 = vsel %vm6829, %v6505, 0
        %v7062 = vsel %vm6829, %v6507, 0
        %v7065 = vsel %vm6829, %v6509, 0
        %7067 = vmatprep.subr.bf16.mxu0 %v7000
        %7068 = vmatpush1.bf16.msra.mxu0 %v6999
        %7069 = vmatprep.subr.bf16.mxu0 %v7002
        %7070 = vmatpush1.bf16.msra.mxu0 %v7001
        %7071 = vmatprep.subr.bf16.mxu0 %v7004
        %7072 = vmatpush1.bf16.msra.mxu0 %v7003
        %7073 = vmatprep.subr.bf16.mxu0 %v7006
        %7074 = vmatpush1.bf16.msra.mxu0 %v7005
        %7075 = vmatprep.subr.bf16.mxu0 %v7008
        %7076 = vmatpush1.bf16.msra.mxu0 %v7007
        %7077 = vmatprep.subr.bf16.mxu0 %v7010
        %7078 = vmatpush1.bf16.msra.mxu0 %v7009
        %7079 = vmatprep.subr.bf16.mxu0 %v7012
        %7080 = vmatpush1.bf16.msra.mxu0 %v7011
        %7081 = vmatprep.subr.bf16.mxu0 %v7014
        %7082 = vmatpush1.bf16.msra.mxu0 %v7013
        %7083 = vmatprep.subr.bf16.mxu0 %v7016
        %7084 = vmatpush1.bf16.msra.mxu0 %v7015
        %7085 = vmatprep.subr.bf16.mxu0 %v7018
        %7086 = vmatpush1.bf16.msra.mxu0 %v7017
        %7087 = vmatprep.subr.bf16.mxu0 %v7020
        %7088 = vmatpush1.bf16.msra.mxu0 %v7019
        %7089 = vmatprep.subr.bf16.mxu0 %v7022
        %7090 = vmatpush1.bf16.msra.mxu0 %v7021
        %7091 = vmatprep.subr.bf16.mxu0 %v7024
        %7092 = vmatpush1.bf16.msra.mxu0 %v7023
        %7093 = vmatprep.subr.bf16.mxu0 %v7026
        %7094 = vmatpush1.bf16.msra.mxu0 %v7025
        %7095 = vmatprep.subr.bf16.mxu0 0
        %7096 = vmatpush1.bf16.msra.mxu0 0
        %7097 = vmatprep.subr.bf16.mxu0 0
        %7098 = vmatpush1.bf16.msra.mxu0 0
        %7099 = vmatprep.mubr.bf16.mxu0 %v7056
        %7100 = vmatmul.mubr.bf16.gmra.mrb[0].mxu0 %v6502
        %v7101 = vpop.f32.mrb[0].mxu0
        %v7102 = vadd.f32 %v6877, %v7101
        %v7103 = vpop.f32.mrb[0].mxu0
        %v7104 = vadd.f32 %v6879, %v7103
        %v7105 = vpop.f32.mrb[0].mxu0
        %v7106 = vadd.f32 %v6881, %v7105
        %v7107 = vpop.f32.mrb[0].mxu0
        %v7108 = vadd.f32 %v6883, %v7107
        %7109 = vmatprep.mubr.bf16.mxu0 %v7059
        %7110 = vmatmul.mubr.bf16.gmra.mrb[0].mxu0 %v6504
        %v7111 = vpop.f32.mrb[0].mxu0
        %v7112 = vadd.f32 %v6887, %v7111
        %v7113 = vpop.f32.mrb[0].mxu0
        %v7114 = vadd.f32 %v6889, %v7113
        %v7115 = vpop.f32.mrb[0].mxu0
        %v7116 = vadd.f32 %v6891, %v7115
        %v7117 = vpop.f32.mrb[0].mxu0
        %v7118 = vadd.f32 %v6893, %v7117
        %7119 = vmatprep.mubr.bf16.mxu0 %v7062
        %7120 = vmatmul.mubr.bf16.gmra.mrb[0].mxu0 %v6506
        %v7121 = vpop.f32.mrb[0].mxu0
        %v7122 = vadd.f32 %v6897, %v7121
        %v7123 = vpop.f32.mrb[0].mxu0
        %v7124 = vadd.f32 %v6899, %v7123
        %v7125 = vpop.f32.mrb[0].mxu0
        %v7126 = vadd.f32 %v6901, %v7125
        %v7127 = vpop.f32.mrb[0].mxu0
        %v7128 = vadd.f32 %v6903, %v7127
        %7129 = vmatprep.mubr.bf16.mxu0 %v7065
        %7130 = vmatmul.mubr.bf16.gmra.mrb[0].mxu0 %v6508
        %v7131 = vpop.f32.mrb[0].mxu0
        %v7132 = vadd.f32 %v6907, %v7131
        %v7133 = vpop.f32.mrb[0].mxu0
        %v7134 = vadd.f32 %v6909, %v7133
        %v7135 = vpop.f32.mrb[0].mxu0
        %v7136 = vadd.f32 %v6911, %v7135
        %v7137 = vpop.f32.mrb[0].mxu0
        %v7138 = vadd.f32 %v6913, %v7137
        %7139 = vdwg.mxu0
        %s7140 = scalar_lea.vmem %s11, 448
        %v7141 = vld [vmem:[%s7140] sm:$0xff]
        %v7142 = vld [vmem:[%s7140 + $0x8] sm:$0xff]
        %v7143 = vld [vmem:[%s7140 + $0x10] sm:$0xff]
        %v7144 = vld [vmem:[%s7140 + $0x18] sm:$0xff]
        %v7145 = vld [vmem:[%s7140 + $0x20] sm:$0xff]
        %v7146 = vld [vmem:[%s7140 + $0x28] sm:$0xff]
        %v7147 = vld [vmem:[%s7140 + $0x30] sm:$0xff]
        %v7148 = vld [vmem:[%s7140 + $0x38] sm:$0xff]
        %v7149 = vld [vmem:[%s7140 + $0x40] sm:$0xff]
        %v7150 = vld [vmem:[%s7140 + $0x48] sm:$0xff]
        %v7151 = vld [vmem:[%s7140 + $0x50] sm:$0xff]
        %v7152 = vld [vmem:[%s7140 + $0x58] sm:$0xff]
        %v7153 = vld [vmem:[%s7140 + $0x60] sm:$0xff]
        %v7154 = vld [vmem:[%s7140 + $0x68] sm:$0xff]
        %v7155 = vld [vmem:[%s7140 + $0x70] sm:$0xff]
        %v7156 = vld [vmem:[%s7140 + $0x78] sm:$0xff]
        %v7157 = vld [vmem:[%s7140 + $0x80] sm:$0xff]
        %v7158 = vld [vmem:[%s7140 + $0x88] sm:$0xff]
        %v7159 = vld [vmem:[%s7140 + $0x90] sm:$0xff]
        %v7160 = vld [vmem:[%s7140 + $0x98] sm:$0xff]
        %v7161 = vld [vmem:[%s7140 + $0xa0] sm:$0xff]
        %v7162 = vld [vmem:[%s7140 + $0xa8] sm:$0xff]
        %v7163 = vld [vmem:[%s7140 + $0xb0] sm:$0xff]
        %v7164 = vld [vmem:[%s7140 + $0xb8] sm:$0xff]
        %v7165 = vld [vmem:[%s7140 + $0xc0] sm:$0xff]
        %v7166 = vld [vmem:[%s7140 + $0xc8] sm:$0xff]
        %v7167 = vld [vmem:[%s7140 + $0xd0] sm:$0xff]
        %v7168 = vld [vmem:[%s7140 + $0xd8] sm:$0xff]
        %v7197 = vunpack.c.l.b16 %v7141
        %v7198 = vunpack.c.h.b16 %v7141
        %v7199 = vunpack.c.l.b16 %v7142
        %v7200 = vunpack.c.h.b16 %v7142
        %v7201 = vunpack.c.l.b16 %v7143
        %v7202 = vunpack.c.h.b16 %v7143
        %v7203 = vunpack.c.l.b16 %v7144
        %v7204 = vunpack.c.h.b16 %v7144
        %v7205 = vunpack.c.l.b16 %v7145
        %v7206 = vunpack.c.h.b16 %v7145
        %v7207 = vunpack.c.l.b16 %v7146
        %v7208 = vunpack.c.h.b16 %v7146
        %v7209 = vunpack.c.l.b16 %v7147
        %v7210 = vunpack.c.h.b16 %v7147
        %v7211 = vunpack.c.l.b16 %v7148
        %v7212 = vunpack.c.h.b16 %v7148
        %v7213 = vunpack.c.l.b16 %v7149
        %v7214 = vunpack.c.h.b16 %v7149
        %v7215 = vunpack.c.l.b16 %v7150
        %v7216 = vunpack.c.h.b16 %v7150
        %v7217 = vunpack.c.l.b16 %v7151
        %v7218 = vunpack.c.h.b16 %v7151
        %v7219 = vunpack.c.l.b16 %v7152
        %v7220 = vunpack.c.h.b16 %v7152
        %v7221 = vunpack.c.l.b16 %v7153
        %v7222 = vunpack.c.h.b16 %v7153
        %v7223 = vunpack.c.l.b16 %v7154
        %v7224 = vunpack.c.h.b16 %v7154
        %v7225 = vunpack.c.l.b16 %v7155
        %v7226 = vunpack.c.h.b16 %v7155
        %v7227 = vunpack.c.l.b16 %v7156
        %v7228 = vunpack.c.h.b16 %v7156
        %v7229 = vunpack.c.l.b16 %v7157
        %v7230 = vunpack.c.h.b16 %v7157
        %v7231 = vunpack.c.l.b16 %v7158
        %v7232 = vunpack.c.h.b16 %v7158
        %v7233 = vunpack.c.l.b16 %v7159
        %v7234 = vunpack.c.h.b16 %v7159
        %v7235 = vunpack.c.l.b16 %v7160
        %v7236 = vunpack.c.h.b16 %v7160
        %v7237 = vunpack.c.l.b16 %v7161
        %v7238 = vunpack.c.h.b16 %v7161
        %v7239 = vunpack.c.l.b16 %v7162
        %v7240 = vunpack.c.h.b16 %v7162
        %v7241 = vunpack.c.l.b16 %v7163
        %v7242 = vunpack.c.h.b16 %v7163
        %v7243 = vunpack.c.l.b16 %v7164
        %v7244 = vunpack.c.h.b16 %v7164
        %v7245 = vunpack.c.l.b16 %v7165
        %v7246 = vunpack.c.h.b16 %v7165
        %v7247 = vunpack.c.l.b16 %v7166
        %v7248 = vunpack.c.h.b16 %v7166
        %v7249 = vunpack.c.l.b16 %v7167
        %v7250 = vunpack.c.h.b16 %v7167
        %v7251 = vunpack.c.l.b16 %v7168
        %v7252 = vunpack.c.h.b16 %v7168
        %v7253 = vpack.c.b16 %v7199, %v7197
        %v7254 = vpack.c.b16 %v7200, %v7198
        %v7255 = vpack.c.b16 %v7203, %v7201
        %v7256 = vpack.c.b16 %v7204, %v7202
        %v7257 = vpack.c.b16 %v7207, %v7205
        %v7258 = vpack.c.b16 %v7208, %v7206
        %v7259 = vpack.c.b16 %v7211, %v7209
        %v7260 = vpack.c.b16 %v7212, %v7210
        %v7261 = vpack.c.b16 %v7215, %v7213
        %v7262 = vpack.c.b16 %v7216, %v7214
        %v7263 = vpack.c.b16 %v7219, %v7217
        %v7264 = vpack.c.b16 %v7220, %v7218
        %v7265 = vpack.c.b16 %v7223, %v7221
        %v7266 = vpack.c.b16 %v7224, %v7222
        %v7267 = vpack.c.b16 %v7227, %v7225
        %v7268 = vpack.c.b16 %v7228, %v7226
        %v7269 = vpack.c.b16 %v7231, %v7229
        %v7270 = vpack.c.b16 %v7232, %v7230
        %v7271 = vpack.c.b16 %v7235, %v7233
        %v7272 = vpack.c.b16 %v7236, %v7234
        %v7273 = vpack.c.b16 %v7239, %v7237
        %v7274 = vpack.c.b16 %v7240, %v7238
        %v7275 = vpack.c.b16 %v7243, %v7241
        %v7276 = vpack.c.b16 %v7244, %v7242
        %v7277 = vpack.c.b16 %v7247, %v7245
        %v7278 = vpack.c.b16 %v7248, %v7246
        %v7279 = vpack.c.b16 %v7251, %v7249
        %v7280 = vpack.c.b16 %v7252, %v7250
        %v7310 = vsel %vm6829, %v6625, 0
        %v7313 = vsel %vm6829, %v6627, 0
        %v7316 = vsel %vm6829, %v6629, 0
        %v7319 = vsel %vm6829, %v6631, 0
        %7321 = vmatprep.subr.bf16.mxu0 %v7254
        %7322 = vmatpush1.bf16.msra.mxu0 %v7253
        %7323 = vmatprep.subr.bf16.mxu0 %v7256
        %7324 = vmatpush1.bf16.msra.mxu0 %v7255
        %7325 = vmatprep.subr.bf16.mxu0 %v7258
        %7326 = vmatpush1.bf16.msra.mxu0 %v7257
        %7327 = vmatprep.subr.bf16.mxu0 %v7260
        %7328 = vmatpush1.bf16.msra.mxu0 %v7259
        %7329 = vmatprep.subr.bf16.mxu0 %v7262
        %7330 = vmatpush1.bf16.msra.mxu0 %v7261
        %7331 = vmatprep.subr.bf16.mxu0 %v7264
        %7332 = vmatpush1.bf16.msra.mxu0 %v7263
        %7333 = vmatprep.subr.bf16.mxu0 %v7266
        %7334 = vmatpush1.bf16.msra.mxu0 %v7265
        %7335 = vmatprep.subr.bf16.mxu0 %v7268
        %7336 = vmatpush1.bf16.msra.mxu0 %v7267
        %7337 = vmatprep.subr.bf16.mxu0 %v7270
        %7338 = vmatpush1.bf16.msra.mxu0 %v7269
        %7339 = vmatprep.subr.bf16.mxu0 %v7272
        %7340 = vmatpush1.bf16.msra.mxu0 %v7271
        %7341 = vmatprep.subr.bf16.mxu0 %v7274
        %7342 = vmatpush1.bf16.msra.mxu0 %v7273
        %7343 = vmatprep.subr.bf16.mxu0 %v7276
        %7344 = vmatpush1.bf16.msra.mxu0 %v7275
        %7345 = vmatprep.subr.bf16.mxu0 %v7278
        %7346 = vmatpush1.bf16.msra.mxu0 %v7277
        %7347 = vmatprep.subr.bf16.mxu0 %v7280
        %7348 = vmatpush1.bf16.msra.mxu0 %v7279
        %7349 = vmatprep.subr.bf16.mxu0 0
        %7350 = vmatpush1.bf16.msra.mxu0 0
        %7351 = vmatprep.subr.bf16.mxu0 0
        %7352 = vmatpush1.bf16.msra.mxu0 0
        %7353 = vmatprep.mubr.bf16.mxu0 %v7310
        %7354 = vmatmul.mubr.bf16.gmra.mrb[0].mxu0 %v6624
        %v7355 = vpop.f32.mrb[0].mxu0
        %v7356 = vadd.f32 0.0, %v7355
        %v7357 = vpop.f32.mrb[0].mxu0
        %v7358 = vadd.f32 0.0, %v7357
        %v7359 = vpop.f32.mrb[0].mxu0
        %v7360 = vadd.f32 0.0, %v7359
        %v7361 = vpop.f32.mrb[0].mxu0
        %v7362 = vadd.f32 0.0, %v7361
        %7363 = vmatprep.mubr.bf16.mxu0 %v7313
        %7364 = vmatmul.mubr.bf16.gmra.mrb[0].mxu0 %v6626
        %v7365 = vpop.f32.mrb[0].mxu0
        %v7366 = vadd.f32 0.0, %v7365
        %v7367 = vpop.f32.mrb[0].mxu0
        %v7368 = vadd.f32 0.0, %v7367
        %v7369 = vpop.f32.mrb[0].mxu0
        %v7370 = vadd.f32 0.0, %v7369
        %v7371 = vpop.f32.mrb[0].mxu0
        %v7372 = vadd.f32 0.0, %v7371
        %7373 = vmatprep.mubr.bf16.mxu0 %v7316
        %7374 = vmatmul.mubr.bf16.gmra.mrb[0].mxu0 %v6628
        %v7375 = vpop.f32.mrb[0].mxu0
        %v7376 = vadd.f32 0.0, %v7375
        %v7377 = vpop.f32.mrb[0].mxu0
        %v7378 = vadd.f32 0.0, %v7377
        %v7379 = vpop.f32.mrb[0].mxu0
        %v7380 = vadd.f32 0.0, %v7379
        %v7381 = vpop.f32.mrb[0].mxu0
        %v7382 = vadd.f32 0.0, %v7381
        %7383 = vmatprep.mubr.bf16.mxu0 %v7319
        %7384 = vmatmul.mubr.bf16.gmra.mrb[0].mxu0 %v6630
        %v7385 = vpop.f32.mrb[0].mxu0
        %v7386 = vadd.f32 0.0, %v7385
        %v7387 = vpop.f32.mrb[0].mxu0
        %v7388 = vadd.f32 0.0, %v7387
        %v7389 = vpop.f32.mrb[0].mxu0
        %v7390 = vadd.f32 0.0, %v7389
        %v7391 = vpop.f32.mrb[0].mxu0
        %v7392 = vadd.f32 0.0, %v7391
        %7393 = vdwg.mxu0
        %v7394 = vadd.f32 %v7102, %v7356
        %v7395 = vadd.f32 %v7104, %v7358
        %v7396 = vadd.f32 %v7106, %v7360
        %v7397 = vadd.f32 %v7108, %v7362
        %v7398 = vadd.f32 %v7112, %v7366
        %v7399 = vadd.f32 %v7114, %v7368
        %v7400 = vadd.f32 %v7116, %v7370
        %v7401 = vadd.f32 %v7118, %v7372
        %v7402 = vadd.f32 %v7122, %v7376
        %v7403 = vadd.f32 %v7124, %v7378
        %v7404 = vadd.f32 %v7126, %v7380
        %v7405 = vadd.f32 %v7128, %v7382
        %v7406 = vadd.f32 %v7132, %v7386
        %v7407 = vadd.f32 %v7134, %v7388
        %v7408 = vadd.f32 %v7136, %v7390
        %v7409 = vadd.f32 %v7138, %v7392
        %v7410 = vld [vmem:[%s12] sm:$0x3]
        %v7412 = vlaneseq
        %v7413 = vshrl.u32 %v7412, 7
        %v7414 = vsub.s32 0, %v7413
        %v7415 = vrot.slane %v7410, %v7414
        %v7416 = vlaneseq
        %v7417 = vshrl.u32 %v7416, 7
        %v7418 = vsub.s32 1, %v7417
        %v7419 = vrot.slane %v7410, %v7418
        %v7422 = vmul.f32 %v7394, %v7415
        %v7423 = vmul.f32 %v7395, %v7419
        %v7424 = vmul.f32 %v7396, %v7415
        %v7425 = vmul.f32 %v7397, %v7419
        %v7426 = vmul.f32 %v7398, %v7415
        %v7427 = vmul.f32 %v7399, %v7419
        %v7428 = vmul.f32 %v7400, %v7415
        %v7429 = vmul.f32 %v7401, %v7419
        %v7430 = vmul.f32 %v7402, %v7415
        %v7431 = vmul.f32 %v7403, %v7419
        %v7432 = vmul.f32 %v7404, %v7415
        %v7433 = vmul.f32 %v7405, %v7419
        %v7434 = vmul.f32 %v7406, %v7415
        %v7435 = vmul.f32 %v7407, %v7419
        %v7436 = vmul.f32 %v7408, %v7415
        %v7437 = vmul.f32 %v7409, %v7419
        %v7438 = vld [vmem:[%s13] sm:$0x3]
        %v7440 = vlaneseq
        %v7441 = vshrl.u32 %v7440, 7
        %v7442 = vsub.s32 0, %v7441
        %v7443 = vrot.slane %v7438, %v7442
        %v7444 = vlaneseq
        %v7445 = vshrl.u32 %v7444, 7
        %v7446 = vsub.s32 1, %v7445
        %v7447 = vrot.slane %v7438, %v7446
        %v7450 = vadd.f32 %v7422, %v7443
        %v7451 = vadd.f32 %v7423, %v7447
        %v7452 = vadd.f32 %v7424, %v7443
        %v7453 = vadd.f32 %v7425, %v7447
        %v7454 = vadd.f32 %v7426, %v7443
        %v7455 = vadd.f32 %v7427, %v7447
        %v7456 = vadd.f32 %v7428, %v7443
        %v7457 = vadd.f32 %v7429, %v7447
        %v7458 = vadd.f32 %v7430, %v7443
        %v7459 = vadd.f32 %v7431, %v7447
        %v7460 = vadd.f32 %v7432, %v7443
        %v7461 = vadd.f32 %v7433, %v7447
        %v7462 = vadd.f32 %v7434, %v7443
        %v7463 = vadd.f32 %v7435, %v7447
        %v7464 = vadd.f32 %v7436, %v7443
        %v7465 = vadd.f32 %v7437, %v7447
        %v7466 = vmax.f32 %v7450, 0.0
        %v7467 = vmax.f32 %v7451, 0.0
        %v7468 = vmax.f32 %v7452, 0.0
        %v7469 = vmax.f32 %v7453, 0.0
        %v7470 = vmax.f32 %v7454, 0.0
        %v7471 = vmax.f32 %v7455, 0.0
        %v7472 = vmax.f32 %v7456, 0.0
        %v7473 = vmax.f32 %v7457, 0.0
        %v7474 = vmax.f32 %v7458, 0.0
        %v7475 = vmax.f32 %v7459, 0.0
        %v7476 = vmax.f32 %v7460, 0.0
        %v7477 = vmax.f32 %v7461, 0.0
        %v7478 = vmax.f32 %v7462, 0.0
        %v7479 = vmax.f32 %v7463, 0.0
        %v7480 = vmax.f32 %v7464, 0.0
        %v7481 = vmax.f32 %v7465, 0.0
        %v7482 = vpack.c.bf16 %v7468, %v7466
        %v7483 = vpack.c.bf16 %v7469, %v7467
        %v7484 = vpack.c.bf16 %v7472, %v7470
        %v7485 = vpack.c.bf16 %v7473, %v7471
        %v7486 = vpack.c.bf16 %v7476, %v7474
        %v7487 = vpack.c.bf16 %v7477, %v7475
        %v7488 = vpack.c.bf16 %v7480, %v7478
        %v7489 = vpack.c.bf16 %v7481, %v7479
        %v7490 = vld [vmem:[%s14] sm:$0xff]
        %v7491 = vld [vmem:[%s14 + $0x8] sm:$0xff]
        %v7492 = vld [vmem:[%s14 + $0x10] sm:$0xff]
        %v7493 = vld [vmem:[%s14 + $0x18] sm:$0xff]
        %v7494 = vld [vmem:[%s14 + $0x20] sm:$0xff]
        %v7495 = vld [vmem:[%s14 + $0x28] sm:$0xff]
        %v7496 = vld [vmem:[%s14 + $0x30] sm:$0xff]
        %v7497 = vld [vmem:[%s14 + $0x38] sm:$0xff]
        %v7498 = vld [vmem:[%s14 + $0x40] sm:$0xf]
        %v7499 = vld [vmem:[%s14 + $0x44] sm:$0xff]
        %v7500 = vld [vmem:[%s14 + $0x4c] sm:$0xff]
        %v7501 = vld [vmem:[%s14 + $0x54] sm:$0xff]
        %v7502 = vld [vmem:[%s14 + $0x5c] sm:$0xff]
        %v7503 = vld [vmem:[%s14 + $0x64] sm:$0xff]
        %v7504 = vld [vmem:[%s14 + $0x6c] sm:$0xff]
        %v7505 = vld [vmem:[%s14 + $0x74] sm:$0xff]
        %v7506 = vld [vmem:[%s14 + $0x7c] sm:$0xff]
        %v7507 = vld [vmem:[%s14 + $0x84] sm:$0xf]
        %v7508 = vld [vmem:[%s14 + $0x88] sm:$0xff]
        %v7509 = vld [vmem:[%s14 + $0x90] sm:$0xff]
        %v7510 = vld [vmem:[%s14 + $0x98] sm:$0xff]
        %v7511 = vld [vmem:[%s14 + $0xa0] sm:$0xff]
        %v7512 = vld [vmem:[%s14 + $0xa8] sm:$0xff]
        %v7513 = vld [vmem:[%s14 + $0xb0] sm:$0xff]
        %v7514 = vld [vmem:[%s14 + $0xb8] sm:$0xff]
        %v7515 = vld [vmem:[%s14 + $0xc0] sm:$0xff]
        %v7516 = vld [vmem:[%s14 + $0xc8] sm:$0xf]
        %v7517 = vld [vmem:[%s14 + $0xcc] sm:$0xff]
        %v7518 = vld [vmem:[%s14 + $0xd4] sm:$0xff]
        %v7519 = vld [vmem:[%s14 + $0xdc] sm:$0xff]
        %v7520 = vld [vmem:[%s14 + $0xe4] sm:$0xff]
        %v7521 = vld [vmem:[%s14 + $0xec] sm:$0xff]
        %v7522 = vld [vmem:[%s14 + $0xf4] sm:$0xff]
        %v7523 = vld [vmem:[%s14 + $0xfc] sm:$0xff]
        %v7524 = vld [vmem:[%s14 + $0x104] sm:$0xff]
        %v7525 = vld [vmem:[%s14 + $0x10c] sm:$0xf]
        %v7526 = vld [vmem:[%s14 + $0x110] sm:$0xff]
        %v7527 = vld [vmem:[%s14 + $0x118] sm:$0xff]
        %v7528 = vld [vmem:[%s14 + $0x120] sm:$0xff]
        %v7529 = vld [vmem:[%s14 + $0x128] sm:$0xff]
        %v7530 = vld [vmem:[%s14 + $0x130] sm:$0xff]
        %v7531 = vld [vmem:[%s14 + $0x138] sm:$0xff]
        %v7532 = vld [vmem:[%s14 + $0x140] sm:$0xff]
        %v7533 = vld [vmem:[%s14 + $0x148] sm:$0xff]
        %v7534 = vld [vmem:[%s14 + $0x150] sm:$0xf]
        %v7535 = vld [vmem:[%s14 + $0x154] sm:$0xff]
        %v7536 = vld [vmem:[%s14 + $0x15c] sm:$0xff]
        %v7537 = vld [vmem:[%s14 + $0x164] sm:$0xff]
        %v7538 = vld [vmem:[%s14 + $0x16c] sm:$0xff]
        %v7539 = vld [vmem:[%s14 + $0x174] sm:$0xff]
        %v7540 = vld [vmem:[%s14 + $0x17c] sm:$0xff]
        %v7541 = vld [vmem:[%s14 + $0x184] sm:$0xff]
        %v7542 = vld [vmem:[%s14 + $0x18c] sm:$0xff]
        %v7543 = vld [vmem:[%s14 + $0x194] sm:$0xf]
        %v7544 = vld [vmem:[%s14 + $0x198] sm:$0xff]
        %v7545 = vld [vmem:[%s14 + $0x1a0] sm:$0xff]
        %v7546 = vld [vmem:[%s14 + $0x1a8] sm:$0xff]
        %v7547 = vld [vmem:[%s14 + $0x1b0] sm:$0xff]
        %v7548 = vld [vmem:[%s14 + $0x1b8] sm:$0xff]
        %v7549 = vld [vmem:[%s14 + $0x1c0] sm:$0xff]
        %v7550 = vld [vmem:[%s14 + $0x1c8] sm:$0xff]
        %v7551 = vld [vmem:[%s14 + $0x1d0] sm:$0xff]
        %v7552 = vld [vmem:[%s14 + $0x1d8] sm:$0xf]
        %v7553 = vld [vmem:[%s14 + $0x1dc] sm:$0xff]
        %v7554 = vld [vmem:[%s14 + $0x1e4] sm:$0xff]
        %v7555 = vld [vmem:[%s14 + $0x1ec] sm:$0xff]
        %v7556 = vld [vmem:[%s14 + $0x1f4] sm:$0xff]
        %v7557 = vld [vmem:[%s14 + $0x1fc] sm:$0xff]
        %v7558 = vld [vmem:[%s14 + $0x204] sm:$0xff]
        %v7559 = vld [vmem:[%s14 + $0x20c] sm:$0xff]
        %v7560 = vld [vmem:[%s14 + $0x214] sm:$0xff]
        %v7561 = vld [vmem:[%s14 + $0x21c] sm:$0xf]
        %v7562 = vld [vmem:[%s14 + $0x220] sm:$0xff]
        %v7563 = vld [vmem:[%s14 + $0x228] sm:$0xff]
        %v7564 = vld [vmem:[%s14 + $0x230] sm:$0xff]
        %v7565 = vld [vmem:[%s14 + $0x238] sm:$0xff]
        %v7566 = vld [vmem:[%s14 + $0x240] sm:$0xff]
        %v7567 = vld [vmem:[%s14 + $0x248] sm:$0xff]
        %v7568 = vld [vmem:[%s14 + $0x250] sm:$0xff]
        %v7569 = vld [vmem:[%s14 + $0x258] sm:$0xff]
        %v7570 = vld [vmem:[%s14 + $0x260] sm:$0xf]
        %v7571 = vld [vmem:[%s14 + $0x264] sm:$0xff]
        %v7572 = vld [vmem:[%s14 + $0x26c] sm:$0xff]
        %v7573 = vld [vmem:[%s14 + $0x274] sm:$0xff]
        %v7574 = vld [vmem:[%s14 + $0x27c] sm:$0xff]
        %v7575 = vld [vmem:[%s14 + $0x284] sm:$0xff]
        %v7576 = vld [vmem:[%s14 + $0x28c] sm:$0xff]
        %v7577 = vld [vmem:[%s14 + $0x294] sm:$0xff]
        %v7578 = vld [vmem:[%s14 + $0x29c] sm:$0xff]
        %v7579 = vld [vmem:[%s14 + $0x2a4] sm:$0xf]
        %v7580 = vld [vmem:[%s14 + $0x2a8] sm:$0xff]
        %v7581 = vld [vmem:[%s14 + $0x2b0] sm:$0xff]
        %v7582 = vld [vmem:[%s14 + $0x2b8] sm:$0xff]
        %v7583 = vld [vmem:[%s14 + $0x2c0] sm:$0xff]
        %v7584 = vld [vmem:[%s14 + $0x2c8] sm:$0xff]
        %v7585 = vld [vmem:[%s14 + $0x2d0] sm:$0xff]
        %v7586 = vld [vmem:[%s14 + $0x2d8] sm:$0xff]
        %v7587 = vld [vmem:[%s14 + $0x2e0] sm:$0xff]
        %v7588 = vld [vmem:[%s14 + $0x2e8] sm:$0xf]
        %v7589 = vld [vmem:[%s14 + $0x2ec] sm:$0xff]
        %v7590 = vld [vmem:[%s14 + $0x2f4] sm:$0xff]
        %v7591 = vld [vmem:[%s14 + $0x2fc] sm:$0xff]
        %v7592 = vld [vmem:[%s14 + $0x304] sm:$0xff]
        %v7593 = vld [vmem:[%s14 + $0x30c] sm:$0xff]
        %v7594 = vld [vmem:[%s14 + $0x314] sm:$0xff]
        %v7595 = vld [vmem:[%s14 + $0x31c] sm:$0xff]
        %v7596 = vld [vmem:[%s14 + $0x324] sm:$0xff]
        %v7597 = vld [vmem:[%s14 + $0x32c] sm:$0xf]
        %v7598 = vld [vmem:[%s14 + $0x330] sm:$0xff]
        %v7599 = vld [vmem:[%s14 + $0x338] sm:$0xff]
        %v7600 = vld [vmem:[%s14 + $0x340] sm:$0xff]
        %v7601 = vld [vmem:[%s14 + $0x348] sm:$0xff]
        %v7602 = vld [vmem:[%s14 + $0x350] sm:$0xff]
        %v7603 = vld [vmem:[%s14 + $0x358] sm:$0xff]
        %v7604 = vld [vmem:[%s14 + $0x360] sm:$0xff]
        %v7605 = vld [vmem:[%s14 + $0x368] sm:$0xff]
        %v7606 = vld [vmem:[%s14 + $0x370] sm:$0xf]
        %v7607 = vld [vmem:[%s14 + $0x374] sm:$0xff]
        %v7608 = vld [vmem:[%s14 + $0x37c] sm:$0xff]
        %v7609 = vld [vmem:[%s14 + $0x384] sm:$0xff]
        %v7610 = vld [vmem:[%s14 + $0x38c] sm:$0xff]
        %v7611 = vld [vmem:[%s14 + $0x394] sm:$0xff]
        %v7612 = vld [vmem:[%s14 + $0x39c] sm:$0xff]
        %v7613 = vld [vmem:[%s14 + $0x3a4] sm:$0xff]
        %v7614 = vld [vmem:[%s14 + $0x3ac] sm:$0xff]
        %v7615 = vld [vmem:[%s14 + $0x3b4] sm:$0xf]
        %v7616 = vld [vmem:[%s14 + $0x3b8] sm:$0xff]
        %v7617 = vld [vmem:[%s14 + $0x3c0] sm:$0xff]
        %v7618 = vld [vmem:[%s14 + $0x3c8] sm:$0xff]
        %v7619 = vld [vmem:[%s14 + $0x3d0] sm:$0xff]
        %v7620 = vld [vmem:[%s14 + $0x3d8] sm:$0xff]
        %v7621 = vld [vmem:[%s14 + $0x3e0] sm:$0xff]
        %v7622 = vld [vmem:[%s14 + $0x3e8] sm:$0xff]
        %v7623 = vld [vmem:[%s14 + $0x3f0] sm:$0xff]
        %v7624 = vld [vmem:[%s14 + $0x3f8] sm:$0xf]
        %v7625 = vld [vmem:[%s14 + $0x3fc] sm:$0xff]
        %v7626 = vld [vmem:[%s14 + $0x404] sm:$0xff]
        %v7627 = vld [vmem:[%s14 + $0x40c] sm:$0xff]
        %v7628 = vld [vmem:[%s14 + $0x414] sm:$0xff]
        %v7629 = vld [vmem:[%s14 + $0x41c] sm:$0xff]
        %v7630 = vld [vmem:[%s14 + $0x424] sm:$0xff]
        %v7631 = vld [vmem:[%s14 + $0x42c] sm:$0xff]
        %v7632 = vld [vmem:[%s14 + $0x434] sm:$0xff]
        %v7633 = vld [vmem:[%s14 + $0x43c] sm:$0xf]
        %v7634 = vld [vmem:[%s14 + $0x440] sm:$0xff]
        %v7635 = vld [vmem:[%s14 + $0x448] sm:$0xff]
        %v7636 = vld [vmem:[%s14 + $0x450] sm:$0xff]
        %v7637 = vld [vmem:[%s14 + $0x458] sm:$0xff]
        %v7638 = vld [vmem:[%s14 + $0x460] sm:$0xff]
        %v7639 = vld [vmem:[%s14 + $0x468] sm:$0xff]
        %v7640 = vld [vmem:[%s14 + $0x470] sm:$0xff]
        %v7641 = vld [vmem:[%s14 + $0x478] sm:$0xff]
        %v7642 = vld [vmem:[%s14 + $0x480] sm:$0xf]
        %v7643 = vld [vmem:[%s14 + $0x484] sm:$0xff]
        %v7644 = vld [vmem:[%s14 + $0x48c] sm:$0xff]
        %v7645 = vld [vmem:[%s14 + $0x494] sm:$0xff]
        %v7646 = vld [vmem:[%s14 + $0x49c] sm:$0xff]
        %v7647 = vld [vmem:[%s14 + $0x4a4] sm:$0xff]
        %v7648 = vld [vmem:[%s14 + $0x4ac] sm:$0xff]
        %v7649 = vld [vmem:[%s14 + $0x4b4] sm:$0xff]
        %v7650 = vld [vmem:[%s14 + $0x4bc] sm:$0xff]
        %v7651 = vld [vmem:[%s14 + $0x4c4] sm:$0xf]
        %v7652 = vld [vmem:[%s14 + $0x4c8] sm:$0xff]
        %v7653 = vld [vmem:[%s14 + $0x4d0] sm:$0xff]
        %v7654 = vld [vmem:[%s14 + $0x4d8] sm:$0xff]
        %v7655 = vld [vmem:[%s14 + $0x4e0] sm:$0xff]
        %v7656 = vld [vmem:[%s14 + $0x4e8] sm:$0xff]
        %v7657 = vld [vmem:[%s14 + $0x4f0] sm:$0xff]
        %v7658 = vld [vmem:[%s14 + $0x4f8] sm:$0xff]
        %v7659 = vld [vmem:[%s14 + $0x500] sm:$0xff]
        %v7660 = vld [vmem:[%s14 + $0x508] sm:$0xf]
        %v7661 = vld [vmem:[%s14 + $0x50c] sm:$0xff]
        %v7662 = vld [vmem:[%s14 + $0x514] sm:$0xff]
        %v7663 = vld [vmem:[%s14 + $0x51c] sm:$0xff]
        %v7664 = vld [vmem:[%s14 + $0x524] sm:$0xff]
        %v7665 = vld [vmem:[%s14 + $0x52c] sm:$0xff]
        %v7666 = vld [vmem:[%s14 + $0x534] sm:$0xff]
        %v7667 = vld [vmem:[%s14 + $0x53c] sm:$0xff]
        %v7668 = vld [vmem:[%s14 + $0x544] sm:$0xff]
        %v7669 = vld [vmem:[%s14 + $0x54c] sm:$0xf]
        %v7670 = vld [vmem:[%s14 + $0x550] sm:$0xff]
        %v7671 = vld [vmem:[%s14 + $0x558] sm:$0xff]
        %v7672 = vld [vmem:[%s14 + $0x560] sm:$0xff]
        %v7673 = vld [vmem:[%s14 + $0x568] sm:$0xff]
        %v7674 = vld [vmem:[%s14 + $0x570] sm:$0xff]
        %v7675 = vld [vmem:[%s14 + $0x578] sm:$0xff]
        %v7676 = vld [vmem:[%s14 + $0x580] sm:$0xff]
        %v7677 = vld [vmem:[%s14 + $0x588] sm:$0xff]
        %v7678 = vld [vmem:[%s14 + $0x590] sm:$0xf]
        %v7679 = vld [vmem:[%s14 + $0x594] sm:$0xff]
        %v7680 = vld [vmem:[%s14 + $0x59c] sm:$0xff]
        %v7681 = vld [vmem:[%s14 + $0x5a4] sm:$0xff]
        %v7682 = vld [vmem:[%s14 + $0x5ac] sm:$0xff]
        %v7683 = vld [vmem:[%s14 + $0x5b4] sm:$0xff]
        %v7684 = vld [vmem:[%s14 + $0x5bc] sm:$0xff]
        %v7685 = vld [vmem:[%s14 + $0x5c4] sm:$0xff]
        %v7686 = vld [vmem:[%s14 + $0x5cc] sm:$0xff]
        %v7687 = vld [vmem:[%s14 + $0x5d4] sm:$0xf]
        %v7688 = vld [vmem:[%s14 + $0x5d8] sm:$0xff]
        %v7689 = vld [vmem:[%s14 + $0x5e0] sm:$0xff]
        %v7690 = vld [vmem:[%s14 + $0x5e8] sm:$0xff]
        %v7691 = vld [vmem:[%s14 + $0x5f0] sm:$0xff]
        %v7692 = vld [vmem:[%s14 + $0x5f8] sm:$0xff]
        %v7693 = vld [vmem:[%s14 + $0x600] sm:$0xff]
        %v7694 = vld [vmem:[%s14 + $0x608] sm:$0xff]
        %v7695 = vld [vmem:[%s14 + $0x610] sm:$0xff]
        %v7696 = vld [vmem:[%s14 + $0x618] sm:$0xf]
        %v7697 = vld [vmem:[%s14 + $0x61c] sm:$0xff]
        %v7698 = vld [vmem:[%s14 + $0x624] sm:$0xff]
        %v7699 = vld [vmem:[%s14 + $0x62c] sm:$0xff]
        %v7700 = vld [vmem:[%s14 + $0x634] sm:$0xff]
        %v7701 = vld [vmem:[%s14 + $0x63c] sm:$0xff]
        %v7702 = vld [vmem:[%s14 + $0x644] sm:$0xff]
        %v7703 = vld [vmem:[%s14 + $0x64c] sm:$0xff]
        %v7704 = vld [vmem:[%s14 + $0x654] sm:$0xff]
        %v7705 = vld [vmem:[%s14 + $0x65c] sm:$0xf]
        %v7706 = vld [vmem:[%s15] sm:$0xff]
        %v7707 = vld [vmem:[%s15 + $0x8] sm:$0xff]
        %v7708 = vld [vmem:[%s15 + $0x10] sm:$0xff]
        %v7709 = vld [vmem:[%s15 + $0x18] sm:$0xff]
        %v7710 = vld [vmem:[%s15 + $0x20] sm:$0xff]
        %v7711 = vld [vmem:[%s15 + $0x28] sm:$0xff]
        %v7712 = vld [vmem:[%s15 + $0x30] sm:$0xff]
        %v7713 = vld [vmem:[%s15 + $0x38] sm:$0xff]
        %v7714 = vld [vmem:[%s15 + $0x40] sm:$0xf]
        %v7715 = vld [vmem:[%s15 + $0x44] sm:$0xff]
        %v7716 = vld [vmem:[%s15 + $0x4c] sm:$0xff]
        %v7717 = vld [vmem:[%s15 + $0x54] sm:$0xff]
        %v7718 = vld [vmem:[%s15 + $0x5c] sm:$0xff]
        %v7719 = vld [vmem:[%s15 + $0x64] sm:$0xff]
        %v7720 = vld [vmem:[%s15 + $0x6c] sm:$0xff]
        %v7721 = vld [vmem:[%s15 + $0x74] sm:$0xff]
        %v7722 = vld [vmem:[%s15 + $0x7c] sm:$0xff]
        %v7723 = vld [vmem:[%s15 + $0x84] sm:$0xf]
        %v7724 = vld [vmem:[%s15 + $0x88] sm:$0xff]
        %v7725 = vld [vmem:[%s15 + $0x90] sm:$0xff]
        %v7726 = vld [vmem:[%s15 + $0x98] sm:$0xff]
        %v7727 = vld [vmem:[%s15 + $0xa0] sm:$0xff]
        %v7728 = vld [vmem:[%s15 + $0xa8] sm:$0xff]
        %v7729 = vld [vmem:[%s15 + $0xb0] sm:$0xff]
        %v7730 = vld [vmem:[%s15 + $0xb8] sm:$0xff]
        %v7731 = vld [vmem:[%s15 + $0xc0] sm:$0xff]
        %v7732 = vld [vmem:[%s15 + $0xc8] sm:$0xf]
        %v7733 = vld [vmem:[%s15 + $0xcc] sm:$0xff]
        %v7734 = vld [vmem:[%s15 + $0xd4] sm:$0xff]
        %v7735 = vld [vmem:[%s15 + $0xdc] sm:$0xff]
        %v7736 = vld [vmem:[%s15 + $0xe4] sm:$0xff]
        %v7737 = vld [vmem:[%s15 + $0xec] sm:$0xff]
        %v7738 = vld [vmem:[%s15 + $0xf4] sm:$0xff]
        %v7739 = vld [vmem:[%s15 + $0xfc] sm:$0xff]
        %v7740 = vld [vmem:[%s15 + $0x104] sm:$0xff]
        %v7741 = vld [vmem:[%s15 + $0x10c] sm:$0xf]
        %v7742 = vld [vmem:[%s15 + $0x110] sm:$0xff]
        %v7743 = vld [vmem:[%s15 + $0x118] sm:$0xff]
        %v7744 = vld [vmem:[%s15 + $0x120] sm:$0xff]
        %v7745 = vld [vmem:[%s15 + $0x128] sm:$0xff]
        %v7746 = vld [vmem:[%s15 + $0x130] sm:$0xff]
        %v7747 = vld [vmem:[%s15 + $0x138] sm:$0xff]
        %v7748 = vld [vmem:[%s15 + $0x140] sm:$0xff]
        %v7749 = vld [vmem:[%s15 + $0x148] sm:$0xff]
        %v7750 = vld [vmem:[%s15 + $0x150] sm:$0xf]
        %v7751 = vld [vmem:[%s15 + $0x154] sm:$0xff]
        %v7752 = vld [vmem:[%s15 + $0x15c] sm:$0xff]
        %v7753 = vld [vmem:[%s15 + $0x164] sm:$0xff]
        %v7754 = vld [vmem:[%s15 + $0x16c] sm:$0xff]
        %v7755 = vld [vmem:[%s15 + $0x174] sm:$0xff]
        %v7756 = vld [vmem:[%s15 + $0x17c] sm:$0xff]
        %v7757 = vld [vmem:[%s15 + $0x184] sm:$0xff]
        %v7758 = vld [vmem:[%s15 + $0x18c] sm:$0xff]
        %v7759 = vld [vmem:[%s15 + $0x194] sm:$0xf]
        %v7760 = vld [vmem:[%s15 + $0x198] sm:$0xff]
        %v7761 = vld [vmem:[%s15 + $0x1a0] sm:$0xff]
        %v7762 = vld [vmem:[%s15 + $0x1a8] sm:$0xff]
        %v7763 = vld [vmem:[%s15 + $0x1b0] sm:$0xff]
        %v7764 = vld [vmem:[%s15 + $0x1b8] sm:$0xff]
        %v7765 = vld [vmem:[%s15 + $0x1c0] sm:$0xff]
        %v7766 = vld [vmem:[%s15 + $0x1c8] sm:$0xff]
        %v7767 = vld [vmem:[%s15 + $0x1d0] sm:$0xff]
        %v7768 = vld [vmem:[%s15 + $0x1d8] sm:$0xf]
        %v7769 = vld [vmem:[%s15 + $0x1dc] sm:$0xff]
        %v7770 = vld [vmem:[%s15 + $0x1e4] sm:$0xff]
        %v7771 = vld [vmem:[%s15 + $0x1ec] sm:$0xff]
        %v7772 = vld [vmem:[%s15 + $0x1f4] sm:$0xff]
        %v7773 = vld [vmem:[%s15 + $0x1fc] sm:$0xff]
        %v7774 = vld [vmem:[%s15 + $0x204] sm:$0xff]
        %v7775 = vld [vmem:[%s15 + $0x20c] sm:$0xff]
        %v7776 = vld [vmem:[%s15 + $0x214] sm:$0xff]
        %v7777 = vld [vmem:[%s15 + $0x21c] sm:$0xf]
        %v7778 = vld [vmem:[%s15 + $0x220] sm:$0xff]
        %v7779 = vld [vmem:[%s15 + $0x228] sm:$0xff]
        %v7780 = vld [vmem:[%s15 + $0x230] sm:$0xff]
        %v7781 = vld [vmem:[%s15 + $0x238] sm:$0xff]
        %v7782 = vld [vmem:[%s15 + $0x240] sm:$0xff]
        %v7783 = vld [vmem:[%s15 + $0x248] sm:$0xff]
        %v7784 = vld [vmem:[%s15 + $0x250] sm:$0xff]
        %v7785 = vld [vmem:[%s15 + $0x258] sm:$0xff]
        %v7786 = vld [vmem:[%s15 + $0x260] sm:$0xf]
        %v7787 = vld [vmem:[%s15 + $0x264] sm:$0xff]
        %v7788 = vld [vmem:[%s15 + $0x26c] sm:$0xff]
        %v7789 = vld [vmem:[%s15 + $0x274] sm:$0xff]
        %v7790 = vld [vmem:[%s15 + $0x27c] sm:$0xff]
        %v7791 = vld [vmem:[%s15 + $0x284] sm:$0xff]
        %v7792 = vld [vmem:[%s15 + $0x28c] sm:$0xff]
        %v7793 = vld [vmem:[%s15 + $0x294] sm:$0xff]
        %v7794 = vld [vmem:[%s15 + $0x29c] sm:$0xff]
        %v7795 = vld [vmem:[%s15 + $0x2a4] sm:$0xf]
        %v7796 = vld [vmem:[%s15 + $0x2a8] sm:$0xff]
        %v7797 = vld [vmem:[%s15 + $0x2b0] sm:$0xff]
        %v7798 = vld [vmem:[%s15 + $0x2b8] sm:$0xff]
        %v7799 = vld [vmem:[%s15 + $0x2c0] sm:$0xff]
        %v7800 = vld [vmem:[%s15 + $0x2c8] sm:$0xff]
        %v7801 = vld [vmem:[%s15 + $0x2d0] sm:$0xff]
        %v7802 = vld [vmem:[%s15 + $0x2d8] sm:$0xff]
        %v7803 = vld [vmem:[%s15 + $0x2e0] sm:$0xff]
        %v7804 = vld [vmem:[%s15 + $0x2e8] sm:$0xf]
        %v7805 = vld [vmem:[%s15 + $0x2ec] sm:$0xff]
        %v7806 = vld [vmem:[%s15 + $0x2f4] sm:$0xff]
        %v7807 = vld [vmem:[%s15 + $0x2fc] sm:$0xff]
        %v7808 = vld [vmem:[%s15 + $0x304] sm:$0xff]
        %v7809 = vld [vmem:[%s15 + $0x30c] sm:$0xff]
        %v7810 = vld [vmem:[%s15 + $0x314] sm:$0xff]
        %v7811 = vld [vmem:[%s15 + $0x31c] sm:$0xff]
        %v7812 = vld [vmem:[%s15 + $0x324] sm:$0xff]
        %v7813 = vld [vmem:[%s15 + $0x32c] sm:$0xf]
        %v7814 = vld [vmem:[%s15 + $0x330] sm:$0xff]
        %v7815 = vld [vmem:[%s15 + $0x338] sm:$0xff]
        %v7816 = vld [vmem:[%s15 + $0x340] sm:$0xff]
        %v7817 = vld [vmem:[%s15 + $0x348] sm:$0xff]
        %v7818 = vld [vmem:[%s15 + $0x350] sm:$0xff]
        %v7819 = vld [vmem:[%s15 + $0x358] sm:$0xff]
        %v7820 = vld [vmem:[%s15 + $0x360] sm:$0xff]
        %v7821 = vld [vmem:[%s15 + $0x368] sm:$0xff]
        %v7822 = vld [vmem:[%s15 + $0x370] sm:$0xf]
        %v7823 = vld [vmem:[%s15 + $0x374] sm:$0xff]
        %v7824 = vld [vmem:[%s15 + $0x37c] sm:$0xff]
        %v7825 = vld [vmem:[%s15 + $0x384] sm:$0xff]
        %v7826 = vld [vmem:[%s15 + $0x38c] sm:$0xff]
        %v7827 = vld [vmem:[%s15 + $0x394] sm:$0xff]
        %v7828 = vld [vmem:[%s15 + $0x39c] sm:$0xff]
        %v7829 = vld [vmem:[%s15 + $0x3a4] sm:$0xff]
        %v7830 = vld [vmem:[%s15 + $0x3ac] sm:$0xff]
        %v7831 = vld [vmem:[%s15 + $0x3b4] sm:$0xf]
        %v7832 = vld [vmem:[%s15 + $0x3b8] sm:$0xff]
        %v7833 = vld [vmem:[%s15 + $0x3c0] sm:$0xff]
        %v7834 = vld [vmem:[%s15 + $0x3c8] sm:$0xff]
        %v7835 = vld [vmem:[%s15 + $0x3d0] sm:$0xff]
        %v7836 = vld [vmem:[%s15 + $0x3d8] sm:$0xff]
        %v7837 = vld [vmem:[%s15 + $0x3e0] sm:$0xff]
        %v7838 = vld [vmem:[%s15 + $0x3e8] sm:$0xff]
        %v7839 = vld [vmem:[%s15 + $0x3f0] sm:$0xff]
        %v7840 = vld [vmem:[%s15 + $0x3f8] sm:$0xf]
        %v7841 = vld [vmem:[%s15 + $0x3fc] sm:$0xff]
        %v7842 = vld [vmem:[%s15 + $0x404] sm:$0xff]
        %v7843 = vld [vmem:[%s15 + $0x40c] sm:$0xff]
        %v7844 = vld [vmem:[%s15 + $0x414] sm:$0xff]
        %v7845 = vld [vmem:[%s15 + $0x41c] sm:$0xff]
        %v7846 = vld [vmem:[%s15 + $0x424] sm:$0xff]
        %v7847 = vld [vmem:[%s15 + $0x42c] sm:$0xff]
        %v7848 = vld [vmem:[%s15 + $0x434] sm:$0xff]
        %v7849 = vld [vmem:[%s15 + $0x43c] sm:$0xf]
        %v7850 = vld [vmem:[%s15 + $0x440] sm:$0xff]
        %v7851 = vld [vmem:[%s15 + $0x448] sm:$0xff]
        %v7852 = vld [vmem:[%s15 + $0x450] sm:$0xff]
        %v7853 = vld [vmem:[%s15 + $0x458] sm:$0xff]
        %v7854 = vld [vmem:[%s15 + $0x460] sm:$0xff]
        %v7855 = vld [vmem:[%s15 + $0x468] sm:$0xff]
        %v7856 = vld [vmem:[%s15 + $0x470] sm:$0xff]
        %v7857 = vld [vmem:[%s15 + $0x478] sm:$0xff]
        %v7858 = vld [vmem:[%s15 + $0x480] sm:$0xf]
        %v7859 = vld [vmem:[%s15 + $0x484] sm:$0xff]
        %v7860 = vld [vmem:[%s15 + $0x48c] sm:$0xff]
        %v7861 = vld [vmem:[%s15 + $0x494] sm:$0xff]
        %v7862 = vld [vmem:[%s15 + $0x49c] sm:$0xff]
        %v7863 = vld [vmem:[%s15 + $0x4a4] sm:$0xff]
        %v7864 = vld [vmem:[%s15 + $0x4ac] sm:$0xff]
        %v7865 = vld [vmem:[%s15 + $0x4b4] sm:$0xff]
        %v7866 = vld [vmem:[%s15 + $0x4bc] sm:$0xff]
        %v7867 = vld [vmem:[%s15 + $0x4c4] sm:$0xf]
        %v7868 = vld [vmem:[%s15 + $0x4c8] sm:$0xff]
        %v7869 = vld [vmem:[%s15 + $0x4d0] sm:$0xff]
        %v7870 = vld [vmem:[%s15 + $0x4d8] sm:$0xff]
        %v7871 = vld [vmem:[%s15 + $0x4e0] sm:$0xff]
        %v7872 = vld [vmem:[%s15 + $0x4e8] sm:$0xff]
        %v7873 = vld [vmem:[%s15 + $0x4f0] sm:$0xff]
        %v7874 = vld [vmem:[%s15 + $0x4f8] sm:$0xff]
        %v7875 = vld [vmem:[%s15 + $0x500] sm:$0xff]
        %v7876 = vld [vmem:[%s15 + $0x508] sm:$0xf]
        %v7877 = vld [vmem:[%s15 + $0x50c] sm:$0xff]
        %v7878 = vld [vmem:[%s15 + $0x514] sm:$0xff]
        %v7879 = vld [vmem:[%s15 + $0x51c] sm:$0xff]
        %v7880 = vld [vmem:[%s15 + $0x524] sm:$0xff]
        %v7881 = vld [vmem:[%s15 + $0x52c] sm:$0xff]
        %v7882 = vld [vmem:[%s15 + $0x534] sm:$0xff]
        %v7883 = vld [vmem:[%s15 + $0x53c] sm:$0xff]
        %v7884 = vld [vmem:[%s15 + $0x544] sm:$0xff]
        %v7885 = vld [vmem:[%s15 + $0x54c] sm:$0xf]
        %v7886 = vld [vmem:[%s15 + $0x550] sm:$0xff]
        %v7887 = vld [vmem:[%s15 + $0x558] sm:$0xff]
        %v7888 = vld [vmem:[%s15 + $0x560] sm:$0xff]
        %v7889 = vld [vmem:[%s15 + $0x568] sm:$0xff]
        %v7890 = vld [vmem:[%s15 + $0x570] sm:$0xff]
        %v7891 = vld [vmem:[%s15 + $0x578] sm:$0xff]
        %v7892 = vld [vmem:[%s15 + $0x580] sm:$0xff]
        %v7893 = vld [vmem:[%s15 + $0x588] sm:$0xff]
        %v7894 = vld [vmem:[%s15 + $0x590] sm:$0xf]
        %v7895 = vld [vmem:[%s15 + $0x594] sm:$0xff]
        %v7896 = vld [vmem:[%s15 + $0x59c] sm:$0xff]
        %v7897 = vld [vmem:[%s15 + $0x5a4] sm:$0xff]
        %v7898 = vld [vmem:[%s15 + $0x5ac] sm:$0xff]
        %v7899 = vld [vmem:[%s15 + $0x5b4] sm:$0xff]
        %v7900 = vld [vmem:[%s15 + $0x5bc] sm:$0xff]
        %v7901 = vld [vmem:[%s15 + $0x5c4] sm:$0xff]
        %v7902 = vld [vmem:[%s15 + $0x5cc] sm:$0xff]
        %v7903 = vld [vmem:[%s15 + $0x5d4] sm:$0xf]
        %v7904 = vld [vmem:[%s15 + $0x5d8] sm:$0xff]
        %v7905 = vld [vmem:[%s15 + $0x5e0] sm:$0xff]
        %v7906 = vld [vmem:[%s15 + $0x5e8] sm:$0xff]
        %v7907 = vld [vmem:[%s15 + $0x5f0] sm:$0xff]
        %v7908 = vld [vmem:[%s15 + $0x5f8] sm:$0xff]
        %v7909 = vld [vmem:[%s15 + $0x600] sm:$0xff]
        %v7910 = vld [vmem:[%s15 + $0x608] sm:$0xff]
        %v7911 = vld [vmem:[%s15 + $0x610] sm:$0xff]
        %v7912 = vld [vmem:[%s15 + $0x618] sm:$0xf]
        %v7913 = vld [vmem:[%s15 + $0x61c] sm:$0xff]
        %v7914 = vld [vmem:[%s15 + $0x624] sm:$0xff]
        %v7915 = vld [vmem:[%s15 + $0x62c] sm:$0xff]
        %v7916 = vld [vmem:[%s15 + $0x634] sm:$0xff]
        %v7917 = vld [vmem:[%s15 + $0x63c] sm:$0xff]
        %v7918 = vld [vmem:[%s15 + $0x644] sm:$0xff]
        %v7919 = vld [vmem:[%s15 + $0x64c] sm:$0xff]
        %v7920 = vld [vmem:[%s15 + $0x654] sm:$0xff]
        %v7921 = vld [vmem:[%s15 + $0x65c] sm:$0xf]
        %v7922 = vld [vmem:[%s15 + $0x660] sm:$0xff]
        %v7923 = vld [vmem:[%s15 + $0x668] sm:$0xff]
        %v7924 = vld [vmem:[%s15 + $0x670] sm:$0xff]
        %v7925 = vld [vmem:[%s15 + $0x678] sm:$0xff]
        %v7926 = vld [vmem:[%s15 + $0x680] sm:$0xff]
        %v7927 = vld [vmem:[%s15 + $0x688] sm:$0xff]
        %v7928 = vld [vmem:[%s15 + $0x690] sm:$0xff]
        %v7929 = vld [vmem:[%s15 + $0x698] sm:$0xff]
        %v7930 = vld [vmem:[%s15 + $0x6a0] sm:$0xf]
        %v7931 = vld [vmem:[%s15 + $0x6a4] sm:$0xff]
        %v7932 = vld [vmem:[%s15 + $0x6ac] sm:$0xff]
        %v7933 = vld [vmem:[%s15 + $0x6b4] sm:$0xff]
        %v7934 = vld [vmem:[%s15 + $0x6bc] sm:$0xff]
        %v7935 = vld [vmem:[%s15 + $0x6c4] sm:$0xff]
        %v7936 = vld [vmem:[%s15 + $0x6cc] sm:$0xff]
        %v7937 = vld [vmem:[%s15 + $0x6d4] sm:$0xff]
        %v7938 = vld [vmem:[%s15 + $0x6dc] sm:$0xff]
        %v7939 = vld [vmem:[%s15 + $0x6e4] sm:$0xf]
        %v7940 = vld [vmem:[%s15 + $0x6e8] sm:$0xff]
        %v7941 = vld [vmem:[%s15 + $0x6f0] sm:$0xff]
        %v7942 = vld [vmem:[%s15 + $0x6f8] sm:$0xff]
        %v7943 = vld [vmem:[%s15 + $0x700] sm:$0xff]
        %v7944 = vld [vmem:[%s15 + $0x708] sm:$0xff]
        %v7945 = vld [vmem:[%s15 + $0x710] sm:$0xff]
        %v7946 = vld [vmem:[%s15 + $0x718] sm:$0xff]
        %v7947 = vld [vmem:[%s15 + $0x720] sm:$0xff]
        %v7948 = vld [vmem:[%s15 + $0x728] sm:$0xf]
        %v7949 = vld [vmem:[%s15 + $0x72c] sm:$0xff]
        %v7950 = vld [vmem:[%s15 + $0x734] sm:$0xff]
        %v7951 = vld [vmem:[%s15 + $0x73c] sm:$0xff]
        %v7952 = vld [vmem:[%s15 + $0x744] sm:$0xff]
        %v7953 = vld [vmem:[%s15 + $0x74c] sm:$0xff]
        %v7954 = vld [vmem:[%s15 + $0x754] sm:$0xff]
        %v7955 = vld [vmem:[%s15 + $0x75c] sm:$0xff]
        %v7956 = vld [vmem:[%s15 + $0x764] sm:$0xff]
        %v7957 = vld [vmem:[%s15 + $0x76c] sm:$0xf]
        %v7958 = vld [vmem:[%s15 + $0x770] sm:$0xff]
        %v7959 = vld [vmem:[%s15 + $0x778] sm:$0xff]
        %v7960 = vld [vmem:[%s15 + $0x780] sm:$0xff]
        %v7961 = vld [vmem:[%s15 + $0x788] sm:$0xff]
        %v7962 = vld [vmem:[%s15 + $0x790] sm:$0xff]
        %v7963 = vld [vmem:[%s15 + $0x798] sm:$0xff]
        %v7964 = vld [vmem:[%s15 + $0x7a0] sm:$0xff]
        %v7965 = vld [vmem:[%s15 + $0x7a8] sm:$0xff]
        %v7966 = vld [vmem:[%s15 + $0x7b0] sm:$0xf]
        %v7967 = vld [vmem:[%s15 + $0x7b4] sm:$0xff]
        %v7968 = vld [vmem:[%s15 + $0x7bc] sm:$0xff]
        %v7969 = vld [vmem:[%s15 + $0x7c4] sm:$0xff]
        %v7970 = vld [vmem:[%s15 + $0x7cc] sm:$0xff]
        %v7971 = vld [vmem:[%s15 + $0x7d4] sm:$0xff]
        %v7972 = vld [vmem:[%s15 + $0x7dc] sm:$0xff]
        %v7973 = vld [vmem:[%s15 + $0x7e4] sm:$0xff]
        %v7974 = vld [vmem:[%s15 + $0x7ec] sm:$0xff]
        %v7975 = vld [vmem:[%s15 + $0x7f4] sm:$0xf]
        %v7976 = vld [vmem:[%s15 + $0x7f8] sm:$0xff]
        %v7977 = vld [vmem:[%s15 + $0x800] sm:$0xff]
        %v7978 = vld [vmem:[%s15 + $0x808] sm:$0xff]
        %v7979 = vld [vmem:[%s15 + $0x810] sm:$0xff]
        %v7980 = vld [vmem:[%s15 + $0x818] sm:$0xff]
        %v7981 = vld [vmem:[%s15 + $0x820] sm:$0xff]
        %v7982 = vld [vmem:[%s15 + $0x828] sm:$0xff]
        %v7983 = vld [vmem:[%s15 + $0x830] sm:$0xff]
        %v7984 = vld [vmem:[%s15 + $0x838] sm:$0xf]
        %v7985 = vld [vmem:[%s15 + $0x83c] sm:$0xff]
        %v7986 = vld [vmem:[%s15 + $0x844] sm:$0xff]
        %v7987 = vld [vmem:[%s15 + $0x84c] sm:$0xff]
        %v7988 = vld [vmem:[%s15 + $0x854] sm:$0xff]
        %v7989 = vld [vmem:[%s15 + $0x85c] sm:$0xff]
        %v7990 = vld [vmem:[%s15 + $0x864] sm:$0xff]
        %v7991 = vld [vmem:[%s15 + $0x86c] sm:$0xff]
        %v7992 = vld [vmem:[%s15 + $0x874] sm:$0xff]
        %v7993 = vld [vmem:[%s15 + $0x87c] sm:$0xf]
        %v8282 = vunpack.c.l.b16 %v7706
        %v8283 = vunpack.c.h.b16 %v7706
        %v8284 = vunpack.c.l.b16 %v7707
        %v8285 = vunpack.c.h.b16 %v7707
        %v8286 = vunpack.c.l.b16 %v7708
        %v8287 = vunpack.c.h.b16 %v7708
        %v8288 = vunpack.c.l.b16 %v7709
        %v8289 = vunpack.c.h.b16 %v7709
        %v8290 = vunpack.c.l.b16 %v7710
        %v8291 = vunpack.c.h.b16 %v7710
        %v8292 = vunpack.c.l.b16 %v7711
        %v8293 = vunpack.c.h.b16 %v7711
        %v8294 = vunpack.c.l.b16 %v7712
        %v8295 = vunpack.c.h.b16 %v7712
        %v8296 = vunpack.c.l.b16 %v7713
        %v8297 = vunpack.c.h.b16 %v7713
        %v8298 = vunpack.c.l.b16 %v7714
        %v8299 = vunpack.c.l.b16 %v7715
        %v8300 = vunpack.c.h.b16 %v7715
        %v8301 = vunpack.c.l.b16 %v7716
        %v8302 = vunpack.c.h.b16 %v7716
        %v8303 = vunpack.c.l.b16 %v7717
        %v8304 = vunpack.c.h.b16 %v7717
        %v8305 = vunpack.c.l.b16 %v7718
        %v8306 = vunpack.c.h.b16 %v7718
        %v8307 = vunpack.c.l.b16 %v7719
        %v8308 = vunpack.c.h.b16 %v7719
        %v8309 = vunpack.c.l.b16 %v7720
        %v8310 = vunpack.c.h.b16 %v7720
        %v8311 = vunpack.c.l.b16 %v7721
        %v8312 = vunpack.c.h.b16 %v7721
        %v8313 = vunpack.c.l.b16 %v7722
        %v8314 = vunpack.c.h.b16 %v7722
        %v8315 = vunpack.c.l.b16 %v7723
        %v8316 = vunpack.c.l.b16 %v7724
        %v8317 = vunpack.c.h.b16 %v7724
        %v8318 = vunpack.c.l.b16 %v7725
        %v8319 = vunpack.c.h.b16 %v7725
        %v8320 = vunpack.c.l.b16 %v7726
        %v8321 = vunpack.c.h.b16 %v7726
        %v8322 = vunpack.c.l.b16 %v7727
        %v8323 = vunpack.c.h.b16 %v7727
        %v8324 = vunpack.c.l.b16 %v7728
        %v8325 = vunpack.c.h.b16 %v7728
        %v8326 = vunpack.c.l.b16 %v7729
        %v8327 = vunpack.c.h.b16 %v7729
        %v8328 = vunpack.c.l.b16 %v7730
        %v8329 = vunpack.c.h.b16 %v7730
        %v8330 = vunpack.c.l.b16 %v7731
        %v8331 = vunpack.c.h.b16 %v7731
        %v8332 = vunpack.c.l.b16 %v7732
        %v8333 = vunpack.c.l.b16 %v7733
        %v8334 = vunpack.c.h.b16 %v7733
        %v8335 = vunpack.c.l.b16 %v7734
        %v8336 = vunpack.c.h.b16 %v7734
        %v8337 = vunpack.c.l.b16 %v7735
        %v8338 = vunpack.c.h.b16 %v7735
        %v8339 = vunpack.c.l.b16 %v7736
        %v8340 = vunpack.c.h.b16 %v7736
        %v8341 = vunpack.c.l.b16 %v7737
        %v8342 = vunpack.c.h.b16 %v7737
        %v8343 = vunpack.c.l.b16 %v7738
        %v8344 = vunpack.c.h.b16 %v7738
        %v8345 = vunpack.c.l.b16 %v7739
        %v8346 = vunpack.c.h.b16 %v7739
        %v8347 = vunpack.c.l.b16 %v7740
        %v8348 = vunpack.c.h.b16 %v7740
        %v8349 = vunpack.c.l.b16 %v7741
        %v8350 = vunpack.c.l.b16 %v7742
        %v8351 = vunpack.c.h.b16 %v7742
        %v8352 = vunpack.c.l.b16 %v7743
        %v8353 = vunpack.c.h.b16 %v7743
        %v8354 = vunpack.c.l.b16 %v7744
        %v8355 = vunpack.c.h.b16 %v7744
        %v8356 = vunpack.c.l.b16 %v7745
        %v8357 = vunpack.c.h.b16 %v7745
        %v8358 = vunpack.c.l.b16 %v7746
        %v8359 = vunpack.c.h.b16 %v7746
        %v8360 = vunpack.c.l.b16 %v7747
        %v8361 = vunpack.c.h.b16 %v7747
        %v8362 = vunpack.c.l.b16 %v7748
        %v8363 = vunpack.c.h.b16 %v7748
        %v8364 = vunpack.c.l.b16 %v7749
        %v8365 = vunpack.c.h.b16 %v7749
        %v8366 = vunpack.c.l.b16 %v7750
        %v8367 = vunpack.c.l.b16 %v7751
        %v8368 = vunpack.c.h.b16 %v7751
        %v8369 = vunpack.c.l.b16 %v7752
        %v8370 = vunpack.c.h.b16 %v7752
        %v8371 = vunpack.c.l.b16 %v7753
        %v8372 = vunpack.c.h.b16 %v7753
        %v8373 = vunpack.c.l.b16 %v7754
        %v8374 = vunpack.c.h.b16 %v7754
        %v8375 = vunpack.c.l.b16 %v7755
        %v8376 = vunpack.c.h.b16 %v7755
        %v8377 = vunpack.c.l.b16 %v7756
        %v8378 = vunpack.c.h.b16 %v7756
        %v8379 = vunpack.c.l.b16 %v7757
        %v8380 = vunpack.c.h.b16 %v7757
        %v8381 = vunpack.c.l.b16 %v7758
        %v8382 = vunpack.c.h.b16 %v7758
        %v8383 = vunpack.c.l.b16 %v7759
        %v8384 = vunpack.c.l.b16 %v7760
        %v8385 = vunpack.c.h.b16 %v7760
        %v8386 = vunpack.c.l.b16 %v7761
        %v8387 = vunpack.c.h.b16 %v7761
        %v8388 = vunpack.c.l.b16 %v7762
        %v8389 = vunpack.c.h.b16 %v7762
        %v8390 = vunpack.c.l.b16 %v7763
        %v8391 = vunpack.c.h.b16 %v7763
        %v8392 = vunpack.c.l.b16 %v7764
        %v8393 = vunpack.c.h.b16 %v7764
        %v8394 = vunpack.c.l.b16 %v7765
        %v8395 = vunpack.c.h.b16 %v7765
        %v8396 = vunpack.c.l.b16 %v7766
        %v8397 = vunpack.c.h.b16 %v7766
        %v8398 = vunpack.c.l.b16 %v7767
        %v8399 = vunpack.c.h.b16 %v7767
        %v8400 = vunpack.c.l.b16 %v7768
        %v8401 = vunpack.c.l.b16 %v7769
        %v8402 = vunpack.c.h.b16 %v7769
        %v8403 = vunpack.c.l.b16 %v7770
        %v8404 = vunpack.c.h.b16 %v7770
        %v8405 = vunpack.c.l.b16 %v7771
        %v8406 = vunpack.c.h.b16 %v7771
        %v8407 = vunpack.c.l.b16 %v7772
        %v8408 = vunpack.c.h.b16 %v7772
        %v8409 = vunpack.c.l.b16 %v7773
        %v8410 = vunpack.c.h.b16 %v7773
        %v8411 = vunpack.c.l.b16 %v7774
        %v8412 = vunpack.c.h.b16 %v7774
        %v8413 = vunpack.c.l.b16 %v7775
        %v8414 = vunpack.c.h.b16 %v7775
        %v8415 = vunpack.c.l.b16 %v7776
        %v8416 = vunpack.c.h.b16 %v7776
        %v8417 = vunpack.c.l.b16 %v7777
        %v8418 = vunpack.c.l.b16 %v7778
        %v8419 = vunpack.c.h.b16 %v7778
        %v8420 = vunpack.c.l.b16 %v7779
        %v8421 = vunpack.c.h.b16 %v7779
        %v8422 = vunpack.c.l.b16 %v7780
        %v8423 = vunpack.c.h.b16 %v7780
        %v8424 = vunpack.c.l.b16 %v7781
        %v8425 = vunpack.c.h.b16 %v7781
        %v8426 = vunpack.c.l.b16 %v7782
        %v8427 = vunpack.c.h.b16 %v7782
        %v8428 = vunpack.c.l.b16 %v7783
        %v8429 = vunpack.c.h.b16 %v7783
        %v8430 = vunpack.c.l.b16 %v7784
        %v8431 = vunpack.c.h.b16 %v7784
        %v8432 = vunpack.c.l.b16 %v7785
        %v8433 = vunpack.c.h.b16 %v7785
        %v8434 = vunpack.c.l.b16 %v7786
        %v8435 = vunpack.c.l.b16 %v7787
        %v8436 = vunpack.c.h.b16 %v7787
        %v8437 = vunpack.c.l.b16 %v7788
        %v8438 = vunpack.c.h.b16 %v7788
        %v8439 = vunpack.c.l.b16 %v7789
        %v8440 = vunpack.c.h.b16 %v7789
        %v8441 = vunpack.c.l.b16 %v7790
        %v8442 = vunpack.c.h.b16 %v7790
        %v8443 = vunpack.c.l.b16 %v7791
        %v8444 = vunpack.c.h.b16 %v7791
        %v8445 = vunpack.c.l.b16 %v7792
        %v8446 = vunpack.c.h.b16 %v7792
        %v8447 = vunpack.c.l.b16 %v7793
        %v8448 = vunpack.c.h.b16 %v7793
        %v8449 = vunpack.c.l.b16 %v7794
        %v8450 = vunpack.c.h.b16 %v7794
        %v8451 = vunpack.c.l.b16 %v7795
        %v8452 = vunpack.c.l.b16 %v7796
        %v8453 = vunpack.c.h.b16 %v7796
        %v8454 = vunpack.c.l.b16 %v7797
        %v8455 = vunpack.c.h.b16 %v7797
        %v8456 = vunpack.c.l.b16 %v7798
        %v8457 = vunpack.c.h.b16 %v7798
        %v8458 = vunpack.c.l.b16 %v7799
        %v8459 = vunpack.c.h.b16 %v7799
        %v8460 = vunpack.c.l.b16 %v7800
        %v8461 = vunpack.c.h.b16 %v7800
        %v8462 = vunpack.c.l.b16 %v7801
        %v8463 = vunpack.c.h.b16 %v7801
        %v8464 = vunpack.c.l.b16 %v7802
        %v8465 = vunpack.c.h.b16 %v7802
        %v8466 = vunpack.c.l.b16 %v7803
        %v8467 = vunpack.c.h.b16 %v7803
        %v8468 = vunpack.c.l.b16 %v7804
        %v8469 = vunpack.c.l.b16 %v7805
        %v8470 = vunpack.c.h.b16 %v7805
        %v8471 = vunpack.c.l.b16 %v7806
        %v8472 = vunpack.c.h.b16 %v7806
        %v8473 = vunpack.c.l.b16 %v7807
        %v8474 = vunpack.c.h.b16 %v7807
        %v8475 = vunpack.c.l.b16 %v7808
        %v8476 = vunpack.c.h.b16 %v7808
        %v8477 = vunpack.c.l.b16 %v7809
        %v8478 = vunpack.c.h.b16 %v7809
        %v8479 = vunpack.c.l.b16 %v7810
        %v8480 = vunpack.c.h.b16 %v7810
        %v8481 = vunpack.c.l.b16 %v7811
        %v8482 = vunpack.c.h.b16 %v7811
        %v8483 = vunpack.c.l.b16 %v7812
        %v8484 = vunpack.c.h.b16 %v7812
        %v8485 = vunpack.c.l.b16 %v7813
        %v8486 = vunpack.c.l.b16 %v7814
        %v8487 = vunpack.c.h.b16 %v7814
        %v8488 = vunpack.c.l.b16 %v7815
        %v8489 = vunpack.c.h.b16 %v7815
        %v8490 = vunpack.c.l.b16 %v7816
        %v8491 = vunpack.c.h.b16 %v7816
        %v8492 = vunpack.c.l.b16 %v7817
        %v8493 = vunpack.c.h.b16 %v7817
        %v8494 = vunpack.c.l.b16 %v7818
        %v8495 = vunpack.c.h.b16 %v7818
        %v8496 = vunpack.c.l.b16 %v7819
        %v8497 = vunpack.c.h.b16 %v7819
        %v8498 = vunpack.c.l.b16 %v7820
        %v8499 = vunpack.c.h.b16 %v7820
        %v8500 = vunpack.c.l.b16 %v7821
        %v8501 = vunpack.c.h.b16 %v7821
        %v8502 = vunpack.c.l.b16 %v7822
        %v8503 = vunpack.c.l.b16 %v7823
        %v8504 = vunpack.c.h.b16 %v7823
        %v8505 = vunpack.c.l.b16 %v7824
        %v8506 = vunpack.c.h.b16 %v7824
        %v8507 = vunpack.c.l.b16 %v7825
        %v8508 = vunpack.c.h.b16 %v7825
        %v8509 = vunpack.c.l.b16 %v7826
        %v8510 = vunpack.c.h.b16 %v7826
        %v8511 = vunpack.c.l.b16 %v7827
        %v8512 = vunpack.c.h.b16 %v7827
        %v8513 = vunpack.c.l.b16 %v7828
        %v8514 = vunpack.c.h.b16 %v7828
        %v8515 = vunpack.c.l.b16 %v7829
        %v8516 = vunpack.c.h.b16 %v7829
        %v8517 = vunpack.c.l.b16 %v7830
        %v8518 = vunpack.c.h.b16 %v7830
        %v8519 = vunpack.c.l.b16 %v7831
        %v8520 = vunpack.c.l.b16 %v7832
        %v8521 = vunpack.c.h.b16 %v7832
        %v8522 = vunpack.c.l.b16 %v7833
        %v8523 = vunpack.c.h.b16 %v7833
        %v8524 = vunpack.c.l.b16 %v7834
        %v8525 = vunpack.c.h.b16 %v7834
        %v8526 = vunpack.c.l.b16 %v7835
        %v8527 = vunpack.c.h.b16 %v7835
        %v8528 = vunpack.c.l.b16 %v7836
        %v8529 = vunpack.c.h.b16 %v7836
        %v8530 = vunpack.c.l.b16 %v7837
        %v8531 = vunpack.c.h.b16 %v7837
        %v8532 = vunpack.c.l.b16 %v7838
        %v8533 = vunpack.c.h.b16 %v7838
        %v8534 = vunpack.c.l.b16 %v7839
        %v8535 = vunpack.c.h.b16 %v7839
        %v8536 = vunpack.c.l.b16 %v7840
        %v8537 = vunpack.c.l.b16 %v7841
        %v8538 = vunpack.c.h.b16 %v7841
        %v8539 = vunpack.c.l.b16 %v7842
        %v8540 = vunpack.c.h.b16 %v7842
        %v8541 = vunpack.c.l.b16 %v7843
        %v8542 = vunpack.c.h.b16 %v7843
        %v8543 = vunpack.c.l.b16 %v7844
        %v8544 = vunpack.c.h.b16 %v7844
        %v8545 = vunpack.c.l.b16 %v7845
        %v8546 = vunpack.c.h.b16 %v7845
        %v8547 = vunpack.c.l.b16 %v7846
        %v8548 = vunpack.c.h.b16 %v7846
        %v8549 = vunpack.c.l.b16 %v7847
        %v8550 = vunpack.c.h.b16 %v7847
        %v8551 = vunpack.c.l.b16 %v7848
        %v8552 = vunpack.c.h.b16 %v7848
        %v8553 = vunpack.c.l.b16 %v7849
        %v8554 = vunpack.c.l.b16 %v7850
        %v8555 = vunpack.c.h.b16 %v7850
        %v8556 = vunpack.c.l.b16 %v7851
        %v8557 = vunpack.c.h.b16 %v7851
        %v8558 = vunpack.c.l.b16 %v7852
        %v8559 = vunpack.c.h.b16 %v7852
        %v8560 = vunpack.c.l.b16 %v7853
        %v8561 = vunpack.c.h.b16 %v7853
        %v8562 = vunpack.c.l.b16 %v7854
        %v8563 = vunpack.c.h.b16 %v7854
        %v8564 = vunpack.c.l.b16 %v7855
        %v8565 = vunpack.c.h.b16 %v7855
        %v8566 = vunpack.c.l.b16 %v7856
        %v8567 = vunpack.c.h.b16 %v7856
        %v8568 = vunpack.c.l.b16 %v7857
        %v8569 = vunpack.c.h.b16 %v7857
        %v8570 = vunpack.c.l.b16 %v7858
        %v8571 = vunpack.c.l.b16 %v7859
        %v8572 = vunpack.c.h.b16 %v7859
        %v8573 = vunpack.c.l.b16 %v7860
        %v8574 = vunpack.c.h.b16 %v7860
        %v8575 = vunpack.c.l.b16 %v7861
        %v8576 = vunpack.c.h.b16 %v7861
        %v8577 = vunpack.c.l.b16 %v7862
        %v8578 = vunpack.c.h.b16 %v7862
        %v8579 = vunpack.c.l.b16 %v7863
        %v8580 = vunpack.c.h.b16 %v7863
        %v8581 = vunpack.c.l.b16 %v7864
        %v8582 = vunpack.c.h.b16 %v7864
        %v8583 = vunpack.c.l.b16 %v7865
        %v8584 = vunpack.c.h.b16 %v7865
        %v8585 = vunpack.c.l.b16 %v7866
        %v8586 = vunpack.c.h.b16 %v7866
        %v8587 = vunpack.c.l.b16 %v7867
        %v8588 = vunpack.c.l.b16 %v7868
        %v8589 = vunpack.c.h.b16 %v7868
        %v8590 = vunpack.c.l.b16 %v7869
        %v8591 = vunpack.c.h.b16 %v7869
        %v8592 = vunpack.c.l.b16 %v7870
        %v8593 = vunpack.c.h.b16 %v7870
        %v8594 = vunpack.c.l.b16 %v7871
        %v8595 = vunpack.c.h.b16 %v7871
        %v8596 = vunpack.c.l.b16 %v7872
        %v8597 = vunpack.c.h.b16 %v7872
        %v8598 = vunpack.c.l.b16 %v7873
        %v8599 = vunpack.c.h.b16 %v7873
        %v8600 = vunpack.c.l.b16 %v7874
        %v8601 = vunpack.c.h.b16 %v7874
        %v8602 = vunpack.c.l.b16 %v7875
        %v8603 = vunpack.c.h.b16 %v7875
        %v8604 = vunpack.c.l.b16 %v7876
        %v8605 = vunpack.c.l.b16 %v7877
        %v8606 = vunpack.c.h.b16 %v7877
        %v8607 = vunpack.c.l.b16 %v7878
        %v8608 = vunpack.c.h.b16 %v7878
        %v8609 = vunpack.c.l.b16 %v7879
        %v8610 = vunpack.c.h.b16 %v7879
        %v8611 = vunpack.c.l.b16 %v7880
        %v8612 = vunpack.c.h.b16 %v7880
        %v8613 = vunpack.c.l.b16 %v7881
        %v8614 = vunpack.c.h.b16 %v7881
        %v8615 = vunpack.c.l.b16 %v7882
        %v8616 = vunpack.c.h.b16 %v7882
        %v8617 = vunpack.c.l.b16 %v7883
        %v8618 = vunpack.c.h.b16 %v7883
        %v8619 = vunpack.c.l.b16 %v7884
        %v8620 = vunpack.c.h.b16 %v7884
        %v8621 = vunpack.c.l.b16 %v7885
        %v8622 = vunpack.c.l.b16 %v7886
        %v8623 = vunpack.c.h.b16 %v7886
        %v8624 = vunpack.c.l.b16 %v7887
        %v8625 = vunpack.c.h.b16 %v7887
        %v8626 = vunpack.c.l.b16 %v7888
        %v8627 = vunpack.c.h.b16 %v7888
        %v8628 = vunpack.c.l.b16 %v7889
        %v8629 = vunpack.c.h.b16 %v7889
        %v8630 = vunpack.c.l.b16 %v7890
        %v8631 = vunpack.c.h.b16 %v7890
        %v8632 = vunpack.c.l.b16 %v7891
        %v8633 = vunpack.c.h.b16 %v7891
        %v8634 = vunpack.c.l.b16 %v7892
        %v8635 = vunpack.c.h.b16 %v7892
        %v8636 = vunpack.c.l.b16 %v7893
        %v8637 = vunpack.c.h.b16 %v7893
        %v8638 = vunpack.c.l.b16 %v7894
        %v8639 = vunpack.c.l.b16 %v7895
        %v8640 = vunpack.c.h.b16 %v7895
        %v8641 = vunpack.c.l.b16 %v7896
        %v8642 = vunpack.c.h.b16 %v7896
        %v8643 = vunpack.c.l.b16 %v7897
        %v8644 = vunpack.c.h.b16 %v7897
        %v8645 = vunpack.c.l.b16 %v7898
        %v8646 = vunpack.c.h.b16 %v7898
        %v8647 = vunpack.c.l.b16 %v7899
        %v8648 = vunpack.c.h.b16 %v7899
        %v8649 = vunpack.c.l.b16 %v7900
        %v8650 = vunpack.c.h.b16 %v7900
        %v8651 = vunpack.c.l.b16 %v7901
        %v8652 = vunpack.c.h.b16 %v7901
        %v8653 = vunpack.c.l.b16 %v7902
        %v8654 = vunpack.c.h.b16 %v7902
        %v8655 = vunpack.c.l.b16 %v7903
        %v8656 = vunpack.c.l.b16 %v7904
        %v8657 = vunpack.c.h.b16 %v7904
        %v8658 = vunpack.c.l.b16 %v7905
        %v8659 = vunpack.c.h.b16 %v7905
        %v8660 = vunpack.c.l.b16 %v7906
        %v8661 = vunpack.c.h.b16 %v7906
        %v8662 = vunpack.c.l.b16 %v7907
        %v8663 = vunpack.c.h.b16 %v7907
        %v8664 = vunpack.c.l.b16 %v7908
        %v8665 = vunpack.c.h.b16 %v7908
        %v8666 = vunpack.c.l.b16 %v7909
        %v8667 = vunpack.c.h.b16 %v7909
        %v8668 = vunpack.c.l.b16 %v7910
        %v8669 = vunpack.c.h.b16 %v7910
        %v8670 = vunpack.c.l.b16 %v7911
        %v8671 = vunpack.c.h.b16 %v7911
        %v8672 = vunpack.c.l.b16 %v7912
        %v8673 = vunpack.c.l.b16 %v7913
        %v8674 = vunpack.c.h.b16 %v7913
        %v8675 = vunpack.c.l.b16 %v7914
        %v8676 = vunpack.c.h.b16 %v7914
        %v8677 = vunpack.c.l.b16 %v7915
        %v8678 = vunpack.c.h.b16 %v7915
        %v8679 = vunpack.c.l.b16 %v7916
        %v8680 = vunpack.c.h.b16 %v7916
        %v8681 = vunpack.c.l.b16 %v7917
        %v8682 = vunpack.c.h.b16 %v7917
        %v8683 = vunpack.c.l.b16 %v7918
        %v8684 = vunpack.c.h.b16 %v7918
        %v8685 = vunpack.c.l.b16 %v7919
        %v8686 = vunpack.c.h.b16 %v7919
        %v8687 = vunpack.c.l.b16 %v7920
        %v8688 = vunpack.c.h.b16 %v7920
        %v8689 = vunpack.c.l.b16 %v7921
        %v8690 = vunpack.c.l.b16 %v7922
        %v8691 = vunpack.c.h.b16 %v7922
        %v8692 = vunpack.c.l.b16 %v7923
        %v8693 = vunpack.c.h.b16 %v7923
        %v8694 = vunpack.c.l.b16 %v7924
        %v8695 = vunpack.c.h.b16 %v7924
        %v8696 = vunpack.c.l.b16 %v7925
        %v8697 = vunpack.c.h.b16 %v7925
        %v8698 = vunpack.c.l.b16 %v7926
        %v8699 = vunpack.c.h.b16 %v7926
        %v8700 = vunpack.c.l.b16 %v7927
        %v8701 = vunpack.c.h.b16 %v7927
        %v8702 = vunpack.c.l.b16 %v7928
        %v8703 = vunpack.c.h.b16 %v7928
        %v8704 = vunpack.c.l.b16 %v7929
        %v8705 = vunpack.c.h.b16 %v7929
        %v8706 = vunpack.c.l.b16 %v7930
        %v8707 = vunpack.c.l.b16 %v7931
        %v8708 = vunpack.c.h.b16 %v7931
        %v8709 = vunpack.c.l.b16 %v7932
        %v8710 = vunpack.c.h.b16 %v7932
        %v8711 = vunpack.c.l.b16 %v7933
        %v8712 = vunpack.c.h.b16 %v7933
        %v8713 = vunpack.c.l.b16 %v7934
        %v8714 = vunpack.c.h.b16 %v7934
        %v8715 = vunpack.c.l.b16 %v7935
        %v8716 = vunpack.c.h.b16 %v7935
        %v8717 = vunpack.c.l.b16 %v7936
        %v8718 = vunpack.c.h.b16 %v7936
        %v8719 = vunpack.c.l.b16 %v7937
        %v8720 = vunpack.c.h.b16 %v7937
        %v8721 = vunpack.c.l.b16 %v7938
        %v8722 = vunpack.c.h.b16 %v7938
        %v8723 = vunpack.c.l.b16 %v7939
        %v8724 = vunpack.c.l.b16 %v7940
        %v8725 = vunpack.c.h.b16 %v7940
        %v8726 = vunpack.c.l.b16 %v7941
        %v8727 = vunpack.c.h.b16 %v7941
        %v8728 = vunpack.c.l.b16 %v7942
        %v8729 = vunpack.c.h.b16 %v7942
        %v8730 = vunpack.c.l.b16 %v7943
        %v8731 = vunpack.c.h.b16 %v7943
        %v8732 = vunpack.c.l.b16 %v7944
        %v8733 = vunpack.c.h.b16 %v7944
        %v8734 = vunpack.c.l.b16 %v7945
        %v8735 = vunpack.c.h.b16 %v7945
        %v8736 = vunpack.c.l.b16 %v7946
        %v8737 = vunpack.c.h.b16 %v7946
        %v8738 = vunpack.c.l.b16 %v7947
        %v8739 = vunpack.c.h.b16 %v7947
        %v8740 = vunpack.c.l.b16 %v7948
        %v8741 = vunpack.c.l.b16 %v7949
        %v8742 = vunpack.c.h.b16 %v7949
        %v8743 = vunpack.c.l.b16 %v7950
        %v8744 = vunpack.c.h.b16 %v7950
        %v8745 = vunpack.c.l.b16 %v7951
        %v8746 = vunpack.c.h.b16 %v7951
        %v8747 = vunpack.c.l.b16 %v7952
        %v8748 = vunpack.c.h.b16 %v7952
        %v8749 = vunpack.c.l.b16 %v7953
        %v8750 = vunpack.c.h.b16 %v7953
        %v8751 = vunpack.c.l.b16 %v7954
        %v8752 = vunpack.c.h.b16 %v7954
        %v8753 = vunpack.c.l.b16 %v7955
        %v8754 = vunpack.c.h.b16 %v7955
        %v8755 = vunpack.c.l.b16 %v7956
        %v8756 = vunpack.c.h.b16 %v7956
        %v8757 = vunpack.c.l.b16 %v7957
        %v8758 = vunpack.c.l.b16 %v7958
        %v8759 = vunpack.c.h.b16 %v7958
        %v8760 = vunpack.c.l.b16 %v7959
        %v8761 = vunpack.c.h.b16 %v7959
        %v8762 = vunpack.c.l.b16 %v7960
        %v8763 = vunpack.c.h.b16 %v7960
        %v8764 = vunpack.c.l.b16 %v7961
        %v8765 = vunpack.c.h.b16 %v7961
        %v8766 = vunpack.c.l.b16 %v7962
        %v8767 = vunpack.c.h.b16 %v7962
        %v8768 = vunpack.c.l.b16 %v7963
        %v8769 = vunpack.c.h.b16 %v7963
        %v8770 = vunpack.c.l.b16 %v7964
        %v8771 = vunpack.c.h.b16 %v7964
        %v8772 = vunpack.c.l.b16 %v7965
        %v8773 = vunpack.c.h.b16 %v7965
        %v8774 = vunpack.c.l.b16 %v7966
        %v8775 = vunpack.c.l.b16 %v7967
        %v8776 = vunpack.c.h.b16 %v7967
        %v8777 = vunpack.c.l.b16 %v7968
        %v8778 = vunpack.c.h.b16 %v7968
        %v8779 = vunpack.c.l.b16 %v7969
        %v8780 = vunpack.c.h.b16 %v7969
        %v8781 = vunpack.c.l.b16 %v7970
        %v8782 = vunpack.c.h.b16 %v7970
        %v8783 = vunpack.c.l.b16 %v7971
        %v8784 = vunpack.c.h.b16 %v7971
        %v8785 = vunpack.c.l.b16 %v7972
        %v8786 = vunpack.c.h.b16 %v7972
        %v8787 = vunpack.c.l.b16 %v7973
        %v8788 = vunpack.c.h.b16 %v7973
        %v8789 = vunpack.c.l.b16 %v7974
        %v8790 = vunpack.c.h.b16 %v7974
        %v8791 = vunpack.c.l.b16 %v7975
        %v8792 = vunpack.c.l.b16 %v7976
        %v8793 = vunpack.c.h.b16 %v7976
        %v8794 = vunpack.c.l.b16 %v7977
        %v8795 = vunpack.c.h.b16 %v7977
        %v8796 = vunpack.c.l.b16 %v7978
        %v8797 = vunpack.c.h.b16 %v7978
        %v8798 = vunpack.c.l.b16 %v7979
        %v8799 = vunpack.c.h.b16 %v7979
        %v8800 = vunpack.c.l.b16 %v7980
        %v8801 = vunpack.c.h.b16 %v7980
        %v8802 = vunpack.c.l.b16 %v7981
        %v8803 = vunpack.c.h.b16 %v7981
        %v8804 = vunpack.c.l.b16 %v7982
        %v8805 = vunpack.c.h.b16 %v7982
        %v8806 = vunpack.c.l.b16 %v7983
        %v8807 = vunpack.c.h.b16 %v7983
        %v8808 = vunpack.c.l.b16 %v7984
        %v8809 = vunpack.c.l.b16 %v7985
        %v8810 = vunpack.c.h.b16 %v7985
        %v8811 = vunpack.c.l.b16 %v7986
        %v8812 = vunpack.c.h.b16 %v7986
        %v8813 = vunpack.c.l.b16 %v7987
        %v8814 = vunpack.c.h.b16 %v7987
        %v8815 = vunpack.c.l.b16 %v7988
        %v8816 = vunpack.c.h.b16 %v7988
        %v8817 = vunpack.c.l.b16 %v7989
        %v8818 = vunpack.c.h.b16 %v7989
        %v8819 = vunpack.c.l.b16 %v7990
        %v8820 = vunpack.c.h.b16 %v7990
        %v8821 = vunpack.c.l.b16 %v7991
        %v8822 = vunpack.c.h.b16 %v7991
        %v8823 = vunpack.c.l.b16 %v7992
        %v8824 = vunpack.c.h.b16 %v7992
        %v8825 = vunpack.c.l.b16 %v7993
        %v8826 = vpack.c.b16 %v8299, %v8282
        %v8827 = vpack.c.b16 %v8300, %v8283
        %v8828 = vpack.c.b16 %v8301, %v8284
        %v8829 = vpack.c.b16 %v8302, %v8285
        %v8830 = vpack.c.b16 %v8303, %v8286
        %v8831 = vpack.c.b16 %v8304, %v8287
        %v8832 = vpack.c.b16 %v8305, %v8288
        %v8833 = vpack.c.b16 %v8306, %v8289
        %v8834 = vpack.c.b16 %v8307, %v8290
        %v8835 = vpack.c.b16 %v8308, %v8291
        %v8836 = vpack.c.b16 %v8309, %v8292
        %v8837 = vpack.c.b16 %v8310, %v8293
        %v8838 = vpack.c.b16 %v8311, %v8294
        %v8839 = vpack.c.b16 %v8312, %v8295
        %v8840 = vpack.c.b16 %v8313, %v8296
        %v8841 = vpack.c.b16 %v8314, %v8297
        %v8842 = vpack.c.b16 %v8315, %v8298
        %v8843 = vpack.c.b16 %v8333, %v8316
        %v8844 = vpack.c.b16 %v8334, %v8317
        %v8845 = vpack.c.b16 %v8335, %v8318
        %v8846 = vpack.c.b16 %v8336, %v8319
        %v8847 = vpack.c.b16 %v8337, %v8320
        %v8848 = vpack.c.b16 %v8338, %v8321
        %v8849 = vpack.c.b16 %v8339, %v8322
        %v8850 = vpack.c.b16 %v8340, %v8323
        %v8851 = vpack.c.b16 %v8341, %v8324
        %v8852 = vpack.c.b16 %v8342, %v8325
        %v8853 = vpack.c.b16 %v8343, %v8326
        %v8854 = vpack.c.b16 %v8344, %v8327
        %v8855 = vpack.c.b16 %v8345, %v8328
        %v8856 = vpack.c.b16 %v8346, %v8329
        %v8857 = vpack.c.b16 %v8347, %v8330
        %v8858 = vpack.c.b16 %v8348, %v8331
        %v8859 = vpack.c.b16 %v8349, %v8332
        %v8860 = vpack.c.b16 %v8367, %v8350
        %v8861 = vpack.c.b16 %v8368, %v8351
        %v8862 = vpack.c.b16 %v8369, %v8352
        %v8863 = vpack.c.b16 %v8370, %v8353
        %v8864 = vpack.c.b16 %v8371, %v8354
        %v8865 = vpack.c.b16 %v8372, %v8355
        %v8866 = vpack.c.b16 %v8373, %v8356
        %v8867 = vpack.c.b16 %v8374, %v8357
        %v8868 = vpack.c.b16 %v8375, %v8358
        %v8869 = vpack.c.b16 %v8376, %v8359
        %v8870 = vpack.c.b16 %v8377, %v8360
        %v8871 = vpack.c.b16 %v8378, %v8361
        %v8872 = vpack.c.b16 %v8379, %v8362
        %v8873 = vpack.c.b16 %v8380, %v8363
        %v8874 = vpack.c.b16 %v8381, %v8364
        %v8875 = vpack.c.b16 %v8382, %v8365
        %v8876 = vpack.c.b16 %v8383, %v8366
        %v8877 = vpack.c.b16 %v8401, %v8384
        %v8878 = vpack.c.b16 %v8402, %v8385
        %v8879 = vpack.c.b16 %v8403, %v8386
        %v8880 = vpack.c.b16 %v8404, %v8387
        %v8881 = vpack.c.b16 %v8405, %v8388
        %v8882 = vpack.c.b16 %v8406, %v8389
        %v8883 = vpack.c.b16 %v8407, %v8390
        %v8884 = vpack.c.b16 %v8408, %v8391
        %v8885 = vpack.c.b16 %v8409, %v8392
        %v8886 = vpack.c.b16 %v8410, %v8393
        %v8887 = vpack.c.b16 %v8411, %v8394
        %v8888 = vpack.c.b16 %v8412, %v8395
        %v8889 = vpack.c.b16 %v8413, %v8396
        %v8890 = vpack.c.b16 %v8414, %v8397
        %v8891 = vpack.c.b16 %v8415, %v8398
        %v8892 = vpack.c.b16 %v8416, %v8399
        %v8893 = vpack.c.b16 %v8417, %v8400
        %v8894 = vpack.c.b16 %v8435, %v8418
        %v8895 = vpack.c.b16 %v8436, %v8419
        %v8896 = vpack.c.b16 %v8437, %v8420
        %v8897 = vpack.c.b16 %v8438, %v8421
        %v8898 = vpack.c.b16 %v8439, %v8422
        %v8899 = vpack.c.b16 %v8440, %v8423
        %v8900 = vpack.c.b16 %v8441, %v8424
        %v8901 = vpack.c.b16 %v8442, %v8425
        %v8902 = vpack.c.b16 %v8443, %v8426
        %v8903 = vpack.c.b16 %v8444, %v8427
        %v8904 = vpack.c.b16 %v8445, %v8428
        %v8905 = vpack.c.b16 %v8446, %v8429
        %v8906 = vpack.c.b16 %v8447, %v8430
        %v8907 = vpack.c.b16 %v8448, %v8431
        %v8908 = vpack.c.b16 %v8449, %v8432
        %v8909 = vpack.c.b16 %v8450, %v8433
        %v8910 = vpack.c.b16 %v8451, %v8434
        %v8911 = vpack.c.b16 %v8469, %v8452
        %v8912 = vpack.c.b16 %v8470, %v8453
        %v8913 = vpack.c.b16 %v8471, %v8454
        %v8914 = vpack.c.b16 %v8472, %v8455
        %v8915 = vpack.c.b16 %v8473, %v8456
        %v8916 = vpack.c.b16 %v8474, %v8457
        %v8917 = vpack.c.b16 %v8475, %v8458
        %v8918 = vpack.c.b16 %v8476, %v8459
        %v8919 = vpack.c.b16 %v8477, %v8460
        %v8920 = vpack.c.b16 %v8478, %v8461
        %v8921 = vpack.c.b16 %v8479, %v8462
        %v8922 = vpack.c.b16 %v8480, %v8463
        %v8923 = vpack.c.b16 %v8481, %v8464
        %v8924 = vpack.c.b16 %v8482, %v8465
        %v8925 = vpack.c.b16 %v8483, %v8466
        %v8926 = vpack.c.b16 %v8484, %v8467
        %v8927 = vpack.c.b16 %v8485, %v8468
        %v8928 = vpack.c.b16 %v8503, %v8486
        %v8929 = vpack.c.b16 %v8504, %v8487
        %v8930 = vpack.c.b16 %v8505, %v8488
        %v8931 = vpack.c.b16 %v8506, %v8489
        %v8932 = vpack.c.b16 %v8507, %v8490
        %v8933 = vpack.c.b16 %v8508, %v8491
        %v8934 = vpack.c.b16 %v8509, %v8492
        %v8935 = vpack.c.b16 %v8510, %v8493
        %v8936 = vpack.c.b16 %v8511, %v8494
        %v8937 = vpack.c.b16 %v8512, %v8495
        %v8938 = vpack.c.b16 %v8513, %v8496
        %v8939 = vpack.c.b16 %v8514, %v8497
        %v8940 = vpack.c.b16 %v8515, %v8498
        %v8941 = vpack.c.b16 %v8516, %v8499
        %v8942 = vpack.c.b16 %v8517, %v8500
        %v8943 = vpack.c.b16 %v8518, %v8501
        %v8944 = vpack.c.b16 %v8519, %v8502
        %v8945 = vpack.c.b16 %v8537, %v8520
        %v8946 = vpack.c.b16 %v8538, %v8521
        %v8947 = vpack.c.b16 %v8539, %v8522
        %v8948 = vpack.c.b16 %v8540, %v8523
        %v8949 = vpack.c.b16 %v8541, %v8524
        %v8950 = vpack.c.b16 %v8542, %v8525
        %v8951 = vpack.c.b16 %v8543, %v8526
        %v8952 = vpack.c.b16 %v8544, %v8527
        %v8953 = vpack.c.b16 %v8545, %v8528
        %v8954 = vpack.c.b16 %v8546, %v8529
        %v8955 = vpack.c.b16 %v8547, %v8530
        %v8956 = vpack.c.b16 %v8548, %v8531
        %v8957 = vpack.c.b16 %v8549, %v8532
        %v8958 = vpack.c.b16 %v8550, %v8533
        %v8959 = vpack.c.b16 %v8551, %v8534
        %v8960 = vpack.c.b16 %v8552, %v8535
        %v8961 = vpack.c.b16 %v8553, %v8536
        %v8962 = vpack.c.b16 %v8571, %v8554
        %v8963 = vpack.c.b16 %v8572, %v8555
        %v8964 = vpack.c.b16 %v8573, %v8556
        %v8965 = vpack.c.b16 %v8574, %v8557
        %v8966 = vpack.c.b16 %v8575, %v8558
        %v8967 = vpack.c.b16 %v8576, %v8559
        %v8968 = vpack.c.b16 %v8577, %v8560
        %v8969 = vpack.c.b16 %v8578, %v8561
        %v8970 = vpack.c.b16 %v8579, %v8562
        %v8971 = vpack.c.b16 %v8580, %v8563
        %v8972 = vpack.c.b16 %v8581, %v8564
        %v8973 = vpack.c.b16 %v8582, %v8565
        %v8974 = vpack.c.b16 %v8583, %v8566
        %v8975 = vpack.c.b16 %v8584, %v8567
        %v8976 = vpack.c.b16 %v8585, %v8568
        %v8977 = vpack.c.b16 %v8586, %v8569
        %v8978 = vpack.c.b16 %v8587, %v8570
        %v8979 = vpack.c.b16 %v8605, %v8588
        %v8980 = vpack.c.b16 %v8606, %v8589
        %v8981 = vpack.c.b16 %v8607, %v8590
        %v8982 = vpack.c.b16 %v8608, %v8591
        %v8983 = vpack.c.b16 %v8609, %v8592
        %v8984 = vpack.c.b16 %v8610, %v8593
        %v8985 = vpack.c.b16 %v8611, %v8594
        %v8986 = vpack.c.b16 %v8612, %v8595
        %v8987 = vpack.c.b16 %v8613, %v8596
        %v8988 = vpack.c.b16 %v8614, %v8597
        %v8989 = vpack.c.b16 %v8615, %v8598
        %v8990 = vpack.c.b16 %v8616, %v8599
        %v8991 = vpack.c.b16 %v8617, %v8600
        %v8992 = vpack.c.b16 %v8618, %v8601
        %v8993 = vpack.c.b16 %v8619, %v8602
        %v8994 = vpack.c.b16 %v8620, %v8603
        %v8995 = vpack.c.b16 %v8621, %v8604
        %v8996 = vpack.c.b16 %v8639, %v8622
        %v8997 = vpack.c.b16 %v8640, %v8623
        %v8998 = vpack.c.b16 %v8641, %v8624
        %v8999 = vpack.c.b16 %v8642, %v8625
        %v9000 = vpack.c.b16 %v8643, %v8626
        %v9001 = vpack.c.b16 %v8644, %v8627
        %v9002 = vpack.c.b16 %v8645, %v8628
        %v9003 = vpack.c.b16 %v8646, %v8629
        %v9004 = vpack.c.b16 %v8647, %v8630
        %v9005 = vpack.c.b16 %v8648, %v8631
        %v9006 = vpack.c.b16 %v8649, %v8632
        %v9007 = vpack.c.b16 %v8650, %v8633
        %v9008 = vpack.c.b16 %v8651, %v8634
        %v9009 = vpack.c.b16 %v8652, %v8635
        %v9010 = vpack.c.b16 %v8653, %v8636
        %v9011 = vpack.c.b16 %v8654, %v8637
        %v9012 = vpack.c.b16 %v8655, %v8638
        %v9013 = vpack.c.b16 %v8673, %v8656
        %v9014 = vpack.c.b16 %v8674, %v8657
        %v9015 = vpack.c.b16 %v8675, %v8658
        %v9016 = vpack.c.b16 %v8676, %v8659
        %v9017 = vpack.c.b16 %v8677, %v8660
        %v9018 = vpack.c.b16 %v8678, %v8661
        %v9019 = vpack.c.b16 %v8679, %v8662
        %v9020 = vpack.c.b16 %v8680, %v8663
        %v9021 = vpack.c.b16 %v8681, %v8664
        %v9022 = vpack.c.b16 %v8682, %v8665
        %v9023 = vpack.c.b16 %v8683, %v8666
        %v9024 = vpack.c.b16 %v8684, %v8667
        %v9025 = vpack.c.b16 %v8685, %v8668
        %v9026 = vpack.c.b16 %v8686, %v8669
        %v9027 = vpack.c.b16 %v8687, %v8670
        %v9028 = vpack.c.b16 %v8688, %v8671
        %v9029 = vpack.c.b16 %v8689, %v8672
        %v9030 = vpack.c.b16 %v8707, %v8690
        %v9031 = vpack.c.b16 %v8708, %v8691
        %v9032 = vpack.c.b16 %v8709, %v8692
        %v9033 = vpack.c.b16 %v8710, %v8693
        %v9034 = vpack.c.b16 %v8711, %v8694
        %v9035 = vpack.c.b16 %v8712, %v8695
        %v9036 = vpack.c.b16 %v8713, %v8696
        %v9037 = vpack.c.b16 %v8714, %v8697
        %v9038 = vpack.c.b16 %v8715, %v8698
        %v9039 = vpack.c.b16 %v8716, %v8699
        %v9040 = vpack.c.b16 %v8717, %v8700
        %v9041 = vpack.c.b16 %v8718, %v8701
        %v9042 = vpack.c.b16 %v8719, %v8702
        %v9043 = vpack.c.b16 %v8720, %v8703
        %v9044 = vpack.c.b16 %v8721, %v8704
        %v9045 = vpack.c.b16 %v8722, %v8705
        %v9046 = vpack.c.b16 %v8723, %v8706
        %v9047 = vpack.c.b16 %v8741, %v8724
        %v9048 = vpack.c.b16 %v8742, %v8725
        %v9049 = vpack.c.b16 %v8743, %v8726
        %v9050 = vpack.c.b16 %v8744, %v8727
        %v9051 = vpack.c.b16 %v8745, %v8728
        %v9052 = vpack.c.b16 %v8746, %v8729
        %v9053 = vpack.c.b16 %v8747, %v8730
        %v9054 = vpack.c.b16 %v8748, %v8731
        %v9055 = vpack.c.b16 %v8749, %v8732
        %v9056 = vpack.c.b16 %v8750, %v8733
        %v9057 = vpack.c.b16 %v8751, %v8734
        %v9058 = vpack.c.b16 %v8752, %v8735
        %v9059 = vpack.c.b16 %v8753, %v8736
        %v9060 = vpack.c.b16 %v8754, %v8737
        %v9061 = vpack.c.b16 %v8755, %v8738
        %v9062 = vpack.c.b16 %v8756, %v8739
        %v9063 = vpack.c.b16 %v8757, %v8740
        %v9064 = vpack.c.b16 %v8775, %v8758
        %v9065 = vpack.c.b16 %v8776, %v8759
        %v9066 = vpack.c.b16 %v8777, %v8760
        %v9067 = vpack.c.b16 %v8778, %v8761
        %v9068 = vpack.c.b16 %v8779, %v8762
        %v9069 = vpack.c.b16 %v8780, %v8763
        %v9070 = vpack.c.b16 %v8781, %v8764
        %v9071 = vpack.c.b16 %v8782, %v8765
        %v9072 = vpack.c.b16 %v8783, %v8766
        %v9073 = vpack.c.b16 %v8784, %v8767
        %v9074 = vpack.c.b16 %v8785, %v8768
        %v9075 = vpack.c.b16 %v8786, %v8769
        %v9076 = vpack.c.b16 %v8787, %v8770
        %v9077 = vpack.c.b16 %v8788, %v8771
        %v9078 = vpack.c.b16 %v8789, %v8772
        %v9079 = vpack.c.b16 %v8790, %v8773
        %v9080 = vpack.c.b16 %v8791, %v8774
        %v9081 = vpack.c.b16 %v8809, %v8792
        %v9082 = vpack.c.b16 %v8810, %v8793
        %v9083 = vpack.c.b16 %v8811, %v8794
        %v9084 = vpack.c.b16 %v8812, %v8795
        %v9085 = vpack.c.b16 %v8813, %v8796
        %v9086 = vpack.c.b16 %v8814, %v8797
        %v9087 = vpack.c.b16 %v8815, %v8798
        %v9088 = vpack.c.b16 %v8816, %v8799
        %v9089 = vpack.c.b16 %v8817, %v8800
        %v9090 = vpack.c.b16 %v8818, %v8801
        %v9091 = vpack.c.b16 %v8819, %v8802
        %v9092 = vpack.c.b16 %v8820, %v8803
        %v9093 = vpack.c.b16 %v8821, %v8804
        %v9094 = vpack.c.b16 %v8822, %v8805
        %v9095 = vpack.c.b16 %v8823, %v8806
        %v9096 = vpack.c.b16 %v8824, %v8807
        %v9097 = vpack.c.b16 %v8825, %v8808
        %9370 = vmatprep.subr.bf16.mxu0 %v8827
        %9371 = vmatpush1.bf16.msra.mxu0 %v8826
        %9372 = vmatprep.subr.bf16.mxu0 %v8844
        %9373 = vmatpush1.bf16.msra.mxu0 %v8843
        %9374 = vmatprep.subr.bf16.mxu0 %v8861
        %9375 = vmatpush1.bf16.msra.mxu0 %v8860
        %9376 = vmatprep.subr.bf16.mxu0 %v8878
        %9377 = vmatpush1.bf16.msra.mxu0 %v8877
        %9378 = vmatprep.subr.bf16.mxu0 %v8895
        %9379 = vmatpush1.bf16.msra.mxu0 %v8894
        %9380 = vmatprep.subr.bf16.mxu0 %v8912
        %9381 = vmatpush1.bf16.msra.mxu0 %v8911
        %9382 = vmatprep.subr.bf16.mxu0 %v8929
        %9383 = vmatpush1.bf16.msra.mxu0 %v8928
        %9384 = vmatprep.subr.bf16.mxu0 %v8946
        %9385 = vmatpush1.bf16.msra.mxu0 %v8945
        %9386 = vmatprep.subr.bf16.mxu0 %v8963
        %9387 = vmatpush1.bf16.msra.mxu0 %v8962
        %9388 = vmatprep.subr.bf16.mxu0 %v8980
        %9389 = vmatpush1.bf16.msra.mxu0 %v8979
        %9390 = vmatprep.subr.bf16.mxu0 %v8997
        %9391 = vmatpush1.bf16.msra.mxu0 %v8996
        %9392 = vmatprep.subr.bf16.mxu0 %v9014
        %9393 = vmatpush1.bf16.msra.mxu0 %v9013
        %9394 = vmatprep.subr.bf16.mxu0 %v9031
        %9395 = vmatpush1.bf16.msra.mxu0 %v9030
        %9396 = vmatprep.subr.bf16.mxu0 %v9048
        %9397 = vmatpush1.bf16.msra.mxu0 %v9047
        %9398 = vmatprep.subr.bf16.mxu0 %v9065
        %9399 = vmatpush1.bf16.msra.mxu0 %v9064
        %9400 = vmatprep.subr.bf16.mxu0 %v9082
        %9401 = vmatpush1.bf16.msra.mxu0 %v9081
        %9402 = vmatprep.mubr.bf16.mxu0 %v7483
        %9403 = vmatmul.mubr.bf16.gmra.mrb[0].mxu0 %v7482
        %v9404 = vpop.f32.mrb[0].mxu0
        %v9405 = vadd.f32 0.0, %v9404
        %v9406 = vpop.f32.mrb[0].mxu0
        %v9407 = vadd.f32 0.0, %v9406
        %v9408 = vpop.f32.mrb[0].mxu0
        %v9409 = vadd.f32 0.0, %v9408
        %v9410 = vpop.f32.mrb[0].mxu0
        %v9411 = vadd.f32 0.0, %v9410
        %9412 = vmatprep.mubr.bf16.mxu0 %v7485
        %9413 = vmatmul.mubr.bf16.gmra.mrb[0].mxu0 %v7484
        %v9414 = vpop.f32.mrb[0].mxu0
        %v9415 = vadd.f32 0.0, %v9414
        %v9416 = vpop.f32.mrb[0].mxu0
        %v9417 = vadd.f32 0.0, %v9416
        %v9418 = vpop.f32.mrb[0].mxu0
        %v9419 = vadd.f32 0.0, %v9418
        %v9420 = vpop.f32.mrb[0].mxu0
        %v9421 = vadd.f32 0.0, %v9420
        %9422 = vmatprep.mubr.bf16.mxu0 %v7487
        %9423 = vmatmul.mubr.bf16.gmra.mrb[0].mxu0 %v7486
        %v9424 = vpop.f32.mrb[0].mxu0
        %v9425 = vadd.f32 0.0, %v9424
        %v9426 = vpop.f32.mrb[0].mxu0
        %v9427 = vadd.f32 0.0, %v9426
        %v9428 = vpop.f32.mrb[0].mxu0
        %v9429 = vadd.f32 0.0, %v9428
        %v9430 = vpop.f32.mrb[0].mxu0
        %v9431 = vadd.f32 0.0, %v9430
        %9432 = vmatprep.mubr.bf16.mxu0 %v7489
        %9433 = vmatmul.mubr.bf16.gmra.mrb[0].mxu0 %v7488
        %v9434 = vpop.f32.mrb[0].mxu0
        %v9435 = vadd.f32 0.0, %v9434
        %v9436 = vpop.f32.mrb[0].mxu0
        %v9437 = vadd.f32 0.0, %v9436
        %v9438 = vpop.f32.mrb[0].mxu0
        %v9439 = vadd.f32 0.0, %v9438
        %v9440 = vpop.f32.mrb[0].mxu0
        %v9441 = vadd.f32 0.0, %v9440
        %9442 = vdwg.mxu0
        %9443 = vmatprep.subr.bf16.mxu0 %v8829
        %9444 = vmatpush1.bf16.msra.mxu0 %v8828
        %9445 = vmatprep.subr.bf16.mxu0 %v8846
        %9446 = vmatpush1.bf16.msra.mxu0 %v8845
        %9447 = vmatprep.subr.bf16.mxu0 %v8863
        %9448 = vmatpush1.bf16.msra.mxu0 %v8862
        %9449 = vmatprep.subr.bf16.mxu0 %v8880
        %9450 = vmatpush1.bf16.msra.mxu0 %v8879
        %9451 = vmatprep.subr.bf16.mxu0 %v8897
        %9452 = vmatpush1.bf16.msra.mxu0 %v8896
        %9453 = vmatprep.subr.bf16.mxu0 %v8914
        %9454 = vmatpush1.bf16.msra.mxu0 %v8913
        %9455 = vmatprep.subr.bf16.mxu0 %v8931
        %9456 = vmatpush1.bf16.msra.mxu0 %v8930
        %9457 = vmatprep.subr.bf16.mxu0 %v8948
        %9458 = vmatpush1.bf16.msra.mxu0 %v8947
        %9459 = vmatprep.subr.bf16.mxu0 %v8965
        %9460 = vmatpush1.bf16.msra.mxu0 %v8964
        %9461 = vmatprep.subr.bf16.mxu0 %v8982
        %9462 = vmatpush1.bf16.msra.mxu0 %v8981
        %9463 = vmatprep.subr.bf16.mxu0 %v8999
        %9464 = vmatpush1.bf16.msra.mxu0 %v8998
        %9465 = vmatprep.subr.bf16.mxu0 %v9016
        %9466 = vmatpush1.bf16.msra.mxu0 %v9015
        %9467 = vmatprep.subr.bf16.mxu0 %v9033
        %9468 = vmatpush1.bf16.msra.mxu0 %v9032
        %9469 = vmatprep.subr.bf16.mxu0 %v9050
        %9470 = vmatpush1.bf16.msra.mxu0 %v9049
        %9471 = vmatprep.subr.bf16.mxu0 %v9067
        %9472 = vmatpush1.bf16.msra.mxu0 %v9066
        %9473 = vmatprep.subr.bf16.mxu0 %v9084
        %9474 = vmatpush1.bf16.msra.mxu0 %v9083
        %9475 = vmatprep.mubr.bf16.mxu0 %v7483
        %9476 = vmatmul.mubr.bf16.gmra.mrb[0].mxu0 %v7482
        %v9477 = vpop.f32.mrb[0].mxu0
        %v9478 = vadd.f32 0.0, %v9477
        %v9479 = vpop.f32.mrb[0].mxu0
        %v9480 = vadd.f32 0.0, %v9479
        %v9481 = vpop.f32.mrb[0].mxu0
        %v9482 = vadd.f32 0.0, %v9481
        %v9483 = vpop.f32.mrb[0].mxu0
        %v9484 = vadd.f32 0.0, %v9483
        %9485 = vmatprep.mubr.bf16.mxu0 %v7485
        %9486 = vmatmul.mubr.bf16.gmra.mrb[0].mxu0 %v7484
        %v9487 = vpop.f32.mrb[0].mxu0
        %v9488 = vadd.f32 0.0, %v9487
        %v9489 = vpop.f32.mrb[0].mxu0
        %v9490 = vadd.f32 0.0, %v9489
        %v9491 = vpop.f32.mrb[0].mxu0
        %v9492 = vadd.f32 0.0, %v9491
        %v9493 = vpop.f32.mrb[0].mxu0
        %v9494 = vadd.f32 0.0, %v9493
        %9495 = vmatprep.mubr.bf16.mxu0 %v7487
        %9496 = vmatmul.mubr.bf16.gmra.mrb[0].mxu0 %v7486
        %v9497 = vpop.f32.mrb[0].mxu0
        %v9498 = vadd.f32 0.0, %v9497
        %v9499 = vpop.f32.mrb[0].mxu0
        %v9500 = vadd.f32 0.0, %v9499
        %v9501 = vpop.f32.mrb[0].mxu0
        %v9502 = vadd.f32 0.0, %v9501
        %v9503 = vpop.f32.mrb[0].mxu0
        %v9504 = vadd.f32 0.0, %v9503
        %9505 = vmatprep.mubr.bf16.mxu0 %v7489
        %9506 = vmatmul.mubr.bf16.gmra.mrb[0].mxu0 %v7488
        %v9507 = vpop.f32.mrb[0].mxu0
        %v9508 = vadd.f32 0.0, %v9507
        %v9509 = vpop.f32.mrb[0].mxu0
        %v9510 = vadd.f32 0.0, %v9509
        %v9511 = vpop.f32.mrb[0].mxu0
        %v9512 = vadd.f32 0.0, %v9511
        %v9513 = vpop.f32.mrb[0].mxu0
        %v9514 = vadd.f32 0.0, %v9513
        %9515 = vdwg.mxu0
        %9516 = vmatprep.subr.bf16.mxu0 %v8831
        %9517 = vmatpush1.bf16.msra.mxu0 %v8830
        %9518 = vmatprep.subr.bf16.mxu0 %v8848
        %9519 = vmatpush1.bf16.msra.mxu0 %v8847
        %9520 = vmatprep.subr.bf16.mxu0 %v8865
        %9521 = vmatpush1.bf16.msra.mxu0 %v8864
        %9522 = vmatprep.subr.bf16.mxu0 %v8882
        %9523 = vmatpush1.bf16.msra.mxu0 %v8881
        %9524 = vmatprep.subr.bf16.mxu0 %v8899
        %9525 = vmatpush1.bf16.msra.mxu0 %v8898
        %9526 = vmatprep.subr.bf16.mxu0 %v8916
        %9527 = vmatpush1.bf16.msra.mxu0 %v8915
        %9528 = vmatprep.subr.bf16.mxu0 %v8933
        %9529 = vmatpush1.bf16.msra.mxu0 %v8932
        %9530 = vmatprep.subr.bf16.mxu0 %v8950
        %9531 = vmatpush1.bf16.msra.mxu0 %v8949
        %9532 = vmatprep.subr.bf16.mxu0 %v8967
        %9533 = vmatpush1.bf16.msra.mxu0 %v8966
        %9534 = vmatprep.subr.bf16.mxu0 %v8984
        %9535 = vmatpush1.bf16.msra.mxu0 %v8983
        %9536 = vmatprep.subr.bf16.mxu0 %v9001
        %9537 = vmatpush1.bf16.msra.mxu0 %v9000
        %9538 = vmatprep.subr.bf16.mxu0 %v9018
        %9539 = vmatpush1.bf16.msra.mxu0 %v9017
        %9540 = vmatprep.subr.bf16.mxu0 %v9035
        %9541 = vmatpush1.bf16.msra.mxu0 %v9034
        %9542 = vmatprep.subr.bf16.mxu0 %v9052
        %9543 = vmatpush1.bf16.msra.mxu0 %v9051
        %9544 = vmatprep.subr.bf16.mxu0 %v9069
        %9545 = vmatpush1.bf16.msra.mxu0 %v9068
        %9546 = vmatprep.subr.bf16.mxu0 %v9086
        %9547 = vmatpush1.bf16.msra.mxu0 %v9085
        %9548 = vmatprep.mubr.bf16.mxu0 %v7483
        %9549 = vmatmul.mubr.bf16.gmra.mrb[0].mxu0 %v7482
        %v9550 = vpop.f32.mrb[0].mxu0
        %v9551 = vadd.f32 0.0, %v9550
        %v9552 = vpop.f32.mrb[0].mxu0
        %v9553 = vadd.f32 0.0, %v9552
        %v9554 = vpop.f32.mrb[0].mxu0
        %v9555 = vadd.f32 0.0, %v9554
        %v9556 = vpop.f32.mrb[0].mxu0
        %v9557 = vadd.f32 0.0, %v9556
        %9558 = vmatprep.mubr.bf16.mxu0 %v7485
        %9559 = vmatmul.mubr.bf16.gmra.mrb[0].mxu0 %v7484
        %v9560 = vpop.f32.mrb[0].mxu0
        %v9561 = vadd.f32 0.0, %v9560
        %v9562 = vpop.f32.mrb[0].mxu0
        %v9563 = vadd.f32 0.0, %v9562
        %v9564 = vpop.f32.mrb[0].mxu0
        %v9565 = vadd.f32 0.0, %v9564
        %v9566 = vpop.f32.mrb[0].mxu0
        %v9567 = vadd.f32 0.0, %v9566
        %9568 = vmatprep.mubr.bf16.mxu0 %v7487
        %9569 = vmatmul.mubr.bf16.gmra.mrb[0].mxu0 %v7486
        %v9570 = vpop.f32.mrb[0].mxu0
        %v9571 = vadd.f32 0.0, %v9570
        %v9572 = vpop.f32.mrb[0].mxu0
        %v9573 = vadd.f32 0.0, %v9572
        %v9574 = vpop.f32.mrb[0].mxu0
        %v9575 = vadd.f32 0.0, %v9574
        %v9576 = vpop.f32.mrb[0].mxu0
        %v9577 = vadd.f32 0.0, %v9576
        %9578 = vmatprep.mubr.bf16.mxu0 %v7489
        %9579 = vmatmul.mubr.bf16.gmra.mrb[0].mxu0 %v7488
        %v9580 = vpop.f32.mrb[0].mxu0
        %v9581 = vadd.f32 0.0, %v9580
        %v9582 = vpop.f32.mrb[0].mxu0
        %v9583 = vadd.f32 0.0, %v9582
        %v9584 = vpop.f32.mrb[0].mxu0
        %v9585 = vadd.f32 0.0, %v9584
        %v9586 = vpop.f32.mrb[0].mxu0
        %v9587 = vadd.f32 0.0, %v9586
        %9588 = vdwg.mxu0
        %9589 = vmatprep.subr.bf16.mxu0 %v8833
        %9590 = vmatpush1.bf16.msra.mxu0 %v8832
        %9591 = vmatprep.subr.bf16.mxu0 %v8850
        %9592 = vmatpush1.bf16.msra.mxu0 %v8849
        %9593 = vmatprep.subr.bf16.mxu0 %v8867
        %9594 = vmatpush1.bf16.msra.mxu0 %v8866
        %9595 = vmatprep.subr.bf16.mxu0 %v8884
        %9596 = vmatpush1.bf16.msra.mxu0 %v8883
        %9597 = vmatprep.subr.bf16.mxu0 %v8901
        %9598 = vmatpush1.bf16.msra.mxu0 %v8900
        %9599 = vmatprep.subr.bf16.mxu0 %v8918
        %9600 = vmatpush1.bf16.msra.mxu0 %v8917
        %9601 = vmatprep.subr.bf16.mxu0 %v8935
        %9602 = vmatpush1.bf16.msra.mxu0 %v8934
        %9603 = vmatprep.subr.bf16.mxu0 %v8952
        %9604 = vmatpush1.bf16.msra.mxu0 %v8951
        %9605 = vmatprep.subr.bf16.mxu0 %v8969
        %9606 = vmatpush1.bf16.msra.mxu0 %v8968
        %9607 = vmatprep.subr.bf16.mxu0 %v8986
        %9608 = vmatpush1.bf16.msra.mxu0 %v8985
        %9609 = vmatprep.subr.bf16.mxu0 %v9003
        %9610 = vmatpush1.bf16.msra.mxu0 %v9002
        %9611 = vmatprep.subr.bf16.mxu0 %v9020
        %9612 = vmatpush1.bf16.msra.mxu0 %v9019
        %9613 = vmatprep.subr.bf16.mxu0 %v9037
        %9614 = vmatpush1.bf16.msra.mxu0 %v9036
        %9615 = vmatprep.subr.bf16.mxu0 %v9054
        %9616 = vmatpush1.bf16.msra.mxu0 %v9053
        %9617 = vmatprep.subr.bf16.mxu0 %v9071
        %9618 = vmatpush1.bf16.msra.mxu0 %v9070
        %9619 = vmatprep.subr.bf16.mxu0 %v9088
        %9620 = vmatpush1.bf16.msra.mxu0 %v9087
        %9621 = vmatprep.mubr.bf16.mxu0 %v7483
        %9622 = vmatmul.mubr.bf16.gmra.mrb[0].mxu0 %v7482
        %v9623 = vpop.f32.mrb[0].mxu0
        %v9624 = vadd.f32 0.0, %v9623
        %v9625 = vpop.f32.mrb[0].mxu0
        %v9626 = vadd.f32 0.0, %v9625
        %v9627 = vpop.f32.mrb[0].mxu0
        %v9628 = vadd.f32 0.0, %v9627
        %v9629 = vpop.f32.mrb[0].mxu0
        %v9630 = vadd.f32 0.0, %v9629
        %9631 = vmatprep.mubr.bf16.mxu0 %v7485
        %9632 = vmatmul.mubr.bf16.gmra.mrb[0].mxu0 %v7484
        %v9633 = vpop.f32.mrb[0].mxu0
        %v9634 = vadd.f32 0.0, %v9633
        %v9635 = vpop.f32.mrb[0].mxu0
        %v9636 = vadd.f32 0.0, %v9635
        %v9637 = vpop.f32.mrb[0].mxu0
        %v9638 = vadd.f32 0.0, %v9637
        %v9639 = vpop.f32.mrb[0].mxu0
        %v9640 = vadd.f32 0.0, %v9639
        %9641 = vmatprep.mubr.bf16.mxu0 %v7487
        %9642 = vmatmul.mubr.bf16.gmra.mrb[0].mxu0 %v7486
        %v9643 = vpop.f32.mrb[0].mxu0
        %v9644 = vadd.f32 0.0, %v9643
        %v9645 = vpop.f32.mrb[0].mxu0
        %v9646 = vadd.f32 0.0, %v9645
        %v9647 = vpop.f32.mrb[0].mxu0
        %v9648 = vadd.f32 0.0, %v9647
        %v9649 = vpop.f32.mrb[0].mxu0
        %v9650 = vadd.f32 0.0, %v9649
        %9651 = vmatprep.mubr.bf16.mxu0 %v7489
        %9652 = vmatmul.mubr.bf16.gmra.mrb[0].mxu0 %v7488
        %v9653 = vpop.f32.mrb[0].mxu0
        %v9654 = vadd.f32 0.0, %v9653
        %v9655 = vpop.f32.mrb[0].mxu0
        %v9656 = vadd.f32 0.0, %v9655
        %v9657 = vpop.f32.mrb[0].mxu0
        %v9658 = vadd.f32 0.0, %v9657
        %v9659 = vpop.f32.mrb[0].mxu0
        %v9660 = vadd.f32 0.0, %v9659
        %9661 = vdwg.mxu0
        %9662 = vmatprep.subr.bf16.mxu0 %v8835
        %9663 = vmatpush1.bf16.msra.mxu0 %v8834
        %9664 = vmatprep.subr.bf16.mxu0 %v8852
        %9665 = vmatpush1.bf16.msra.mxu0 %v8851
        %9666 = vmatprep.subr.bf16.mxu0 %v8869
        %9667 = vmatpush1.bf16.msra.mxu0 %v8868
        %9668 = vmatprep.subr.bf16.mxu0 %v8886
        %9669 = vmatpush1.bf16.msra.mxu0 %v8885
        %9670 = vmatprep.subr.bf16.mxu0 %v8903
        %9671 = vmatpush1.bf16.msra.mxu0 %v8902
        %9672 = vmatprep.subr.bf16.mxu0 %v8920
        %9673 = vmatpush1.bf16.msra.mxu0 %v8919
        %9674 = vmatprep.subr.bf16.mxu0 %v8937
        %9675 = vmatpush1.bf16.msra.mxu0 %v8936
        %9676 = vmatprep.subr.bf16.mxu0 %v8954
        %9677 = vmatpush1.bf16.msra.mxu0 %v8953
        %9678 = vmatprep.subr.bf16.mxu0 %v8971
        %9679 = vmatpush1.bf16.msra.mxu0 %v8970
        %9680 = vmatprep.subr.bf16.mxu0 %v8988
        %9681 = vmatpush1.bf16.msra.mxu0 %v8987
        %9682 = vmatprep.subr.bf16.mxu0 %v9005
        %9683 = vmatpush1.bf16.msra.mxu0 %v9004
        %9684 = vmatprep.subr.bf16.mxu0 %v9022
        %9685 = vmatpush1.bf16.msra.mxu0 %v9021
        %9686 = vmatprep.subr.bf16.mxu0 %v9039
        %9687 = vmatpush1.bf16.msra.mxu0 %v9038
        %9688 = vmatprep.subr.bf16.mxu0 %v9056
        %9689 = vmatpush1.bf16.msra.mxu0 %v9055
        %9690 = vmatprep.subr.bf16.mxu0 %v9073
        %9691 = vmatpush1.bf16.msra.mxu0 %v9072
        %9692 = vmatprep.subr.bf16.mxu0 %v9090
        %9693 = vmatpush1.bf16.msra.mxu0 %v9089
        %9694 = vmatprep.mubr.bf16.mxu0 %v7483
        %9695 = vmatmul.mubr.bf16.gmra.mrb[0].mxu0 %v7482
        %v9696 = vpop.f32.mrb[0].mxu0
        %v9697 = vadd.f32 0.0, %v9696
        %v9698 = vpop.f32.mrb[0].mxu0
        %v9699 = vadd.f32 0.0, %v9698
        %v9700 = vpop.f32.mrb[0].mxu0
        %v9701 = vadd.f32 0.0, %v9700
        %v9702 = vpop.f32.mrb[0].mxu0
        %v9703 = vadd.f32 0.0, %v9702
        %9704 = vmatprep.mubr.bf16.mxu0 %v7485
        %9705 = vmatmul.mubr.bf16.gmra.mrb[0].mxu0 %v7484
        %v9706 = vpop.f32.mrb[0].mxu0
        %v9707 = vadd.f32 0.0, %v9706
        %v9708 = vpop.f32.mrb[0].mxu0
        %v9709 = vadd.f32 0.0, %v9708
        %v9710 = vpop.f32.mrb[0].mxu0
        %v9711 = vadd.f32 0.0, %v9710
        %v9712 = vpop.f32.mrb[0].mxu0
        %v9713 = vadd.f32 0.0, %v9712
        %9714 = vmatprep.mubr.bf16.mxu0 %v7487
        %9715 = vmatmul.mubr.bf16.gmra.mrb[0].mxu0 %v7486
        %v9716 = vpop.f32.mrb[0].mxu0
        %v9717 = vadd.f32 0.0, %v9716
        %v9718 = vpop.f32.mrb[0].mxu0
        %v9719 = vadd.f32 0.0, %v9718
        %v9720 = vpop.f32.mrb[0].mxu0
        %v9721 = vadd.f32 0.0, %v9720
        %v9722 = vpop.f32.mrb[0].mxu0
        %v9723 = vadd.f32 0.0, %v9722
        %9724 = vmatprep.mubr.bf16.mxu0 %v7489
        %9725 = vmatmul.mubr.bf16.gmra.mrb[0].mxu0 %v7488
        %v9726 = vpop.f32.mrb[0].mxu0
        %v9727 = vadd.f32 0.0, %v9726
        %v9728 = vpop.f32.mrb[0].mxu0
        %v9729 = vadd.f32 0.0, %v9728
        %v9730 = vpop.f32.mrb[0].mxu0
        %v9731 = vadd.f32 0.0, %v9730
        %v9732 = vpop.f32.mrb[0].mxu0
        %v9733 = vadd.f32 0.0, %v9732
        %9734 = vdwg.mxu0
        %9735 = vmatprep.subr.bf16.mxu0 %v8837
        %9736 = vmatpush1.bf16.msra.mxu0 %v8836
        %9737 = vmatprep.subr.bf16.mxu0 %v8854
        %9738 = vmatpush1.bf16.msra.mxu0 %v8853
        %9739 = vmatprep.subr.bf16.mxu0 %v8871
        %9740 = vmatpush1.bf16.msra.mxu0 %v8870
        %9741 = vmatprep.subr.bf16.mxu0 %v8888
        %9742 = vmatpush1.bf16.msra.mxu0 %v8887
        %9743 = vmatprep.subr.bf16.mxu0 %v8905
        %9744 = vmatpush1.bf16.msra.mxu0 %v8904
        %9745 = vmatprep.subr.bf16.mxu0 %v8922
        %9746 = vmatpush1.bf16.msra.mxu0 %v8921
        %9747 = vmatprep.subr.bf16.mxu0 %v8939
        %9748 = vmatpush1.bf16.msra.mxu0 %v8938
        %9749 = vmatprep.subr.bf16.mxu0 %v8956
        %9750 = vmatpush1.bf16.msra.mxu0 %v8955
        %9751 = vmatprep.subr.bf16.mxu0 %v8973
        %9752 = vmatpush1.bf16.msra.mxu0 %v8972
        %9753 = vmatprep.subr.bf16.mxu0 %v8990
        %9754 = vmatpush1.bf16.msra.mxu0 %v8989
        %9755 = vmatprep.subr.bf16.mxu0 %v9007
        %9756 = vmatpush1.bf16.msra.mxu0 %v9006
        %9757 = vmatprep.subr.bf16.mxu0 %v9024
        %9758 = vmatpush1.bf16.msra.mxu0 %v9023
        %9759 = vmatprep.subr.bf16.mxu0 %v9041
        %9760 = vmatpush1.bf16.msra.mxu0 %v9040
        %9761 = vmatprep.subr.bf16.mxu0 %v9058
        %9762 = vmatpush1.bf16.msra.mxu0 %v9057
        %9763 = vmatprep.subr.bf16.mxu0 %v9075
        %9764 = vmatpush1.bf16.msra.mxu0 %v9074
        %9765 = vmatprep.subr.bf16.mxu0 %v9092
        %9766 = vmatpush1.bf16.msra.mxu0 %v9091
        %9767 = vmatprep.mubr.bf16.mxu0 %v7483
        %9768 = vmatmul.mubr.bf16.gmra.mrb[0].mxu0 %v7482
        %v9769 = vpop.f32.mrb[0].mxu0
        %v9770 = vadd.f32 0.0, %v9769
        %v9771 = vpop.f32.mrb[0].mxu0
        %v9772 = vadd.f32 0.0, %v9771
        %v9773 = vpop.f32.mrb[0].mxu0
        %v9774 = vadd.f32 0.0, %v9773
        %v9775 = vpop.f32.mrb[0].mxu0
        %v9776 = vadd.f32 0.0, %v9775
        %9777 = vmatprep.mubr.bf16.mxu0 %v7485
        %9778 = vmatmul.mubr.bf16.gmra.mrb[0].mxu0 %v7484
        %v9779 = vpop.f32.mrb[0].mxu0
        %v9780 = vadd.f32 0.0, %v9779
        %v9781 = vpop.f32.mrb[0].mxu0
        %v9782 = vadd.f32 0.0, %v9781
        %v9783 = vpop.f32.mrb[0].mxu0
        %v9784 = vadd.f32 0.0, %v9783
        %v9785 = vpop.f32.mrb[0].mxu0
        %v9786 = vadd.f32 0.0, %v9785
        %9787 = vmatprep.mubr.bf16.mxu0 %v7487
        %9788 = vmatmul.mubr.bf16.gmra.mrb[0].mxu0 %v7486
        %v9789 = vpop.f32.mrb[0].mxu0
        %v9790 = vadd.f32 0.0, %v9789
        %v9791 = vpop.f32.mrb[0].mxu0
        %v9792 = vadd.f32 0.0, %v9791
        %v9793 = vpop.f32.mrb[0].mxu0
        %v9794 = vadd.f32 0.0, %v9793
        %v9795 = vpop.f32.mrb[0].mxu0
        %v9796 = vadd.f32 0.0, %v9795
        %9797 = vmatprep.mubr.bf16.mxu0 %v7489
        %9798 = vmatmul.mubr.bf16.gmra.mrb[0].mxu0 %v7488
        %v9799 = vpop.f32.mrb[0].mxu0
        %v9800 = vadd.f32 0.0, %v9799
        %v9801 = vpop.f32.mrb[0].mxu0
        %v9802 = vadd.f32 0.0, %v9801
        %v9803 = vpop.f32.mrb[0].mxu0
        %v9804 = vadd.f32 0.0, %v9803
        %v9805 = vpop.f32.mrb[0].mxu0
        %v9806 = vadd.f32 0.0, %v9805
        %9807 = vdwg.mxu0
        %9808 = vmatprep.subr.bf16.mxu0 %v8839
        %9809 = vmatpush1.bf16.msra.mxu0 %v8838
        %9810 = vmatprep.subr.bf16.mxu0 %v8856
        %9811 = vmatpush1.bf16.msra.mxu0 %v8855
        %9812 = vmatprep.subr.bf16.mxu0 %v8873
        %9813 = vmatpush1.bf16.msra.mxu0 %v8872
        %9814 = vmatprep.subr.bf16.mxu0 %v8890
        %9815 = vmatpush1.bf16.msra.mxu0 %v8889
        %9816 = vmatprep.subr.bf16.mxu0 %v8907
        %9817 = vmatpush1.bf16.msra.mxu0 %v8906
        %9818 = vmatprep.subr.bf16.mxu0 %v8924
        %9819 = vmatpush1.bf16.msra.mxu0 %v8923
        %9820 = vmatprep.subr.bf16.mxu0 %v8941
        %9821 = vmatpush1.bf16.msra.mxu0 %v8940
        %9822 = vmatprep.subr.bf16.mxu0 %v8958
        %9823 = vmatpush1.bf16.msra.mxu0 %v8957
        %9824 = vmatprep.subr.bf16.mxu0 %v8975
        %9825 = vmatpush1.bf16.msra.mxu0 %v8974
        %9826 = vmatprep.subr.bf16.mxu0 %v8992
        %9827 = vmatpush1.bf16.msra.mxu0 %v8991
        %9828 = vmatprep.subr.bf16.mxu0 %v9009
        %9829 = vmatpush1.bf16.msra.mxu0 %v9008
        %9830 = vmatprep.subr.bf16.mxu0 %v9026
        %9831 = vmatpush1.bf16.msra.mxu0 %v9025
        %9832 = vmatprep.subr.bf16.mxu0 %v9043
        %9833 = vmatpush1.bf16.msra.mxu0 %v9042
        %9834 = vmatprep.subr.bf16.mxu0 %v9060
        %9835 = vmatpush1.bf16.msra.mxu0 %v9059
        %9836 = vmatprep.subr.bf16.mxu0 %v9077
        %9837 = vmatpush1.bf16.msra.mxu0 %v9076
        %9838 = vmatprep.subr.bf16.mxu0 %v9094
        %9839 = vmatpush1.bf16.msra.mxu0 %v9093
        %9840 = vmatprep.mubr.bf16.mxu0 %v7483
        %9841 = vmatmul.mubr.bf16.gmra.mrb[0].mxu0 %v7482
        %v9842 = vpop.f32.mrb[0].mxu0
        %v9843 = vadd.f32 0.0, %v9842
        %v9844 = vpop.f32.mrb[0].mxu0
        %v9845 = vadd.f32 0.0, %v9844
        %v9846 = vpop.f32.mrb[0].mxu0
        %v9847 = vadd.f32 0.0, %v9846
        %v9848 = vpop.f32.mrb[0].mxu0
        %v9849 = vadd.f32 0.0, %v9848
        %9850 = vmatprep.mubr.bf16.mxu0 %v7485
        %9851 = vmatmul.mubr.bf16.gmra.mrb[0].mxu0 %v7484
        %v9852 = vpop.f32.mrb[0].mxu0
        %v9853 = vadd.f32 0.0, %v9852
        %v9854 = vpop.f32.mrb[0].mxu0
        %v9855 = vadd.f32 0.0, %v9854
        %v9856 = vpop.f32.mrb[0].mxu0
        %v9857 = vadd.f32 0.0, %v9856
        %v9858 = vpop.f32.mrb[0].mxu0
        %v9859 = vadd.f32 0.0, %v9858
        %9860 = vmatprep.mubr.bf16.mxu0 %v7487
        %9861 = vmatmul.mubr.bf16.gmra.mrb[0].mxu0 %v7486
        %v9862 = vpop.f32.mrb[0].mxu0
        %v9863 = vadd.f32 0.0, %v9862
        %v9864 = vpop.f32.mrb[0].mxu0
        %v9865 = vadd.f32 0.0, %v9864
        %v9866 = vpop.f32.mrb[0].mxu0
        %v9867 = vadd.f32 0.0, %v9866
        %v9868 = vpop.f32.mrb[0].mxu0
        %v9869 = vadd.f32 0.0, %v9868
        %9870 = vmatprep.mubr.bf16.mxu0 %v7489
        %9871 = vmatmul.mubr.bf16.gmra.mrb[0].mxu0 %v7488
        %v9872 = vpop.f32.mrb[0].mxu0
        %v9873 = vadd.f32 0.0, %v9872
        %v9874 = vpop.f32.mrb[0].mxu0
        %v9875 = vadd.f32 0.0, %v9874
        %v9876 = vpop.f32.mrb[0].mxu0
        %v9877 = vadd.f32 0.0, %v9876
        %v9878 = vpop.f32.mrb[0].mxu0
        %v9879 = vadd.f32 0.0, %v9878
        %9880 = vdwg.mxu0
        %9881 = vmatprep.subr.bf16.mxu0 %v8841
        %9882 = vmatpush1.bf16.msra.mxu0 %v8840
        %9883 = vmatprep.subr.bf16.mxu0 %v8858
        %9884 = vmatpush1.bf16.msra.mxu0 %v8857
        %9885 = vmatprep.subr.bf16.mxu0 %v8875
        %9886 = vmatpush1.bf16.msra.mxu0 %v8874
        %9887 = vmatprep.subr.bf16.mxu0 %v8892
        %9888 = vmatpush1.bf16.msra.mxu0 %v8891
        %9889 = vmatprep.subr.bf16.mxu0 %v8909
        %9890 = vmatpush1.bf16.msra.mxu0 %v8908
        %9891 = vmatprep.subr.bf16.mxu0 %v8926
        %9892 = vmatpush1.bf16.msra.mxu0 %v8925
        %9893 = vmatprep.subr.bf16.mxu0 %v8943
        %9894 = vmatpush1.bf16.msra.mxu0 %v8942
        %9895 = vmatprep.subr.bf16.mxu0 %v8960
        %9896 = vmatpush1.bf16.msra.mxu0 %v8959
        %9897 = vmatprep.subr.bf16.mxu0 %v8977
        %9898 = vmatpush1.bf16.msra.mxu0 %v8976
        %9899 = vmatprep.subr.bf16.mxu0 %v8994
        %9900 = vmatpush1.bf16.msra.mxu0 %v8993
        %9901 = vmatprep.subr.bf16.mxu0 %v9011
        %9902 = vmatpush1.bf16.msra.mxu0 %v9010
        %9903 = vmatprep.subr.bf16.mxu0 %v9028
        %9904 = vmatpush1.bf16.msra.mxu0 %v9027
        %9905 = vmatprep.subr.bf16.mxu0 %v9045
        %9906 = vmatpush1.bf16.msra.mxu0 %v9044
        %9907 = vmatprep.subr.bf16.mxu0 %v9062
        %9908 = vmatpush1.bf16.msra.mxu0 %v9061
        %9909 = vmatprep.subr.bf16.mxu0 %v9079
        %9910 = vmatpush1.bf16.msra.mxu0 %v9078
        %9911 = vmatprep.subr.bf16.mxu0 %v9096
        %9912 = vmatpush1.bf16.msra.mxu0 %v9095
        %9913 = vmatprep.mubr.bf16.mxu0 %v7483
        %9914 = vmatmul.mubr.bf16.gmra.mrb[0].mxu0 %v7482
        %v9915 = vpop.f32.mrb[0].mxu0
        %v9916 = vadd.f32 0.0, %v9915
        %v9917 = vpop.f32.mrb[0].mxu0
        %v9918 = vadd.f32 0.0, %v9917
        %v9919 = vpop.f32.mrb[0].mxu0
        %v9920 = vadd.f32 0.0, %v9919
        %v9921 = vpop.f32.mrb[0].mxu0
        %v9922 = vadd.f32 0.0, %v9921
        %9923 = vmatprep.mubr.bf16.mxu0 %v7485
        %9924 = vmatmul.mubr.bf16.gmra.mrb[0].mxu0 %v7484
        %v9925 = vpop.f32.mrb[0].mxu0
        %v9926 = vadd.f32 0.0, %v9925
        %v9927 = vpop.f32.mrb[0].mxu0
        %v9928 = vadd.f32 0.0, %v9927
        %v9929 = vpop.f32.mrb[0].mxu0
        %v9930 = vadd.f32 0.0, %v9929
        %v9931 = vpop.f32.mrb[0].mxu0
        %v9932 = vadd.f32 0.0, %v9931
        %9933 = vmatprep.mubr.bf16.mxu0 %v7487
        %9934 = vmatmul.mubr.bf16.gmra.mrb[0].mxu0 %v7486
        %v9935 = vpop.f32.mrb[0].mxu0
        %v9936 = vadd.f32 0.0, %v9935
        %v9937 = vpop.f32.mrb[0].mxu0
        %v9938 = vadd.f32 0.0, %v9937
        %v9939 = vpop.f32.mrb[0].mxu0
        %v9940 = vadd.f32 0.0, %v9939
        %v9941 = vpop.f32.mrb[0].mxu0
        %v9942 = vadd.f32 0.0, %v9941
        %9943 = vmatprep.mubr.bf16.mxu0 %v7489
        %9944 = vmatmul.mubr.bf16.gmra.mrb[0].mxu0 %v7488
        %v9945 = vpop.f32.mrb[0].mxu0
        %v9946 = vadd.f32 0.0, %v9945
        %v9947 = vpop.f32.mrb[0].mxu0
        %v9948 = vadd.f32 0.0, %v9947
        %v9949 = vpop.f32.mrb[0].mxu0
        %v9950 = vadd.f32 0.0, %v9949
        %v9951 = vpop.f32.mrb[0].mxu0
        %v9952 = vadd.f32 0.0, %v9951
        %9953 = vdwg.mxu0
        %9954 = vmatprep.subr.bf16.mxu0 0
        %9955 = vmatpush1.bf16.msra.mxu0 %v8842
        %9956 = vmatprep.subr.bf16.mxu0 0
        %9957 = vmatpush1.bf16.msra.mxu0 %v8859
        %9958 = vmatprep.subr.bf16.mxu0 0
        %9959 = vmatpush1.bf16.msra.mxu0 %v8876
        %9960 = vmatprep.subr.bf16.mxu0 0
        %9961 = vmatpush1.bf16.msra.mxu0 %v8893
        %9962 = vmatprep.subr.bf16.mxu0 0
        %9963 = vmatpush1.bf16.msra.mxu0 %v8910
        %9964 = vmatprep.subr.bf16.mxu0 0
        %9965 = vmatpush1.bf16.msra.mxu0 %v8927
        %9966 = vmatprep.subr.bf16.mxu0 0
        %9967 = vmatpush1.bf16.msra.mxu0 %v8944
        %9968 = vmatprep.subr.bf16.mxu0 0
        %9969 = vmatpush1.bf16.msra.mxu0 %v8961
        %9970 = vmatprep.subr.bf16.mxu0 0
        %9971 = vmatpush1.bf16.msra.mxu0 %v8978
        %9972 = vmatprep.subr.bf16.mxu0 0
        %9973 = vmatpush1.bf16.msra.mxu0 %v8995
        %9974 = vmatprep.subr.bf16.mxu0 0
        %9975 = vmatpush1.bf16.msra.mxu0 %v9012
        %9976 = vmatprep.subr.bf16.mxu0 0
        %9977 = vmatpush1.bf16.msra.mxu0 %v9029
        %9978 = vmatprep.subr.bf16.mxu0 0
        %9979 = vmatpush1.bf16.msra.mxu0 %v9046
        %9980 = vmatprep.subr.bf16.mxu0 0
        %9981 = vmatpush1.bf16.msra.mxu0 %v9063
        %9982 = vmatprep.subr.bf16.mxu0 0
        %9983 = vmatpush1.bf16.msra.mxu0 %v9080
        %9984 = vmatprep.subr.bf16.mxu0 0
        %9985 = vmatpush1.bf16.msra.mxu0 %v9097
        %9986 = vmatprep.mubr.bf16.mxu0 %v7483
        %9987 = vmatmul.mubr.bf16.gmra.mrb[0].mxu0 %v7482
        %v9988 = vpop.f32.mrb[0].mxu0
        %v9989 = vadd.f32 0.0, %v9988
        %v9990 = vpop.f32.mrb[0].mxu0
        %v9991 = vpop.f32.mrb[0].mxu0
        %v9992 = vadd.f32 0.0, %v9991
        %v9993 = vpop.f32.mrb[0].mxu0
        %9994 = vmatprep.mubr.bf16.mxu0 %v7485
        %9995 = vmatmul.mubr.bf16.gmra.mrb[0].mxu0 %v7484
        %v9996 = vpop.f32.mrb[0].mxu0
        %v9997 = vadd.f32 0.0, %v9996
        %v9998 = vpop.f32.mrb[0].mxu0
        %v9999 = vpop.f32.mrb[0].mxu0
        %v10000 = vadd.f32 0.0, %v9999
        %v10001 = vpop.f32.mrb[0].mxu0
        %10002 = vmatprep.mubr.bf16.mxu0 %v7487
        %10003 = vmatmul.mubr.bf16.gmra.mrb[0].mxu0 %v7486
        %v10004 = vpop.f32.mrb[0].mxu0
        %v10005 = vadd.f32 0.0, %v10004
        %v10006 = vpop.f32.mrb[0].mxu0
        %v10007 = vpop.f32.mrb[0].mxu0
        %v10008 = vadd.f32 0.0, %v10007
        %v10009 = vpop.f32.mrb[0].mxu0
        %10010 = vmatprep.mubr.bf16.mxu0 %v7489
        %10011 = vmatmul.mubr.bf16.gmra.mrb[0].mxu0 %v7488
        %v10012 = vpop.f32.mrb[0].mxu0
        %v10013 = vadd.f32 0.0, %v10012
        %v10014 = vpop.f32.mrb[0].mxu0
        %v10015 = vpop.f32.mrb[0].mxu0
        %v10016 = vadd.f32 0.0, %v10015
        %v10017 = vpop.f32.mrb[0].mxu0
        %10018 = vdwg.mxu0
        %v10235 = vunpack.c.l.b16 %v7490
        %v10236 = vunpack.c.h.b16 %v7490
        %v10237 = vunpack.c.l.b16 %v7491
        %v10238 = vunpack.c.h.b16 %v7491
        %v10239 = vunpack.c.l.b16 %v7492
        %v10240 = vunpack.c.h.b16 %v7492
        %v10241 = vunpack.c.l.b16 %v7493
        %v10242 = vunpack.c.h.b16 %v7493
        %v10243 = vunpack.c.l.b16 %v7494
        %v10244 = vunpack.c.h.b16 %v7494
        %v10245 = vunpack.c.l.b16 %v7495
        %v10246 = vunpack.c.h.b16 %v7495
        %v10247 = vunpack.c.l.b16 %v7496
        %v10248 = vunpack.c.h.b16 %v7496
        %v10249 = vunpack.c.l.b16 %v7497
        %v10250 = vunpack.c.h.b16 %v7497
        %v10251 = vunpack.c.l.b16 %v7498
        %v10252 = vunpack.c.l.b16 %v7499
        %v10253 = vunpack.c.h.b16 %v7499
        %v10254 = vunpack.c.l.b16 %v7500
        %v10255 = vunpack.c.h.b16 %v7500
        %v10256 = vunpack.c.l.b16 %v7501
        %v10257 = vunpack.c.h.b16 %v7501
        %v10258 = vunpack.c.l.b16 %v7502
        %v10259 = vunpack.c.h.b16 %v7502
        %v10260 = vunpack.c.l.b16 %v7503
        %v10261 = vunpack.c.h.b16 %v7503
        %v10262 = vunpack.c.l.b16 %v7504
        %v10263 = vunpack.c.h.b16 %v7504
        %v10264 = vunpack.c.l.b16 %v7505
        %v10265 = vunpack.c.h.b16 %v7505
        %v10266 = vunpack.c.l.b16 %v7506
        %v10267 = vunpack.c.h.b16 %v7506
        %v10268 = vunpack.c.l.b16 %v7507
        %v10269 = vunpack.c.l.b16 %v7508
        %v10270 = vunpack.c.h.b16 %v7508
        %v10271 = vunpack.c.l.b16 %v7509
        %v10272 = vunpack.c.h.b16 %v7509
        %v10273 = vunpack.c.l.b16 %v7510
        %v10274 = vunpack.c.h.b16 %v7510
        %v10275 = vunpack.c.l.b16 %v7511
        %v10276 = vunpack.c.h.b16 %v7511
        %v10277 = vunpack.c.l.b16 %v7512
        %v10278 = vunpack.c.h.b16 %v7512
        %v10279 = vunpack.c.l.b16 %v7513
        %v10280 = vunpack.c.h.b16 %v7513
        %v10281 = vunpack.c.l.b16 %v7514
        %v10282 = vunpack.c.h.b16 %v7514
        %v10283 = vunpack.c.l.b16 %v7515
        %v10284 = vunpack.c.h.b16 %v7515
        %v10285 = vunpack.c.l.b16 %v7516
        %v10286 = vunpack.c.l.b16 %v7517
        %v10287 = vunpack.c.h.b16 %v7517
        %v10288 = vunpack.c.l.b16 %v7518
        %v10289 = vunpack.c.h.b16 %v7518
        %v10290 = vunpack.c.l.b16 %v7519
        %v10291 = vunpack.c.h.b16 %v7519
        %v10292 = vunpack.c.l.b16 %v7520
        %v10293 = vunpack.c.h.b16 %v7520
        %v10294 = vunpack.c.l.b16 %v7521
        %v10295 = vunpack.c.h.b16 %v7521
        %v10296 = vunpack.c.l.b16 %v7522
        %v10297 = vunpack.c.h.b16 %v7522
        %v10298 = vunpack.c.l.b16 %v7523
        %v10299 = vunpack.c.h.b16 %v7523
        %v10300 = vunpack.c.l.b16 %v7524
        %v10301 = vunpack.c.h.b16 %v7524
        %v10302 = vunpack.c.l.b16 %v7525
        %v10303 = vunpack.c.l.b16 %v7526
        %v10304 = vunpack.c.h.b16 %v7526
        %v10305 = vunpack.c.l.b16 %v7527
        %v10306 = vunpack.c.h.b16 %v7527
        %v10307 = vunpack.c.l.b16 %v7528
        %v10308 = vunpack.c.h.b16 %v7528
        %v10309 = vunpack.c.l.b16 %v7529
        %v10310 = vunpack.c.h.b16 %v7529
        %v10311 = vunpack.c.l.b16 %v7530
        %v10312 = vunpack.c.h.b16 %v7530
        %v10313 = vunpack.c.l.b16 %v7531
        %v10314 = vunpack.c.h.b16 %v7531
        %v10315 = vunpack.c.l.b16 %v7532
        %v10316 = vunpack.c.h.b16 %v7532
        %v10317 = vunpack.c.l.b16 %v7533
        %v10318 = vunpack.c.h.b16 %v7533
        %v10319 = vunpack.c.l.b16 %v7534
        %v10320 = vunpack.c.l.b16 %v7535
        %v10321 = vunpack.c.h.b16 %v7535
        %v10322 = vunpack.c.l.b16 %v7536
        %v10323 = vunpack.c.h.b16 %v7536
        %v10324 = vunpack.c.l.b16 %v7537
        %v10325 = vunpack.c.h.b16 %v7537
        %v10326 = vunpack.c.l.b16 %v7538
        %v10327 = vunpack.c.h.b16 %v7538
        %v10328 = vunpack.c.l.b16 %v7539
        %v10329 = vunpack.c.h.b16 %v7539
        %v10330 = vunpack.c.l.b16 %v7540
        %v10331 = vunpack.c.h.b16 %v7540
        %v10332 = vunpack.c.l.b16 %v7541
        %v10333 = vunpack.c.h.b16 %v7541
        %v10334 = vunpack.c.l.b16 %v7542
        %v10335 = vunpack.c.h.b16 %v7542
        %v10336 = vunpack.c.l.b16 %v7543
        %v10337 = vunpack.c.l.b16 %v7544
        %v10338 = vunpack.c.h.b16 %v7544
        %v10339 = vunpack.c.l.b16 %v7545
        %v10340 = vunpack.c.h.b16 %v7545
        %v10341 = vunpack.c.l.b16 %v7546
        %v10342 = vunpack.c.h.b16 %v7546
        %v10343 = vunpack.c.l.b16 %v7547
        %v10344 = vunpack.c.h.b16 %v7547
        %v10345 = vunpack.c.l.b16 %v7548
        %v10346 = vunpack.c.h.b16 %v7548
        %v10347 = vunpack.c.l.b16 %v7549
        %v10348 = vunpack.c.h.b16 %v7549
        %v10349 = vunpack.c.l.b16 %v7550
        %v10350 = vunpack.c.h.b16 %v7550
        %v10351 = vunpack.c.l.b16 %v7551
        %v10352 = vunpack.c.h.b16 %v7551
        %v10353 = vunpack.c.l.b16 %v7552
        %v10354 = vunpack.c.l.b16 %v7553
        %v10355 = vunpack.c.h.b16 %v7553
        %v10356 = vunpack.c.l.b16 %v7554
        %v10357 = vunpack.c.h.b16 %v7554
        %v10358 = vunpack.c.l.b16 %v7555
        %v10359 = vunpack.c.h.b16 %v7555
        %v10360 = vunpack.c.l.b16 %v7556
        %v10361 = vunpack.c.h.b16 %v7556
        %v10362 = vunpack.c.l.b16 %v7557
        %v10363 = vunpack.c.h.b16 %v7557
        %v10364 = vunpack.c.l.b16 %v7558
        %v10365 = vunpack.c.h.b16 %v7558
        %v10366 = vunpack.c.l.b16 %v7559
        %v10367 = vunpack.c.h.b16 %v7559
        %v10368 = vunpack.c.l.b16 %v7560
        %v10369 = vunpack.c.h.b16 %v7560
        %v10370 = vunpack.c.l.b16 %v7561
        %v10371 = vunpack.c.l.b16 %v7562
        %v10372 = vunpack.c.h.b16 %v7562
        %v10373 = vunpack.c.l.b16 %v7563
        %v10374 = vunpack.c.h.b16 %v7563
        %v10375 = vunpack.c.l.b16 %v7564
        %v10376 = vunpack.c.h.b16 %v7564
        %v10377 = vunpack.c.l.b16 %v7565
        %v10378 = vunpack.c.h.b16 %v7565
        %v10379 = vunpack.c.l.b16 %v7566
        %v10380 = vunpack.c.h.b16 %v7566
        %v10381 = vunpack.c.l.b16 %v7567
        %v10382 = vunpack.c.h.b16 %v7567
        %v10383 = vunpack.c.l.b16 %v7568
        %v10384 = vunpack.c.h.b16 %v7568
        %v10385 = vunpack.c.l.b16 %v7569
        %v10386 = vunpack.c.h.b16 %v7569
        %v10387 = vunpack.c.l.b16 %v7570
        %v10388 = vunpack.c.l.b16 %v7571
        %v10389 = vunpack.c.h.b16 %v7571
        %v10390 = vunpack.c.l.b16 %v7572
        %v10391 = vunpack.c.h.b16 %v7572
        %v10392 = vunpack.c.l.b16 %v7573
        %v10393 = vunpack.c.h.b16 %v7573
        %v10394 = vunpack.c.l.b16 %v7574
        %v10395 = vunpack.c.h.b16 %v7574
        %v10396 = vunpack.c.l.b16 %v7575
        %v10397 = vunpack.c.h.b16 %v7575
        %v10398 = vunpack.c.l.b16 %v7576
        %v10399 = vunpack.c.h.b16 %v7576
        %v10400 = vunpack.c.l.b16 %v7577
        %v10401 = vunpack.c.h.b16 %v7577
        %v10402 = vunpack.c.l.b16 %v7578
        %v10403 = vunpack.c.h.b16 %v7578
        %v10404 = vunpack.c.l.b16 %v7579
        %v10405 = vunpack.c.l.b16 %v7580
        %v10406 = vunpack.c.h.b16 %v7580
        %v10407 = vunpack.c.l.b16 %v7581
        %v10408 = vunpack.c.h.b16 %v7581
        %v10409 = vunpack.c.l.b16 %v7582
        %v10410 = vunpack.c.h.b16 %v7582
        %v10411 = vunpack.c.l.b16 %v7583
        %v10412 = vunpack.c.h.b16 %v7583
        %v10413 = vunpack.c.l.b16 %v7584
        %v10414 = vunpack.c.h.b16 %v7584
        %v10415 = vunpack.c.l.b16 %v7585
        %v10416 = vunpack.c.h.b16 %v7585
        %v10417 = vunpack.c.l.b16 %v7586
        %v10418 = vunpack.c.h.b16 %v7586
        %v10419 = vunpack.c.l.b16 %v7587
        %v10420 = vunpack.c.h.b16 %v7587
        %v10421 = vunpack.c.l.b16 %v7588
        %v10422 = vunpack.c.l.b16 %v7589
        %v10423 = vunpack.c.h.b16 %v7589
        %v10424 = vunpack.c.l.b16 %v7590
        %v10425 = vunpack.c.h.b16 %v7590
        %v10426 = vunpack.c.l.b16 %v7591
        %v10427 = vunpack.c.h.b16 %v7591
        %v10428 = vunpack.c.l.b16 %v7592
        %v10429 = vunpack.c.h.b16 %v7592
        %v10430 = vunpack.c.l.b16 %v7593
        %v10431 = vunpack.c.h.b16 %v7593
        %v10432 = vunpack.c.l.b16 %v7594
        %v10433 = vunpack.c.h.b16 %v7594
        %v10434 = vunpack.c.l.b16 %v7595
        %v10435 = vunpack.c.h.b16 %v7595
        %v10436 = vunpack.c.l.b16 %v7596
        %v10437 = vunpack.c.h.b16 %v7596
        %v10438 = vunpack.c.l.b16 %v7597
        %v10439 = vunpack.c.l.b16 %v7598
        %v10440 = vunpack.c.h.b16 %v7598
        %v10441 = vunpack.c.l.b16 %v7599
        %v10442 = vunpack.c.h.b16 %v7599
        %v10443 = vunpack.c.l.b16 %v7600
        %v10444 = vunpack.c.h.b16 %v7600
        %v10445 = vunpack.c.l.b16 %v7601
        %v10446 = vunpack.c.h.b16 %v7601
        %v10447 = vunpack.c.l.b16 %v7602
        %v10448 = vunpack.c.h.b16 %v7602
        %v10449 = vunpack.c.l.b16 %v7603
        %v10450 = vunpack.c.h.b16 %v7603
        %v10451 = vunpack.c.l.b16 %v7604
        %v10452 = vunpack.c.h.b16 %v7604
        %v10453 = vunpack.c.l.b16 %v7605
        %v10454 = vunpack.c.h.b16 %v7605
        %v10455 = vunpack.c.l.b16 %v7606
        %v10456 = vunpack.c.l.b16 %v7607
        %v10457 = vunpack.c.h.b16 %v7607
        %v10458 = vunpack.c.l.b16 %v7608
        %v10459 = vunpack.c.h.b16 %v7608
        %v10460 = vunpack.c.l.b16 %v7609
        %v10461 = vunpack.c.h.b16 %v7609
        %v10462 = vunpack.c.l.b16 %v7610
        %v10463 = vunpack.c.h.b16 %v7610
        %v10464 = vunpack.c.l.b16 %v7611
        %v10465 = vunpack.c.h.b16 %v7611
        %v10466 = vunpack.c.l.b16 %v7612
        %v10467 = vunpack.c.h.b16 %v7612
        %v10468 = vunpack.c.l.b16 %v7613
        %v10469 = vunpack.c.h.b16 %v7613
        %v10470 = vunpack.c.l.b16 %v7614
        %v10471 = vunpack.c.h.b16 %v7614
        %v10472 = vunpack.c.l.b16 %v7615
        %v10473 = vunpack.c.l.b16 %v7616
        %v10474 = vunpack.c.h.b16 %v7616
        %v10475 = vunpack.c.l.b16 %v7617
        %v10476 = vunpack.c.h.b16 %v7617
        %v10477 = vunpack.c.l.b16 %v7618
        %v10478 = vunpack.c.h.b16 %v7618
        %v10479 = vunpack.c.l.b16 %v7619
        %v10480 = vunpack.c.h.b16 %v7619
        %v10481 = vunpack.c.l.b16 %v7620
        %v10482 = vunpack.c.h.b16 %v7620
        %v10483 = vunpack.c.l.b16 %v7621
        %v10484 = vunpack.c.h.b16 %v7621
        %v10485 = vunpack.c.l.b16 %v7622
        %v10486 = vunpack.c.h.b16 %v7622
        %v10487 = vunpack.c.l.b16 %v7623
        %v10488 = vunpack.c.h.b16 %v7623
        %v10489 = vunpack.c.l.b16 %v7624
        %v10490 = vunpack.c.l.b16 %v7625
        %v10491 = vunpack.c.h.b16 %v7625
        %v10492 = vunpack.c.l.b16 %v7626
        %v10493 = vunpack.c.h.b16 %v7626
        %v10494 = vunpack.c.l.b16 %v7627
        %v10495 = vunpack.c.h.b16 %v7627
        %v10496 = vunpack.c.l.b16 %v7628
        %v10497 = vunpack.c.h.b16 %v7628
        %v10498 = vunpack.c.l.b16 %v7629
        %v10499 = vunpack.c.h.b16 %v7629
        %v10500 = vunpack.c.l.b16 %v7630
        %v10501 = vunpack.c.h.b16 %v7630
        %v10502 = vunpack.c.l.b16 %v7631
        %v10503 = vunpack.c.h.b16 %v7631
        %v10504 = vunpack.c.l.b16 %v7632
        %v10505 = vunpack.c.h.b16 %v7632
        %v10506 = vunpack.c.l.b16 %v7633
        %v10507 = vunpack.c.l.b16 %v7634
        %v10508 = vunpack.c.h.b16 %v7634
        %v10509 = vunpack.c.l.b16 %v7635
        %v10510 = vunpack.c.h.b16 %v7635
        %v10511 = vunpack.c.l.b16 %v7636
        %v10512 = vunpack.c.h.b16 %v7636
        %v10513 = vunpack.c.l.b16 %v7637
        %v10514 = vunpack.c.h.b16 %v7637
        %v10515 = vunpack.c.l.b16 %v7638
        %v10516 = vunpack.c.h.b16 %v7638
        %v10517 = vunpack.c.l.b16 %v7639
        %v10518 = vunpack.c.h.b16 %v7639
        %v10519 = vunpack.c.l.b16 %v7640
        %v10520 = vunpack.c.h.b16 %v7640
        %v10521 = vunpack.c.l.b16 %v7641
        %v10522 = vunpack.c.h.b16 %v7641
        %v10523 = vunpack.c.l.b16 %v7642
        %v10524 = vunpack.c.l.b16 %v7643
        %v10525 = vunpack.c.h.b16 %v7643
        %v10526 = vunpack.c.l.b16 %v7644
        %v10527 = vunpack.c.h.b16 %v7644
        %v10528 = vunpack.c.l.b16 %v7645
        %v10529 = vunpack.c.h.b16 %v7645
        %v10530 = vunpack.c.l.b16 %v7646
        %v10531 = vunpack.c.h.b16 %v7646
        %v10532 = vunpack.c.l.b16 %v7647
        %v10533 = vunpack.c.h.b16 %v7647
        %v10534 = vunpack.c.l.b16 %v7648
        %v10535 = vunpack.c.h.b16 %v7648
        %v10536 = vunpack.c.l.b16 %v7649
        %v10537 = vunpack.c.h.b16 %v7649
        %v10538 = vunpack.c.l.b16 %v7650
        %v10539 = vunpack.c.h.b16 %v7650
        %v10540 = vunpack.c.l.b16 %v7651
        %v10541 = vunpack.c.l.b16 %v7652
        %v10542 = vunpack.c.h.b16 %v7652
        %v10543 = vunpack.c.l.b16 %v7653
        %v10544 = vunpack.c.h.b16 %v7653
        %v10545 = vunpack.c.l.b16 %v7654
        %v10546 = vunpack.c.h.b16 %v7654
        %v10547 = vunpack.c.l.b16 %v7655
        %v10548 = vunpack.c.h.b16 %v7655
        %v10549 = vunpack.c.l.b16 %v7656
        %v10550 = vunpack.c.h.b16 %v7656
        %v10551 = vunpack.c.l.b16 %v7657
        %v10552 = vunpack.c.h.b16 %v7657
        %v10553 = vunpack.c.l.b16 %v7658
        %v10554 = vunpack.c.h.b16 %v7658
        %v10555 = vunpack.c.l.b16 %v7659
        %v10556 = vunpack.c.h.b16 %v7659
        %v10557 = vunpack.c.l.b16 %v7660
        %v10558 = vunpack.c.l.b16 %v7661
        %v10559 = vunpack.c.h.b16 %v7661
        %v10560 = vunpack.c.l.b16 %v7662
        %v10561 = vunpack.c.h.b16 %v7662
        %v10562 = vunpack.c.l.b16 %v7663
        %v10563 = vunpack.c.h.b16 %v7663
        %v10564 = vunpack.c.l.b16 %v7664
        %v10565 = vunpack.c.h.b16 %v7664
        %v10566 = vunpack.c.l.b16 %v7665
        %v10567 = vunpack.c.h.b16 %v7665
        %v10568 = vunpack.c.l.b16 %v7666
        %v10569 = vunpack.c.h.b16 %v7666
        %v10570 = vunpack.c.l.b16 %v7667
        %v10571 = vunpack.c.h.b16 %v7667
        %v10572 = vunpack.c.l.b16 %v7668
        %v10573 = vunpack.c.h.b16 %v7668
        %v10574 = vunpack.c.l.b16 %v7669
        %v10575 = vunpack.c.l.b16 %v7670
        %v10576 = vunpack.c.h.b16 %v7670
        %v10577 = vunpack.c.l.b16 %v7671
        %v10578 = vunpack.c.h.b16 %v7671
        %v10579 = vunpack.c.l.b16 %v7672
        %v10580 = vunpack.c.h.b16 %v7672
        %v10581 = vunpack.c.l.b16 %v7673
        %v10582 = vunpack.c.h.b16 %v7673
        %v10583 = vunpack.c.l.b16 %v7674
        %v10584 = vunpack.c.h.b16 %v7674
        %v10585 = vunpack.c.l.b16 %v7675
        %v10586 = vunpack.c.h.b16 %v7675
        %v10587 = vunpack.c.l.b16 %v7676
        %v10588 = vunpack.c.h.b16 %v7676
        %v10589 = vunpack.c.l.b16 %v7677
        %v10590 = vunpack.c.h.b16 %v7677
        %v10591 = vunpack.c.l.b16 %v7678
        %v10592 = vunpack.c.l.b16 %v7679
        %v10593 = vunpack.c.h.b16 %v7679
        %v10594 = vunpack.c.l.b16 %v7680
        %v10595 = vunpack.c.h.b16 %v7680
        %v10596 = vunpack.c.l.b16 %v7681
        %v10597 = vunpack.c.h.b16 %v7681
        %v10598 = vunpack.c.l.b16 %v7682
        %v10599 = vunpack.c.h.b16 %v7682
        %v10600 = vunpack.c.l.b16 %v7683
        %v10601 = vunpack.c.h.b16 %v7683
        %v10602 = vunpack.c.l.b16 %v7684
        %v10603 = vunpack.c.h.b16 %v7684
        %v10604 = vunpack.c.l.b16 %v7685
        %v10605 = vunpack.c.h.b16 %v7685
        %v10606 = vunpack.c.l.b16 %v7686
        %v10607 = vunpack.c.h.b16 %v7686
        %v10608 = vunpack.c.l.b16 %v7687
        %v10609 = vunpack.c.l.b16 %v7688
        %v10610 = vunpack.c.h.b16 %v7688
        %v10611 = vunpack.c.l.b16 %v7689
        %v10612 = vunpack.c.h.b16 %v7689
        %v10613 = vunpack.c.l.b16 %v7690
        %v10614 = vunpack.c.h.b16 %v7690
        %v10615 = vunpack.c.l.b16 %v7691
        %v10616 = vunpack.c.h.b16 %v7691
        %v10617 = vunpack.c.l.b16 %v7692
        %v10618 = vunpack.c.h.b16 %v7692
        %v10619 = vunpack.c.l.b16 %v7693
        %v10620 = vunpack.c.h.b16 %v7693
        %v10621 = vunpack.c.l.b16 %v7694
        %v10622 = vunpack.c.h.b16 %v7694
        %v10623 = vunpack.c.l.b16 %v7695
        %v10624 = vunpack.c.h.b16 %v7695
        %v10625 = vunpack.c.l.b16 %v7696
        %v10626 = vunpack.c.l.b16 %v7697
        %v10627 = vunpack.c.h.b16 %v7697
        %v10628 = vunpack.c.l.b16 %v7698
        %v10629 = vunpack.c.h.b16 %v7698
        %v10630 = vunpack.c.l.b16 %v7699
        %v10631 = vunpack.c.h.b16 %v7699
        %v10632 = vunpack.c.l.b16 %v7700
        %v10633 = vunpack.c.h.b16 %v7700
        %v10634 = vunpack.c.l.b16 %v7701
        %v10635 = vunpack.c.h.b16 %v7701
        %v10636 = vunpack.c.l.b16 %v7702
        %v10637 = vunpack.c.h.b16 %v7702
        %v10638 = vunpack.c.l.b16 %v7703
        %v10639 = vunpack.c.h.b16 %v7703
        %v10640 = vunpack.c.l.b16 %v7704
        %v10641 = vunpack.c.h.b16 %v7704
        %v10642 = vunpack.c.l.b16 %v7705
        %v10643 = vpack.c.b16 %v10252, %v10235
        %v10644 = vpack.c.b16 %v10253, %v10236
        %v10645 = vpack.c.b16 %v10254, %v10237
        %v10646 = vpack.c.b16 %v10255, %v10238
        %v10647 = vpack.c.b16 %v10256, %v10239
        %v10648 = vpack.c.b16 %v10257, %v10240
        %v10649 = vpack.c.b16 %v10258, %v10241
        %v10650 = vpack.c.b16 %v10259, %v10242
        %v10651 = vpack.c.b16 %v10260, %v10243
        %v10652 = vpack.c.b16 %v10261, %v10244
        %v10653 = vpack.c.b16 %v10262, %v10245
        %v10654 = vpack.c.b16 %v10263, %v10246
        %v10655 = vpack.c.b16 %v10264, %v10247
        %v10656 = vpack.c.b16 %v10265, %v10248
        %v10657 = vpack.c.b16 %v10266, %v10249
        %v10658 = vpack.c.b16 %v10267, %v10250
        %v10659 = vpack.c.b16 %v10268, %v10251
        %v10660 = vpack.c.b16 %v10286, %v10269
        %v10661 = vpack.c.b16 %v10287, %v10270
        %v10662 = vpack.c.b16 %v10288, %v10271
        %v10663 = vpack.c.b16 %v10289, %v10272
        %v10664 = vpack.c.b16 %v10290, %v10273
        %v10665 = vpack.c.b16 %v10291, %v10274
        %v10666 = vpack.c.b16 %v10292, %v10275
        %v10667 = vpack.c.b16 %v10293, %v10276
        %v10668 = vpack.c.b16 %v10294, %v10277
        %v10669 = vpack.c.b16 %v10295, %v10278
        %v10670 = vpack.c.b16 %v10296, %v10279
        %v10671 = vpack.c.b16 %v10297, %v10280
        %v10672 = vpack.c.b16 %v10298, %v10281
        %v10673 = vpack.c.b16 %v10299, %v10282
        %v10674 = vpack.c.b16 %v10300, %v10283
        %v10675 = vpack.c.b16 %v10301, %v10284
        %v10676 = vpack.c.b16 %v10302, %v10285
        %v10677 = vpack.c.b16 %v10320, %v10303
        %v10678 = vpack.c.b16 %v10321, %v10304
        %v10679 = vpack.c.b16 %v10322, %v10305
        %v10680 = vpack.c.b16 %v10323, %v10306
        %v10681 = vpack.c.b16 %v10324, %v10307
        %v10682 = vpack.c.b16 %v10325, %v10308
        %v10683 = vpack.c.b16 %v10326, %v10309
        %v10684 = vpack.c.b16 %v10327, %v10310
        %v10685 = vpack.c.b16 %v10328, %v10311
        %v10686 = vpack.c.b16 %v10329, %v10312
        %v10687 = vpack.c.b16 %v10330, %v10313
        %v10688 = vpack.c.b16 %v10331, %v10314
        %v10689 = vpack.c.b16 %v10332, %v10315
        %v10690 = vpack.c.b16 %v10333, %v10316
        %v10691 = vpack.c.b16 %v10334, %v10317
        %v10692 = vpack.c.b16 %v10335, %v10318
        %v10693 = vpack.c.b16 %v10336, %v10319
        %v10694 = vpack.c.b16 %v10354, %v10337
        %v10695 = vpack.c.b16 %v10355, %v10338
        %v10696 = vpack.c.b16 %v10356, %v10339
        %v10697 = vpack.c.b16 %v10357, %v10340
        %v10698 = vpack.c.b16 %v10358, %v10341
        %v10699 = vpack.c.b16 %v10359, %v10342
        %v10700 = vpack.c.b16 %v10360, %v10343
        %v10701 = vpack.c.b16 %v10361, %v10344
        %v10702 = vpack.c.b16 %v10362, %v10345
        %v10703 = vpack.c.b16 %v10363, %v10346
        %v10704 = vpack.c.b16 %v10364, %v10347
        %v10705 = vpack.c.b16 %v10365, %v10348
        %v10706 = vpack.c.b16 %v10366, %v10349
        %v10707 = vpack.c.b16 %v10367, %v10350
        %v10708 = vpack.c.b16 %v10368, %v10351
        %v10709 = vpack.c.b16 %v10369, %v10352
        %v10710 = vpack.c.b16 %v10370, %v10353
        %v10711 = vpack.c.b16 %v10388, %v10371
        %v10712 = vpack.c.b16 %v10389, %v10372
        %v10713 = vpack.c.b16 %v10390, %v10373
        %v10714 = vpack.c.b16 %v10391, %v10374
        %v10715 = vpack.c.b16 %v10392, %v10375
        %v10716 = vpack.c.b16 %v10393, %v10376
        %v10717 = vpack.c.b16 %v10394, %v10377
        %v10718 = vpack.c.b16 %v10395, %v10378
        %v10719 = vpack.c.b16 %v10396, %v10379
        %v10720 = vpack.c.b16 %v10397, %v10380
        %v10721 = vpack.c.b16 %v10398, %v10381
        %v10722 = vpack.c.b16 %v10399, %v10382
        %v10723 = vpack.c.b16 %v10400, %v10383
        %v10724 = vpack.c.b16 %v10401, %v10384
        %v10725 = vpack.c.b16 %v10402, %v10385
        %v10726 = vpack.c.b16 %v10403, %v10386
        %v10727 = vpack.c.b16 %v10404, %v10387
        %v10728 = vpack.c.b16 %v10422, %v10405
        %v10729 = vpack.c.b16 %v10423, %v10406
        %v10730 = vpack.c.b16 %v10424, %v10407
        %v10731 = vpack.c.b16 %v10425, %v10408
        %v10732 = vpack.c.b16 %v10426, %v10409
        %v10733 = vpack.c.b16 %v10427, %v10410
        %v10734 = vpack.c.b16 %v10428, %v10411
        %v10735 = vpack.c.b16 %v10429, %v10412
        %v10736 = vpack.c.b16 %v10430, %v10413
        %v10737 = vpack.c.b16 %v10431, %v10414
        %v10738 = vpack.c.b16 %v10432, %v10415
        %v10739 = vpack.c.b16 %v10433, %v10416
        %v10740 = vpack.c.b16 %v10434, %v10417
        %v10741 = vpack.c.b16 %v10435, %v10418
        %v10742 = vpack.c.b16 %v10436, %v10419
        %v10743 = vpack.c.b16 %v10437, %v10420
        %v10744 = vpack.c.b16 %v10438, %v10421
        %v10745 = vpack.c.b16 %v10456, %v10439
        %v10746 = vpack.c.b16 %v10457, %v10440
        %v10747 = vpack.c.b16 %v10458, %v10441
        %v10748 = vpack.c.b16 %v10459, %v10442
        %v10749 = vpack.c.b16 %v10460, %v10443
        %v10750 = vpack.c.b16 %v10461, %v10444
        %v10751 = vpack.c.b16 %v10462, %v10445
        %v10752 = vpack.c.b16 %v10463, %v10446
        %v10753 = vpack.c.b16 %v10464, %v10447
        %v10754 = vpack.c.b16 %v10465, %v10448
        %v10755 = vpack.c.b16 %v10466, %v10449
        %v10756 = vpack.c.b16 %v10467, %v10450
        %v10757 = vpack.c.b16 %v10468, %v10451
        %v10758 = vpack.c.b16 %v10469, %v10452
        %v10759 = vpack.c.b16 %v10470, %v10453
        %v10760 = vpack.c.b16 %v10471, %v10454
        %v10761 = vpack.c.b16 %v10472, %v10455
        %v10762 = vpack.c.b16 %v10490, %v10473
        %v10763 = vpack.c.b16 %v10491, %v10474
        %v10764 = vpack.c.b16 %v10492, %v10475
        %v10765 = vpack.c.b16 %v10493, %v10476
        %v10766 = vpack.c.b16 %v10494, %v10477
        %v10767 = vpack.c.b16 %v10495, %v10478
        %v10768 = vpack.c.b16 %v10496, %v10479
        %v10769 = vpack.c.b16 %v10497, %v10480
        %v10770 = vpack.c.b16 %v10498, %v10481
        %v10771 = vpack.c.b16 %v10499, %v10482
        %v10772 = vpack.c.b16 %v10500, %v10483
        %v10773 = vpack.c.b16 %v10501, %v10484
        %v10774 = vpack.c.b16 %v10502, %v10485
        %v10775 = vpack.c.b16 %v10503, %v10486
        %v10776 = vpack.c.b16 %v10504, %v10487
        %v10777 = vpack.c.b16 %v10505, %v10488
        %v10778 = vpack.c.b16 %v10506, %v10489
        %v10779 = vpack.c.b16 %v10524, %v10507
        %v10780 = vpack.c.b16 %v10525, %v10508
        %v10781 = vpack.c.b16 %v10526, %v10509
        %v10782 = vpack.c.b16 %v10527, %v10510
        %v10783 = vpack.c.b16 %v10528, %v10511
        %v10784 = vpack.c.b16 %v10529, %v10512
        %v10785 = vpack.c.b16 %v10530, %v10513
        %v10786 = vpack.c.b16 %v10531, %v10514
        %v10787 = vpack.c.b16 %v10532, %v10515
        %v10788 = vpack.c.b16 %v10533, %v10516
        %v10789 = vpack.c.b16 %v10534, %v10517
        %v10790 = vpack.c.b16 %v10535, %v10518
        %v10791 = vpack.c.b16 %v10536, %v10519
        %v10792 = vpack.c.b16 %v10537, %v10520
        %v10793 = vpack.c.b16 %v10538, %v10521
        %v10794 = vpack.c.b16 %v10539, %v10522
        %v10795 = vpack.c.b16 %v10540, %v10523
        %v10796 = vpack.c.b16 %v10558, %v10541
        %v10797 = vpack.c.b16 %v10559, %v10542
        %v10798 = vpack.c.b16 %v10560, %v10543
        %v10799 = vpack.c.b16 %v10561, %v10544
        %v10800 = vpack.c.b16 %v10562, %v10545
        %v10801 = vpack.c.b16 %v10563, %v10546
        %v10802 = vpack.c.b16 %v10564, %v10547
        %v10803 = vpack.c.b16 %v10565, %v10548
        %v10804 = vpack.c.b16 %v10566, %v10549
        %v10805 = vpack.c.b16 %v10567, %v10550
        %v10806 = vpack.c.b16 %v10568, %v10551
        %v10807 = vpack.c.b16 %v10569, %v10552
        %v10808 = vpack.c.b16 %v10570, %v10553
        %v10809 = vpack.c.b16 %v10571, %v10554
        %v10810 = vpack.c.b16 %v10572, %v10555
        %v10811 = vpack.c.b16 %v10573, %v10556
        %v10812 = vpack.c.b16 %v10574, %v10557
        %v10813 = vpack.c.b16 %v10592, %v10575
        %v10814 = vpack.c.b16 %v10593, %v10576
        %v10815 = vpack.c.b16 %v10594, %v10577
        %v10816 = vpack.c.b16 %v10595, %v10578
        %v10817 = vpack.c.b16 %v10596, %v10579
        %v10818 = vpack.c.b16 %v10597, %v10580
        %v10819 = vpack.c.b16 %v10598, %v10581
        %v10820 = vpack.c.b16 %v10599, %v10582
        %v10821 = vpack.c.b16 %v10600, %v10583
        %v10822 = vpack.c.b16 %v10601, %v10584
        %v10823 = vpack.c.b16 %v10602, %v10585
        %v10824 = vpack.c.b16 %v10603, %v10586
        %v10825 = vpack.c.b16 %v10604, %v10587
        %v10826 = vpack.c.b16 %v10605, %v10588
        %v10827 = vpack.c.b16 %v10606, %v10589
        %v10828 = vpack.c.b16 %v10607, %v10590
        %v10829 = vpack.c.b16 %v10608, %v10591
        %v10830 = vpack.c.b16 %v10626, %v10609
        %v10831 = vpack.c.b16 %v10627, %v10610
        %v10832 = vpack.c.b16 %v10628, %v10611
        %v10833 = vpack.c.b16 %v10629, %v10612
        %v10834 = vpack.c.b16 %v10630, %v10613
        %v10835 = vpack.c.b16 %v10631, %v10614
        %v10836 = vpack.c.b16 %v10632, %v10615
        %v10837 = vpack.c.b16 %v10633, %v10616
        %v10838 = vpack.c.b16 %v10634, %v10617
        %v10839 = vpack.c.b16 %v10635, %v10618
        %v10840 = vpack.c.b16 %v10636, %v10619
        %v10841 = vpack.c.b16 %v10637, %v10620
        %v10842 = vpack.c.b16 %v10638, %v10621
        %v10843 = vpack.c.b16 %v10639, %v10622
        %v10844 = vpack.c.b16 %v10640, %v10623
        %v10845 = vpack.c.b16 %v10641, %v10624
        %v10846 = vpack.c.b16 %v10642, %v10625
        %v11052 = vsel %vm5387, %v5344, 0
        %v11055 = vsel %vm5387, %v5346, 0
        %v11058 = vsel %vm5387, %v5348, 0
        %v11061 = vsel %vm5387, %v5350, 0
        %11063 = vmatprep.subr.bf16.mxu0 %v10644
        %11064 = vmatpush1.bf16.msra.mxu0 %v10643
        %11065 = vmatprep.subr.bf16.mxu0 %v10661
        %11066 = vmatpush1.bf16.msra.mxu0 %v10660
        %11067 = vmatprep.subr.bf16.mxu0 %v10678
        %11068 = vmatpush1.bf16.msra.mxu0 %v10677
        %11069 = vmatprep.subr.bf16.mxu0 %v10695
        %11070 = vmatpush1.bf16.msra.mxu0 %v10694
        %11071 = vmatprep.subr.bf16.mxu0 %v10712
        %11072 = vmatpush1.bf16.msra.mxu0 %v10711
        %11073 = vmatprep.subr.bf16.mxu0 %v10729
        %11074 = vmatpush1.bf16.msra.mxu0 %v10728
        %11075 = vmatprep.subr.bf16.mxu0 %v10746
        %11076 = vmatpush1.bf16.msra.mxu0 %v10745
        %11077 = vmatprep.subr.bf16.mxu0 %v10763
        %11078 = vmatpush1.bf16.msra.mxu0 %v10762
        %11079 = vmatprep.subr.bf16.mxu0 %v10780
        %11080 = vmatpush1.bf16.msra.mxu0 %v10779
        %11081 = vmatprep.subr.bf16.mxu0 %v10797
        %11082 = vmatpush1.bf16.msra.mxu0 %v10796
        %11083 = vmatprep.subr.bf16.mxu0 %v10814
        %11084 = vmatpush1.bf16.msra.mxu0 %v10813
        %11085 = vmatprep.subr.bf16.mxu0 %v10831
        %11086 = vmatpush1.bf16.msra.mxu0 %v10830
        %11087 = vmatprep.subr.bf16.mxu0 0
        %11088 = vmatpush1.bf16.msra.mxu0 0
        %11089 = vmatprep.subr.bf16.mxu0 0
        %11090 = vmatpush1.bf16.msra.mxu0 0
        %11091 = vmatprep.subr.bf16.mxu0 0
        %11092 = vmatpush1.bf16.msra.mxu0 0
        %11093 = vmatprep.subr.bf16.mxu0 0
        %11094 = vmatpush1.bf16.msra.mxu0 0
        %11095 = vmatprep.mubr.bf16.mxu0 %v11052
        %11096 = vmatmul.mubr.bf16.gmra.mrb[0].mxu0 %v5343
        %v11097 = vpop.f32.mrb[0].mxu0
        %v11098 = vadd.f32 %v9405, %v11097
        %v11099 = vpop.f32.mrb[0].mxu0
        %v11100 = vadd.f32 %v9407, %v11099
        %v11101 = vpop.f32.mrb[0].mxu0
        %v11102 = vadd.f32 %v9409, %v11101
        %v11103 = vpop.f32.mrb[0].mxu0
        %v11104 = vadd.f32 %v9411, %v11103
        %11105 = vmatprep.mubr.bf16.mxu0 %v11055
        %11106 = vmatmul.mubr.bf16.gmra.mrb[0].mxu0 %v5345
        %v11107 = vpop.f32.mrb[0].mxu0
        %v11108 = vadd.f32 %v9415, %v11107
        %v11109 = vpop.f32.mrb[0].mxu0
        %v11110 = vadd.f32 %v9417, %v11109
        %v11111 = vpop.f32.mrb[0].mxu0
        %v11112 = vadd.f32 %v9419, %v11111
        %v11113 = vpop.f32.mrb[0].mxu0
        %v11114 = vadd.f32 %v9421, %v11113
        %11115 = vmatprep.mubr.bf16.mxu0 %v11058
        %11116 = vmatmul.mubr.bf16.gmra.mrb[0].mxu0 %v5347
        %v11117 = vpop.f32.mrb[0].mxu0
        %v11118 = vadd.f32 %v9425, %v11117
        %v11119 = vpop.f32.mrb[0].mxu0
        %v11120 = vadd.f32 %v9427, %v11119
        %v11121 = vpop.f32.mrb[0].mxu0
        %v11122 = vadd.f32 %v9429, %v11121
        %v11123 = vpop.f32.mrb[0].mxu0
        %v11124 = vadd.f32 %v9431, %v11123
        %11125 = vmatprep.mubr.bf16.mxu0 %v11061
        %11126 = vmatmul.mubr.bf16.gmra.mrb[0].mxu0 %v5349
        %v11127 = vpop.f32.mrb[0].mxu0
        %v11128 = vadd.f32 %v9435, %v11127
        %v11129 = vpop.f32.mrb[0].mxu0
        %v11130 = vadd.f32 %v9437, %v11129
        %v11131 = vpop.f32.mrb[0].mxu0
        %v11132 = vadd.f32 %v9439, %v11131
        %v11133 = vpop.f32.mrb[0].mxu0
        %v11134 = vadd.f32 %v9441, %v11133
        %11135 = vdwg.mxu0
        %11136 = vmatprep.subr.bf16.mxu0 %v10646
        %11137 = vmatpush1.bf16.msra.mxu0 %v10645
        %11138 = vmatprep.subr.bf16.mxu0 %v10663
        %11139 = vmatpush1.bf16.msra.mxu0 %v10662
        %11140 = vmatprep.subr.bf16.mxu0 %v10680
        %11141 = vmatpush1.bf16.msra.mxu0 %v10679
        %11142 = vmatprep.subr.bf16.mxu0 %v10697
        %11143 = vmatpush1.bf16.msra.mxu0 %v10696
        %11144 = vmatprep.subr.bf16.mxu0 %v10714
        %11145 = vmatpush1.bf16.msra.mxu0 %v10713
        %11146 = vmatprep.subr.bf16.mxu0 %v10731
        %11147 = vmatpush1.bf16.msra.mxu0 %v10730
        %11148 = vmatprep.subr.bf16.mxu0 %v10748
        %11149 = vmatpush1.bf16.msra.mxu0 %v10747
        %11150 = vmatprep.subr.bf16.mxu0 %v10765
        %11151 = vmatpush1.bf16.msra.mxu0 %v10764
        %11152 = vmatprep.subr.bf16.mxu0 %v10782
        %11153 = vmatpush1.bf16.msra.mxu0 %v10781
        %11154 = vmatprep.subr.bf16.mxu0 %v10799
        %11155 = vmatpush1.bf16.msra.mxu0 %v10798
        %11156 = vmatprep.subr.bf16.mxu0 %v10816
        %11157 = vmatpush1.bf16.msra.mxu0 %v10815
        %11158 = vmatprep.subr.bf16.mxu0 %v10833
        %11159 = vmatpush1.bf16.msra.mxu0 %v10832
        %11160 = vmatprep.subr.bf16.mxu0 0
        %11161 = vmatpush1.bf16.msra.mxu0 0
        %11162 = vmatprep.subr.bf16.mxu0 0
        %11163 = vmatpush1.bf16.msra.mxu0 0
        %11164 = vmatprep.subr.bf16.mxu0 0
        %11165 = vmatpush1.bf16.msra.mxu0 0
        %11166 = vmatprep.subr.bf16.mxu0 0
        %11167 = vmatpush1.bf16.msra.mxu0 0
        %11168 = vmatprep.mubr.bf16.mxu0 %v11052
        %11169 = vmatmul.mubr.bf16.gmra.mrb[0].mxu0 %v5343
        %v11170 = vpop.f32.mrb[0].mxu0
        %v11171 = vadd.f32 %v9478, %v11170
        %v11172 = vpop.f32.mrb[0].mxu0
        %v11173 = vadd.f32 %v9480, %v11172
        %v11174 = vpop.f32.mrb[0].mxu0
        %v11175 = vadd.f32 %v9482, %v11174
        %v11176 = vpop.f32.mrb[0].mxu0
        %v11177 = vadd.f32 %v9484, %v11176
        %11178 = vmatprep.mubr.bf16.mxu0 %v11055
        %11179 = vmatmul.mubr.bf16.gmra.mrb[0].mxu0 %v5345
        %v11180 = vpop.f32.mrb[0].mxu0
        %v11181 = vadd.f32 %v9488, %v11180
        %v11182 = vpop.f32.mrb[0].mxu0
        %v11183 = vadd.f32 %v9490, %v11182
        %v11184 = vpop.f32.mrb[0].mxu0
        %v11185 = vadd.f32 %v9492, %v11184
        %v11186 = vpop.f32.mrb[0].mxu0
        %v11187 = vadd.f32 %v9494, %v11186
        %11188 = vmatprep.mubr.bf16.mxu0 %v11058
        %11189 = vmatmul.mubr.bf16.gmra.mrb[0].mxu0 %v5347
        %v11190 = vpop.f32.mrb[0].mxu0
        %v11191 = vadd.f32 %v9498, %v11190
        %v11192 = vpop.f32.mrb[0].mxu0
        %v11193 = vadd.f32 %v9500, %v11192
        %v11194 = vpop.f32.mrb[0].mxu0
        %v11195 = vadd.f32 %v9502, %v11194
        %v11196 = vpop.f32.mrb[0].mxu0
        %v11197 = vadd.f32 %v9504, %v11196
        %11198 = vmatprep.mubr.bf16.mxu0 %v11061
        %11199 = vmatmul.mubr.bf16.gmra.mrb[0].mxu0 %v5349
        %v11200 = vpop.f32.mrb[0].mxu0
        %v11201 = vadd.f32 %v9508, %v11200
        %v11202 = vpop.f32.mrb[0].mxu0
        %v11203 = vadd.f32 %v9510, %v11202
        %v11204 = vpop.f32.mrb[0].mxu0
        %v11205 = vadd.f32 %v9512, %v11204
        %v11206 = vpop.f32.mrb[0].mxu0
        %v11207 = vadd.f32 %v9514, %v11206
        %11208 = vdwg.mxu0
        %11209 = vmatprep.subr.bf16.mxu0 %v10648
        %11210 = vmatpush1.bf16.msra.mxu0 %v10647
        %11211 = vmatprep.subr.bf16.mxu0 %v10665
        %11212 = vmatpush1.bf16.msra.mxu0 %v10664
        %11213 = vmatprep.subr.bf16.mxu0 %v10682
        %11214 = vmatpush1.bf16.msra.mxu0 %v10681
        %11215 = vmatprep.subr.bf16.mxu0 %v10699
        %11216 = vmatpush1.bf16.msra.mxu0 %v10698
        %11217 = vmatprep.subr.bf16.mxu0 %v10716
        %11218 = vmatpush1.bf16.msra.mxu0 %v10715
        %11219 = vmatprep.subr.bf16.mxu0 %v10733
        %11220 = vmatpush1.bf16.msra.mxu0 %v10732
        %11221 = vmatprep.subr.bf16.mxu0 %v10750
        %11222 = vmatpush1.bf16.msra.mxu0 %v10749
        %11223 = vmatprep.subr.bf16.mxu0 %v10767
        %11224 = vmatpush1.bf16.msra.mxu0 %v10766
        %11225 = vmatprep.subr.bf16.mxu0 %v10784
        %11226 = vmatpush1.bf16.msra.mxu0 %v10783
        %11227 = vmatprep.subr.bf16.mxu0 %v10801
        %11228 = vmatpush1.bf16.msra.mxu0 %v10800
        %11229 = vmatprep.subr.bf16.mxu0 %v10818
        %11230 = vmatpush1.bf16.msra.mxu0 %v10817
        %11231 = vmatprep.subr.bf16.mxu0 %v10835
        %11232 = vmatpush1.bf16.msra.mxu0 %v10834
        %11233 = vmatprep.subr.bf16.mxu0 0
        %11234 = vmatpush1.bf16.msra.mxu0 0
        %11235 = vmatprep.subr.bf16.mxu0 0
        %11236 = vmatpush1.bf16.msra.mxu0 0
        %11237 = vmatprep.subr.bf16.mxu0 0
        %11238 = vmatpush1.bf16.msra.mxu0 0
        %11239 = vmatprep.subr.bf16.mxu0 0
        %11240 = vmatpush1.bf16.msra.mxu0 0
        %11241 = vmatprep.mubr.bf16.mxu0 %v11052
        %11242 = vmatmul.mubr.bf16.gmra.mrb[0].mxu0 %v5343
        %v11243 = vpop.f32.mrb[0].mxu0
        %v11244 = vadd.f32 %v9551, %v11243
        %v11245 = vpop.f32.mrb[0].mxu0
        %v11246 = vadd.f32 %v9553, %v11245
        %v11247 = vpop.f32.mrb[0].mxu0
        %v11248 = vadd.f32 %v9555, %v11247
        %v11249 = vpop.f32.mrb[0].mxu0
        %v11250 = vadd.f32 %v9557, %v11249
        %11251 = vmatprep.mubr.bf16.mxu0 %v11055
        %11252 = vmatmul.mubr.bf16.gmra.mrb[0].mxu0 %v5345
        %v11253 = vpop.f32.mrb[0].mxu0
        %v11254 = vadd.f32 %v9561, %v11253
        %v11255 = vpop.f32.mrb[0].mxu0
        %v11256 = vadd.f32 %v9563, %v11255
        %v11257 = vpop.f32.mrb[0].mxu0
        %v11258 = vadd.f32 %v9565, %v11257
        %v11259 = vpop.f32.mrb[0].mxu0
        %v11260 = vadd.f32 %v9567, %v11259
        %11261 = vmatprep.mubr.bf16.mxu0 %v11058
        %11262 = vmatmul.mubr.bf16.gmra.mrb[0].mxu0 %v5347
        %v11263 = vpop.f32.mrb[0].mxu0
        %v11264 = vadd.f32 %v9571, %v11263
        %v11265 = vpop.f32.mrb[0].mxu0
        %v11266 = vadd.f32 %v9573, %v11265
        %v11267 = vpop.f32.mrb[0].mxu0
        %v11268 = vadd.f32 %v9575, %v11267
        %v11269 = vpop.f32.mrb[0].mxu0
        %v11270 = vadd.f32 %v9577, %v11269
        %11271 = vmatprep.mubr.bf16.mxu0 %v11061
        %11272 = vmatmul.mubr.bf16.gmra.mrb[0].mxu0 %v5349
        %v11273 = vpop.f32.mrb[0].mxu0
        %v11274 = vadd.f32 %v9581, %v11273
        %v11275 = vpop.f32.mrb[0].mxu0
        %v11276 = vadd.f32 %v9583, %v11275
        %v11277 = vpop.f32.mrb[0].mxu0
        %v11278 = vadd.f32 %v9585, %v11277
        %v11279 = vpop.f32.mrb[0].mxu0
        %v11280 = vadd.f32 %v9587, %v11279
        %11281 = vdwg.mxu0
        %11282 = vmatprep.subr.bf16.mxu0 %v10650
        %11283 = vmatpush1.bf16.msra.mxu0 %v10649
        %11284 = vmatprep.subr.bf16.mxu0 %v10667
        %11285 = vmatpush1.bf16.msra.mxu0 %v10666
        %11286 = vmatprep.subr.bf16.mxu0 %v10684
        %11287 = vmatpush1.bf16.msra.mxu0 %v10683
        %11288 = vmatprep.subr.bf16.mxu0 %v10701
        %11289 = vmatpush1.bf16.msra.mxu0 %v10700
        %11290 = vmatprep.subr.bf16.mxu0 %v10718
        %11291 = vmatpush1.bf16.msra.mxu0 %v10717
        %11292 = vmatprep.subr.bf16.mxu0 %v10735
        %11293 = vmatpush1.bf16.msra.mxu0 %v10734
        %11294 = vmatprep.subr.bf16.mxu0 %v10752
        %11295 = vmatpush1.bf16.msra.mxu0 %v10751
        %11296 = vmatprep.subr.bf16.mxu0 %v10769
        %11297 = vmatpush1.bf16.msra.mxu0 %v10768
        %11298 = vmatprep.subr.bf16.mxu0 %v10786
        %11299 = vmatpush1.bf16.msra.mxu0 %v10785
        %11300 = vmatprep.subr.bf16.mxu0 %v10803
        %11301 = vmatpush1.bf16.msra.mxu0 %v10802
        %11302 = vmatprep.subr.bf16.mxu0 %v10820
        %11303 = vmatpush1.bf16.msra.mxu0 %v10819
        %11304 = vmatprep.subr.bf16.mxu0 %v10837
        %11305 = vmatpush1.bf16.msra.mxu0 %v10836
        %11306 = vmatprep.subr.bf16.mxu0 0
        %11307 = vmatpush1.bf16.msra.mxu0 0
        %11308 = vmatprep.subr.bf16.mxu0 0
        %11309 = vmatpush1.bf16.msra.mxu0 0
        %11310 = vmatprep.subr.bf16.mxu0 0
        %11311 = vmatpush1.bf16.msra.mxu0 0
        %11312 = vmatprep.subr.bf16.mxu0 0
        %11313 = vmatpush1.bf16.msra.mxu0 0
        %11314 = vmatprep.mubr.bf16.mxu0 %v11052
        %11315 = vmatmul.mubr.bf16.gmra.mrb[0].mxu0 %v5343
        %v11316 = vpop.f32.mrb[0].mxu0
        %v11317 = vadd.f32 %v9624, %v11316
        %v11318 = vpop.f32.mrb[0].mxu0
        %v11319 = vadd.f32 %v9626, %v11318
        %v11320 = vpop.f32.mrb[0].mxu0
        %v11321 = vadd.f32 %v9628, %v11320
        %v11322 = vpop.f32.mrb[0].mxu0
        %v11323 = vadd.f32 %v9630, %v11322
        %11324 = vmatprep.mubr.bf16.mxu0 %v11055
        %11325 = vmatmul.mubr.bf16.gmra.mrb[0].mxu0 %v5345
        %v11326 = vpop.f32.mrb[0].mxu0
        %v11327 = vadd.f32 %v9634, %v11326
        %v11328 = vpop.f32.mrb[0].mxu0
        %v11329 = vadd.f32 %v9636, %v11328
        %v11330 = vpop.f32.mrb[0].mxu0
        %v11331 = vadd.f32 %v9638, %v11330
        %v11332 = vpop.f32.mrb[0].mxu0
        %v11333 = vadd.f32 %v9640, %v11332
        %11334 = vmatprep.mubr.bf16.mxu0 %v11058
        %11335 = vmatmul.mubr.bf16.gmra.mrb[0].mxu0 %v5347
        %v11336 = vpop.f32.mrb[0].mxu0
        %v11337 = vadd.f32 %v9644, %v11336
        %v11338 = vpop.f32.mrb[0].mxu0
        %v11339 = vadd.f32 %v9646, %v11338
        %v11340 = vpop.f32.mrb[0].mxu0
        %v11341 = vadd.f32 %v9648, %v11340
        %v11342 = vpop.f32.mrb[0].mxu0
        %v11343 = vadd.f32 %v9650, %v11342
        %11344 = vmatprep.mubr.bf16.mxu0 %v11061
        %11345 = vmatmul.mubr.bf16.gmra.mrb[0].mxu0 %v5349
        %v11346 = vpop.f32.mrb[0].mxu0
        %v11347 = vadd.f32 %v9654, %v11346
        %v11348 = vpop.f32.mrb[0].mxu0
        %v11349 = vadd.f32 %v9656, %v11348
        %v11350 = vpop.f32.mrb[0].mxu0
        %v11351 = vadd.f32 %v9658, %v11350
        %v11352 = vpop.f32.mrb[0].mxu0
        %v11353 = vadd.f32 %v9660, %v11352
        %11354 = vdwg.mxu0
        %11355 = vmatprep.subr.bf16.mxu0 %v10652
        %11356 = vmatpush1.bf16.msra.mxu0 %v10651
        %11357 = vmatprep.subr.bf16.mxu0 %v10669
        %11358 = vmatpush1.bf16.msra.mxu0 %v10668
        %11359 = vmatprep.subr.bf16.mxu0 %v10686
        %11360 = vmatpush1.bf16.msra.mxu0 %v10685
        %11361 = vmatprep.subr.bf16.mxu0 %v10703
        %11362 = vmatpush1.bf16.msra.mxu0 %v10702
        %11363 = vmatprep.subr.bf16.mxu0 %v10720
        %11364 = vmatpush1.bf16.msra.mxu0 %v10719
        %11365 = vmatprep.subr.bf16.mxu0 %v10737
        %11366 = vmatpush1.bf16.msra.mxu0 %v10736
        %11367 = vmatprep.subr.bf16.mxu0 %v10754
        %11368 = vmatpush1.bf16.msra.mxu0 %v10753
        %11369 = vmatprep.subr.bf16.mxu0 %v10771
        %11370 = vmatpush1.bf16.msra.mxu0 %v10770
        %11371 = vmatprep.subr.bf16.mxu0 %v10788
        %11372 = vmatpush1.bf16.msra.mxu0 %v10787
        %11373 = vmatprep.subr.bf16.mxu0 %v10805
        %11374 = vmatpush1.bf16.msra.mxu0 %v10804
        %11375 = vmatprep.subr.bf16.mxu0 %v10822
        %11376 = vmatpush1.bf16.msra.mxu0 %v10821
        %11377 = vmatprep.subr.bf16.mxu0 %v10839
        %11378 = vmatpush1.bf16.msra.mxu0 %v10838
        %11379 = vmatprep.subr.bf16.mxu0 0
        %11380 = vmatpush1.bf16.msra.mxu0 0
        %11381 = vmatprep.subr.bf16.mxu0 0
        %11382 = vmatpush1.bf16.msra.mxu0 0
        %11383 = vmatprep.subr.bf16.mxu0 0
        %11384 = vmatpush1.bf16.msra.mxu0 0
        %11385 = vmatprep.subr.bf16.mxu0 0
        %11386 = vmatpush1.bf16.msra.mxu0 0
        %11387 = vmatprep.mubr.bf16.mxu0 %v11052
        %11388 = vmatmul.mubr.bf16.gmra.mrb[0].mxu0 %v5343
        %v11389 = vpop.f32.mrb[0].mxu0
        %v11390 = vadd.f32 %v9697, %v11389
        %v11391 = vpop.f32.mrb[0].mxu0
        %v11392 = vadd.f32 %v9699, %v11391
        %v11393 = vpop.f32.mrb[0].mxu0
        %v11394 = vadd.f32 %v9701, %v11393
        %v11395 = vpop.f32.mrb[0].mxu0
        %v11396 = vadd.f32 %v9703, %v11395
        %11397 = vmatprep.mubr.bf16.mxu0 %v11055
        %11398 = vmatmul.mubr.bf16.gmra.mrb[0].mxu0 %v5345
        %v11399 = vpop.f32.mrb[0].mxu0
        %v11400 = vadd.f32 %v9707, %v11399
        %v11401 = vpop.f32.mrb[0].mxu0
        %v11402 = vadd.f32 %v9709, %v11401
        %v11403 = vpop.f32.mrb[0].mxu0
        %v11404 = vadd.f32 %v9711, %v11403
        %v11405 = vpop.f32.mrb[0].mxu0
        %v11406 = vadd.f32 %v9713, %v11405
        %11407 = vmatprep.mubr.bf16.mxu0 %v11058
        %11408 = vmatmul.mubr.bf16.gmra.mrb[0].mxu0 %v5347
        %v11409 = vpop.f32.mrb[0].mxu0
        %v11410 = vadd.f32 %v9717, %v11409
        %v11411 = vpop.f32.mrb[0].mxu0
        %v11412 = vadd.f32 %v9719, %v11411
        %v11413 = vpop.f32.mrb[0].mxu0
        %v11414 = vadd.f32 %v9721, %v11413
        %v11415 = vpop.f32.mrb[0].mxu0
        %v11416 = vadd.f32 %v9723, %v11415
        %11417 = vmatprep.mubr.bf16.mxu0 %v11061
        %11418 = vmatmul.mubr.bf16.gmra.mrb[0].mxu0 %v5349
        %v11419 = vpop.f32.mrb[0].mxu0
        %v11420 = vadd.f32 %v9727, %v11419
        %v11421 = vpop.f32.mrb[0].mxu0
        %v11422 = vadd.f32 %v9729, %v11421
        %v11423 = vpop.f32.mrb[0].mxu0
        %v11424 = vadd.f32 %v9731, %v11423
        %v11425 = vpop.f32.mrb[0].mxu0
        %v11426 = vadd.f32 %v9733, %v11425
        %11427 = vdwg.mxu0
        %11428 = vmatprep.subr.bf16.mxu0 %v10654
        %11429 = vmatpush1.bf16.msra.mxu0 %v10653
        %11430 = vmatprep.subr.bf16.mxu0 %v10671
        %11431 = vmatpush1.bf16.msra.mxu0 %v10670
        %11432 = vmatprep.subr.bf16.mxu0 %v10688
        %11433 = vmatpush1.bf16.msra.mxu0 %v10687
        %11434 = vmatprep.subr.bf16.mxu0 %v10705
        %11435 = vmatpush1.bf16.msra.mxu0 %v10704
        %11436 = vmatprep.subr.bf16.mxu0 %v10722
        %11437 = vmatpush1.bf16.msra.mxu0 %v10721
        %11438 = vmatprep.subr.bf16.mxu0 %v10739
        %11439 = vmatpush1.bf16.msra.mxu0 %v10738
        %11440 = vmatprep.subr.bf16.mxu0 %v10756
        %11441 = vmatpush1.bf16.msra.mxu0 %v10755
        %11442 = vmatprep.subr.bf16.mxu0 %v10773
        %11443 = vmatpush1.bf16.msra.mxu0 %v10772
        %11444 = vmatprep.subr.bf16.mxu0 %v10790
        %11445 = vmatpush1.bf16.msra.mxu0 %v10789
        %11446 = vmatprep.subr.bf16.mxu0 %v10807
        %11447 = vmatpush1.bf16.msra.mxu0 %v10806
        %11448 = vmatprep.subr.bf16.mxu0 %v10824
        %11449 = vmatpush1.bf16.msra.mxu0 %v10823
        %11450 = vmatprep.subr.bf16.mxu0 %v10841
        %11451 = vmatpush1.bf16.msra.mxu0 %v10840
        %11452 = vmatprep.subr.bf16.mxu0 0
        %11453 = vmatpush1.bf16.msra.mxu0 0
        %11454 = vmatprep.subr.bf16.mxu0 0
        %11455 = vmatpush1.bf16.msra.mxu0 0
        %11456 = vmatprep.subr.bf16.mxu0 0
        %11457 = vmatpush1.bf16.msra.mxu0 0
        %11458 = vmatprep.subr.bf16.mxu0 0
        %11459 = vmatpush1.bf16.msra.mxu0 0
        %11460 = vmatprep.mubr.bf16.mxu0 %v11052
        %11461 = vmatmul.mubr.bf16.gmra.mrb[0].mxu0 %v5343
        %v11462 = vpop.f32.mrb[0].mxu0
        %v11463 = vadd.f32 %v9770, %v11462
        %v11464 = vpop.f32.mrb[0].mxu0
        %v11465 = vadd.f32 %v9772, %v11464
        %v11466 = vpop.f32.mrb[0].mxu0
        %v11467 = vadd.f32 %v9774, %v11466
        %v11468 = vpop.f32.mrb[0].mxu0
        %v11469 = vadd.f32 %v9776, %v11468
        %11470 = vmatprep.mubr.bf16.mxu0 %v11055
        %11471 = vmatmul.mubr.bf16.gmra.mrb[0].mxu0 %v5345
        %v11472 = vpop.f32.mrb[0].mxu0
        %v11473 = vadd.f32 %v9780, %v11472
        %v11474 = vpop.f32.mrb[0].mxu0
        %v11475 = vadd.f32 %v9782, %v11474
        %v11476 = vpop.f32.mrb[0].mxu0
        %v11477 = vadd.f32 %v9784, %v11476
        %v11478 = vpop.f32.mrb[0].mxu0
        %v11479 = vadd.f32 %v9786, %v11478
        %11480 = vmatprep.mubr.bf16.mxu0 %v11058
        %11481 = vmatmul.mubr.bf16.gmra.mrb[0].mxu0 %v5347
        %v11482 = vpop.f32.mrb[0].mxu0
        %v11483 = vadd.f32 %v9790, %v11482
        %v11484 = vpop.f32.mrb[0].mxu0
        %v11485 = vadd.f32 %v9792, %v11484
        %v11486 = vpop.f32.mrb[0].mxu0
        %v11487 = vadd.f32 %v9794, %v11486
        %v11488 = vpop.f32.mrb[0].mxu0
        %v11489 = vadd.f32 %v9796, %v11488
        %11490 = vmatprep.mubr.bf16.mxu0 %v11061
        %11491 = vmatmul.mubr.bf16.gmra.mrb[0].mxu0 %v5349
        %v11492 = vpop.f32.mrb[0].mxu0
        %v11493 = vadd.f32 %v9800, %v11492
        %v11494 = vpop.f32.mrb[0].mxu0
        %v11495 = vadd.f32 %v9802, %v11494
        %v11496 = vpop.f32.mrb[0].mxu0
        %v11497 = vadd.f32 %v9804, %v11496
        %v11498 = vpop.f32.mrb[0].mxu0
        %v11499 = vadd.f32 %v9806, %v11498
        %11500 = vdwg.mxu0
        %11501 = vmatprep.subr.bf16.mxu0 %v10656
        %11502 = vmatpush1.bf16.msra.mxu0 %v10655
        %11503 = vmatprep.subr.bf16.mxu0 %v10673
        %11504 = vmatpush1.bf16.msra.mxu0 %v10672
        %11505 = vmatprep.subr.bf16.mxu0 %v10690
        %11506 = vmatpush1.bf16.msra.mxu0 %v10689
        %11507 = vmatprep.subr.bf16.mxu0 %v10707
        %11508 = vmatpush1.bf16.msra.mxu0 %v10706
        %11509 = vmatprep.subr.bf16.mxu0 %v10724
        %11510 = vmatpush1.bf16.msra.mxu0 %v10723
        %11511 = vmatprep.subr.bf16.mxu0 %v10741
        %11512 = vmatpush1.bf16.msra.mxu0 %v10740
        %11513 = vmatprep.subr.bf16.mxu0 %v10758
        %11514 = vmatpush1.bf16.msra.mxu0 %v10757
        %11515 = vmatprep.subr.bf16.mxu0 %v10775
        %11516 = vmatpush1.bf16.msra.mxu0 %v10774
        %11517 = vmatprep.subr.bf16.mxu0 %v10792
        %11518 = vmatpush1.bf16.msra.mxu0 %v10791
        %11519 = vmatprep.subr.bf16.mxu0 %v10809
        %11520 = vmatpush1.bf16.msra.mxu0 %v10808
        %11521 = vmatprep.subr.bf16.mxu0 %v10826
        %11522 = vmatpush1.bf16.msra.mxu0 %v10825
        %11523 = vmatprep.subr.bf16.mxu0 %v10843
        %11524 = vmatpush1.bf16.msra.mxu0 %v10842
        %11525 = vmatprep.subr.bf16.mxu0 0
        %11526 = vmatpush1.bf16.msra.mxu0 0
        %11527 = vmatprep.subr.bf16.mxu0 0
        %11528 = vmatpush1.bf16.msra.mxu0 0
        %11529 = vmatprep.subr.bf16.mxu0 0
        %11530 = vmatpush1.bf16.msra.mxu0 0
        %11531 = vmatprep.subr.bf16.mxu0 0
        %11532 = vmatpush1.bf16.msra.mxu0 0
        %11533 = vmatprep.mubr.bf16.mxu0 %v11052
        %11534 = vmatmul.mubr.bf16.gmra.mrb[0].mxu0 %v5343
        %v11535 = vpop.f32.mrb[0].mxu0
        %v11536 = vadd.f32 %v9843, %v11535
        %v11537 = vpop.f32.mrb[0].mxu0
        %v11538 = vadd.f32 %v9845, %v11537
        %v11539 = vpop.f32.mrb[0].mxu0
        %v11540 = vadd.f32 %v9847, %v11539
        %v11541 = vpop.f32.mrb[0].mxu0
        %v11542 = vadd.f32 %v9849, %v11541
        %11543 = vmatprep.mubr.bf16.mxu0 %v11055
        %11544 = vmatmul.mubr.bf16.gmra.mrb[0].mxu0 %v5345
        %v11545 = vpop.f32.mrb[0].mxu0
        %v11546 = vadd.f32 %v9853, %v11545
        %v11547 = vpop.f32.mrb[0].mxu0
        %v11548 = vadd.f32 %v9855, %v11547
        %v11549 = vpop.f32.mrb[0].mxu0
        %v11550 = vadd.f32 %v9857, %v11549
        %v11551 = vpop.f32.mrb[0].mxu0
        %v11552 = vadd.f32 %v9859, %v11551
        %11553 = vmatprep.mubr.bf16.mxu0 %v11058
        %11554 = vmatmul.mubr.bf16.gmra.mrb[0].mxu0 %v5347
        %v11555 = vpop.f32.mrb[0].mxu0
        %v11556 = vadd.f32 %v9863, %v11555
        %v11557 = vpop.f32.mrb[0].mxu0
        %v11558 = vadd.f32 %v9865, %v11557
        %v11559 = vpop.f32.mrb[0].mxu0
        %v11560 = vadd.f32 %v9867, %v11559
        %v11561 = vpop.f32.mrb[0].mxu0
        %v11562 = vadd.f32 %v9869, %v11561
        %11563 = vmatprep.mubr.bf16.mxu0 %v11061
        %11564 = vmatmul.mubr.bf16.gmra.mrb[0].mxu0 %v5349
        %v11565 = vpop.f32.mrb[0].mxu0
        %v11566 = vadd.f32 %v9873, %v11565
        %v11567 = vpop.f32.mrb[0].mxu0
        %v11568 = vadd.f32 %v9875, %v11567
        %v11569 = vpop.f32.mrb[0].mxu0
        %v11570 = vadd.f32 %v9877, %v11569
        %v11571 = vpop.f32.mrb[0].mxu0
        %v11572 = vadd.f32 %v9879, %v11571
        %11573 = vdwg.mxu0
        %11574 = vmatprep.subr.bf16.mxu0 %v10658
        %11575 = vmatpush1.bf16.msra.mxu0 %v10657
        %11576 = vmatprep.subr.bf16.mxu0 %v10675
        %11577 = vmatpush1.bf16.msra.mxu0 %v10674
        %11578 = vmatprep.subr.bf16.mxu0 %v10692
        %11579 = vmatpush1.bf16.msra.mxu0 %v10691
        %11580 = vmatprep.subr.bf16.mxu0 %v10709
        %11581 = vmatpush1.bf16.msra.mxu0 %v10708
        %11582 = vmatprep.subr.bf16.mxu0 %v10726
        %11583 = vmatpush1.bf16.msra.mxu0 %v10725
        %11584 = vmatprep.subr.bf16.mxu0 %v10743
        %11585 = vmatpush1.bf16.msra.mxu0 %v10742
        %11586 = vmatprep.subr.bf16.mxu0 %v10760
        %11587 = vmatpush1.bf16.msra.mxu0 %v10759
        %11588 = vmatprep.subr.bf16.mxu0 %v10777
        %11589 = vmatpush1.bf16.msra.mxu0 %v10776
        %11590 = vmatprep.subr.bf16.mxu0 %v10794
        %11591 = vmatpush1.bf16.msra.mxu0 %v10793
        %11592 = vmatprep.subr.bf16.mxu0 %v10811
        %11593 = vmatpush1.bf16.msra.mxu0 %v10810
        %11594 = vmatprep.subr.bf16.mxu0 %v10828
        %11595 = vmatpush1.bf16.msra.mxu0 %v10827
        %11596 = vmatprep.subr.bf16.mxu0 %v10845
        %11597 = vmatpush1.bf16.msra.mxu0 %v10844
        %11598 = vmatprep.subr.bf16.mxu0 0
        %11599 = vmatpush1.bf16.msra.mxu0 0
        %11600 = vmatprep.subr.bf16.mxu0 0
        %11601 = vmatpush1.bf16.msra.mxu0 0
        %11602 = vmatprep.subr.bf16.mxu0 0
        %11603 = vmatpush1.bf16.msra.mxu0 0
        %11604 = vmatprep.subr.bf16.mxu0 0
        %11605 = vmatpush1.bf16.msra.mxu0 0
        %11606 = vmatprep.mubr.bf16.mxu0 %v11052
        %11607 = vmatmul.mubr.bf16.gmra.mrb[0].mxu0 %v5343
        %v11608 = vpop.f32.mrb[0].mxu0
        %v11609 = vadd.f32 %v9916, %v11608
        %v11610 = vpop.f32.mrb[0].mxu0
        %v11611 = vadd.f32 %v9918, %v11610
        %v11612 = vpop.f32.mrb[0].mxu0
        %v11613 = vadd.f32 %v9920, %v11612
        %v11614 = vpop.f32.mrb[0].mxu0
        %v11615 = vadd.f32 %v9922, %v11614
        %11616 = vmatprep.mubr.bf16.mxu0 %v11055
        %11617 = vmatmul.mubr.bf16.gmra.mrb[0].mxu0 %v5345
        %v11618 = vpop.f32.mrb[0].mxu0
        %v11619 = vadd.f32 %v9926, %v11618
        %v11620 = vpop.f32.mrb[0].mxu0
        %v11621 = vadd.f32 %v9928, %v11620
        %v11622 = vpop.f32.mrb[0].mxu0
        %v11623 = vadd.f32 %v9930, %v11622
        %v11624 = vpop.f32.mrb[0].mxu0
        %v11625 = vadd.f32 %v9932, %v11624
        %11626 = vmatprep.mubr.bf16.mxu0 %v11058
        %11627 = vmatmul.mubr.bf16.gmra.mrb[0].mxu0 %v5347
        %v11628 = vpop.f32.mrb[0].mxu0
        %v11629 = vadd.f32 %v9936, %v11628
        %v11630 = vpop.f32.mrb[0].mxu0
        %v11631 = vadd.f32 %v9938, %v11630
        %v11632 = vpop.f32.mrb[0].mxu0
        %v11633 = vadd.f32 %v9940, %v11632
        %v11634 = vpop.f32.mrb[0].mxu0
        %v11635 = vadd.f32 %v9942, %v11634
        %11636 = vmatprep.mubr.bf16.mxu0 %v11061
        %11637 = vmatmul.mubr.bf16.gmra.mrb[0].mxu0 %v5349
        %v11638 = vpop.f32.mrb[0].mxu0
        %v11639 = vadd.f32 %v9946, %v11638
        %v11640 = vpop.f32.mrb[0].mxu0
        %v11641 = vadd.f32 %v9948, %v11640
        %v11642 = vpop.f32.mrb[0].mxu0
        %v11643 = vadd.f32 %v9950, %v11642
        %v11644 = vpop.f32.mrb[0].mxu0
        %v11645 = vadd.f32 %v9952, %v11644
        %11646 = vdwg.mxu0
        %11647 = vmatprep.subr.bf16.mxu0 0
        %11648 = vmatpush1.bf16.msra.mxu0 %v10659
        %11649 = vmatprep.subr.bf16.mxu0 0
        %11650 = vmatpush1.bf16.msra.mxu0 %v10676
        %11651 = vmatprep.subr.bf16.mxu0 0
        %11652 = vmatpush1.bf16.msra.mxu0 %v10693
        %11653 = vmatprep.subr.bf16.mxu0 0
        %11654 = vmatpush1.bf16.msra.mxu0 %v10710
        %11655 = vmatprep.subr.bf16.mxu0 0
        %11656 = vmatpush1.bf16.msra.mxu0 %v10727
        %11657 = vmatprep.subr.bf16.mxu0 0
        %11658 = vmatpush1.bf16.msra.mxu0 %v10744
        %11659 = vmatprep.subr.bf16.mxu0 0
        %11660 = vmatpush1.bf16.msra.mxu0 %v10761
        %11661 = vmatprep.subr.bf16.mxu0 0
        %11662 = vmatpush1.bf16.msra.mxu0 %v10778
        %11663 = vmatprep.subr.bf16.mxu0 0
        %11664 = vmatpush1.bf16.msra.mxu0 %v10795
        %11665 = vmatprep.subr.bf16.mxu0 0
        %11666 = vmatpush1.bf16.msra.mxu0 %v10812
        %11667 = vmatprep.subr.bf16.mxu0 0
        %11668 = vmatpush1.bf16.msra.mxu0 %v10829
        %11669 = vmatprep.subr.bf16.mxu0 0
        %11670 = vmatpush1.bf16.msra.mxu0 %v10846
        %11671 = vmatprep.subr.bf16.mxu0 0
        %11672 = vmatpush1.bf16.msra.mxu0 0
        %11673 = vmatprep.subr.bf16.mxu0 0
        %11674 = vmatpush1.bf16.msra.mxu0 0
        %11675 = vmatprep.subr.bf16.mxu0 0
        %11676 = vmatpush1.bf16.msra.mxu0 0
        %11677 = vmatprep.subr.bf16.mxu0 0
        %11678 = vmatpush1.bf16.msra.mxu0 0
        %11679 = vmatprep.mubr.bf16.mxu0 %v11052
        %11680 = vmatmul.mubr.bf16.gmra.mrb[0].mxu0 %v5343
        %v11681 = vpop.f32.mrb[0].mxu0
        %v11682 = vadd.f32 %v9989, %v11681
        %v11683 = vpop.f32.mrb[0].mxu0
        %v11684 = vpop.f32.mrb[0].mxu0
        %v11685 = vadd.f32 %v9992, %v11684
        %v11686 = vpop.f32.mrb[0].mxu0
        %11687 = vmatprep.mubr.bf16.mxu0 %v11055
        %11688 = vmatmul.mubr.bf16.gmra.mrb[0].mxu0 %v5345
        %v11689 = vpop.f32.mrb[0].mxu0
        %v11690 = vadd.f32 %v9997, %v11689
        %v11691 = vpop.f32.mrb[0].mxu0
        %v11692 = vpop.f32.mrb[0].mxu0
        %v11693 = vadd.f32 %v10000, %v11692
        %v11694 = vpop.f32.mrb[0].mxu0
        %11695 = vmatprep.mubr.bf16.mxu0 %v11058
        %11696 = vmatmul.mubr.bf16.gmra.mrb[0].mxu0 %v5347
        %v11697 = vpop.f32.mrb[0].mxu0
        %v11698 = vadd.f32 %v10005, %v11697
        %v11699 = vpop.f32.mrb[0].mxu0
        %v11700 = vpop.f32.mrb[0].mxu0
        %v11701 = vadd.f32 %v10008, %v11700
        %v11702 = vpop.f32.mrb[0].mxu0
        %11703 = vmatprep.mubr.bf16.mxu0 %v11061
        %11704 = vmatmul.mubr.bf16.gmra.mrb[0].mxu0 %v5349
        %v11705 = vpop.f32.mrb[0].mxu0
        %v11706 = vadd.f32 %v10013, %v11705
        %v11707 = vpop.f32.mrb[0].mxu0
        %v11708 = vpop.f32.mrb[0].mxu0
        %v11709 = vadd.f32 %v10016, %v11708
        %v11710 = vpop.f32.mrb[0].mxu0
        %11711 = vdwg.mxu0
        %v11712 = vld [vmem:[%s16] sm:$0xff]
        %v11713 = vld [vmem:[%s16 + $0x8] sm:$0xff]
        %v11714 = vld [vmem:[%s16 + $0x10] sm:$0x1]
        %v11718 = vlaneseq
        %v11719 = vshrl.u32 %v11718, 7
        %v11720 = vsub.s32 0, %v11719
        %v11721 = vrot.slane %v11712, %v11720
        %v11722 = vlaneseq
        %v11723 = vshrl.u32 %v11722, 7
        %v11724 = vsub.s32 1, %v11723
        %v11725 = vrot.slane %v11712, %v11724
        %v11726 = vlaneseq
        %v11727 = vshrl.u32 %v11726, 7
        %v11728 = vsub.s32 2, %v11727
        %v11729 = vrot.slane %v11712, %v11728
        %v11730 = vlaneseq
        %v11731 = vshrl.u32 %v11730, 7
        %v11732 = vsub.s32 3, %v11731
        %v11733 = vrot.slane %v11712, %v11732
        %v11734 = vlaneseq
        %v11735 = vshrl.u32 %v11734, 7
        %v11736 = vsub.s32 4, %v11735
        %v11737 = vrot.slane %v11712, %v11736
        %v11738 = vlaneseq
        %v11739 = vshrl.u32 %v11738, 7
        %v11740 = vsub.s32 5, %v11739
        %v11741 = vrot.slane %v11712, %v11740
        %v11742 = vlaneseq
        %v11743 = vshrl.u32 %v11742, 7
        %v11744 = vsub.s32 6, %v11743
        %v11745 = vrot.slane %v11712, %v11744
        %v11746 = vlaneseq
        %v11747 = vshrl.u32 %v11746, 7
        %v11748 = vsub.s32 7, %v11747
        %v11749 = vrot.slane %v11712, %v11748
        %v11750 = vlaneseq
        %v11751 = vshrl.u32 %v11750, 7
        %v11752 = vsub.s32 0, %v11751
        %v11753 = vrot.slane %v11713, %v11752
        %v11754 = vlaneseq
        %v11755 = vshrl.u32 %v11754, 7
        %v11756 = vsub.s32 1, %v11755
        %v11757 = vrot.slane %v11713, %v11756
        %v11758 = vlaneseq
        %v11759 = vshrl.u32 %v11758, 7
        %v11760 = vsub.s32 2, %v11759
        %v11761 = vrot.slane %v11713, %v11760
        %v11762 = vlaneseq
        %v11763 = vshrl.u32 %v11762, 7
        %v11764 = vsub.s32 3, %v11763
        %v11765 = vrot.slane %v11713, %v11764
        %v11766 = vlaneseq
        %v11767 = vshrl.u32 %v11766, 7
        %v11768 = vsub.s32 4, %v11767
        %v11769 = vrot.slane %v11713, %v11768
        %v11770 = vlaneseq
        %v11771 = vshrl.u32 %v11770, 7
        %v11772 = vsub.s32 5, %v11771
        %v11773 = vrot.slane %v11713, %v11772
        %v11774 = vlaneseq
        %v11775 = vshrl.u32 %v11774, 7
        %v11776 = vsub.s32 6, %v11775
        %v11777 = vrot.slane %v11713, %v11776
        %v11778 = vlaneseq
        %v11779 = vshrl.u32 %v11778, 7
        %v11780 = vsub.s32 7, %v11779
        %v11781 = vrot.slane %v11713, %v11780
        %v11782 = vlaneseq
        %v11783 = vshrl.u32 %v11782, 7
        %v11784 = vsub.s32 0, %v11783
        %v11785 = vrot.slane %v11714, %v11784
        %v11803 = vadd.f32 %v11098, %v11721
        %v11804 = vadd.f32 %v11100, %v11725
        %v11805 = vadd.f32 %v11171, %v11729
        %v11806 = vadd.f32 %v11173, %v11733
        %v11807 = vadd.f32 %v11244, %v11737
        %v11808 = vadd.f32 %v11246, %v11741
        %v11809 = vadd.f32 %v11317, %v11745
        %v11810 = vadd.f32 %v11319, %v11749
        %v11811 = vadd.f32 %v11390, %v11753
        %v11812 = vadd.f32 %v11392, %v11757
        %v11813 = vadd.f32 %v11463, %v11761
        %v11814 = vadd.f32 %v11465, %v11765
        %v11815 = vadd.f32 %v11536, %v11769
        %v11816 = vadd.f32 %v11538, %v11773
        %v11817 = vadd.f32 %v11609, %v11777
        %v11818 = vadd.f32 %v11611, %v11781
        %v11819 = vadd.f32 %v11682, %v11785
        %v11820 = vadd.f32 %v11102, %v11721
        %v11821 = vadd.f32 %v11104, %v11725
        %v11822 = vadd.f32 %v11175, %v11729
        %v11823 = vadd.f32 %v11177, %v11733
        %v11824 = vadd.f32 %v11248, %v11737
        %v11825 = vadd.f32 %v11250, %v11741
        %v11826 = vadd.f32 %v11321, %v11745
        %v11827 = vadd.f32 %v11323, %v11749
        %v11828 = vadd.f32 %v11394, %v11753
        %v11829 = vadd.f32 %v11396, %v11757
        %v11830 = vadd.f32 %v11467, %v11761
        %v11831 = vadd.f32 %v11469, %v11765
        %v11832 = vadd.f32 %v11540, %v11769
        %v11833 = vadd.f32 %v11542, %v11773
        %v11834 = vadd.f32 %v11613, %v11777
        %v11835 = vadd.f32 %v11615, %v11781
        %v11836 = vadd.f32 %v11685, %v11785
        %v11837 = vadd.f32 %v11108, %v11721
        %v11838 = vadd.f32 %v11110, %v11725
        %v11839 = vadd.f32 %v11181, %v11729
        %v11840 = vadd.f32 %v11183, %v11733
        %v11841 = vadd.f32 %v11254, %v11737
        %v11842 = vadd.f32 %v11256, %v11741
        %v11843 = vadd.f32 %v11327, %v11745
        %v11844 = vadd.f32 %v11329, %v11749
        %v11845 = vadd.f32 %v11400, %v11753
        %v11846 = vadd.f32 %v11402, %v11757
        %v11847 = vadd.f32 %v11473, %v11761
        %v11848 = vadd.f32 %v11475, %v11765
        %v11849 = vadd.f32 %v11546, %v11769
        %v11850 = vadd.f32 %v11548, %v11773
        %v11851 = vadd.f32 %v11619, %v11777
        %v11852 = vadd.f32 %v11621, %v11781
        %v11853 = vadd.f32 %v11690, %v11785
        %v11854 = vadd.f32 %v11112, %v11721
        %v11855 = vadd.f32 %v11114, %v11725
        %v11856 = vadd.f32 %v11185, %v11729
        %v11857 = vadd.f32 %v11187, %v11733
        %v11858 = vadd.f32 %v11258, %v11737
        %v11859 = vadd.f32 %v11260, %v11741
        %v11860 = vadd.f32 %v11331, %v11745
        %v11861 = vadd.f32 %v11333, %v11749
        %v11862 = vadd.f32 %v11404, %v11753
        %v11863 = vadd.f32 %v11406, %v11757
        %v11864 = vadd.f32 %v11477, %v11761
        %v11865 = vadd.f32 %v11479, %v11765
        %v11866 = vadd.f32 %v11550, %v11769
        %v11867 = vadd.f32 %v11552, %v11773
        %v11868 = vadd.f32 %v11623, %v11777
        %v11869 = vadd.f32 %v11625, %v11781
        %v11870 = vadd.f32 %v11693, %v11785
        %v11871 = vadd.f32 %v11118, %v11721
        %v11872 = vadd.f32 %v11120, %v11725
        %v11873 = vadd.f32 %v11191, %v11729
        %v11874 = vadd.f32 %v11193, %v11733
        %v11875 = vadd.f32 %v11264, %v11737
        %v11876 = vadd.f32 %v11266, %v11741
        %v11877 = vadd.f32 %v11337, %v11745
        %v11878 = vadd.f32 %v11339, %v11749
        %v11879 = vadd.f32 %v11410, %v11753
        %v11880 = vadd.f32 %v11412, %v11757
        %v11881 = vadd.f32 %v11483, %v11761
        %v11882 = vadd.f32 %v11485, %v11765
        %v11883 = vadd.f32 %v11556, %v11769
        %v11884 = vadd.f32 %v11558, %v11773
        %v11885 = vadd.f32 %v11629, %v11777
        %v11886 = vadd.f32 %v11631, %v11781
        %v11887 = vadd.f32 %v11698, %v11785
        %v11888 = vadd.f32 %v11122, %v11721
        %v11889 = vadd.f32 %v11124, %v11725
        %v11890 = vadd.f32 %v11195, %v11729
        %v11891 = vadd.f32 %v11197, %v11733
        %v11892 = vadd.f32 %v11268, %v11737
        %v11893 = vadd.f32 %v11270, %v11741
        %v11894 = vadd.f32 %v11341, %v11745
        %v11895 = vadd.f32 %v11343, %v11749
        %v11896 = vadd.f32 %v11414, %v11753
        %v11897 = vadd.f32 %v11416, %v11757
        %v11898 = vadd.f32 %v11487, %v11761
        %v11899 = vadd.f32 %v11489, %v11765
        %v11900 = vadd.f32 %v11560, %v11769
        %v11901 = vadd.f32 %v11562, %v11773
        %v11902 = vadd.f32 %v11633, %v11777
        %v11903 = vadd.f32 %v11635, %v11781
        %v11904 = vadd.f32 %v11701, %v11785
        %v11905 = vadd.f32 %v11128, %v11721
        %v11906 = vadd.f32 %v11130, %v11725
        %v11907 = vadd.f32 %v11201, %v11729
        %v11908 = vadd.f32 %v11203, %v11733
        %v11909 = vadd.f32 %v11274, %v11737
        %v11910 = vadd.f32 %v11276, %v11741
        %v11911 = vadd.f32 %v11347, %v11745
        %v11912 = vadd.f32 %v11349, %v11749
        %v11913 = vadd.f32 %v11420, %v11753
        %v11914 = vadd.f32 %v11422, %v11757
        %v11915 = vadd.f32 %v11493, %v11761
        %v11916 = vadd.f32 %v11495, %v11765
        %v11917 = vadd.f32 %v11566, %v11769
        %v11918 = vadd.f32 %v11568, %v11773
        %v11919 = vadd.f32 %v11639, %v11777
        %v11920 = vadd.f32 %v11641, %v11781
        %v11921 = vadd.f32 %v11706, %v11785
        %v11922 = vadd.f32 %v11132, %v11721
        %v11923 = vadd.f32 %v11134, %v11725
        %v11924 = vadd.f32 %v11205, %v11729
        %v11925 = vadd.f32 %v11207, %v11733
        %v11926 = vadd.f32 %v11278, %v11737
        %v11927 = vadd.f32 %v11280, %v11741
        %v11928 = vadd.f32 %v11351, %v11745
        %v11929 = vadd.f32 %v11353, %v11749
        %v11930 = vadd.f32 %v11424, %v11753
        %v11931 = vadd.f32 %v11426, %v11757
        %v11932 = vadd.f32 %v11497, %v11761
        %v11933 = vadd.f32 %v11499, %v11765
        %v11934 = vadd.f32 %v11570, %v11769
        %v11935 = vadd.f32 %v11572, %v11773
        %v11936 = vadd.f32 %v11643, %v11777
        %v11937 = vadd.f32 %v11645, %v11781
        %v11938 = vadd.f32 %v11709, %v11785
        %v11939 = vmul.f32 %v11803, 0.2
        %v11940 = vmul.f32 %v11804, 0.2
        %v11941 = vmul.f32 %v11805, 0.2
        %v11942 = vmul.f32 %v11806, 0.2
        %v11943 = vmul.f32 %v11807, 0.2
        %v11944 = vmul.f32 %v11808, 0.2
        %v11945 = vmul.f32 %v11809, 0.2
        %v11946 = vmul.f32 %v11810, 0.2
        %v11947 = vmul.f32 %v11811, 0.2
        %v11948 = vmul.f32 %v11812, 0.2
        %v11949 = vmul.f32 %v11813, 0.2
        %v11950 = vmul.f32 %v11814, 0.2
        %v11951 = vmul.f32 %v11815, 0.2
        %v11952 = vmul.f32 %v11816, 0.2
        %v11953 = vmul.f32 %v11817, 0.2
        %v11954 = vmul.f32 %v11818, 0.2
        %v11955 = vmul.f32 %v11819, 0.2
        %v11956 = vmul.f32 %v11820, 0.2
        %v11957 = vmul.f32 %v11821, 0.2
        %v11958 = vmul.f32 %v11822, 0.2
        %v11959 = vmul.f32 %v11823, 0.2
        %v11960 = vmul.f32 %v11824, 0.2
        %v11961 = vmul.f32 %v11825, 0.2
        %v11962 = vmul.f32 %v11826, 0.2
        %v11963 = vmul.f32 %v11827, 0.2
        %v11964 = vmul.f32 %v11828, 0.2
        %v11965 = vmul.f32 %v11829, 0.2
        %v11966 = vmul.f32 %v11830, 0.2
        %v11967 = vmul.f32 %v11831, 0.2
        %v11968 = vmul.f32 %v11832, 0.2
        %v11969 = vmul.f32 %v11833, 0.2
        %v11970 = vmul.f32 %v11834, 0.2
        %v11971 = vmul.f32 %v11835, 0.2
        %v11972 = vmul.f32 %v11836, 0.2
        %v11973 = vmul.f32 %v11837, 0.2
        %v11974 = vmul.f32 %v11838, 0.2
        %v11975 = vmul.f32 %v11839, 0.2
        %v11976 = vmul.f32 %v11840, 0.2
        %v11977 = vmul.f32 %v11841, 0.2
        %v11978 = vmul.f32 %v11842, 0.2
        %v11979 = vmul.f32 %v11843, 0.2
        %v11980 = vmul.f32 %v11844, 0.2
        %v11981 = vmul.f32 %v11845, 0.2
        %v11982 = vmul.f32 %v11846, 0.2
        %v11983 = vmul.f32 %v11847, 0.2
        %v11984 = vmul.f32 %v11848, 0.2
        %v11985 = vmul.f32 %v11849, 0.2
        %v11986 = vmul.f32 %v11850, 0.2
        %v11987 = vmul.f32 %v11851, 0.2
        %v11988 = vmul.f32 %v11852, 0.2
        %v11989 = vmul.f32 %v11853, 0.2
        %v11990 = vmul.f32 %v11854, 0.2
        %v11991 = vmul.f32 %v11855, 0.2
        %v11992 = vmul.f32 %v11856, 0.2
        %v11993 = vmul.f32 %v11857, 0.2
        %v11994 = vmul.f32 %v11858, 0.2
        %v11995 = vmul.f32 %v11859, 0.2
        %v11996 = vmul.f32 %v11860, 0.2
        %v11997 = vmul.f32 %v11861, 0.2
        %v11998 = vmul.f32 %v11862, 0.2
        %v11999 = vmul.f32 %v11863, 0.2
        %v12000 = vmul.f32 %v11864, 0.2
        %v12001 = vmul.f32 %v11865, 0.2
        %v12002 = vmul.f32 %v11866, 0.2
        %v12003 = vmul.f32 %v11867, 0.2
        %v12004 = vmul.f32 %v11868, 0.2
        %v12005 = vmul.f32 %v11869, 0.2
        %v12006 = vmul.f32 %v11870, 0.2
        %v12007 = vmul.f32 %v11871, 0.2
        %v12008 = vmul.f32 %v11872, 0.2
        %v12009 = vmul.f32 %v11873, 0.2
        %v12010 = vmul.f32 %v11874, 0.2
        %v12011 = vmul.f32 %v11875, 0.2
        %v12012 = vmul.f32 %v11876, 0.2
        %v12013 = vmul.f32 %v11877, 0.2
        %v12014 = vmul.f32 %v11878, 0.2
        %v12015 = vmul.f32 %v11879, 0.2
        %v12016 = vmul.f32 %v11880, 0.2
        %v12017 = vmul.f32 %v11881, 0.2
        %v12018 = vmul.f32 %v11882, 0.2
        %v12019 = vmul.f32 %v11883, 0.2
        %v12020 = vmul.f32 %v11884, 0.2
        %v12021 = vmul.f32 %v11885, 0.2
        %v12022 = vmul.f32 %v11886, 0.2
        %v12023 = vmul.f32 %v11887, 0.2
        %v12024 = vmul.f32 %v11888, 0.2
        %v12025 = vmul.f32 %v11889, 0.2
        %v12026 = vmul.f32 %v11890, 0.2
        %v12027 = vmul.f32 %v11891, 0.2
        %v12028 = vmul.f32 %v11892, 0.2
        %v12029 = vmul.f32 %v11893, 0.2
        %v12030 = vmul.f32 %v11894, 0.2
        %v12031 = vmul.f32 %v11895, 0.2
        %v12032 = vmul.f32 %v11896, 0.2
        %v12033 = vmul.f32 %v11897, 0.2
        %v12034 = vmul.f32 %v11898, 0.2
        %v12035 = vmul.f32 %v11899, 0.2
        %v12036 = vmul.f32 %v11900, 0.2
        %v12037 = vmul.f32 %v11901, 0.2
        %v12038 = vmul.f32 %v11902, 0.2
        %v12039 = vmul.f32 %v11903, 0.2
        %v12040 = vmul.f32 %v11904, 0.2
        %v12041 = vmul.f32 %v11905, 0.2
        %v12042 = vmul.f32 %v11906, 0.2
        %v12043 = vmul.f32 %v11907, 0.2
        %v12044 = vmul.f32 %v11908, 0.2
        %v12045 = vmul.f32 %v11909, 0.2
        %v12046 = vmul.f32 %v11910, 0.2
        %v12047 = vmul.f32 %v11911, 0.2
        %v12048 = vmul.f32 %v11912, 0.2
        %v12049 = vmul.f32 %v11913, 0.2
        %v12050 = vmul.f32 %v11914, 0.2
        %v12051 = vmul.f32 %v11915, 0.2
        %v12052 = vmul.f32 %v11916, 0.2
        %v12053 = vmul.f32 %v11917, 0.2
        %v12054 = vmul.f32 %v11918, 0.2
        %v12055 = vmul.f32 %v11919, 0.2
        %v12056 = vmul.f32 %v11920, 0.2
        %v12057 = vmul.f32 %v11921, 0.2
        %v12058 = vmul.f32 %v11922, 0.2
        %v12059 = vmul.f32 %v11923, 0.2
        %v12060 = vmul.f32 %v11924, 0.2
        %v12061 = vmul.f32 %v11925, 0.2
        %v12062 = vmul.f32 %v11926, 0.2
        %v12063 = vmul.f32 %v11927, 0.2
        %v12064 = vmul.f32 %v11928, 0.2
        %v12065 = vmul.f32 %v11929, 0.2
        %v12066 = vmul.f32 %v11930, 0.2
        %v12067 = vmul.f32 %v11931, 0.2
        %v12068 = vmul.f32 %v11932, 0.2
        %v12069 = vmul.f32 %v11933, 0.2
        %v12070 = vmul.f32 %v11934, 0.2
        %v12071 = vmul.f32 %v11935, 0.2
        %v12072 = vmul.f32 %v11936, 0.2
        %v12073 = vmul.f32 %v11937, 0.2
        %v12074 = vmul.f32 %v11938, 0.2
        %v12075 = vadd.f32 %v11939, %v548
        %v12076 = vadd.f32 %v11940, %v549
        %v12077 = vadd.f32 %v11941, %v550
        %v12078 = vadd.f32 %v11942, %v551
        %v12079 = vadd.f32 %v11943, %v552
        %v12080 = vadd.f32 %v11944, %v553
        %v12081 = vadd.f32 %v11945, %v554
        %v12082 = vadd.f32 %v11946, %v555
        %v12083 = vadd.f32 %v11947, %v556
        %v12084 = vadd.f32 %v11948, %v557
        %v12085 = vadd.f32 %v11949, %v558
        %v12086 = vadd.f32 %v11950, %v559
        %v12087 = vadd.f32 %v11951, %v560
        %v12088 = vadd.f32 %v11952, %v561
        %v12089 = vadd.f32 %v11953, %v562
        %v12090 = vadd.f32 %v11954, %v563
        %v12091 = vadd.f32 %v11955, %v564
        %v12092 = vadd.f32 %v11956, %v565
        %v12093 = vadd.f32 %v11957, %v566
        %v12094 = vadd.f32 %v11958, %v567
        %v12095 = vadd.f32 %v11959, %v568
        %v12096 = vadd.f32 %v11960, %v569
        %v12097 = vadd.f32 %v11961, %v570
        %v12098 = vadd.f32 %v11962, %v571
        %v12099 = vadd.f32 %v11963, %v572
        %v12100 = vadd.f32 %v11964, %v573
        %v12101 = vadd.f32 %v11965, %v574
        %v12102 = vadd.f32 %v11966, %v575
        %v12103 = vadd.f32 %v11967, %v576
        %v12104 = vadd.f32 %v11968, %v577
        %v12105 = vadd.f32 %v11969, %v578
        %v12106 = vadd.f32 %v11970, %v579
        %v12107 = vadd.f32 %v11971, %v580
        %v12108 = vadd.f32 %v11972, %v581
        %v12109 = vadd.f32 %v11973, %v582
        %v12110 = vadd.f32 %v11974, %v583
        %v12111 = vadd.f32 %v11975, %v584
        %v12112 = vadd.f32 %v11976, %v585
        %v12113 = vadd.f32 %v11977, %v586
        %v12114 = vadd.f32 %v11978, %v587
        %v12115 = vadd.f32 %v11979, %v588
        %v12116 = vadd.f32 %v11980, %v589
        %v12117 = vadd.f32 %v11981, %v590
        %v12118 = vadd.f32 %v11982, %v591
        %v12119 = vadd.f32 %v11983, %v592
        %v12120 = vadd.f32 %v11984, %v593
        %v12121 = vadd.f32 %v11985, %v594
        %v12122 = vadd.f32 %v11986, %v595
        %v12123 = vadd.f32 %v11987, %v596
        %v12124 = vadd.f32 %v11988, %v597
        %v12125 = vadd.f32 %v11989, %v598
        %v12126 = vadd.f32 %v11990, %v599
        %v12127 = vadd.f32 %v11991, %v600
        %v12128 = vadd.f32 %v11992, %v601
        %v12129 = vadd.f32 %v11993, %v602
        %v12130 = vadd.f32 %v11994, %v603
        %v12131 = vadd.f32 %v11995, %v604
        %v12132 = vadd.f32 %v11996, %v605
        %v12133 = vadd.f32 %v11997, %v606
        %v12134 = vadd.f32 %v11998, %v607
        %v12135 = vadd.f32 %v11999, %v608
        %v12136 = vadd.f32 %v12000, %v609
        %v12137 = vadd.f32 %v12001, %v610
        %v12138 = vadd.f32 %v12002, %v611
        %v12139 = vadd.f32 %v12003, %v612
        %v12140 = vadd.f32 %v12004, %v613
        %v12141 = vadd.f32 %v12005, %v614
        %v12142 = vadd.f32 %v12006, %v615
        %v12143 = vadd.f32 %v12007, %v616
        %v12144 = vadd.f32 %v12008, %v617
        %v12145 = vadd.f32 %v12009, %v618
        %v12146 = vadd.f32 %v12010, %v619
        %v12147 = vadd.f32 %v12011, %v620
        %v12148 = vadd.f32 %v12012, %v621
        %v12149 = vadd.f32 %v12013, %v622
        %v12150 = vadd.f32 %v12014, %v623
        %v12151 = vadd.f32 %v12015, %v624
        %v12152 = vadd.f32 %v12016, %v625
        %v12153 = vadd.f32 %v12017, %v626
        %v12154 = vadd.f32 %v12018, %v627
        %v12155 = vadd.f32 %v12019, %v628
        %v12156 = vadd.f32 %v12020, %v629
        %v12157 = vadd.f32 %v12021, %v630
        %v12158 = vadd.f32 %v12022, %v631
        %v12159 = vadd.f32 %v12023, %v632
        %v12160 = vadd.f32 %v12024, %v633
        %v12161 = vadd.f32 %v12025, %v634
        %v12162 = vadd.f32 %v12026, %v635
        %v12163 = vadd.f32 %v12027, %v636
        %v12164 = vadd.f32 %v12028, %v637
        %v12165 = vadd.f32 %v12029, %v638
        %v12166 = vadd.f32 %v12030, %v639
        %v12167 = vadd.f32 %v12031, %v640
        %v12168 = vadd.f32 %v12032, %v641
        %v12169 = vadd.f32 %v12033, %v642
        %v12170 = vadd.f32 %v12034, %v643
        %v12171 = vadd.f32 %v12035, %v644
        %v12172 = vadd.f32 %v12036, %v645
        %v12173 = vadd.f32 %v12037, %v646
        %v12174 = vadd.f32 %v12038, %v647
        %v12175 = vadd.f32 %v12039, %v648
        %v12176 = vadd.f32 %v12040, %v649
        %v12177 = vadd.f32 %v12041, %v650
        %v12178 = vadd.f32 %v12042, %v651
        %v12179 = vadd.f32 %v12043, %v652
        %v12180 = vadd.f32 %v12044, %v653
        %v12181 = vadd.f32 %v12045, %v654
        %v12182 = vadd.f32 %v12046, %v655
        %v12183 = vadd.f32 %v12047, %v656
        %v12184 = vadd.f32 %v12048, %v657
        %v12185 = vadd.f32 %v12049, %v658
        %v12186 = vadd.f32 %v12050, %v659
        %v12187 = vadd.f32 %v12051, %v660
        %v12188 = vadd.f32 %v12052, %v661
        %v12189 = vadd.f32 %v12053, %v662
        %v12190 = vadd.f32 %v12054, %v663
        %v12191 = vadd.f32 %v12055, %v664
        %v12192 = vadd.f32 %v12056, %v665
        %v12193 = vadd.f32 %v12057, %v666
        %v12194 = vadd.f32 %v12058, %v667
        %v12195 = vadd.f32 %v12059, %v668
        %v12196 = vadd.f32 %v12060, %v669
        %v12197 = vadd.f32 %v12061, %v670
        %v12198 = vadd.f32 %v12062, %v671
        %v12199 = vadd.f32 %v12063, %v672
        %v12200 = vadd.f32 %v12064, %v673
        %v12201 = vadd.f32 %v12065, %v674
        %v12202 = vadd.f32 %v12066, %v675
        %v12203 = vadd.f32 %v12067, %v676
        %v12204 = vadd.f32 %v12068, %v677
        %v12205 = vadd.f32 %v12069, %v678
        %v12206 = vadd.f32 %v12070, %v679
        %v12207 = vadd.f32 %v12071, %v680
        %v12208 = vadd.f32 %v12072, %v681
        %v12209 = vadd.f32 %v12073, %v682
        %v12210 = vadd.f32 %v12074, %v683
        %v12211 = vmax.f32 %v12075, 0.0
        %v12212 = vmax.f32 %v12076, 0.0
        %v12213 = vmax.f32 %v12077, 0.0
        %v12214 = vmax.f32 %v12078, 0.0
        %v12215 = vmax.f32 %v12079, 0.0
        %v12216 = vmax.f32 %v12080, 0.0
        %v12217 = vmax.f32 %v12081, 0.0
        %v12218 = vmax.f32 %v12082, 0.0
        %v12219 = vmax.f32 %v12083, 0.0
        %v12220 = vmax.f32 %v12084, 0.0
        %v12221 = vmax.f32 %v12085, 0.0
        %v12222 = vmax.f32 %v12086, 0.0
        %v12223 = vmax.f32 %v12087, 0.0
        %v12224 = vmax.f32 %v12088, 0.0
        %v12225 = vmax.f32 %v12089, 0.0
        %v12226 = vmax.f32 %v12090, 0.0
        %v12227 = vmax.f32 %v12091, 0.0
        %v12228 = vmax.f32 %v12092, 0.0
        %v12229 = vmax.f32 %v12093, 0.0
        %v12230 = vmax.f32 %v12094, 0.0
        %v12231 = vmax.f32 %v12095, 0.0
        %v12232 = vmax.f32 %v12096, 0.0
        %v12233 = vmax.f32 %v12097, 0.0
        %v12234 = vmax.f32 %v12098, 0.0
        %v12235 = vmax.f32 %v12099, 0.0
        %v12236 = vmax.f32 %v12100, 0.0
        %v12237 = vmax.f32 %v12101, 0.0
        %v12238 = vmax.f32 %v12102, 0.0
        %v12239 = vmax.f32 %v12103, 0.0
        %v12240 = vmax.f32 %v12104, 0.0
        %v12241 = vmax.f32 %v12105, 0.0
        %v12242 = vmax.f32 %v12106, 0.0
        %v12243 = vmax.f32 %v12107, 0.0
        %v12244 = vmax.f32 %v12108, 0.0
        %v12245 = vmax.f32 %v12109, 0.0
        %v12246 = vmax.f32 %v12110, 0.0
        %v12247 = vmax.f32 %v12111, 0.0
        %v12248 = vmax.f32 %v12112, 0.0
        %v12249 = vmax.f32 %v12113, 0.0
        %v12250 = vmax.f32 %v12114, 0.0
        %v12251 = vmax.f32 %v12115, 0.0
        %v12252 = vmax.f32 %v12116, 0.0
        %v12253 = vmax.f32 %v12117, 0.0
        %v12254 = vmax.f32 %v12118, 0.0
        %v12255 = vmax.f32 %v12119, 0.0
        %v12256 = vmax.f32 %v12120, 0.0
        %v12257 = vmax.f32 %v12121, 0.0
        %v12258 = vmax.f32 %v12122, 0.0
        %v12259 = vmax.f32 %v12123, 0.0
        %v12260 = vmax.f32 %v12124, 0.0
        %v12261 = vmax.f32 %v12125, 0.0
        %v12262 = vmax.f32 %v12126, 0.0
        %v12263 = vmax.f32 %v12127, 0.0
        %v12264 = vmax.f32 %v12128, 0.0
        %v12265 = vmax.f32 %v12129, 0.0
        %v12266 = vmax.f32 %v12130, 0.0
        %v12267 = vmax.f32 %v12131, 0.0
        %v12268 = vmax.f32 %v12132, 0.0
        %v12269 = vmax.f32 %v12133, 0.0
        %v12270 = vmax.f32 %v12134, 0.0
        %v12271 = vmax.f32 %v12135, 0.0
        %v12272 = vmax.f32 %v12136, 0.0
        %v12273 = vmax.f32 %v12137, 0.0
        %v12274 = vmax.f32 %v12138, 0.0
        %v12275 = vmax.f32 %v12139, 0.0
        %v12276 = vmax.f32 %v12140, 0.0
        %v12277 = vmax.f32 %v12141, 0.0
        %v12278 = vmax.f32 %v12142, 0.0
        %v12279 = vmax.f32 %v12143, 0.0
        %v12280 = vmax.f32 %v12144, 0.0
        %v12281 = vmax.f32 %v12145, 0.0
        %v12282 = vmax.f32 %v12146, 0.0
        %v12283 = vmax.f32 %v12147, 0.0
        %v12284 = vmax.f32 %v12148, 0.0
        %v12285 = vmax.f32 %v12149, 0.0
        %v12286 = vmax.f32 %v12150, 0.0
        %v12287 = vmax.f32 %v12151, 0.0
        %v12288 = vmax.f32 %v12152, 0.0
        %v12289 = vmax.f32 %v12153, 0.0
        %v12290 = vmax.f32 %v12154, 0.0
        %v12291 = vmax.f32 %v12155, 0.0
        %v12292 = vmax.f32 %v12156, 0.0
        %v12293 = vmax.f32 %v12157, 0.0
        %v12294 = vmax.f32 %v12158, 0.0
        %v12295 = vmax.f32 %v12159, 0.0
        %v12296 = vmax.f32 %v12160, 0.0
        %v12297 = vmax.f32 %v12161, 0.0
        %v12298 = vmax.f32 %v12162, 0.0
        %v12299 = vmax.f32 %v12163, 0.0
        %v12300 = vmax.f32 %v12164, 0.0
        %v12301 = vmax.f32 %v12165, 0.0
        %v12302 = vmax.f32 %v12166, 0.0
        %v12303 = vmax.f32 %v12167, 0.0
        %v12304 = vmax.f32 %v12168, 0.0
        %v12305 = vmax.f32 %v12169, 0.0
        %v12306 = vmax.f32 %v12170, 0.0
        %v12307 = vmax.f32 %v12171, 0.0
        %v12308 = vmax.f32 %v12172, 0.0
        %v12309 = vmax.f32 %v12173, 0.0
        %v12310 = vmax.f32 %v12174, 0.0
        %v12311 = vmax.f32 %v12175, 0.0
        %v12312 = vmax.f32 %v12176, 0.0
        %v12313 = vmax.f32 %v12177, 0.0
        %v12314 = vmax.f32 %v12178, 0.0
        %v12315 = vmax.f32 %v12179, 0.0
        %v12316 = vmax.f32 %v12180, 0.0
        %v12317 = vmax.f32 %v12181, 0.0
        %v12318 = vmax.f32 %v12182, 0.0
        %v12319 = vmax.f32 %v12183, 0.0
        %v12320 = vmax.f32 %v12184, 0.0
        %v12321 = vmax.f32 %v12185, 0.0
        %v12322 = vmax.f32 %v12186, 0.0
        %v12323 = vmax.f32 %v12187, 0.0
        %v12324 = vmax.f32 %v12188, 0.0
        %v12325 = vmax.f32 %v12189, 0.0
        %v12326 = vmax.f32 %v12190, 0.0
        %v12327 = vmax.f32 %v12191, 0.0
        %v12328 = vmax.f32 %v12192, 0.0
        %v12329 = vmax.f32 %v12193, 0.0
        %v12330 = vmax.f32 %v12194, 0.0
        %v12331 = vmax.f32 %v12195, 0.0
        %v12332 = vmax.f32 %v12196, 0.0
        %v12333 = vmax.f32 %v12197, 0.0
        %v12334 = vmax.f32 %v12198, 0.0
        %v12335 = vmax.f32 %v12199, 0.0
        %v12336 = vmax.f32 %v12200, 0.0
        %v12337 = vmax.f32 %v12201, 0.0
        %v12338 = vmax.f32 %v12202, 0.0
        %v12339 = vmax.f32 %v12203, 0.0
        %v12340 = vmax.f32 %v12204, 0.0
        %v12341 = vmax.f32 %v12205, 0.0
        %v12342 = vmax.f32 %v12206, 0.0
        %v12343 = vmax.f32 %v12207, 0.0
        %v12344 = vmax.f32 %v12208, 0.0
        %v12345 = vmax.f32 %v12209, 0.0
        %v12346 = vmax.f32 %v12210, 0.0
        %12347 = vst [vmem:[%s541] sm:$0xff] %v12211
        %12348 = vst [vmem:[%s541 + $0x8] sm:$0xff] %v12212
        %12349 = vst [vmem:[%s541 + $0x10] sm:$0xff] %v12213
        %12350 = vst [vmem:[%s541 + $0x18] sm:$0xff] %v12214
        %12351 = vst [vmem:[%s541 + $0x20] sm:$0xff] %v12215
        %12352 = vst [vmem:[%s541 + $0x28] sm:$0xff] %v12216
        %12353 = vst [vmem:[%s541 + $0x30] sm:$0xff] %v12217
        %12354 = vst [vmem:[%s541 + $0x38] sm:$0xff] %v12218
        %12355 = vst [vmem:[%s541 + $0x40] sm:$0xff] %v12219
        %12356 = vst [vmem:[%s541 + $0x48] sm:$0xff] %v12220
        %12357 = vst [vmem:[%s541 + $0x50] sm:$0xff] %v12221
        %12358 = vst [vmem:[%s541 + $0x58] sm:$0xff] %v12222
        %12359 = vst [vmem:[%s541 + $0x60] sm:$0xff] %v12223
        %12360 = vst [vmem:[%s541 + $0x68] sm:$0xff] %v12224
        %12361 = vst [vmem:[%s541 + $0x70] sm:$0xff] %v12225
        %12362 = vst [vmem:[%s541 + $0x78] sm:$0xff] %v12226
        %12363 = vst.msk [vmem:[%s541 + $0x80] sm:$0xff] %vm2312, %v12227
        %12364 = vst [vmem:[%s541 + $0x88] sm:$0xff] %v12228
        %12365 = vst [vmem:[%s541 + $0x90] sm:$0xff] %v12229
        %12366 = vst [vmem:[%s541 + $0x98] sm:$0xff] %v12230
        %12367 = vst [vmem:[%s541 + $0xa0] sm:$0xff] %v12231
        %12368 = vst [vmem:[%s541 + $0xa8] sm:$0xff] %v12232
        %12369 = vst [vmem:[%s541 + $0xb0] sm:$0xff] %v12233
        %12370 = vst [vmem:[%s541 + $0xb8] sm:$0xff] %v12234
        %12371 = vst [vmem:[%s541 + $0xc0] sm:$0xff] %v12235
        %12372 = vst [vmem:[%s541 + $0xc8] sm:$0xff] %v12236
        %12373 = vst [vmem:[%s541 + $0xd0] sm:$0xff] %v12237
        %12374 = vst [vmem:[%s541 + $0xd8] sm:$0xff] %v12238
        %12375 = vst [vmem:[%s541 + $0xe0] sm:$0xff] %v12239
        %12376 = vst [vmem:[%s541 + $0xe8] sm:$0xff] %v12240
        %12377 = vst [vmem:[%s541 + $0xf0] sm:$0xff] %v12241
        %12378 = vst [vmem:[%s541 + $0xf8] sm:$0xff] %v12242
        %12379 = vst [vmem:[%s541 + $0x100] sm:$0xff] %v12243
        %12380 = vst.msk [vmem:[%s541 + $0x108] sm:$0xff] %vm2312, %v12244
        %12381 = vst [vmem:[%s541 + $0x110] sm:$0xff] %v12245
        %12382 = vst [vmem:[%s541 + $0x118] sm:$0xff] %v12246
        %12383 = vst [vmem:[%s541 + $0x120] sm:$0xff] %v12247
        %12384 = vst [vmem:[%s541 + $0x128] sm:$0xff] %v12248
        %12385 = vst [vmem:[%s541 + $0x130] sm:$0xff] %v12249
        %12386 = vst [vmem:[%s541 + $0x138] sm:$0xff] %v12250
        %12387 = vst [vmem:[%s541 + $0x140] sm:$0xff] %v12251
        %12388 = vst [vmem:[%s541 + $0x148] sm:$0xff] %v12252
        %12389 = vst [vmem:[%s541 + $0x150] sm:$0xff] %v12253
        %12390 = vst [vmem:[%s541 + $0x158] sm:$0xff] %v12254
        %12391 = vst [vmem:[%s541 + $0x160] sm:$0xff] %v12255
        %12392 = vst [vmem:[%s541 + $0x168] sm:$0xff] %v12256
        %12393 = vst [vmem:[%s541 + $0x170] sm:$0xff] %v12257
        %12394 = vst [vmem:[%s541 + $0x178] sm:$0xff] %v12258
        %12395 = vst [vmem:[%s541 + $0x180] sm:$0xff] %v12259
        %12396 = vst [vmem:[%s541 + $0x188] sm:$0xff] %v12260
        %12397 = vst.msk [vmem:[%s541 + $0x190] sm:$0xff] %vm2312, %v12261
        %12398 = vst [vmem:[%s541 + $0x198] sm:$0xff] %v12262
        %12399 = vst [vmem:[%s541 + $0x1a0] sm:$0xff] %v12263
        %12400 = vst [vmem:[%s541 + $0x1a8] sm:$0xff] %v12264
        %12401 = vst [vmem:[%s541 + $0x1b0] sm:$0xff] %v12265
        %12402 = vst [vmem:[%s541 + $0x1b8] sm:$0xff] %v12266
        %12403 = vst [vmem:[%s541 + $0x1c0] sm:$0xff] %v12267
        %12404 = vst [vmem:[%s541 + $0x1c8] sm:$0xff] %v12268
        %12405 = vst [vmem:[%s541 + $0x1d0] sm:$0xff] %v12269
        %12406 = vst [vmem:[%s541 + $0x1d8] sm:$0xff] %v12270
        %12407 = vst [vmem:[%s541 + $0x1e0] sm:$0xff] %v12271
        %12408 = vst [vmem:[%s541 + $0x1e8] sm:$0xff] %v12272
        %12409 = vst [vmem:[%s541 + $0x1f0] sm:$0xff] %v12273
        %12410 = vst [vmem:[%s541 + $0x1f8] sm:$0xff] %v12274
        %12411 = vst [vmem:[%s541 + $0x200] sm:$0xff] %v12275
        %12412 = vst [vmem:[%s541 + $0x208] sm:$0xff] %v12276
        %12413 = vst [vmem:[%s541 + $0x210] sm:$0xff] %v12277
        %12414 = vst.msk [vmem:[%s541 + $0x218] sm:$0xff] %vm2312, %v12278
        %12415 = vst [vmem:[%s541 + $0x220] sm:$0xff] %v12279
        %12416 = vst [vmem:[%s541 + $0x228] sm:$0xff] %v12280
        %12417 = vst [vmem:[%s541 + $0x230] sm:$0xff] %v12281
        %12418 = vst [vmem:[%s541 + $0x238] sm:$0xff] %v12282
        %12419 = vst [vmem:[%s541 + $0x240] sm:$0xff] %v12283
        %12420 = vst [vmem:[%s541 + $0x248] sm:$0xff] %v12284
        %12421 = vst [vmem:[%s541 + $0x250] sm:$0xff] %v12285
        %12422 = vst [vmem:[%s541 + $0x258] sm:$0xff] %v12286
        %12423 = vst [vmem:[%s541 + $0x260] sm:$0xff] %v12287
        %12424 = vst [vmem:[%s541 + $0x268] sm:$0xff] %v12288
        %12425 = vst [vmem:[%s541 + $0x270] sm:$0xff] %v12289
        %12426 = vst [vmem:[%s541 + $0x278] sm:$0xff] %v12290
        %12427 = vst [vmem:[%s541 + $0x280] sm:$0xff] %v12291
        %12428 = vst [vmem:[%s541 + $0x288] sm:$0xff] %v12292
        %12429 = vst [vmem:[%s541 + $0x290] sm:$0xff] %v12293
        %12430 = vst [vmem:[%s541 + $0x298] sm:$0xff] %v12294
        %12431 = vst.msk [vmem:[%s541 + $0x2a0] sm:$0xff] %vm2312, %v12295
        %12432 = vst [vmem:[%s541 + $0x2a8] sm:$0xff] %v12296
        %12433 = vst [vmem:[%s541 + $0x2b0] sm:$0xff] %v12297
        %12434 = vst [vmem:[%s541 + $0x2b8] sm:$0xff] %v12298
        %12435 = vst [vmem:[%s541 + $0x2c0] sm:$0xff] %v12299
        %12436 = vst [vmem:[%s541 + $0x2c8] sm:$0xff] %v12300
        %12437 = vst [vmem:[%s541 + $0x2d0] sm:$0xff] %v12301
        %12438 = vst [vmem:[%s541 + $0x2d8] sm:$0xff] %v12302
        %12439 = vst [vmem:[%s541 + $0x2e0] sm:$0xff] %v12303
        %12440 = vst [vmem:[%s541 + $0x2e8] sm:$0xff] %v12304
        %12441 = vst [vmem:[%s541 + $0x2f0] sm:$0xff] %v12305
        %12442 = vst [vmem:[%s541 + $0x2f8] sm:$0xff] %v12306
        %12443 = vst [vmem:[%s541 + $0x300] sm:$0xff] %v12307
        %12444 = vst [vmem:[%s541 + $0x308] sm:$0xff] %v12308
        %12445 = vst [vmem:[%s541 + $0x310] sm:$0xff] %v12309
        %12446 = vst [vmem:[%s541 + $0x318] sm:$0xff] %v12310
        %12447 = vst [vmem:[%s541 + $0x320] sm:$0xff] %v12311
        %12448 = vst.msk [vmem:[%s541 + $0x328] sm:$0xff] %vm2312, %v12312
        %12449 = vst [vmem:[%s541 + $0x330] sm:$0xff] %v12313
        %12450 = vst [vmem:[%s541 + $0x338] sm:$0xff] %v12314
        %12451 = vst [vmem:[%s541 + $0x340] sm:$0xff] %v12315
        %12452 = vst [vmem:[%s541 + $0x348] sm:$0xff] %v12316
        %12453 = vst [vmem:[%s541 + $0x350] sm:$0xff] %v12317
        %12454 = vst [vmem:[%s541 + $0x358] sm:$0xff] %v12318
        %12455 = vst [vmem:[%s541 + $0x360] sm:$0xff] %v12319
        %12456 = vst [vmem:[%s541 + $0x368] sm:$0xff] %v12320
        %12457 = vst [vmem:[%s541 + $0x370] sm:$0xff] %v12321
        %12458 = vst [vmem:[%s541 + $0x378] sm:$0xff] %v12322
        %12459 = vst [vmem:[%s541 + $0x380] sm:$0xff] %v12323
        %12460 = vst [vmem:[%s541 + $0x388] sm:$0xff] %v12324
        %12461 = vst [vmem:[%s541 + $0x390] sm:$0xff] %v12325
        %12462 = vst [vmem:[%s541 + $0x398] sm:$0xff] %v12326
        %12463 = vst [vmem:[%s541 + $0x3a0] sm:$0xff] %v12327
        %12464 = vst [vmem:[%s541 + $0x3a8] sm:$0xff] %v12328
        %12465 = vst.msk [vmem:[%s541 + $0x3b0] sm:$0xff] %vm2312, %v12329
        %12466 = vst [vmem:[%s541 + $0x3b8] sm:$0xff] %v12330
        %12467 = vst [vmem:[%s541 + $0x3c0] sm:$0xff] %v12331
        %12468 = vst [vmem:[%s541 + $0x3c8] sm:$0xff] %v12332
        %12469 = vst [vmem:[%s541 + $0x3d0] sm:$0xff] %v12333
        %12470 = vst [vmem:[%s541 + $0x3d8] sm:$0xff] %v12334
        %12471 = vst [vmem:[%s541 + $0x3e0] sm:$0xff] %v12335
        %12472 = vst [vmem:[%s541 + $0x3e8] sm:$0xff] %v12336
        %12473 = vst [vmem:[%s541 + $0x3f0] sm:$0xff] %v12337
        %12474 = vst [vmem:[%s541 + $0x3f8] sm:$0xff] %v12338
        %12475 = vst [vmem:[%s541 + $0x400] sm:$0xff] %v12339
        %12476 = vst [vmem:[%s541 + $0x408] sm:$0xff] %v12340
        %12477 = vst [vmem:[%s541 + $0x410] sm:$0xff] %v12341
        %12478 = vst [vmem:[%s541 + $0x418] sm:$0xff] %v12342
        %12479 = vst [vmem:[%s541 + $0x420] sm:$0xff] %v12343
        %12480 = vst [vmem:[%s541 + $0x428] sm:$0xff] %v12344
        %12481 = vst [vmem:[%s541 + $0x430] sm:$0xff] %v12345
        %12482 = vst.msk [vmem:[%s541 + $0x438] sm:$0xff] %vm2312, %v12346
        %s12483 = sand.u32 %s401, 1
        %s12484 = scalar_lea.sflag [#allocation3], %s12483
        %s12485 = sand.u32 %s401, 1
        %s12486 = smul.addr %s12485, 1088
        %s12487 = scalar_lea.vmem [#allocation2], %s12486
        // Predicated region
        $region89: #{block8_forward.1} parent=87 // pred_check
          %p12488 = pneg %p411
        $region90: #{block8_forward.1} parent=87 // pred_check_branch
          %12490 = sbr.rel (%p12488) target = $region92
        $region91: #{block8_forward.1} parent=87 // pred_region
          %s12492 = ssub.s32 17408, 17408
          %12493 = vsyncadd %s12484, %s12492
          %s12494 = smul.addr %s31, 136
          %s12495 = smul.addr %s12494, 128
          %s12496 = scalar_lea.hbm %s17, %s12495
          %s12497 = sshll.u32 %s12487, 4
          %s12498 = int_to_ptr.vmem [resolvable:$true] %s12497
          %12503 = dma.vmem_to_hbm [thread:$0]  %s12498, 17408, %s12496, %s12484, 2176, 2176, 136
        $region92: #{block8_forward.1} parent=87 // pred_fallthru
          _
      $region88: #{block8_forward.1} parent=5 // pred_fallthru
        _
      %p12504 = scmp.le.s32.totalorder 2, %s26
      // Predicated region
      $region93: #{block8_forward.1} parent=5 // pred_check
        %p12505 = pneg %p12504
      $region94: #{block8_forward.1} parent=5 // pred_check_branch
        %12507 = sbr.rel (%p12505) target = $region96
      $region95: #{block8_forward.1} parent=5 // pred_region
        %s12508 = ssub.s32 %s26, 2
        // Predicated region
        $region97: #{block8_forward.1} parent=95 // pred_check
          %p12509 = pneg %p417
        $region98: #{block8_forward.1} parent=95 // pred_check_branch
          %12511 = sbr.rel (%p12509) target = $region100
        $region99: #{block8_forward.1} parent=95 // pred_region
          %s12512 = sand.u32 %s402, 1
          %s12513 = scalar_lea.sflag [#allocation3], %s12512
          %s12514 = sand.u32 %s402, 1
          %s12515 = smul.addr %s12514, 1088
          %s12516 = scalar_lea.vmem [#allocation2], %s12515
          %12517 = dma.done %s12513, 17408
        $region100: #{block8_forward.1} parent=95 // pred_fallthru
          _
      $region96: #{block8_forward.1} parent=5 // pred_fallthru
        _
    $region6: #{block8_forward.1} parent=1 // loop_footer
      %s30 = sadd.s32 1, %s26
    $region7: #{block8_forward.1} parent=1 // loop_footer_branch
      %25 = sbr.rel target = $region3
    $region8: #{block8_forward.1} parent=1 // loop_exit
      _
    %12518 = vsyncpa [#allocation3], 1
    %s12519 = scalar_lea.sflag [#allocation3], 1
    %12520 = vsyncpa %s12519, 1

</llo_original>
